<compile_context>
chip_gen: v5e
topology: v5e:2x2
jax: 0.10.0
libtpu: 0.0.40
codegen_flags: <defaults>
</compile_context>

<pallas_src>
import functools

import jax
import jax.numpy as jnp
from jax.experimental import pallas as pl
from jax.experimental.pallas import tpu as pltpu

EPS = 1e-5


def _gelu(x):
    # TODO(synk): PyTorch F.gelu is erf-exact; tanh approximation used (Mosaic-safe).
    return jax.nn.gelu(x, approximate=True)


# ---------------------------------------------------------------------------
# Kernel 1: fused FA branch.
#   Block = nblk (window, frame) groups of N tokens.  fori_loop over groups:
#   LN -> fused QKV+Sigma dot -> per-head attention (Sigma-scaled sim, diag-masked
#   theta MLP threshold, softmax, mask) -> attn @ v -> to_out (+bias) -> residual.
# ---------------------------------------------------------------------------
def fa_kernel(x_ref, wqkv_ref, bqk_ref, m1_ref, w2a_ref, w2b_ref, wo_ref, bo_ref,
              o_ref, *, nblk, n_tok, heads, dh, rank):
    C = wo_ref.shape[1]
    q_off = 0
    k_off = rank
    v_off = 2 * rank
    sq_off = 2 * rank + C          # per-head Sigma_q columns
    sk_off = sq_off + heads        # per-head Sigma_k columns

    bq = bqk_ref[0]                # SMEM scalars
    bk = bqk_ref[1]

    wqkv = wqkv_ref[...]                                         # (C, 2*rank+C+2*heads)
    m1 = m1_ref[...]                                              # (1, N)
    w2a = w2a_ref[...]                                            # (N, N)
    w2b = w2b_ref[...]                                            # (N, 1)
    bo = bo_ref[...]                                              # (1, C)
    wo_h = [wo_ref[h * dh:(h + 1) * dh, :] for h in range(heads)]  # traced once

    rows_i = jax.lax.broadcasted_iota(jnp.int32, (n_tok, n_tok), 0)
    cols_i = jax.lax.broadcasted_iota(jnp.int32, (n_tok, n_tok), 1)
    diag = rows_i == cols_i
    dn_rhsT = (((1,), (1,)), ((), ()))                            # A @ B^T contraction

    def body(g, carry):
        x_f = x_ref[g]                                            # (N, C)
        mu = jnp.mean(x_f, axis=-1, keepdims=True)
        var = jnp.mean(jnp.square(x_f - mu), axis=-1, keepdims=True)
        xn = (x_f - mu) * jax.lax.rsqrt(var + EPS)

        # One fused projection: q | k | v | sigma_q cols | sigma_k cols.
        qkv = jnp.dot(xn, wqkv, preferred_element_type=jnp.float32)

        out_f = jnp.zeros((n_tok, C), jnp.float32)
        for h in range(heads):
            q_g = qkv[:, q_off + h * dh:q_off + (h + 1) * dh]     # (N, dh)
            k_g = qkv[:, k_off + h * dh:k_off + (h + 1) * dh]
            v_g = qkv[:, v_off + h * dh:v_off + (h + 1) * dh]
            sig_q = qkv[:, sq_off + h:sq_off + h + 1] + bq        # (N, 1)
            sig_k = qkv[:, sk_off + h:sk_off + h + 1] + bk        # (N, 1)

            sim = jax.lax.dot_general(q_g, k_g, dn_rhsT,
                                      preferred_element_type=jnp.float32)       # (N, N)
            # sim * (Sigma_q_i * Sigma_k_j) via pre-scaled operands (no outer product).
            sim_s = jax.lax.dot_general(q_g * sig_q, k_g * sig_k, dn_rhsT,
                                        preferred_element_type=jnp.float32)     # (N, N)

            # theta = mlp2(LeakyReLU(mlp1(sim with zeroed diagonal)))
            sim_nd = jnp.where(diag, 0.0, sim)
            theta_col = jnp.sum(sim_nd * m1, axis=-1, keepdims=True)            # (N, 1)
            hidden = jnp.dot(w2a, theta_col, preferred_element_type=jnp.float32)
            hidden = jnp.where(hidden > 0, hidden, 0.1 * hidden)                # LeakyReLU(0.1)
            theta = jnp.sum(w2b * hidden, axis=0, keepdims=True)                # (1, 1)

            mrow = jnp.max(sim_s, axis=-1, keepdims=True)
            e = jnp.exp(sim_s - mrow)
            inv_l = pl.reciprocal(jnp.sum(e, axis=-1, keepdims=True), approx=True)
            attn = jnp.where(sim_s > theta, e, 0.0) * inv_l       # == softmax * (sim_s>theta)

            o_g = jnp.dot(attn, v_g, preferred_element_type=jnp.float32)        # (N, dh)
            out_f = out_f + jnp.dot(o_g, wo_h[h], preferred_element_type=jnp.float32)

        # to_out bias + residual (pre-norm x) fused into the epilogue.
        o_ref[g] = out_f + bo + x_f
        return carry

    jax.lax.fori_loop(0, nblk, body, 0)


def fa_fused(x_tok, wqkv, bqk, m1, w2a, w2b, wo, bo, *, nblk, n_tok, heads, dh, rank):
    nb_tot, N, C = x_tok.shape
    assert N == n_tok and nb_tot % nblk == 0
    kern = functools.partial(fa_kernel, nblk=nblk, n_tok=n_tok,
                             heads=heads, dh=dh, rank=rank)
    const = lambda i: (0, 0)
    return pl.pallas_call(
        kern,
        out_shape=jax.ShapeDtypeStruct((nb_tot, N, C), jnp.float32),
        grid=(nb_tot // nblk,),
        in_specs=[pl.BlockSpec((nblk, N, C), lambda i: (i, 0, 0)),
                  pl.BlockSpec(wqkv.shape, const),
                  pl.BlockSpec(memory_space=pltpu.MemorySpace.SMEM),   # (2,) bq/bk scalars
                  pl.BlockSpec(m1.shape, const),
                  pl.BlockSpec(w2a.shape, const),
                  pl.BlockSpec(w2b.shape, const),
                  pl.BlockSpec(wo.shape, const),
                  pl.BlockSpec(bo.shape, const)],
        out_specs=pl.BlockSpec((nblk, N, C), lambda i: (i, 0, 0)),
        compiler_params=pltpu.CompilerParams(dimension_semantics=("parallel",)),
    )(x_tok, wqkv, bqk, m1, w2a, w2b, wo, bo)


# ---------------------------------------------------------------------------
# Kernel 2: fused FFN branch, grid (b, z), rolling 3-plane hidden ring in VMEM.
#   Per step z: LN + 1x1x1 conv C->4C + GELU for plane z+1 into the ring,
#   depthwise 3x3x3 (+GELU) over ring planes z-1,z,z+1, 1x1x1 conv 4C->C + residual.
# ---------------------------------------------------------------------------
def ffn_kernel(xr_ref, xnx_ref, w1_ref, wd_ref, w3_ref, o_ref, hp_ref, *, nz):
    z = pl.program_id(1)
    _, _, H, W, C = xr_ref.shape
    C4 = w1_ref.shape[1]

    def ln_w1(xp):                                           # (H, W, C) -> (H, W, C4)
        xf = xp.reshape(H * W, C)
        mu = jnp.mean(xf, axis=-1, keepdims=True)
        var = jnp.mean(jnp.square(xf - mu), axis=-1, keepdims=True)
        xnorm = (xf - mu) * jax.lax.rsqrt(var + EPS)
        h = _gelu(jnp.dot(xnorm, w1_ref[...], preferred_element_type=jnp.float32))
        return h.reshape(H, W, C4)

    zcol = jnp.zeros((H, 1, C4), jnp.float32)
    zrow = jnp.zeros((1, W + 2, C4), jnp.float32)
    zplane = jnp.zeros((H + 2, W + 2, C4), jnp.float32)

    def scatter(slot, hz):
        # Dense interior store; W-halo columns rewritten to zero, H-halo rows untouched.
        hp_ref[slot, 1:H + 1, :, :] = jnp.concatenate([zcol, hz, zcol], axis=1)

    # First frame of this batch element: initialise the ring (halo-only zeroing).
    @pl.when(z == 0)
    def _():
        hp_ref[2] = zplane                         # "plane -1" reads as zero
        hp_ref[0, 0:1, :, :] = zrow                # H-halo rows, zeroed once per b
        hp_ref[0, H + 1:H + 2, :, :] = zrow
        hp_ref[1, 0:1, :, :] = zrow
        hp_ref[1, H + 1:H + 2, :, :] = zrow
        scatter(0, ln_w1(xr_ref[0, 0]))            # hidden plane 0 -> slot 0

    nxt = (z + 1) % 3

    @pl.when(z + 1 < nz)
    def _():
        scatter(nxt, ln_w1(xnx_ref[0, 0]))         # hidden plane z+1 -> slot (z+1)%3

    @pl.when(z + 1 == nz)
    def _():
        hp_ref[nxt] = zplane                       # "plane Bf" reads as zero

    # Depthwise 3x3x3 over ring planes z-1, z, z+1.
    wtaps = [wd_ref[t].reshape(1, 1, C4) for t in range(27)]   # emitted once per trace
    acc = jnp.zeros((H, W, C4), jnp.float32)
    for dz in range(3):
        plane = hp_ref[(z + 2 + dz) % 3]           # plane (z-1+dz), non-negative mod
        for dx in range(3):
            px = plane[:, dx:dx + W, :]            # one W-shift reused across 3 dy taps
            for dy in range(3):
                acc = acc + px[dy:dy + H] * wtaps[dz * 9 + dy * 3 + dx]
    h2 = _gelu(acc)
    y = jnp.dot(h2.reshape(H * W, C4), w3_ref[...], preferred_element_type=jnp.float32)
    o_ref[0, 0] = y.reshape(H, W, C) + xr_ref[0, 0]            # fused residual


def ffn_fused(x_cl, w1_t, wd, w3_t):
    b, Bf, H, W, C = x_cl.shape
    C4 = w1_t.shape[1]
    nz = Bf
    kern = functools.partial(ffn_kernel, nz=nz)
    const2 = lambda bi, zi: (0, 0)

    ring = 3 * (H + 2) * (W + 2) * C4 * 4
    blocks = 3 * 2 * H * W * C * 4                 # xr / xnx / out, double-buffered
    wts = (C * C4 + 27 * C4 + C4 * C) * 4
    need = ring + blocks + wts + (2 << 20)
    vmem_limit = int(min(max(2 * need, 32 << 20), 56 << 20))   # v7x-safe headroom

    return pl.pallas_call(
        kern,
        out_shape=jax.ShapeDtypeStruct((b, Bf, H, W, C), jnp.float32),
        grid=(b, Bf),
        in_specs=[pl.BlockSpec((1, 1, H, W, C), lambda bi, zi: (bi, zi, 0, 0, 0)),
                  pl.BlockSpec((1, 1, H, W, C),
                               lambda bi, zi: (bi, jnp.minimum(zi + 1, nz - 1), 0, 0, 0)),
                  pl.BlockSpec((C, C4), const2),
                  pl.BlockSpec((27, C4), const2),
                  pl.BlockSpec((C4, C), const2)],
        out_specs=pl.BlockSpec((1, 1, H, W, C), lambda bi, zi: (bi, zi, 0, 0, 0)),
        scratch_shapes=[pltpu.VMEM((3, H + 2, W + 2, C4), jnp.float32)],
        compiler_params=pltpu.CompilerParams(
            dimension_semantics=("parallel", "arbitrary"),
            vmem_limit_bytes=vmem_limit),
    )(x_cl, x_cl, w1_t, wd, w3_t)


# ---------------------------------------------------------------------------
# FAB forward (glue: window rearranges / final transpose in plain JAX).
# ---------------------------------------------------------------------------
def fab_forward(x, p, *, window=(8, 8), dim_head=8, sq_dim=16):
    b, C, Bf, H, W = x.shape
    w0, w1 = window
    rank = sq_dim
    heads = sq_dim // dim_head
    assert C // dim_head == heads, "einsum over heads requires heads_qk == heads_v"
    N = w0 * w1
    hb, wbn = H // w0, W // w1
    nb = b * hb * wbn

    x_cl = x.transpose(0, 2, 3, 4, 1)                           # (b, Bf, H, W, C)

    # ----- FA branch (shift=False).  Token layout: (window, frame, b0*b1, C). -----
    xw = x_cl.reshape(b, Bf, hb, w0, wbn, w1, C)
    xw = xw.transpose(0, 2, 4, 1, 3, 5, 6)                      # (b, hb, wb, Bf, b0, b1, C)
    x_tok = xw.reshape(nb * Bf, N, C)

    wq = p['to_qk'][:rank]                                      # (rank, C)
    wk = p['to_qk'][rank:]
    # Sigma_q / Sigma_k folded into the fused projection (one column per head).
    sq_cols = jnp.einsum('chd,d->ch', wq.T.reshape(C, heads, dim_head), p['pc_q_w'][0])
    sk_cols = jnp.einsum('chd,d->ch', wk.T.reshape(C, heads, dim_head), p['pc_k_w'][0])
    wqkv = jnp.concatenate([wq.T, wk.T, p['to_v'].T, sq_cols, sk_cols], axis=1)
    bqk = jnp.concatenate([p['pc_q_b'].reshape(-1), p['pc_k_b'].reshape(-1)])

    # Windows per grid step: keep >=8 steps when possible (>=4 per core on 2-TC chips),
    # cap rows per step, and require wpb | nb.
    wpb = max(1, nb // 8)
    wpb = min(wpb, max(1, 4096 // (Bf * N)))
    while nb % wpb:
        wpb -= 1

    o_tok = fa_fused(x_tok, wqkv, bqk,
                     p['mlp1_w'], p['mlp2_w1'], p['mlp2_w2'].T,
                     p['to_out_w'].T, p['to_out_b'].reshape(1, C),
                     nblk=wpb * Bf, n_tok=N, heads=heads, dh=dim_head, rank=rank)

    x1 = (o_tok.reshape(b, hb, wbn, Bf, w0, w1, C)
               .transpose(0, 3, 1, 4, 2, 5, 6)
               .reshape(b, Bf, H, W, C))                        # FA output + residual

    # ----- FFN branch (hidden never leaves VMEM). -----
    C4 = p['ffn_w1'].shape[0]
    wd = p['ffn_wd'].reshape(C4, 27).T                          # (27, 4C), taps (dz,dy,dx)
    y = ffn_fused(x1, p['ffn_w1'].T, wd, p['ffn_w3'].T)         # + residual fused

    return y.transpose(0, 4, 1, 2, 3)                           # back to (b, C, Bf, H, W)


def init_params(key, dim, sq_dim, dim_head, num_token, mult):
    rank = sq_dim
    ks = jax.random.split(key, 12)
    s = 0.1
    p = {
        'to_qk':    jax.random.normal(ks[0], (2 * rank, dim)) * s,
        'to_v':     jax.random.normal(ks[1], (dim, dim)) * s,
        'to_out_w': jax.random.normal(ks[2], (dim, dim)) * s,
        'to_out_b': jax.random.normal(ks[3], (dim,)) * s,
        'pc_q_w':   jax.random.normal(ks[4], (1, dim_head)) * s,
        'pc_q_b':   jnp.ones((1, 1), jnp.float32),
        'pc_k_w':   jax.random.normal(ks[5], (1, dim_head)) * s,
        'pc_k_b':   jnp.ones((1, 1), jnp.float32),
        'mlp1_w':   jax.random.normal(ks[6], (1, num_token)) * s,
        'mlp2_w1':  jax.random.normal(ks[7], (num_token, num_token)) * s,
        'mlp2_w2':  jax.random.normal(ks[8], (1, num_token)) * s,
        'ffn_w1':   jax.random.normal(ks[9], (dim * mult, dim)) * s,
        'ffn_wd':   jax.random.normal(ks[10], (dim * mult, 1, 3, 3, 3)) * s,
        'ffn_w3':   jax.random.normal(ks[11], (dim, dim * mult)) * s,
    }
    return {k: v.astype(jnp.float32) for k, v in p.items()}


if __name__ == "__main__":
    dim, sq_dim, dim_head, mult = 16, 16, 8, 4
    b, B_frames, H, W = 2, 2, 16, 16          # x: [b, dim, B, H, W]
    window = (8, 8)

    key = jax.random.PRNGKey(0)
    kx, kp = jax.random.split(key)
    x = jax.random.normal(kx, (b, dim, B_frames, H, W), jnp.float32)
    params = init_params(kp, dim, sq_dim, dim_head, window[0] * window[1], mult)

    fwd = jax.jit(functools.partial(fab_forward, window=window,
                                    dim_head=dim_head, sq_dim=sq_dim))
    out = fwd(x, params)
    out = jax.block_until_ready(out)
    assert out.shape == x.shape
    assert bool(jnp.isfinite(out).all())
    print("KERNEL_OK")
</pallas_src>

<mosaic_0001>
module attributes {stable_mosaic.version = 11 : i64} {
  func.func @fa_kernel(%arg0: i32, %arg1: memref<2x64x16xf32, #tpu.memory_space<vmem>>, %arg2: memref<16x52xf32, #tpu.memory_space<vmem>>, %arg3: memref<2xf32, #tpu.memory_space<smem>>, %arg4: memref<1x64xf32, #tpu.memory_space<vmem>>, %arg5: memref<64x64xf32, #tpu.memory_space<vmem>>, %arg6: memref<64x1xf32, #tpu.memory_space<vmem>>, %arg7: memref<16x16xf32, #tpu.memory_space<vmem>>, %arg8: memref<1x16xf32, #tpu.memory_space<vmem>>, %arg9: memref<2x64x16xf32, #tpu.memory_space<vmem>>) attributes {dimension_semantics = [#tpu.dimension_semantics<parallel>], iteration_bounds = array<i64: 8>, scalar_prefetch = 0 : i64, scratch_operands = 0 : i64, tpu.core_type = #tpu.core_type<tc>, window_params = [{transform_indices = @transform_0, window_bounds = array<i64: 2, 64, 16>}, {pipeline_mode = #tpu.pipeline_mode<synchronous>, transform_indices = @transform_1, window_bounds = array<i64: 16, 52>}, {transform_indices = @transform_2, window_bounds = array<i64: 2>}, {pipeline_mode = #tpu.pipeline_mode<synchronous>, transform_indices = @transform_3, window_bounds = array<i64: 1, 64>}, {pipeline_mode = #tpu.pipeline_mode<synchronous>, transform_indices = @transform_4, window_bounds = array<i64: 64, 64>}, {pipeline_mode = #tpu.pipeline_mode<synchronous>, transform_indices = @transform_5, window_bounds = array<i64: 64, 1>}, {pipeline_mode = #tpu.pipeline_mode<synchronous>, transform_indices = @transform_6, window_bounds = array<i64: 16, 16>}, {pipeline_mode = #tpu.pipeline_mode<synchronous>, transform_indices = @transform_7, window_bounds = array<i64: 1, 16>}, {transform_indices = @transform_8, window_bounds = array<i64: 2, 64, 16>}]} {
    %c0 = arith.constant 0 : index
    %0 = memref.load %arg3[%c0] : memref<2xf32, #tpu.memory_space<smem>>
    %c1 = arith.constant 1 : index
    %1 = memref.load %arg3[%c1] : memref<2xf32, #tpu.memory_space<smem>>
    %c0_0 = arith.constant 0 : index
    %c0_1 = arith.constant 0 : index
    %2 = vector.load %arg2[%c0_0, %c0_1] : memref<16x52xf32, #tpu.memory_space<vmem>>, vector<16x52xf32>
    %c0_2 = arith.constant 0 : index
    %c0_3 = arith.constant 0 : index
    %3 = vector.load %arg4[%c0_2, %c0_3] : memref<1x64xf32, #tpu.memory_space<vmem>>, vector<1x64xf32>
    %c0_4 = arith.constant 0 : index
    %c0_5 = arith.constant 0 : index
    %4 = vector.load %arg5[%c0_4, %c0_5] : memref<64x64xf32, #tpu.memory_space<vmem>>, vector<64x64xf32>
    %c0_6 = arith.constant 0 : index
    %c0_7 = arith.constant 0 : index
    %5 = vector.load %arg6[%c0_6, %c0_7] : memref<64x1xf32, #tpu.memory_space<vmem>>, vector<64x1xf32>
    %c0_8 = arith.constant 0 : index
    %c0_9 = arith.constant 0 : index
    %6 = vector.load %arg8[%c0_8, %c0_9] : memref<1x16xf32, #tpu.memory_space<vmem>>, vector<1x16xf32>
    %c0_10 = arith.constant 0 : index
    %c0_11 = arith.constant 0 : index
    %7 = vector.load %arg7[%c0_10, %c0_11] : memref<16x16xf32, #tpu.memory_space<vmem>>, vector<8x16xf32>
    %c8 = arith.constant 8 : index
    %c0_12 = arith.constant 0 : index
    %8 = vector.load %arg7[%c8, %c0_12] : memref<16x16xf32, #tpu.memory_space<vmem>>, vector<8x16xf32>
    %9 = tpu.iota {dimensions = array<i32: 0>} : vector<64x64xi32>
    %10 = tpu.iota {dimensions = array<i32: 1>} : vector<64x64xi32>
    %11 = arith.cmpi eq, %9, %10 : vector<64x64xi32>
    %c0_i32 = arith.constant 0 : i32
    %c2_i32 = arith.constant 2 : i32
    %12 = arith.addi %c0_i32, %c2_i32 : i32
    %c1_i32 = arith.constant 1 : i32
    scf.for %arg10 = %c0_i32 to %12 step %c1_i32  : i32 {
      %13 = arith.index_cast %arg10 : i32 to index
      %c0_14 = arith.constant 0 : index
      %c0_15 = arith.constant 0 : index
      %14 = vector.load %arg1[%13, %c0_14, %c0_15] : memref<2x64x16xf32, #tpu.memory_space<vmem>>, vector<1x64x16xf32>
      %15 = vector.shape_cast %14 : vector<1x64x16xf32> to vector<64x16xf32>
      %cst = arith.constant dense<0.000000e+00> : vector<64xf32>
      %16 = vector.multi_reduction <add>, %15, %cst [1] : vector<64x16xf32> to vector<64xf32>
      %17 = vector.shape_cast %16 : vector<64xf32> to vector<64x1xf32>
      %cst_16 = arith.constant 1.600000e+01 : f32
      %18 = vector.broadcast %cst_16 : f32 to vector<64x1xf32>
      %19 = arith.divf %17, %18 : vector<64x1xf32>
      %20 = vector.broadcast %19 : vector<64x1xf32> to vector<64x16xf32>
      %21 = arith.subf %15, %20 : vector<64x16xf32>
      %22 = arith.mulf %21, %21 : vector<64x16xf32>
      %cst_17 = arith.constant dense<0.000000e+00> : vector<64xf32>
      %23 = vector.multi_reduction <add>, %22, %cst_17 [1] : vector<64x16xf32> to vector<64xf32>
      %24 = vector.shape_cast %23 : vector<64xf32> to vector<64x1xf32>
      %cst_18 = arith.constant 1.600000e+01 : f32
      %25 = vector.broadcast %cst_18 : f32 to vector<64x1xf32>
      %26 = arith.divf %24, %25 : vector<64x1xf32>
      %27 = vector.broadcast %19 : vector<64x1xf32> to vector<64x16xf32>
      %28 = arith.subf %15, %27 : vector<64x16xf32>
      %cst_19 = arith.constant 9.99999974E-6 : f32
      %29 = vector.broadcast %cst_19 : f32 to vector<64x1xf32>
      %30 = arith.addf %26, %29 : vector<64x1xf32>
      %31 = math.rsqrt %30 : vector<64x1xf32>
      %32 = vector.broadcast %31 : vector<64x1xf32> to vector<64x16xf32>
      %33 = arith.mulf %28, %32 : vector<64x16xf32>
      %cst_20 = arith.constant dense<0.000000e+00> : vector<64x52xf32>
      %34 = tpu.matmul %33, %2, %cst_20 {dimension_numbers = #tpu.dot_dimension_numbers<[1], [0], [0], [1], [0, 0, 1, 1], [], []>} : vector<64x16xf32>, vector<16x52xf32>, vector<64x52xf32> -> vector<64x52xf32>
      %cst_21 = arith.constant 0.000000e+00 : f32
      %35 = vector.broadcast %cst_21 : f32 to vector<64x16xf32>
      %36 = vector.extract_strided_slice %34 {offsets = [0, 0], sizes = [64, 8], strides = [1, 1]} : vector<64x52xf32> to vector<64x8xf32>
      %37 = vector.extract_strided_slice %34 {offsets = [0, 16], sizes = [64, 8], strides = [1, 1]} : vector<64x52xf32> to vector<64x8xf32>
      %38 = vector.extract_strided_slice %34 {offsets = [0, 32], sizes = [64, 8], strides = [1, 1]} : vector<64x52xf32> to vector<64x8xf32>
      %39 = vector.extract_strided_slice %34 {offsets = [0, 48], sizes = [64, 1], strides = [1, 1]} : vector<64x52xf32> to vector<64x1xf32>
      %40 = vector.broadcast %0 : f32 to vector<64x1xf32>
      %41 = arith.addf %39, %40 : vector<64x1xf32>
      %42 = vector.extract_strided_slice %34 {offsets = [0, 50], sizes = [64, 1], strides = [1, 1]} : vector<64x52xf32> to vector<64x1xf32>
      %43 = vector.broadcast %1 : f32 to vector<64x1xf32>
      %44 = arith.addf %42, %43 : vector<64x1xf32>
      %cst_22 = arith.constant dense<0.000000e+00> : vector<64x64xf32>
      %45 = tpu.matmul %36, %37, %cst_22 {dimension_numbers = #tpu.dot_dimension_numbers<[1], [1], [0], [0], [0, 0, 1, 0], [], []>} : vector<64x8xf32>, vector<64x8xf32>, vector<64x64xf32> -> vector<64x64xf32>
      %46 = vector.broadcast %41 : vector<64x1xf32> to vector<64x8xf32>
      %47 = arith.mulf %36, %46 : vector<64x8xf32>
      %48 = vector.broadcast %44 : vector<64x1xf32> to vector<64x8xf32>
      %49 = arith.mulf %37, %48 : vector<64x8xf32>
      %cst_23 = arith.constant dense<0.000000e+00> : vector<64x64xf32>
      %50 = tpu.matmul %47, %49, %cst_23 {dimension_numbers = #tpu.dot_dimension_numbers<[1], [1], [0], [0], [0, 0, 1, 0], [], []>} : vector<64x8xf32>, vector<64x8xf32>, vector<64x64xf32> -> vector<64x64xf32>
      %cst_24 = arith.constant 0.000000e+00 : f32
      %51 = vector.broadcast %cst_24 : f32 to vector<64x64xf32>
      %52 = arith.select %11, %51, %45 : vector<64x64xi1>, vector<64x64xf32>
      %53 = vector.broadcast %3 : vector<1x64xf32> to vector<64x64xf32>
      %54 = arith.mulf %52, %53 : vector<64x64xf32>
      %cst_25 = arith.constant dense<0.000000e+00> : vector<64xf32>
      %55 = vector.multi_reduction <add>, %54, %cst_25 [1] : vector<64x64xf32> to vector<64xf32>
      %56 = vector.shape_cast %55 : vector<64xf32> to vector<64x1xf32>
      %cst_26 = arith.constant dense<0.000000e+00> : vector<64x1xf32>
      %57 = tpu.matmul %4, %56, %cst_26 {dimension_numbers = #tpu.dot_dimension_numbers<[1], [0], [0], [1], [0, 0, 1, 1], [], []>} : vector<64x64xf32>, vector<64x1xf32>, vector<64x1xf32> -> vector<64x1xf32>
      %cst_27 = arith.constant 0.000000e+00 : f32
      %58 = vector.broadcast %cst_27 : f32 to vector<64x1xf32>
      %59 = arith.cmpf ogt, %57, %58 : vector<64x1xf32>
      %cst_28 = arith.constant 1.000000e-01 : f32
      %60 = vector.broadcast %cst_28 : f32 to vector<64x1xf32>
      %61 = arith.mulf %60, %57 : vector<64x1xf32>
      %62 = arith.select %59, %57, %61 : vector<64x1xi1>, vector<64x1xf32>
      %63 = arith.mulf %5, %62 : vector<64x1xf32>
      %cst_29 = arith.constant dense<0.000000e+00> : vector<1xf32>
      %64 = vector.multi_reduction <add>, %63, %cst_29 [0] : vector<64x1xf32> to vector<1xf32>
      %65 = vector.shape_cast %64 : vector<1xf32> to vector<1x1xf32>
      %cst_30 = arith.constant dense<0xFF800000> : vector<64xf32>
      %66 = vector.multi_reduction <maximumf>, %50, %cst_30 [1] : vector<64x64xf32> to vector<64xf32>
      %67 = vector.shape_cast %66 : vector<64xf32> to vector<64x1xf32>
      %68 = vector.broadcast %67 : vector<64x1xf32> to vector<64x64xf32>
      %69 = arith.subf %50, %68 : vector<64x64xf32>
      %70 = math.exp %69 : vector<64x64xf32>
      %cst_31 = arith.constant dense<0.000000e+00> : vector<64xf32>
      %71 = vector.multi_reduction <add>, %70, %cst_31 [1] : vector<64x64xf32> to vector<64xf32>
      %72 = vector.shape_cast %71 : vector<64xf32> to vector<64x1xf32>
      %73 = tpu.reciprocal %72 {approx = true} : vector<64x1xf32> -> vector<64x1xf32>
      %74 = vector.broadcast %65 : vector<1x1xf32> to vector<64x64xf32>
      %75 = arith.cmpf ogt, %50, %74 : vector<64x64xf32>
      %cst_32 = arith.constant 0.000000e+00 : f32
      %76 = vector.broadcast %cst_32 : f32 to vector<64x64xf32>
      %77 = arith.select %75, %70, %76 : vector<64x64xi1>, vector<64x64xf32>
      %78 = vector.broadcast %73 : vector<64x1xf32> to vector<64x64xf32>
      %79 = arith.mulf %77, %78 : vector<64x64xf32>
      %cst_33 = arith.constant dense<0.000000e+00> : vector<64x8xf32>
      %80 = tpu.matmul %79, %38, %cst_33 {dimension_numbers = #tpu.dot_dimension_numbers<[1], [0], [0], [1], [0, 0, 1, 1], [], []>} : vector<64x64xf32>, vector<64x8xf32>, vector<64x8xf32> -> vector<64x8xf32>
      %cst_34 = arith.constant dense<0.000000e+00> : vector<64x16xf32>
      %81 = tpu.matmul %80, %7, %cst_34 {dimension_numbers = #tpu.dot_dimension_numbers<[1], [0], [0], [1], [0, 0, 1, 1], [], []>} : vector<64x8xf32>, vector<8x16xf32>, vector<64x16xf32> -> vector<64x16xf32>
      %82 = arith.addf %35, %81 : vector<64x16xf32>
      %83 = vector.extract_strided_slice %34 {offsets = [0, 8], sizes = [64, 8], strides = [1, 1]} : vector<64x52xf32> to vector<64x8xf32>
      %84 = vector.extract_strided_slice %34 {offsets = [0, 24], sizes = [64, 8], strides = [1, 1]} : vector<64x52xf32> to vector<64x8xf32>
      %85 = vector.extract_strided_slice %34 {offsets = [0, 40], sizes = [64, 8], strides = [1, 1]} : vector<64x52xf32> to vector<64x8xf32>
      %86 = vector.extract_strided_slice %34 {offsets = [0, 49], sizes = [64, 1], strides = [1, 1]} : vector<64x52xf32> to vector<64x1xf32>
      %87 = vector.broadcast %0 : f32 to vector<64x1xf32>
      %88 = arith.addf %86, %87 : vector<64x1xf32>
      %89 = vector.extract_strided_slice %34 {offsets = [0, 51], sizes = [64, 1], strides = [1, 1]} : vector<64x52xf32> to vector<64x1xf32>
      %90 = vector.broadcast %1 : f32 to vector<64x1xf32>
      %91 = arith.addf %89, %90 : vector<64x1xf32>
      %cst_35 = arith.constant dense<0.000000e+00> : vector<64x64xf32>
      %92 = tpu.matmul %83, %84, %cst_35 {dimension_numbers = #tpu.dot_dimension_numbers<[1], [1], [0], [0], [0, 0, 1, 0], [], []>} : vector<64x8xf32>, vector<64x8xf32>, vector<64x64xf32> -> vector<64x64xf32>
      %93 = vector.broadcast %88 : vector<64x1xf32> to vector<64x8xf32>
      %94 = arith.mulf %83, %93 : vector<64x8xf32>
      %95 = vector.broadcast %91 : vector<64x1xf32> to vector<64x8xf32>
      %96 = arith.mulf %84, %95 : vector<64x8xf32>
      %cst_36 = arith.constant dense<0.000000e+00> : vector<64x64xf32>
      %97 = tpu.matmul %94, %96, %cst_36 {dimension_numbers = #tpu.dot_dimension_numbers<[1], [1], [0], [0], [0, 0, 1, 0], [], []>} : vector<64x8xf32>, vector<64x8xf32>, vector<64x64xf32> -> vector<64x64xf32>
      %cst_37 = arith.constant 0.000000e+00 : f32
      %98 = vector.broadcast %cst_37 : f32 to vector<64x64xf32>
      %99 = arith.select %11, %98, %92 : vector<64x64xi1>, vector<64x64xf32>
      %100 = vector.broadcast %3 : vector<1x64xf32> to vector<64x64xf32>
      %101 = arith.mulf %99, %100 : vector<64x64xf32>
      %cst_38 = arith.constant dense<0.000000e+00> : vector<64xf32>
      %102 = vector.multi_reduction <add>, %101, %cst_38 [1] : vector<64x64xf32> to vector<64xf32>
      %103 = vector.shape_cast %102 : vector<64xf32> to vector<64x1xf32>
      %cst_39 = arith.constant dense<0.000000e+00> : vector<64x1xf32>
      %104 = tpu.matmul %4, %103, %cst_39 {dimension_numbers = #tpu.dot_dimension_numbers<[1], [0], [0], [1], [0, 0, 1, 1], [], []>} : vector<64x64xf32>, vector<64x1xf32>, vector<64x1xf32> -> vector<64x1xf32>
      %cst_40 = arith.constant 0.000000e+00 : f32
      %105 = vector.broadcast %cst_40 : f32 to vector<64x1xf32>
      %106 = arith.cmpf ogt, %104, %105 : vector<64x1xf32>
      %cst_41 = arith.constant 1.000000e-01 : f32
      %107 = vector.broadcast %cst_41 : f32 to vector<64x1xf32>
      %108 = arith.mulf %107, %104 : vector<64x1xf32>
      %109 = arith.select %106, %104, %108 : vector<64x1xi1>, vector<64x1xf32>
      %110 = arith.mulf %5, %109 : vector<64x1xf32>
      %cst_42 = arith.constant dense<0.000000e+00> : vector<1xf32>
      %111 = vector.multi_reduction <add>, %110, %cst_42 [0] : vector<64x1xf32> to vector<1xf32>
      %112 = vector.shape_cast %111 : vector<1xf32> to vector<1x1xf32>
      %cst_43 = arith.constant dense<0xFF800000> : vector<64xf32>
      %113 = vector.multi_reduction <maximumf>, %97, %cst_43 [1] : vector<64x64xf32> to vector<64xf32>
      %114 = vector.shape_cast %113 : vector<64xf32> to vector<64x1xf32>
      %115 = vector.broadcast %114 : vector<64x1xf32> to vector<64x64xf32>
      %116 = arith.subf %97, %115 : vector<64x64xf32>
      %117 = math.exp %116 : vector<64x64xf32>
      %cst_44 = arith.constant dense<0.000000e+00> : vector<64xf32>
      %118 = vector.multi_reduction <add>, %117, %cst_44 [1] : vector<64x64xf32> to vector<64xf32>
      %119 = vector.shape_cast %118 : vector<64xf32> to vector<64x1xf32>
      %120 = tpu.reciprocal %119 {approx = true} : vector<64x1xf32> -> vector<64x1xf32>
      %121 = vector.broadcast %112 : vector<1x1xf32> to vector<64x64xf32>
      %122 = arith.cmpf ogt, %97, %121 : vector<64x64xf32>
      %cst_45 = arith.constant 0.000000e+00 : f32
      %123 = vector.broadcast %cst_45 : f32 to vector<64x64xf32>
      %124 = arith.select %122, %117, %123 : vector<64x64xi1>, vector<64x64xf32>
      %125 = vector.broadcast %120 : vector<64x1xf32> to vector<64x64xf32>
      %126 = arith.mulf %124, %125 : vector<64x64xf32>
      %cst_46 = arith.constant dense<0.000000e+00> : vector<64x8xf32>
      %127 = tpu.matmul %126, %85, %cst_46 {dimension_numbers = #tpu.dot_dimension_numbers<[1], [0], [0], [1], [0, 0, 1, 1], [], []>} : vector<64x64xf32>, vector<64x8xf32>, vector<64x8xf32> -> vector<64x8xf32>
      %cst_47 = arith.constant dense<0.000000e+00> : vector<64x16xf32>
      %128 = tpu.matmul %127, %8, %cst_47 {dimension_numbers = #tpu.dot_dimension_numbers<[1], [0], [0], [1], [0, 0, 1, 1], [], []>} : vector<64x8xf32>, vector<8x16xf32>, vector<64x16xf32> -> vector<64x16xf32>
      %129 = arith.addf %82, %128 : vector<64x16xf32>
      %130 = vector.broadcast %6 : vector<1x16xf32> to vector<64x16xf32>
      %131 = arith.addf %129, %130 : vector<64x16xf32>
      %132 = arith.addf %131, %15 : vector<64x16xf32>
      %133 = arith.index_cast %arg10 : i32 to index
      %c0_48 = arith.constant 0 : index
      %c0_49 = arith.constant 0 : index
      %134 = vector.load %arg9[%133, %c0_48, %c0_49] : memref<2x64x16xf32, #tpu.memory_space<vmem>>, vector<1x64x16xf32>
      %135 = vector.shape_cast %134 : vector<1x64x16xf32> to vector<64x16xf32>
      %136 = vector.shape_cast %132 : vector<64x16xf32> to vector<1x64x16xf32>
      tpu.vector_store %arg9[%133, %c0_48, %c0_49], %136 {strides = array<i32>} : memref<2x64x16xf32, #tpu.memory_space<vmem>>, vector<1x64x16xf32>,
    }
    %c2_i32_13 = arith.constant 2 : i32
    return
  }
  func.func @transform_0(%arg0: i32) -> (i32, i32, i32) {
    %c0_i32 = arith.constant 0 : i32
    %c0_i32_0 = arith.constant 0 : i32
    %c0_i32_1 = arith.constant 0 : i32
    return %arg0, %c0_i32, %c0_i32_0 : i32, i32, i32
  }
  func.func @transform_1(%arg0: i32) -> (i32, i32) {
    %c0_i32 = arith.constant 0 : i32
    %c0_i32_0 = arith.constant 0 : i32
    %c0_i32_1 = arith.constant 0 : i32
    return %c0_i32, %c0_i32_0 : i32, i32
  }
  func.func @transform_2(%arg0: i32) -> i32 {
    %c0_i32 = arith.constant 0 : i32
    %c0_i32_0 = arith.constant 0 : i32
    return %c0_i32 : i32
  }
  func.func @transform_3(%arg0: i32) -> (i32, i32) {
    %c0_i32 = arith.constant 0 : i32
    %c0_i32_0 = arith.constant 0 : i32
    %c0_i32_1 = arith.constant 0 : i32
    return %c0_i32, %c0_i32_0 : i32, i32
  }
  func.func @transform_4(%arg0: i32) -> (i32, i32) {
    %c0_i32 = arith.constant 0 : i32
    %c0_i32_0 = arith.constant 0 : i32
    %c0_i32_1 = arith.constant 0 : i32
    return %c0_i32, %c0_i32_0 : i32, i32
  }
  func.func @transform_5(%arg0: i32) -> (i32, i32) {
    %c0_i32 = arith.constant 0 : i32
    %c0_i32_0 = arith.constant 0 : i32
    %c0_i32_1 = arith.constant 0 : i32
    return %c0_i32, %c0_i32_0 : i32, i32
  }
  func.func @transform_6(%arg0: i32) -> (i32, i32) {
    %c0_i32 = arith.constant 0 : i32
    %c0_i32_0 = arith.constant 0 : i32
    %c0_i32_1 = arith.constant 0 : i32
    return %c0_i32, %c0_i32_0 : i32, i32
  }
  func.func @transform_7(%arg0: i32) -> (i32, i32) {
    %c0_i32 = arith.constant 0 : i32
    %c0_i32_0 = arith.constant 0 : i32
    %c0_i32_1 = arith.constant 0 : i32
    return %c0_i32, %c0_i32_0 : i32, i32
  }
  func.func @transform_8(%arg0: i32) -> (i32, i32, i32) {
    %c0_i32 = arith.constant 0 : i32
    %c0_i32_0 = arith.constant 0 : i32
    %c0_i32_1 = arith.constant 0 : i32
    return %arg0, %c0_i32, %c0_i32_0 : i32, i32, i32
  }
}

module attributes {stable_mosaic.version = 11 : i64} {
  func.func @ffn_kernel(%arg0: i32, %arg1: i32, %arg2: memref<1x1x16x16x16xf32, #tpu.memory_space<vmem>>, %arg3: memref<1x1x16x16x16xf32, #tpu.memory_space<vmem>>, %arg4: memref<16x64xf32, #tpu.memory_space<vmem>>, %arg5: memref<27x64xf32, #tpu.memory_space<vmem>>, %arg6: memref<64x16xf32, #tpu.memory_space<vmem>>, %arg7: memref<1x1x16x16x16xf32, #tpu.memory_space<vmem>>, %arg8: memref<3x18x18x64xf32, #tpu.memory_space<vmem>>) attributes {dimension_semantics = [#tpu.dimension_semantics<parallel>, #tpu.dimension_semantics<arbitrary>], iteration_bounds = array<i64: 2, 2>, scalar_prefetch = 0 : i64, scratch_operands = 1 : i64, tpu.core_type = #tpu.core_type<tc>, window_params = [{transform_indices = @transform_0, window_bounds = array<i64: 1, 1, 16, 16, 16>}, {transform_indices = @transform_1, window_bounds = array<i64: 1, 1, 16, 16, 16>}, {pipeline_mode = #tpu.pipeline_mode<synchronous>, transform_indices = @transform_2, window_bounds = array<i64: 16, 64>}, {pipeline_mode = #tpu.pipeline_mode<synchronous>, transform_indices = @transform_3, window_bounds = array<i64: 27, 64>}, {pipeline_mode = #tpu.pipeline_mode<synchronous>, transform_indices = @transform_4, window_bounds = array<i64: 64, 16>}, {transform_indices = @transform_5, window_bounds = array<i64: 1, 1, 16, 16, 16>}]} {
    %cst = arith.constant 0.000000e+00 : f32
    %0 = vector.broadcast %cst : f32 to vector<16x1x64xf32>
    %cst_0 = arith.constant 0.000000e+00 : f32
    %1 = vector.broadcast %cst_0 : f32 to vector<1x18x64xf32>
    %cst_1 = arith.constant 0.000000e+00 : f32
    %2 = vector.broadcast %cst_1 : f32 to vector<18x18x64xf32>
    %c0_i32 = arith.constant 0 : i32
    %3 = arith.cmpi eq, %arg1, %c0_i32 : i32
    %4 = arith.extui %3 : i1 to i32
    %c0_i32_2 = arith.constant 0 : i32
    %5 = arith.cmpi ne, %4, %c0_i32_2 : i32
    scf.if %5 {
      %c2_91 = arith.constant 2 : index
      %c0_92 = arith.constant 0 : index
      %c0_93 = arith.constant 0 : index
      %c0_94 = arith.constant 0 : index
      %292 = vector.load %arg8[%c2_91, %c0_92, %c0_93, %c0_94] : memref<3x18x18x64xf32, #tpu.memory_space<vmem>>, vector<1x18x18x64xf32>
      %293 = vector.shape_cast %292 : vector<1x18x18x64xf32> to vector<18x18x64xf32>
      %294 = vector.shape_cast %2 : vector<18x18x64xf32> to vector<1x18x18x64xf32>
      tpu.vector_store %arg8[%c2_91, %c0_92, %c0_93, %c0_94], %294 {strides = array<i32>} : memref<3x18x18x64xf32, #tpu.memory_space<vmem>>, vector<1x18x18x64xf32>,
      %c0_95 = arith.constant 0 : index
      %c0_96 = arith.constant 0 : index
      %c0_97 = arith.constant 0 : index
      %c0_98 = arith.constant 0 : index
      %295 = vector.load %arg8[%c0_95, %c0_96, %c0_97, %c0_98] : memref<3x18x18x64xf32, #tpu.memory_space<vmem>>, vector<1x1x18x64xf32>
      %296 = vector.shape_cast %295 : vector<1x1x18x64xf32> to vector<1x18x64xf32>
      %297 = vector.shape_cast %1 : vector<1x18x64xf32> to vector<1x1x18x64xf32>
      tpu.vector_store %arg8[%c0_95, %c0_96, %c0_97, %c0_98], %297 {strides = array<i32>} : memref<3x18x18x64xf32, #tpu.memory_space<vmem>>, vector<1x1x18x64xf32>,
      %c0_99 = arith.constant 0 : index
      %c17_100 = arith.constant 17 : index
      %c0_101 = arith.constant 0 : index
      %c0_102 = arith.constant 0 : index
      %298 = vector.load %arg8[%c0_99, %c17_100, %c0_101, %c0_102] : memref<3x18x18x64xf32, #tpu.memory_space<vmem>>, vector<1x1x18x64xf32>
      %299 = vector.shape_cast %298 : vector<1x1x18x64xf32> to vector<1x18x64xf32>
      %300 = vector.shape_cast %1 : vector<1x18x64xf32> to vector<1x1x18x64xf32>
      tpu.vector_store %arg8[%c0_99, %c17_100, %c0_101, %c0_102], %300 {strides = array<i32>} : memref<3x18x18x64xf32, #tpu.memory_space<vmem>>, vector<1x1x18x64xf32>,
      %c1_103 = arith.constant 1 : index
      %c0_104 = arith.constant 0 : index
      %c0_105 = arith.constant 0 : index
      %c0_106 = arith.constant 0 : index
      %301 = vector.load %arg8[%c1_103, %c0_104, %c0_105, %c0_106] : memref<3x18x18x64xf32, #tpu.memory_space<vmem>>, vector<1x1x18x64xf32>
      %302 = vector.shape_cast %301 : vector<1x1x18x64xf32> to vector<1x18x64xf32>
      %303 = vector.shape_cast %1 : vector<1x18x64xf32> to vector<1x1x18x64xf32>
      tpu.vector_store %arg8[%c1_103, %c0_104, %c0_105, %c0_106], %303 {strides = array<i32>} : memref<3x18x18x64xf32, #tpu.memory_space<vmem>>, vector<1x1x18x64xf32>,
      %c1_107 = arith.constant 1 : index
      %c17_108 = arith.constant 17 : index
      %c0_109 = arith.constant 0 : index
      %c0_110 = arith.constant 0 : index
      %304 = vector.load %arg8[%c1_107, %c17_108, %c0_109, %c0_110] : memref<3x18x18x64xf32, #tpu.memory_space<vmem>>, vector<1x1x18x64xf32>
      %305 = vector.shape_cast %304 : vector<1x1x18x64xf32> to vector<1x18x64xf32>
      %306 = vector.shape_cast %1 : vector<1x18x64xf32> to vector<1x1x18x64xf32>
      tpu.vector_store %arg8[%c1_107, %c17_108, %c0_109, %c0_110], %306 {strides = array<i32>} : memref<3x18x18x64xf32, #tpu.memory_space<vmem>>, vector<1x1x18x64xf32>,
      %c0_111 = arith.constant 0 : index
      %c0_112 = arith.constant 0 : index
      %c0_113 = arith.constant 0 : index
      %c0_114 = arith.constant 0 : index
      %c0_115 = arith.constant 0 : index
      %307 = vector.load %arg2[%c0_111, %c0_112, %c0_113, %c0_114, %c0_115] : memref<1x1x16x16x16xf32, #tpu.memory_space<vmem>>, vector<1x1x16x16x16xf32>
      %308 = vector.shape_cast %307 : vector<1x1x16x16x16xf32> to vector<16x16x16xf32>
      %309 = vector.shape_cast %308 : vector<16x16x16xf32> to vector<256x16xf32>
      %cst_116 = arith.constant dense<0.000000e+00> : vector<256xf32>
      %310 = vector.multi_reduction <add>, %309, %cst_116 [1] : vector<256x16xf32> to vector<256xf32>
      %311 = vector.shape_cast %310 : vector<256xf32> to vector<256x1xf32>
      %cst_117 = arith.constant 1.600000e+01 : f32
      %312 = vector.broadcast %cst_117 : f32 to vector<256x1xf32>
      %313 = arith.divf %311, %312 : vector<256x1xf32>
      %314 = vector.broadcast %313 : vector<256x1xf32> to vector<256x16xf32>
      %315 = arith.subf %309, %314 : vector<256x16xf32>
      %316 = arith.mulf %315, %315 : vector<256x16xf32>
      %cst_118 = arith.constant dense<0.000000e+00> : vector<256xf32>
      %317 = vector.multi_reduction <add>, %316, %cst_118 [1] : vector<256x16xf32> to vector<256xf32>
      %318 = vector.shape_cast %317 : vector<256xf32> to vector<256x1xf32>
      %cst_119 = arith.constant 1.600000e+01 : f32
      %319 = vector.broadcast %cst_119 : f32 to vector<256x1xf32>
      %320 = arith.divf %318, %319 : vector<256x1xf32>
      %321 = vector.broadcast %313 : vector<256x1xf32> to vector<256x16xf32>
      %322 = arith.subf %309, %321 : vector<256x16xf32>
      %cst_120 = arith.constant 9.99999974E-6 : f32
      %323 = vector.broadcast %cst_120 : f32 to vector<256x1xf32>
      %324 = arith.addf %320, %323 : vector<256x1xf32>
      %325 = math.rsqrt %324 : vector<256x1xf32>
      %326 = vector.broadcast %325 : vector<256x1xf32> to vector<256x16xf32>
      %327 = arith.mulf %322, %326 : vector<256x16xf32>
      %c0_121 = arith.constant 0 : index
      %c0_122 = arith.constant 0 : index
      %328 = vector.load %arg4[%c0_121, %c0_122] : memref<16x64xf32, #tpu.memory_space<vmem>>, vector<16x64xf32>
      %cst_123 = arith.constant dense<0.000000e+00> : vector<256x64xf32>
      %329 = tpu.matmul %327, %328, %cst_123 {dimension_numbers = #tpu.dot_dimension_numbers<[1], [0], [0], [1], [0, 0, 1, 1], [], []>} : vector<256x16xf32>, vector<16x64xf32>, vector<256x64xf32> -> vector<256x64xf32>
      %330 = arith.mulf %329, %329 : vector<256x64xf32>
      %331 = arith.mulf %329, %330 : vector<256x64xf32>
      %cst_124 = arith.constant 4.471500e-02 : f32
      %332 = vector.broadcast %cst_124 : f32 to vector<256x64xf32>
      %333 = arith.mulf %332, %331 : vector<256x64xf32>
      %334 = arith.addf %329, %333 : vector<256x64xf32>
      %cst_125 = arith.constant 0.797884583 : f32
      %335 = vector.broadcast %cst_125 : f32 to vector<256x64xf32>
      %336 = arith.mulf %335, %334 : vector<256x64xf32>
      %337 = math.tanh %336 : vector<256x64xf32>
      %cst_126 = arith.constant 1.000000e+00 : f32
      %338 = vector.broadcast %cst_126 : f32 to vector<256x64xf32>
      %339 = arith.addf %338, %337 : vector<256x64xf32>
      %cst_127 = arith.constant 5.000000e-01 : f32
      %340 = vector.broadcast %cst_127 : f32 to vector<256x64xf32>
      %341 = arith.mulf %340, %339 : vector<256x64xf32>
      %342 = arith.mulf %329, %341 : vector<256x64xf32>
      %343 = vector.shape_cast %342 : vector<256x64xf32> to vector<16x16x64xf32>
      %344 = tpu.concatenate %0, %343, %0 in 1 : vector<16x1x64xf32>, vector<16x16x64xf32>, vector<16x1x64xf32> -> vector<16x18x64xf32>
      %c0_128 = arith.constant 0 : index
      %c1_129 = arith.constant 1 : index
      %c0_130 = arith.constant 0 : index
      %c0_131 = arith.constant 0 : index
      %345 = vector.load %arg8[%c0_128, %c1_129, %c0_130, %c0_131] : memref<3x18x18x64xf32, #tpu.memory_space<vmem>>, vector<1x16x18x64xf32>
      %346 = vector.shape_cast %345 : vector<1x16x18x64xf32> to vector<16x18x64xf32>
      %347 = vector.shape_cast %344 : vector<16x18x64xf32> to vector<1x16x18x64xf32>
      tpu.vector_store %arg8[%c0_128, %c1_129, %c0_130, %c0_131], %347 {strides = array<i32>} : memref<3x18x18x64xf32, #tpu.memory_space<vmem>>, vector<1x16x18x64xf32>,
    } else {
    }
    %c1_i32 = arith.constant 1 : i32
    %6 = arith.addi %arg1, %c1_i32 : i32
    %c3_i32 = arith.constant 3 : i32
    %c0_i32_3 = arith.constant 0 : i32
    %7 = arith.cmpi eq, %c3_i32, %c0_i32_3 : i32
    %c1_i32_4 = arith.constant 1 : i32
    %8 = arith.select %7, %c1_i32_4, %c3_i32 : i32
    %9 = arith.remsi %6, %8 : i32
    %c0_i32_5 = arith.constant 0 : i32
    %10 = arith.cmpi ne, %9, %c0_i32_5 : i32
    %c0_i32_6 = arith.constant 0 : i32
    %11 = arith.cmpi slt, %9, %c0_i32_6 : i32
    %c0_i32_7 = arith.constant 0 : i32
    %12 = arith.cmpi slt, %8, %c0_i32_7 : i32
    %13 = arith.xori %11, %12 : i1
    %14 = arith.andi %13, %10 : i1
    %15 = arith.addi %9, %8 : i32
    %16 = arith.select %14, %15, %9 : i32
    %c1_i32_8 = arith.constant 1 : i32
    %17 = arith.addi %arg1, %c1_i32_8 : i32
    %c2_i32 = arith.constant 2 : i32
    %18 = arith.cmpi slt, %17, %c2_i32 : i32
    %19 = arith.extui %18 : i1 to i32
    %c0_i32_9 = arith.constant 0 : i32
    %20 = arith.cmpi ne, %19, %c0_i32_9 : i32
    scf.if %20 {
      %c0_91 = arith.constant 0 : index
      %c0_92 = arith.constant 0 : index
      %c0_93 = arith.constant 0 : index
      %c0_94 = arith.constant 0 : index
      %c0_95 = arith.constant 0 : index
      %292 = vector.load %arg3[%c0_91, %c0_92, %c0_93, %c0_94, %c0_95] : memref<1x1x16x16x16xf32, #tpu.memory_space<vmem>>, vector<1x1x16x16x16xf32>
      %293 = vector.shape_cast %292 : vector<1x1x16x16x16xf32> to vector<16x16x16xf32>
      %294 = vector.shape_cast %293 : vector<16x16x16xf32> to vector<256x16xf32>
      %cst_96 = arith.constant dense<0.000000e+00> : vector<256xf32>
      %295 = vector.multi_reduction <add>, %294, %cst_96 [1] : vector<256x16xf32> to vector<256xf32>
      %296 = vector.shape_cast %295 : vector<256xf32> to vector<256x1xf32>
      %cst_97 = arith.constant 1.600000e+01 : f32
      %297 = vector.broadcast %cst_97 : f32 to vector<256x1xf32>
      %298 = arith.divf %296, %297 : vector<256x1xf32>
      %299 = vector.broadcast %298 : vector<256x1xf32> to vector<256x16xf32>
      %300 = arith.subf %294, %299 : vector<256x16xf32>
      %301 = arith.mulf %300, %300 : vector<256x16xf32>
      %cst_98 = arith.constant dense<0.000000e+00> : vector<256xf32>
      %302 = vector.multi_reduction <add>, %301, %cst_98 [1] : vector<256x16xf32> to vector<256xf32>
      %303 = vector.shape_cast %302 : vector<256xf32> to vector<256x1xf32>
      %cst_99 = arith.constant 1.600000e+01 : f32
      %304 = vector.broadcast %cst_99 : f32 to vector<256x1xf32>
      %305 = arith.divf %303, %304 : vector<256x1xf32>
      %306 = vector.broadcast %298 : vector<256x1xf32> to vector<256x16xf32>
      %307 = arith.subf %294, %306 : vector<256x16xf32>
      %cst_100 = arith.constant 9.99999974E-6 : f32
      %308 = vector.broadcast %cst_100 : f32 to vector<256x1xf32>
      %309 = arith.addf %305, %308 : vector<256x1xf32>
      %310 = math.rsqrt %309 : vector<256x1xf32>
      %311 = vector.broadcast %310 : vector<256x1xf32> to vector<256x16xf32>
      %312 = arith.mulf %307, %311 : vector<256x16xf32>
      %c0_101 = arith.constant 0 : index
      %c0_102 = arith.constant 0 : index
      %313 = vector.load %arg4[%c0_101, %c0_102] : memref<16x64xf32, #tpu.memory_space<vmem>>, vector<16x64xf32>
      %cst_103 = arith.constant dense<0.000000e+00> : vector<256x64xf32>
      %314 = tpu.matmul %312, %313, %cst_103 {dimension_numbers = #tpu.dot_dimension_numbers<[1], [0], [0], [1], [0, 0, 1, 1], [], []>} : vector<256x16xf32>, vector<16x64xf32>, vector<256x64xf32> -> vector<256x64xf32>
      %315 = arith.mulf %314, %314 : vector<256x64xf32>
      %316 = arith.mulf %314, %315 : vector<256x64xf32>
      %cst_104 = arith.constant 4.471500e-02 : f32
      %317 = vector.broadcast %cst_104 : f32 to vector<256x64xf32>
      %318 = arith.mulf %317, %316 : vector<256x64xf32>
      %319 = arith.addf %314, %318 : vector<256x64xf32>
      %cst_105 = arith.constant 0.797884583 : f32
      %320 = vector.broadcast %cst_105 : f32 to vector<256x64xf32>
      %321 = arith.mulf %320, %319 : vector<256x64xf32>
      %322 = math.tanh %321 : vector<256x64xf32>
      %cst_106 = arith.constant 1.000000e+00 : f32
      %323 = vector.broadcast %cst_106 : f32 to vector<256x64xf32>
      %324 = arith.addf %323, %322 : vector<256x64xf32>
      %cst_107 = arith.constant 5.000000e-01 : f32
      %325 = vector.broadcast %cst_107 : f32 to vector<256x64xf32>
      %326 = arith.mulf %325, %324 : vector<256x64xf32>
      %327 = arith.mulf %314, %326 : vector<256x64xf32>
      %328 = vector.shape_cast %327 : vector<256x64xf32> to vector<16x16x64xf32>
      %329 = tpu.concatenate %0, %328, %0 in 1 : vector<16x1x64xf32>, vector<16x16x64xf32>, vector<16x1x64xf32> -> vector<16x18x64xf32>
      %330 = arith.index_cast %16 : i32 to index
      %c1_108 = arith.constant 1 : index
      %c0_109 = arith.constant 0 : index
      %c0_110 = arith.constant 0 : index
      %331 = vector.load %arg8[%330, %c1_108, %c0_109, %c0_110] : memref<3x18x18x64xf32, #tpu.memory_space<vmem>>, vector<1x16x18x64xf32>
      %332 = vector.shape_cast %331 : vector<1x16x18x64xf32> to vector<16x18x64xf32>
      %333 = vector.shape_cast %329 : vector<16x18x64xf32> to vector<1x16x18x64xf32>
      tpu.vector_store %arg8[%330, %c1_108, %c0_109, %c0_110], %333 {strides = array<i32>} : memref<3x18x18x64xf32, #tpu.memory_space<vmem>>, vector<1x16x18x64xf32>,
    } else {
    }
    %c1_i32_10 = arith.constant 1 : i32
    %21 = arith.addi %arg1, %c1_i32_10 : i32
    %c2_i32_11 = arith.constant 2 : i32
    %22 = arith.cmpi eq, %21, %c2_i32_11 : i32
    %23 = arith.extui %22 : i1 to i32
    %c0_i32_12 = arith.constant 0 : i32
    %24 = arith.cmpi ne, %23, %c0_i32_12 : i32
    scf.if %24 {
      %292 = arith.index_cast %16 : i32 to index
      %c0_91 = arith.constant 0 : index
      %c0_92 = arith.constant 0 : index
      %c0_93 = arith.constant 0 : index
      %293 = vector.load %arg8[%292, %c0_91, %c0_92, %c0_93] : memref<3x18x18x64xf32, #tpu.memory_space<vmem>>, vector<1x18x18x64xf32>
      %294 = vector.shape_cast %293 : vector<1x18x18x64xf32> to vector<18x18x64xf32>
      %295 = vector.shape_cast %2 : vector<18x18x64xf32> to vector<1x18x18x64xf32>
      tpu.vector_store %arg8[%292, %c0_91, %c0_92, %c0_93], %295 {strides = array<i32>} : memref<3x18x18x64xf32, #tpu.memory_space<vmem>>, vector<1x18x18x64xf32>,
    } else {
    }
    %c0 = arith.constant 0 : index
    %c0_13 = arith.constant 0 : index
    %25 = vector.load %arg5[%c0, %c0_13] : memref<27x64xf32, #tpu.memory_space<vmem>>, vector<1x64xf32>
    %26 = vector.shape_cast %25 : vector<1x64xf32> to vector<64xf32>
    %27 = vector.shape_cast %26 : vector<64xf32> to vector<1x1x64xf32>
    %c1 = arith.constant 1 : index
    %c0_14 = arith.constant 0 : index
    %28 = vector.load %arg5[%c1, %c0_14] : memref<27x64xf32, #tpu.memory_space<vmem>>, vector<1x64xf32>
    %29 = vector.shape_cast %28 : vector<1x64xf32> to vector<64xf32>
    %30 = vector.shape_cast %29 : vector<64xf32> to vector<1x1x64xf32>
    %c2 = arith.constant 2 : index
    %c0_15 = arith.constant 0 : index
    %31 = vector.load %arg5[%c2, %c0_15] : memref<27x64xf32, #tpu.memory_space<vmem>>, vector<1x64xf32>
    %32 = vector.shape_cast %31 : vector<1x64xf32> to vector<64xf32>
    %33 = vector.shape_cast %32 : vector<64xf32> to vector<1x1x64xf32>
    %c3 = arith.constant 3 : index
    %c0_16 = arith.constant 0 : index
    %34 = vector.load %arg5[%c3, %c0_16] : memref<27x64xf32, #tpu.memory_space<vmem>>, vector<1x64xf32>
    %35 = vector.shape_cast %34 : vector<1x64xf32> to vector<64xf32>
    %36 = vector.shape_cast %35 : vector<64xf32> to vector<1x1x64xf32>
    %c4 = arith.constant 4 : index
    %c0_17 = arith.constant 0 : index
    %37 = vector.load %arg5[%c4, %c0_17] : memref<27x64xf32, #tpu.memory_space<vmem>>, vector<1x64xf32>
    %38 = vector.shape_cast %37 : vector<1x64xf32> to vector<64xf32>
    %39 = vector.shape_cast %38 : vector<64xf32> to vector<1x1x64xf32>
    %c5 = arith.constant 5 : index
    %c0_18 = arith.constant 0 : index
    %40 = vector.load %arg5[%c5, %c0_18] : memref<27x64xf32, #tpu.memory_space<vmem>>, vector<1x64xf32>
    %41 = vector.shape_cast %40 : vector<1x64xf32> to vector<64xf32>
    %42 = vector.shape_cast %41 : vector<64xf32> to vector<1x1x64xf32>
    %c6 = arith.constant 6 : index
    %c0_19 = arith.constant 0 : index
    %43 = vector.load %arg5[%c6, %c0_19] : memref<27x64xf32, #tpu.memory_space<vmem>>, vector<1x64xf32>
    %44 = vector.shape_cast %43 : vector<1x64xf32> to vector<64xf32>
    %45 = vector.shape_cast %44 : vector<64xf32> to vector<1x1x64xf32>
    %c7 = arith.constant 7 : index
    %c0_20 = arith.constant 0 : index
    %46 = vector.load %arg5[%c7, %c0_20] : memref<27x64xf32, #tpu.memory_space<vmem>>, vector<1x64xf32>
    %47 = vector.shape_cast %46 : vector<1x64xf32> to vector<64xf32>
    %48 = vector.shape_cast %47 : vector<64xf32> to vector<1x1x64xf32>
    %c8 = arith.constant 8 : index
    %c0_21 = arith.constant 0 : index
    %49 = vector.load %arg5[%c8, %c0_21] : memref<27x64xf32, #tpu.memory_space<vmem>>, vector<1x64xf32>
    %50 = vector.shape_cast %49 : vector<1x64xf32> to vector<64xf32>
    %51 = vector.shape_cast %50 : vector<64xf32> to vector<1x1x64xf32>
    %c9 = arith.constant 9 : index
    %c0_22 = arith.constant 0 : index
    %52 = vector.load %arg5[%c9, %c0_22] : memref<27x64xf32, #tpu.memory_space<vmem>>, vector<1x64xf32>
    %53 = vector.shape_cast %52 : vector<1x64xf32> to vector<64xf32>
    %54 = vector.shape_cast %53 : vector<64xf32> to vector<1x1x64xf32>
    %c10 = arith.constant 10 : index
    %c0_23 = arith.constant 0 : index
    %55 = vector.load %arg5[%c10, %c0_23] : memref<27x64xf32, #tpu.memory_space<vmem>>, vector<1x64xf32>
    %56 = vector.shape_cast %55 : vector<1x64xf32> to vector<64xf32>
    %57 = vector.shape_cast %56 : vector<64xf32> to vector<1x1x64xf32>
    %c11 = arith.constant 11 : index
    %c0_24 = arith.constant 0 : index
    %58 = vector.load %arg5[%c11, %c0_24] : memref<27x64xf32, #tpu.memory_space<vmem>>, vector<1x64xf32>
    %59 = vector.shape_cast %58 : vector<1x64xf32> to vector<64xf32>
    %60 = vector.shape_cast %59 : vector<64xf32> to vector<1x1x64xf32>
    %c12 = arith.constant 12 : index
    %c0_25 = arith.constant 0 : index
    %61 = vector.load %arg5[%c12, %c0_25] : memref<27x64xf32, #tpu.memory_space<vmem>>, vector<1x64xf32>
    %62 = vector.shape_cast %61 : vector<1x64xf32> to vector<64xf32>
    %63 = vector.shape_cast %62 : vector<64xf32> to vector<1x1x64xf32>
    %c13 = arith.constant 13 : index
    %c0_26 = arith.constant 0 : index
    %64 = vector.load %arg5[%c13, %c0_26] : memref<27x64xf32, #tpu.memory_space<vmem>>, vector<1x64xf32>
    %65 = vector.shape_cast %64 : vector<1x64xf32> to vector<64xf32>
    %66 = vector.shape_cast %65 : vector<64xf32> to vector<1x1x64xf32>
    %c14 = arith.constant 14 : index
    %c0_27 = arith.constant 0 : index
    %67 = vector.load %arg5[%c14, %c0_27] : memref<27x64xf32, #tpu.memory_space<vmem>>, vector<1x64xf32>
    %68 = vector.shape_cast %67 : vector<1x64xf32> to vector<64xf32>
    %69 = vector.shape_cast %68 : vector<64xf32> to vector<1x1x64xf32>
    %c15 = arith.constant 15 : index
    %c0_28 = arith.constant 0 : index
    %70 = vector.load %arg5[%c15, %c0_28] : memref<27x64xf32, #tpu.memory_space<vmem>>, vector<1x64xf32>
    %71 = vector.shape_cast %70 : vector<1x64xf32> to vector<64xf32>
    %72 = vector.shape_cast %71 : vector<64xf32> to vector<1x1x64xf32>
    %c16 = arith.constant 16 : index
    %c0_29 = arith.constant 0 : index
    %73 = vector.load %arg5[%c16, %c0_29] : memref<27x64xf32, #tpu.memory_space<vmem>>, vector<1x64xf32>
    %74 = vector.shape_cast %73 : vector<1x64xf32> to vector<64xf32>
    %75 = vector.shape_cast %74 : vector<64xf32> to vector<1x1x64xf32>
    %c17 = arith.constant 17 : index
    %c0_30 = arith.constant 0 : index
    %76 = vector.load %arg5[%c17, %c0_30] : memref<27x64xf32, #tpu.memory_space<vmem>>, vector<1x64xf32>
    %77 = vector.shape_cast %76 : vector<1x64xf32> to vector<64xf32>
    %78 = vector.shape_cast %77 : vector<64xf32> to vector<1x1x64xf32>
    %c18 = arith.constant 18 : index
    %c0_31 = arith.constant 0 : index
    %79 = vector.load %arg5[%c18, %c0_31] : memref<27x64xf32, #tpu.memory_space<vmem>>, vector<1x64xf32>
    %80 = vector.shape_cast %79 : vector<1x64xf32> to vector<64xf32>
    %81 = vector.shape_cast %80 : vector<64xf32> to vector<1x1x64xf32>
    %c19 = arith.constant 19 : index
    %c0_32 = arith.constant 0 : index
    %82 = vector.load %arg5[%c19, %c0_32] : memref<27x64xf32, #tpu.memory_space<vmem>>, vector<1x64xf32>
    %83 = vector.shape_cast %82 : vector<1x64xf32> to vector<64xf32>
    %84 = vector.shape_cast %83 : vector<64xf32> to vector<1x1x64xf32>
    %c20 = arith.constant 20 : index
    %c0_33 = arith.constant 0 : index
    %85 = vector.load %arg5[%c20, %c0_33] : memref<27x64xf32, #tpu.memory_space<vmem>>, vector<1x64xf32>
    %86 = vector.shape_cast %85 : vector<1x64xf32> to vector<64xf32>
    %87 = vector.shape_cast %86 : vector<64xf32> to vector<1x1x64xf32>
    %c21 = arith.constant 21 : index
    %c0_34 = arith.constant 0 : index
    %88 = vector.load %arg5[%c21, %c0_34] : memref<27x64xf32, #tpu.memory_space<vmem>>, vector<1x64xf32>
    %89 = vector.shape_cast %88 : vector<1x64xf32> to vector<64xf32>
    %90 = vector.shape_cast %89 : vector<64xf32> to vector<1x1x64xf32>
    %c22 = arith.constant 22 : index
    %c0_35 = arith.constant 0 : index
    %91 = vector.load %arg5[%c22, %c0_35] : memref<27x64xf32, #tpu.memory_space<vmem>>, vector<1x64xf32>
    %92 = vector.shape_cast %91 : vector<1x64xf32> to vector<64xf32>
    %93 = vector.shape_cast %92 : vector<64xf32> to vector<1x1x64xf32>
    %c23 = arith.constant 23 : index
    %c0_36 = arith.constant 0 : index
    %94 = vector.load %arg5[%c23, %c0_36] : memref<27x64xf32, #tpu.memory_space<vmem>>, vector<1x64xf32>
    %95 = vector.shape_cast %94 : vector<1x64xf32> to vector<64xf32>
    %96 = vector.shape_cast %95 : vector<64xf32> to vector<1x1x64xf32>
    %c24 = arith.constant 24 : index
    %c0_37 = arith.constant 0 : index
    %97 = vector.load %arg5[%c24, %c0_37] : memref<27x64xf32, #tpu.memory_space<vmem>>, vector<1x64xf32>
    %98 = vector.shape_cast %97 : vector<1x64xf32> to vector<64xf32>
    %99 = vector.shape_cast %98 : vector<64xf32> to vector<1x1x64xf32>
    %c25 = arith.constant 25 : index
    %c0_38 = arith.constant 0 : index
    %100 = vector.load %arg5[%c25, %c0_38] : memref<27x64xf32, #tpu.memory_space<vmem>>, vector<1x64xf32>
    %101 = vector.shape_cast %100 : vector<1x64xf32> to vector<64xf32>
    %102 = vector.shape_cast %101 : vector<64xf32> to vector<1x1x64xf32>
    %c26 = arith.constant 26 : index
    %c0_39 = arith.constant 0 : index
    %103 = vector.load %arg5[%c26, %c0_39] : memref<27x64xf32, #tpu.memory_space<vmem>>, vector<1x64xf32>
    %104 = vector.shape_cast %103 : vector<1x64xf32> to vector<64xf32>
    %105 = vector.shape_cast %104 : vector<64xf32> to vector<1x1x64xf32>
    %cst_40 = arith.constant 0.000000e+00 : f32
    %106 = vector.broadcast %cst_40 : f32 to vector<16x16x64xf32>
    %c2_i32_41 = arith.constant 2 : i32
    %107 = arith.addi %arg1, %c2_i32_41 : i32
    %c0_i32_42 = arith.constant 0 : i32
    %108 = arith.addi %107, %c0_i32_42 : i32
    %c3_i32_43 = arith.constant 3 : i32
    %c0_i32_44 = arith.constant 0 : i32
    %109 = arith.cmpi eq, %c3_i32_43, %c0_i32_44 : i32
    %c1_i32_45 = arith.constant 1 : i32
    %110 = arith.select %109, %c1_i32_45, %c3_i32_43 : i32
    %111 = arith.remsi %108, %110 : i32
    %c0_i32_46 = arith.constant 0 : i32
    %112 = arith.cmpi ne, %111, %c0_i32_46 : i32
    %c0_i32_47 = arith.constant 0 : i32
    %113 = arith.cmpi slt, %111, %c0_i32_47 : i32
    %c0_i32_48 = arith.constant 0 : i32
    %114 = arith.cmpi slt, %110, %c0_i32_48 : i32
    %115 = arith.xori %113, %114 : i1
    %116 = arith.andi %115, %112 : i1
    %117 = arith.addi %111, %110 : i32
    %118 = arith.select %116, %117, %111 : i32
    %119 = arith.index_cast %118 : i32 to index
    %c0_49 = arith.constant 0 : index
    %c0_50 = arith.constant 0 : index
    %c0_51 = arith.constant 0 : index
    %120 = vector.load %arg8[%119, %c0_49, %c0_50, %c0_51] : memref<3x18x18x64xf32, #tpu.memory_space<vmem>>, vector<1x18x18x64xf32>
    %121 = vector.shape_cast %120 : vector<1x18x18x64xf32> to vector<18x18x64xf32>
    %122 = vector.extract_strided_slice %121 {offsets = [0, 0, 0], sizes = [18, 16, 64], strides = [1, 1, 1]} : vector<18x18x64xf32> to vector<18x16x64xf32>
    %123 = vector.extract_strided_slice %122 {offsets = [0, 0, 0], sizes = [16, 16, 64], strides = [1, 1, 1]} : vector<18x16x64xf32> to vector<16x16x64xf32>
    %124 = vector.broadcast %27 : vector<1x1x64xf32> to vector<16x16x64xf32>
    %125 = arith.mulf %123, %124 : vector<16x16x64xf32>
    %126 = arith.addf %106, %125 : vector<16x16x64xf32>
    %127 = vector.extract_strided_slice %122 {offsets = [1, 0, 0], sizes = [16, 16, 64], strides = [1, 1, 1]} : vector<18x16x64xf32> to vector<16x16x64xf32>
    %128 = vector.broadcast %36 : vector<1x1x64xf32> to vector<16x16x64xf32>
    %129 = arith.mulf %127, %128 : vector<16x16x64xf32>
    %130 = arith.addf %126, %129 : vector<16x16x64xf32>
    %131 = vector.extract_strided_slice %122 {offsets = [2, 0, 0], sizes = [16, 16, 64], strides = [1, 1, 1]} : vector<18x16x64xf32> to vector<16x16x64xf32>
    %132 = vector.broadcast %45 : vector<1x1x64xf32> to vector<16x16x64xf32>
    %133 = arith.mulf %131, %132 : vector<16x16x64xf32>
    %134 = arith.addf %130, %133 : vector<16x16x64xf32>
    %135 = vector.extract_strided_slice %121 {offsets = [0, 1, 0], sizes = [18, 16, 64], strides = [1, 1, 1]} : vector<18x18x64xf32> to vector<18x16x64xf32>
    %136 = vector.extract_strided_slice %135 {offsets = [0, 0, 0], sizes = [16, 16, 64], strides = [1, 1, 1]} : vector<18x16x64xf32> to vector<16x16x64xf32>
    %137 = vector.broadcast %30 : vector<1x1x64xf32> to vector<16x16x64xf32>
    %138 = arith.mulf %136, %137 : vector<16x16x64xf32>
    %139 = arith.addf %134, %138 : vector<16x16x64xf32>
    %140 = vector.extract_strided_slice %135 {offsets = [1, 0, 0], sizes = [16, 16, 64], strides = [1, 1, 1]} : vector<18x16x64xf32> to vector<16x16x64xf32>
    %141 = vector.broadcast %39 : vector<1x1x64xf32> to vector<16x16x64xf32>
    %142 = arith.mulf %140, %141 : vector<16x16x64xf32>
    %143 = arith.addf %139, %142 : vector<16x16x64xf32>
    %144 = vector.extract_strided_slice %135 {offsets = [2, 0, 0], sizes = [16, 16, 64], strides = [1, 1, 1]} : vector<18x16x64xf32> to vector<16x16x64xf32>
    %145 = vector.broadcast %48 : vector<1x1x64xf32> to vector<16x16x64xf32>
    %146 = arith.mulf %144, %145 : vector<16x16x64xf32>
    %147 = arith.addf %143, %146 : vector<16x16x64xf32>
    %148 = vector.extract_strided_slice %121 {offsets = [0, 2, 0], sizes = [18, 16, 64], strides = [1, 1, 1]} : vector<18x18x64xf32> to vector<18x16x64xf32>
    %149 = vector.extract_strided_slice %148 {offsets = [0, 0, 0], sizes = [16, 16, 64], strides = [1, 1, 1]} : vector<18x16x64xf32> to vector<16x16x64xf32>
    %150 = vector.broadcast %33 : vector<1x1x64xf32> to vector<16x16x64xf32>
    %151 = arith.mulf %149, %150 : vector<16x16x64xf32>
    %152 = arith.addf %147, %151 : vector<16x16x64xf32>
    %153 = vector.extract_strided_slice %148 {offsets = [1, 0, 0], sizes = [16, 16, 64], strides = [1, 1, 1]} : vector<18x16x64xf32> to vector<16x16x64xf32>
    %154 = vector.broadcast %42 : vector<1x1x64xf32> to vector<16x16x64xf32>
    %155 = arith.mulf %153, %154 : vector<16x16x64xf32>
    %156 = arith.addf %152, %155 : vector<16x16x64xf32>
    %157 = vector.extract_strided_slice %148 {offsets = [2, 0, 0], sizes = [16, 16, 64], strides = [1, 1, 1]} : vector<18x16x64xf32> to vector<16x16x64xf32>
    %158 = vector.broadcast %51 : vector<1x1x64xf32> to vector<16x16x64xf32>
    %159 = arith.mulf %157, %158 : vector<16x16x64xf32>
    %160 = arith.addf %156, %159 : vector<16x16x64xf32>
    %c2_i32_52 = arith.constant 2 : i32
    %161 = arith.addi %arg1, %c2_i32_52 : i32
    %c1_i32_53 = arith.constant 1 : i32
    %162 = arith.addi %161, %c1_i32_53 : i32
    %c3_i32_54 = arith.constant 3 : i32
    %c0_i32_55 = arith.constant 0 : i32
    %163 = arith.cmpi eq, %c3_i32_54, %c0_i32_55 : i32
    %c1_i32_56 = arith.constant 1 : i32
    %164 = arith.select %163, %c1_i32_56, %c3_i32_54 : i32
    %165 = arith.remsi %162, %164 : i32
    %c0_i32_57 = arith.constant 0 : i32
    %166 = arith.cmpi ne, %165, %c0_i32_57 : i32
    %c0_i32_58 = arith.constant 0 : i32
    %167 = arith.cmpi slt, %165, %c0_i32_58 : i32
    %c0_i32_59 = arith.constant 0 : i32
    %168 = arith.cmpi slt, %164, %c0_i32_59 : i32
    %169 = arith.xori %167, %168 : i1
    %170 = arith.andi %169, %166 : i1
    %171 = arith.addi %165, %164 : i32
    %172 = arith.select %170, %171, %165 : i32
    %173 = arith.index_cast %172 : i32 to index
    %c0_60 = arith.constant 0 : index
    %c0_61 = arith.constant 0 : index
    %c0_62 = arith.constant 0 : index
    %174 = vector.load %arg8[%173, %c0_60, %c0_61, %c0_62] : memref<3x18x18x64xf32, #tpu.memory_space<vmem>>, vector<1x18x18x64xf32>
    %175 = vector.shape_cast %174 : vector<1x18x18x64xf32> to vector<18x18x64xf32>
    %176 = vector.extract_strided_slice %175 {offsets = [0, 0, 0], sizes = [18, 16, 64], strides = [1, 1, 1]} : vector<18x18x64xf32> to vector<18x16x64xf32>
    %177 = vector.extract_strided_slice %176 {offsets = [0, 0, 0], sizes = [16, 16, 64], strides = [1, 1, 1]} : vector<18x16x64xf32> to vector<16x16x64xf32>
    %178 = vector.broadcast %54 : vector<1x1x64xf32> to vector<16x16x64xf32>
    %179 = arith.mulf %177, %178 : vector<16x16x64xf32>
    %180 = arith.addf %160, %179 : vector<16x16x64xf32>
    %181 = vector.extract_strided_slice %176 {offsets = [1, 0, 0], sizes = [16, 16, 64], strides = [1, 1, 1]} : vector<18x16x64xf32> to vector<16x16x64xf32>
    %182 = vector.broadcast %63 : vector<1x1x64xf32> to vector<16x16x64xf32>
    %183 = arith.mulf %181, %182 : vector<16x16x64xf32>
    %184 = arith.addf %180, %183 : vector<16x16x64xf32>
    %185 = vector.extract_strided_slice %176 {offsets = [2, 0, 0], sizes = [16, 16, 64], strides = [1, 1, 1]} : vector<18x16x64xf32> to vector<16x16x64xf32>
    %186 = vector.broadcast %72 : vector<1x1x64xf32> to vector<16x16x64xf32>
    %187 = arith.mulf %185, %186 : vector<16x16x64xf32>
    %188 = arith.addf %184, %187 : vector<16x16x64xf32>
    %189 = vector.extract_strided_slice %175 {offsets = [0, 1, 0], sizes = [18, 16, 64], strides = [1, 1, 1]} : vector<18x18x64xf32> to vector<18x16x64xf32>
    %190 = vector.extract_strided_slice %189 {offsets = [0, 0, 0], sizes = [16, 16, 64], strides = [1, 1, 1]} : vector<18x16x64xf32> to vector<16x16x64xf32>
    %191 = vector.broadcast %57 : vector<1x1x64xf32> to vector<16x16x64xf32>
    %192 = arith.mulf %190, %191 : vector<16x16x64xf32>
    %193 = arith.addf %188, %192 : vector<16x16x64xf32>
    %194 = vector.extract_strided_slice %189 {offsets = [1, 0, 0], sizes = [16, 16, 64], strides = [1, 1, 1]} : vector<18x16x64xf32> to vector<16x16x64xf32>
    %195 = vector.broadcast %66 : vector<1x1x64xf32> to vector<16x16x64xf32>
    %196 = arith.mulf %194, %195 : vector<16x16x64xf32>
    %197 = arith.addf %193, %196 : vector<16x16x64xf32>
    %198 = vector.extract_strided_slice %189 {offsets = [2, 0, 0], sizes = [16, 16, 64], strides = [1, 1, 1]} : vector<18x16x64xf32> to vector<16x16x64xf32>
    %199 = vector.broadcast %75 : vector<1x1x64xf32> to vector<16x16x64xf32>
    %200 = arith.mulf %198, %199 : vector<16x16x64xf32>
    %201 = arith.addf %197, %200 : vector<16x16x64xf32>
    %202 = vector.extract_strided_slice %175 {offsets = [0, 2, 0], sizes = [18, 16, 64], strides = [1, 1, 1]} : vector<18x18x64xf32> to vector<18x16x64xf32>
    %203 = vector.extract_strided_slice %202 {offsets = [0, 0, 0], sizes = [16, 16, 64], strides = [1, 1, 1]} : vector<18x16x64xf32> to vector<16x16x64xf32>
    %204 = vector.broadcast %60 : vector<1x1x64xf32> to vector<16x16x64xf32>
    %205 = arith.mulf %203, %204 : vector<16x16x64xf32>
    %206 = arith.addf %201, %205 : vector<16x16x64xf32>
    %207 = vector.extract_strided_slice %202 {offsets = [1, 0, 0], sizes = [16, 16, 64], strides = [1, 1, 1]} : vector<18x16x64xf32> to vector<16x16x64xf32>
    %208 = vector.broadcast %69 : vector<1x1x64xf32> to vector<16x16x64xf32>
    %209 = arith.mulf %207, %208 : vector<16x16x64xf32>
    %210 = arith.addf %206, %209 : vector<16x16x64xf32>
    %211 = vector.extract_strided_slice %202 {offsets = [2, 0, 0], sizes = [16, 16, 64], strides = [1, 1, 1]} : vector<18x16x64xf32> to vector<16x16x64xf32>
    %212 = vector.broadcast %78 : vector<1x1x64xf32> to vector<16x16x64xf32>
    %213 = arith.mulf %211, %212 : vector<16x16x64xf32>
    %214 = arith.addf %210, %213 : vector<16x16x64xf32>
    %c2_i32_63 = arith.constant 2 : i32
    %215 = arith.addi %arg1, %c2_i32_63 : i32
    %c2_i32_64 = arith.constant 2 : i32
    %216 = arith.addi %215, %c2_i32_64 : i32
    %c3_i32_65 = arith.constant 3 : i32
    %c0_i32_66 = arith.constant 0 : i32
    %217 = arith.cmpi eq, %c3_i32_65, %c0_i32_66 : i32
    %c1_i32_67 = arith.constant 1 : i32
    %218 = arith.select %217, %c1_i32_67, %c3_i32_65 : i32
    %219 = arith.remsi %216, %218 : i32
    %c0_i32_68 = arith.constant 0 : i32
    %220 = arith.cmpi ne, %219, %c0_i32_68 : i32
    %c0_i32_69 = arith.constant 0 : i32
    %221 = arith.cmpi slt, %219, %c0_i32_69 : i32
    %c0_i32_70 = arith.constant 0 : i32
    %222 = arith.cmpi slt, %218, %c0_i32_70 : i32
    %223 = arith.xori %221, %222 : i1
    %224 = arith.andi %223, %220 : i1
    %225 = arith.addi %219, %218 : i32
    %226 = arith.select %224, %225, %219 : i32
    %227 = arith.index_cast %226 : i32 to index
    %c0_71 = arith.constant 0 : index
    %c0_72 = arith.constant 0 : index
    %c0_73 = arith.constant 0 : index
    %228 = vector.load %arg8[%227, %c0_71, %c0_72, %c0_73] : memref<3x18x18x64xf32, #tpu.memory_space<vmem>>, vector<1x18x18x64xf32>
    %229 = vector.shape_cast %228 : vector<1x18x18x64xf32> to vector<18x18x64xf32>
    %230 = vector.extract_strided_slice %229 {offsets = [0, 0, 0], sizes = [18, 16, 64], strides = [1, 1, 1]} : vector<18x18x64xf32> to vector<18x16x64xf32>
    %231 = vector.extract_strided_slice %230 {offsets = [0, 0, 0], sizes = [16, 16, 64], strides = [1, 1, 1]} : vector<18x16x64xf32> to vector<16x16x64xf32>
    %232 = vector.broadcast %81 : vector<1x1x64xf32> to vector<16x16x64xf32>
    %233 = arith.mulf %231, %232 : vector<16x16x64xf32>
    %234 = arith.addf %214, %233 : vector<16x16x64xf32>
    %235 = vector.extract_strided_slice %230 {offsets = [1, 0, 0], sizes = [16, 16, 64], strides = [1, 1, 1]} : vector<18x16x64xf32> to vector<16x16x64xf32>
    %236 = vector.broadcast %90 : vector<1x1x64xf32> to vector<16x16x64xf32>
    %237 = arith.mulf %235, %236 : vector<16x16x64xf32>
    %238 = arith.addf %234, %237 : vector<16x16x64xf32>
    %239 = vector.extract_strided_slice %230 {offsets = [2, 0, 0], sizes = [16, 16, 64], strides = [1, 1, 1]} : vector<18x16x64xf32> to vector<16x16x64xf32>
    %240 = vector.broadcast %99 : vector<1x1x64xf32> to vector<16x16x64xf32>
    %241 = arith.mulf %239, %240 : vector<16x16x64xf32>
    %242 = arith.addf %238, %241 : vector<16x16x64xf32>
    %243 = vector.extract_strided_slice %229 {offsets = [0, 1, 0], sizes = [18, 16, 64], strides = [1, 1, 1]} : vector<18x18x64xf32> to vector<18x16x64xf32>
    %244 = vector.extract_strided_slice %243 {offsets = [0, 0, 0], sizes = [16, 16, 64], strides = [1, 1, 1]} : vector<18x16x64xf32> to vector<16x16x64xf32>
    %245 = vector.broadcast %84 : vector<1x1x64xf32> to vector<16x16x64xf32>
    %246 = arith.mulf %244, %245 : vector<16x16x64xf32>
    %247 = arith.addf %242, %246 : vector<16x16x64xf32>
    %248 = vector.extract_strided_slice %243 {offsets = [1, 0, 0], sizes = [16, 16, 64], strides = [1, 1, 1]} : vector<18x16x64xf32> to vector<16x16x64xf32>
    %249 = vector.broadcast %93 : vector<1x1x64xf32> to vector<16x16x64xf32>
    %250 = arith.mulf %248, %249 : vector<16x16x64xf32>
    %251 = arith.addf %247, %250 : vector<16x16x64xf32>
    %252 = vector.extract_strided_slice %243 {offsets = [2, 0, 0], sizes = [16, 16, 64], strides = [1, 1, 1]} : vector<18x16x64xf32> to vector<16x16x64xf32>
    %253 = vector.broadcast %102 : vector<1x1x64xf32> to vector<16x16x64xf32>
    %254 = arith.mulf %252, %253 : vector<16x16x64xf32>
    %255 = arith.addf %251, %254 : vector<16x16x64xf32>
    %256 = vector.extract_strided_slice %229 {offsets = [0, 2, 0], sizes = [18, 16, 64], strides = [1, 1, 1]} : vector<18x18x64xf32> to vector<18x16x64xf32>
    %257 = vector.extract_strided_slice %256 {offsets = [0, 0, 0], sizes = [16, 16, 64], strides = [1, 1, 1]} : vector<18x16x64xf32> to vector<16x16x64xf32>
    %258 = vector.broadcast %87 : vector<1x1x64xf32> to vector<16x16x64xf32>
    %259 = arith.mulf %257, %258 : vector<16x16x64xf32>
    %260 = arith.addf %255, %259 : vector<16x16x64xf32>
    %261 = vector.extract_strided_slice %256 {offsets = [1, 0, 0], sizes = [16, 16, 64], strides = [1, 1, 1]} : vector<18x16x64xf32> to vector<16x16x64xf32>
    %262 = vector.broadcast %96 : vector<1x1x64xf32> to vector<16x16x64xf32>
    %263 = arith.mulf %261, %262 : vector<16x16x64xf32>
    %264 = arith.addf %260, %263 : vector<16x16x64xf32>
    %265 = vector.extract_strided_slice %256 {offsets = [2, 0, 0], sizes = [16, 16, 64], strides = [1, 1, 1]} : vector<18x16x64xf32> to vector<16x16x64xf32>
    %266 = vector.broadcast %105 : vector<1x1x64xf32> to vector<16x16x64xf32>
    %267 = arith.mulf %265, %266 : vector<16x16x64xf32>
    %268 = arith.addf %264, %267 : vector<16x16x64xf32>
    %269 = arith.mulf %268, %268 : vector<16x16x64xf32>
    %270 = arith.mulf %268, %269 : vector<16x16x64xf32>
    %cst_74 = arith.constant 4.471500e-02 : f32
    %271 = vector.broadcast %cst_74 : f32 to vector<16x16x64xf32>
    %272 = arith.mulf %271, %270 : vector<16x16x64xf32>
    %273 = arith.addf %268, %272 : vector<16x16x64xf32>
    %cst_75 = arith.constant 0.797884583 : f32
    %274 = vector.broadcast %cst_75 : f32 to vector<16x16x64xf32>
    %275 = arith.mulf %274, %273 : vector<16x16x64xf32>
    %276 = math.tanh %275 : vector<16x16x64xf32>
    %cst_76 = arith.constant 1.000000e+00 : f32
    %277 = vector.broadcast %cst_76 : f32 to vector<16x16x64xf32>
    %278 = arith.addf %277, %276 : vector<16x16x64xf32>
    %cst_77 = arith.constant 5.000000e-01 : f32
    %279 = vector.broadcast %cst_77 : f32 to vector<16x16x64xf32>
    %280 = arith.mulf %279, %278 : vector<16x16x64xf32>
    %281 = arith.mulf %268, %280 : vector<16x16x64xf32>
    %282 = vector.shape_cast %281 : vector<16x16x64xf32> to vector<256x64xf32>
    %c0_78 = arith.constant 0 : index
    %c0_79 = arith.constant 0 : index
    %283 = vector.load %arg6[%c0_78, %c0_79] : memref<64x16xf32, #tpu.memory_space<vmem>>, vector<64x16xf32>
    %cst_80 = arith.constant dense<0.000000e+00> : vector<256x16xf32>
    %284 = tpu.matmul %282, %283, %cst_80 {dimension_numbers = #tpu.dot_dimension_numbers<[1], [0], [0], [1], [0, 0, 1, 1], [], []>} : vector<256x64xf32>, vector<64x16xf32>, vector<256x16xf32> -> vector<256x16xf32>
    %285 = vector.shape_cast %284 : vector<256x16xf32> to vector<16x16x16xf32>
    %c0_81 = arith.constant 0 : index
    %c0_82 = arith.constant 0 : index
    %c0_83 = arith.constant 0 : index
    %c0_84 = arith.constant 0 : index
    %c0_85 = arith.constant 0 : index
    %286 = vector.load %arg2[%c0_81, %c0_82, %c0_83, %c0_84, %c0_85] : memref<1x1x16x16x16xf32, #tpu.memory_space<vmem>>, vector<1x1x16x16x16xf32>
    %287 = vector.shape_cast %286 : vector<1x1x16x16x16xf32> to vector<16x16x16xf32>
    %288 = arith.addf %285, %287 : vector<16x16x16xf32>
    %c0_86 = arith.constant 0 : index
    %c0_87 = arith.constant 0 : index
    %c0_88 = arith.constant 0 : index
    %c0_89 = arith.constant 0 : index
    %c0_90 = arith.constant 0 : index
    %289 = vector.load %arg7[%c0_86, %c0_87, %c0_88, %c0_89, %c0_90] : memref<1x1x16x16x16xf32, #tpu.memory_space<vmem>>, vector<1x1x16x16x16xf32>
    %290 = vector.shape_cast %289 : vector<1x1x16x16x16xf32> to vector<16x16x16xf32>
    %291 = vector.shape_cast %288 : vector<16x16x16xf32> to vector<1x1x16x16x16xf32>
    tpu.vector_store %arg7[%c0_86, %c0_87, %c0_88, %c0_89, %c0_90], %291 {strides = array<i32>} : memref<1x1x16x16x16xf32, #tpu.memory_space<vmem>>, vector<1x1x16x16x16xf32>,
    return
  }
  func.func @transform_0(%arg0: i32, %arg1: i32) -> (i32, i32, i32, i32, i32) {
    %c0_i32 = arith.constant 0 : i32
    %c0_i32_0 = arith.constant 0 : i32
    %c0_i32_1 = arith.constant 0 : i32
    %c0_i32_2 = arith.constant 0 : i32
    return %arg0, %arg1, %c0_i32, %c0_i32_0, %c0_i32_1 : i32, i32, i32, i32, i32
  }
  func.func @transform_1(%arg0: i32, %arg1: i32) -> (i32, i32, i32, i32, i32) {
    %c1_i32 = arith.constant 1 : i32
    %0 = arith.addi %arg1, %c1_i32 : i32
    %c1_i32_0 = arith.constant 1 : i32
    %1 = arith.minsi %0, %c1_i32_0 : i32
    %c0_i32 = arith.constant 0 : i32
    %c0_i32_1 = arith.constant 0 : i32
    %c0_i32_2 = arith.constant 0 : i32
    %c0_i32_3 = arith.constant 0 : i32
    return %arg0, %1, %c0_i32, %c0_i32_1, %c0_i32_2 : i32, i32, i32, i32, i32
  }
  func.func @transform_2(%arg0: i32, %arg1: i32) -> (i32, i32) {
    %c0_i32 = arith.constant 0 : i32
    %c0_i32_0 = arith.constant 0 : i32
    %c0_i32_1 = arith.constant 0 : i32
    return %c0_i32, %c0_i32_0 : i32, i32
  }
  func.func @transform_3(%arg0: i32, %arg1: i32) -> (i32, i32) {
    %c0_i32 = arith.constant 0 : i32
    %c0_i32_0 = arith.constant 0 : i32
    %c0_i32_1 = arith.constant 0 : i32
    return %c0_i32, %c0_i32_0 : i32, i32
  }
  func.func @transform_4(%arg0: i32, %arg1: i32) -> (i32, i32) {
    %c0_i32 = arith.constant 0 : i32
    %c0_i32_0 = arith.constant 0 : i32
    %c0_i32_1 = arith.constant 0 : i32
    return %c0_i32, %c0_i32_0 : i32, i32
  }
  func.func @transform_5(%arg0: i32, %arg1: i32) -> (i32, i32, i32, i32, i32) {
    %c0_i32 = arith.constant 0 : i32
    %c0_i32_0 = arith.constant 0 : i32
    %c0_i32_1 = arith.constant 0 : i32
    %c0_i32_2 = arith.constant 0 : i32
    return %arg0, %arg1, %c0_i32, %c0_i32_0, %c0_i32_1 : i32, i32, i32, i32, i32
  }
}

</mosaic_0001>

<llo_original>
// kernel: fab_forward.2
$region0: #{fab_forward.2}
  #allocation0 [shape = 'u32[]', space=smem, size = 0x4, offset = 0x4, fixed_abs, tag = 'smem constant byte address 0x4 - core index']
  #allocation1 [shape = 'u32[72,128]{1,0:T(1,128)}', space=vmem, size = 0x9000, scoped, tag = 'internal scratch']
  %s0 = inlined_call_operand.vmem [shape: f32[16,64,16], index: 0, kind: input, shape index: {}]
  %s1 = inlined_call_operand.vmem [shape: f32[16,52], index: 1, kind: input, shape index: {}]
  %s2 = inlined_call_operand.vmem [shape: f32[2], index: 2, kind: input, shape index: {}]
  %s3 = inlined_call_operand.vmem [shape: f32[1,64], index: 3, kind: input, shape index: {}]
  %s4 = inlined_call_operand.vmem [shape: f32[64,64], index: 4, kind: input, shape index: {}]
  %s5 = inlined_call_operand.vmem [shape: f32[64,1], index: 5, kind: input, shape index: {}]
  %s6 = inlined_call_operand.vmem [shape: f32[16,16], index: 6, kind: input, shape index: {}]
  %s7 = inlined_call_operand.vmem [shape: f32[1,16], index: 7, kind: input, shape index: {}]
  %s8 = inlined_call_operand.vmem [shape: f32[16,64,16], index: 8, kind: output, shape index: {}]
  %s9 = sld [smem:[#allocation0]]
  $region76: #{fab_forward.2} parent=0
    _
  %s11 = ssub.s32 1, %s9
  %s12 = scalar_select 0, %s11, %s9
  $region1: #{fab_forward.2} parent=0
    #allocation2 [shape = 'u8[512]{0}', space=smem, size = 0x200, scoped, tag = 'input window, operand 2, single buffered']
    #allocation3 [shape = 's32[2]{0}', space=sflag, size = 0x8, scoped, tag = 'scoped memory for fab_forward.2']
    %13 = vsyncpa [#allocation3], 0
    loop: start=0, step=1, limit=10
    $region2: #{fab_forward.2} parent=1 // loop_pre_header
      _
    $region3: #{fab_forward.2} parent=1 // loop_header
      %s15 = sphi 0, %s19
      %p16 = scmp.ge.s32.totalorder %s15, 10
      %s25 = sphi 0, %s27
      %s28 = sphi 0, %s25
      %s29 = sphi 0, %s28
      %s45 = sphi 0, %s29
      %s49 = sphi 0, %s49
      %s51 = sphi 0, %s49
      %s52 = sphi 0, %s51
      %s66 = sphi 0, %s52
      %s70 = sphi 0, %s70
      %s72 = sphi 0, %s70
      %s73 = sphi 0, %s72
      %s87 = sphi 0, %s73
      %s91 = sphi 0, %s91
      %s93 = sphi 0, %s91
      %s94 = sphi 0, %s93
      %s108 = sphi 0, %s94
      %s112 = sphi 0, %s112
      %s114 = sphi 0, %s112
      %s115 = sphi 0, %s114
      %s129 = sphi 0, %s115
      %s133 = sphi 0, %s133
      %s135 = sphi 0, %s133
      %s136 = sphi 0, %s135
      %s150 = sphi 0, %s136
      %s154 = sphi 0, %s154
      %s156 = sphi 0, %s154
      %s157 = sphi 0, %s156
      %s171 = sphi 0, %s157
      %s175 = sphi 0, %s175
      %s177 = sphi 0, %s175
      %s178 = sphi 0, %s177
      %s192 = sphi 0, %s178
      %s198 = sphi 0, %s200
      %s201 = sphi 0, %s198
      %s202 = sphi 0, %s201
      %s218 = sphi 0, %s202
    $region4: #{fab_forward.2} parent=1 // loop_header_branch
      %18 = sbr.rel (%p16) target = $region8
    $region5: #{fab_forward.2} parent=1 // loop_body
      %s20 = ssub.s32 %s15, 1
      %s21 = ssub.s32 %s15, 2
      %s22 = sadd.s32 %s15, 1
      %s23 = ssub.s32 %s15, %s22
      %p24 = scmp.eq.s32.totalorder %s23, 0
      %s26 = sadd.s32 %s25, 1
      %s27 = scalar_select %p24, %s25, %s26
      %p30 = pneg %p24
      %p31 = scmp.eq.s32.totalorder %s15, 7
      %p32 = por %p30, %p31
      %p33 = scmp.ne.s32.totalorder %s25, %s28
      %p34 = scmp.eq.s32.totalorder %s15, 0
      %p35 = por %p33, %p34
      %p36 = scmp.ne.s32.totalorder %s25, %s28
      %p37 = scmp.eq.s32.totalorder %s20, 7
      %p38 = por %p36, %p37
      %p39 = scmp.ne.s32.totalorder %s28, %s29
      %p40 = scmp.eq.s32.totalorder %s20, 0
      %p41 = por %p39, %p40
      %p42 = scmp.ne.s32.totalorder %s28, %s29
      %p43 = scmp.eq.s32.totalorder %s21, 7
      %p44 = por %p42, %p43
      %p46 = scmp.ne.s32.totalorder %s29, %s45
      %p47 = scmp.eq.s32.totalorder %s21, 0
      %p48 = por %p46, %p47
      %s50 = sadd.s32 %s49, 1
      %p53 = scmp.eq.s32.totalorder %s15, 7
      %p54 = scmp.ne.s32.totalorder %s49, %s51
      %p55 = scmp.eq.s32.totalorder %s15, 0
      %p56 = por %p54, %p55
      %p57 = scmp.ne.s32.totalorder %s49, %s51
      %p58 = scmp.eq.s32.totalorder %s20, 7
      %p59 = por %p57, %p58
      %p60 = scmp.ne.s32.totalorder %s51, %s52
      %p61 = scmp.eq.s32.totalorder %s20, 0
      %p62 = por %p60, %p61
      %p63 = scmp.ne.s32.totalorder %s51, %s52
      %p64 = scmp.eq.s32.totalorder %s21, 7
      %p65 = por %p63, %p64
      %p67 = scmp.ne.s32.totalorder %s52, %s66
      %p68 = scmp.eq.s32.totalorder %s21, 0
      %p69 = por %p67, %p68
      %s71 = sadd.s32 %s70, 1
      %p74 = scmp.eq.s32.totalorder %s15, 7
      %p75 = scmp.ne.s32.totalorder %s70, %s72
      %p76 = scmp.eq.s32.totalorder %s15, 0
      %p77 = por %p75, %p76
      %p78 = scmp.ne.s32.totalorder %s70, %s72
      %p79 = scmp.eq.s32.totalorder %s20, 7
      %p80 = por %p78, %p79
      %p81 = scmp.ne.s32.totalorder %s72, %s73
      %p82 = scmp.eq.s32.totalorder %s20, 0
      %p83 = por %p81, %p82
      %p84 = scmp.ne.s32.totalorder %s72, %s73
      %p85 = scmp.eq.s32.totalorder %s21, 7
      %p86 = por %p84, %p85
      %p88 = scmp.ne.s32.totalorder %s73, %s87
      %p89 = scmp.eq.s32.totalorder %s21, 0
      %p90 = por %p88, %p89
      %s92 = sadd.s32 %s91, 1
      %p95 = scmp.eq.s32.totalorder %s15, 7
      %p96 = scmp.ne.s32.totalorder %s91, %s93
      %p97 = scmp.eq.s32.totalorder %s15, 0
      %p98 = por %p96, %p97
      %p99 = scmp.ne.s32.totalorder %s91, %s93
      %p100 = scmp.eq.s32.totalorder %s20, 7
      %p101 = por %p99, %p100
      %p102 = scmp.ne.s32.totalorder %s93, %s94
      %p103 = scmp.eq.s32.totalorder %s20, 0
      %p104 = por %p102, %p103
      %p105 = scmp.ne.s32.totalorder %s93, %s94
      %p106 = scmp.eq.s32.totalorder %s21, 7
      %p107 = por %p105, %p106
      %p109 = scmp.ne.s32.totalorder %s94, %s108
      %p110 = scmp.eq.s32.totalorder %s21, 0
      %p111 = por %p109, %p110
      %s113 = sadd.s32 %s112, 1
      %p116 = scmp.eq.s32.totalorder %s15, 7
      %p117 = scmp.ne.s32.totalorder %s112, %s114
      %p118 = scmp.eq.s32.totalorder %s15, 0
      %p119 = por %p117, %p118
      %p120 = scmp.ne.s32.totalorder %s112, %s114
      %p121 = scmp.eq.s32.totalorder %s20, 7
      %p122 = por %p120, %p121
      %p123 = scmp.ne.s32.totalorder %s114, %s115
      %p124 = scmp.eq.s32.totalorder %s20, 0
      %p125 = por %p123, %p124
      %p126 = scmp.ne.s32.totalorder %s114, %s115
      %p127 = scmp.eq.s32.totalorder %s21, 7
      %p128 = por %p126, %p127
      %p130 = scmp.ne.s32.totalorder %s115, %s129
      %p131 = scmp.eq.s32.totalorder %s21, 0
      %p132 = por %p130, %p131
      %s134 = sadd.s32 %s133, 1
      %p137 = scmp.eq.s32.totalorder %s15, 7
      %p138 = scmp.ne.s32.totalorder %s133, %s135
      %p139 = scmp.eq.s32.totalorder %s15, 0
      %p140 = por %p138, %p139
      %p141 = scmp.ne.s32.totalorder %s133, %s135
      %p142 = scmp.eq.s32.totalorder %s20, 7
      %p143 = por %p141, %p142
      %p144 = scmp.ne.s32.totalorder %s135, %s136
      %p145 = scmp.eq.s32.totalorder %s20, 0
      %p146 = por %p144, %p145
      %p147 = scmp.ne.s32.totalorder %s135, %s136
      %p148 = scmp.eq.s32.totalorder %s21, 7
      %p149 = por %p147, %p148
      %p151 = scmp.ne.s32.totalorder %s136, %s150
      %p152 = scmp.eq.s32.totalorder %s21, 0
      %p153 = por %p151, %p152
      %s155 = sadd.s32 %s154, 1
      %p158 = scmp.eq.s32.totalorder %s15, 7
      %p159 = scmp.ne.s32.totalorder %s154, %s156
      %p160 = scmp.eq.s32.totalorder %s15, 0
      %p161 = por %p159, %p160
      %p162 = scmp.ne.s32.totalorder %s154, %s156
      %p163 = scmp.eq.s32.totalorder %s20, 7
      %p164 = por %p162, %p163
      %p165 = scmp.ne.s32.totalorder %s156, %s157
      %p166 = scmp.eq.s32.totalorder %s20, 0
      %p167 = por %p165, %p166
      %p168 = scmp.ne.s32.totalorder %s156, %s157
      %p169 = scmp.eq.s32.totalorder %s21, 7
      %p170 = por %p168, %p169
      %p172 = scmp.ne.s32.totalorder %s157, %s171
      %p173 = scmp.eq.s32.totalorder %s21, 0
      %p174 = por %p172, %p173
      %s176 = sadd.s32 %s175, 1
      %p179 = scmp.eq.s32.totalorder %s15, 7
      %p180 = scmp.ne.s32.totalorder %s175, %s177
      %p181 = scmp.eq.s32.totalorder %s15, 0
      %p182 = por %p180, %p181
      %p183 = scmp.ne.s32.totalorder %s175, %s177
      %p184 = scmp.eq.s32.totalorder %s20, 7
      %p185 = por %p183, %p184
      %p186 = scmp.ne.s32.totalorder %s177, %s178
      %p187 = scmp.eq.s32.totalorder %s20, 0
      %p188 = por %p186, %p187
      %p189 = scmp.ne.s32.totalorder %s177, %s178
      %p190 = scmp.eq.s32.totalorder %s21, 7
      %p191 = por %p189, %p190
      %p193 = scmp.ne.s32.totalorder %s178, %s192
      %p194 = scmp.eq.s32.totalorder %s21, 0
      %p195 = por %p193, %p194
      %s196 = ssub.s32 %s15, %s22
      %p197 = scmp.eq.s32.totalorder %s196, 0
      %s199 = sadd.s32 %s198, 1
      %s200 = scalar_select %p197, %s198, %s199
      %p203 = pneg %p197
      %p204 = scmp.eq.s32.totalorder %s15, 7
      %p205 = por %p203, %p204
      %p206 = scmp.ne.s32.totalorder %s198, %s201
      %p207 = scmp.eq.s32.totalorder %s15, 0
      %p208 = por %p206, %p207
      %p209 = scmp.ne.s32.totalorder %s198, %s201
      %p210 = scmp.eq.s32.totalorder %s20, 7
      %p211 = por %p209, %p210
      %p212 = scmp.ne.s32.totalorder %s201, %s202
      %p213 = scmp.eq.s32.totalorder %s20, 0
      %p214 = por %p212, %p213
      %p215 = scmp.ne.s32.totalorder %s201, %s202
      %p216 = scmp.eq.s32.totalorder %s21, 7
      %p217 = por %p215, %p216
      %p219 = scmp.ne.s32.totalorder %s202, %s218
      %p220 = scmp.eq.s32.totalorder %s21, 0
      %p221 = por %p219, %p220
      %p222 = scmp.le.s32.totalorder 1, %s15
      %p223 = scmp.lt.s32.totalorder %s15, 9
      %p224 = pnand %p222, %p223
      %p225 = pneg %p224
      // Predicated region
      $region9: #{fab_forward.2} parent=5 // pred_check
        _
      $region10: #{fab_forward.2} parent=5 // pred_check_branch
        %227 = sbr.rel (%p224) target = $region12
      $region11: #{fab_forward.2} parent=5 // pred_region
        %s228 = ssub.s32 %s15, 1
        // Predicated region
        $region13: #{fab_forward.2} parent=11 // pred_check
          %p229 = pneg %p62
        $region14: #{fab_forward.2} parent=11 // pred_check_branch
          %231 = sbr.rel (%p229) target = $region16
        $region15: #{fab_forward.2} parent=11 // pred_region
          _
        $region16: #{fab_forward.2} parent=11 // pred_fallthru
          _
        // Predicated region
        $region17: #{fab_forward.2} parent=11 // pred_check
          %p232 = pneg %p83
        $region18: #{fab_forward.2} parent=11 // pred_check_branch
          %234 = sbr.rel (%p232) target = $region20
        $region19: #{fab_forward.2} parent=11 // pred_region
          %236 = vsyncadd [#allocation3], 0
          %s238 = sshll.u32 %s2, 4
          %s239 = int_to_ptr.vmem [resolvable:$true] %s238
          %241 = dma.vmem_to_smem %s239, 16, [#allocation2], [#allocation3]
        $region20: #{fab_forward.2} parent=11 // pred_fallthru
          _
        // Predicated region
        $region21: #{fab_forward.2} parent=11 // pred_check
          %p242 = pneg %p104
        $region22: #{fab_forward.2} parent=11 // pred_check_branch
          %244 = sbr.rel (%p242) target = $region24
        $region23: #{fab_forward.2} parent=11 // pred_region
          _
        $region24: #{fab_forward.2} parent=11 // pred_fallthru
          _
        // Predicated region
        $region25: #{fab_forward.2} parent=11 // pred_check
          %p245 = pneg %p125
        $region26: #{fab_forward.2} parent=11 // pred_check_branch
          %247 = sbr.rel (%p245) target = $region28
        $region27: #{fab_forward.2} parent=11 // pred_region
          _
        $region28: #{fab_forward.2} parent=11 // pred_fallthru
          _
        // Predicated region
        $region29: #{fab_forward.2} parent=11 // pred_check
          %p248 = pneg %p146
        $region30: #{fab_forward.2} parent=11 // pred_check_branch
          %250 = sbr.rel (%p248) target = $region32
        $region31: #{fab_forward.2} parent=11 // pred_region
          _
        $region32: #{fab_forward.2} parent=11 // pred_fallthru
          _
        // Predicated region
        $region33: #{fab_forward.2} parent=11 // pred_check
          %p251 = pneg %p167
        $region34: #{fab_forward.2} parent=11 // pred_check_branch
          %253 = sbr.rel (%p251) target = $region36
        $region35: #{fab_forward.2} parent=11 // pred_region
          _
        $region36: #{fab_forward.2} parent=11 // pred_fallthru
          _
        // Predicated region
        $region37: #{fab_forward.2} parent=11 // pred_check
          %p254 = pneg %p188
        $region38: #{fab_forward.2} parent=11 // pred_check_branch
          %256 = sbr.rel (%p254) target = $region40
        $region39: #{fab_forward.2} parent=11 // pred_region
          _
        $region40: #{fab_forward.2} parent=11 // pred_fallthru
          _
      $region12: #{fab_forward.2} parent=5 // pred_fallthru
        _
      %p257 = scmp.lt.s32.totalorder %s15, 8
      // Predicated region
      $region41: #{fab_forward.2} parent=5 // pred_check
        %p258 = pneg %p257
      $region42: #{fab_forward.2} parent=5 // pred_check_branch
        %260 = sbr.rel (%p258) target = $region44
      $region43: #{fab_forward.2} parent=5 // pred_region
        // Predicated region
        $region45: #{fab_forward.2} parent=43 // pred_check
          %p261 = pneg %p35
        $region46: #{fab_forward.2} parent=43 // pred_check_branch
          %263 = sbr.rel (%p261) target = $region48
        $region47: #{fab_forward.2} parent=43 // pred_region
          %s264 = smul.u32 2, %s15
          %p265 = scmp.lt.s32.totalorder %s264, 15
          %s266 = scalar_select %p265, %s264, 15
          %s267 = smul.addr %s266, 8
          %s268 = smul.addr %s267, 8
          %s269 = scalar_lea.vmem %s0, %s268
          %s270 = smul.u32 2, %s15
        $region48: #{fab_forward.2} parent=43 // pred_fallthru
          _
      $region44: #{fab_forward.2} parent=5 // pred_fallthru
        _
      %p271 = scmp.le.s32.totalorder 1, %s15
      %p272 = scmp.lt.s32.totalorder %s15, 9
      %p273 = pnand %p271, %p272
      %p274 = pneg %p273
      // Predicated region
      $region49: #{fab_forward.2} parent=5 // pred_check
        _
      $region50: #{fab_forward.2} parent=5 // pred_check_branch
        %276 = sbr.rel (%p273) target = $region52
      $region51: #{fab_forward.2} parent=5 // pred_region
        %s277 = ssub.s32 %s15, 1
        // Predicated region
        $region53: #{fab_forward.2} parent=51 // pred_check
          %p278 = pneg %p83
        $region54: #{fab_forward.2} parent=51 // pred_check_branch
          %280 = sbr.rel (%p278) target = $region56
        $region55: #{fab_forward.2} parent=51 // pred_region
          %282 = dma.done [#allocation3], 16
        $region56: #{fab_forward.2} parent=51 // pred_fallthru
          _
        %283 = sfence
        %s284 = smul.u32 2, %s20
        %p285 = scmp.lt.s32.totalorder %s284, 15
        %s286 = scalar_select %p285, %s284, 15
        %s287 = smul.addr %s286, 8
        %s288 = smul.addr %s287, 8
        %s289 = scalar_lea.vmem %s0, %s288
        %p290 = pneg %p41
        %p291 = pneg %p38
        %p292 = pneg %p62
        %p293 = pneg %p59
        %p294 = pneg %p83
        %p295 = pneg %p80
        %p296 = pneg %p104
        %p297 = pneg %p101
        %p298 = pneg %p125
        %p299 = pneg %p122
        %p300 = pneg %p146
        %p301 = pneg %p143
        %p302 = pneg %p167
        %p303 = pneg %p164
        %p304 = pneg %p188
        %p305 = pneg %p185
        %p306 = pneg %p214
        %p307 = pneg %p211
        %s308 = smul.u32 2, %s20
        %p309 = scmp.lt.s32.totalorder %s308, 15
        %s310 = scalar_select %p309, %s308, 15
        %s311 = smul.addr %s310, 8
        %s312 = smul.addr %s311, 8
        %s313 = scalar_lea.vmem %s8, %s312
        %s314 = smul.u32 2, %s20
        %p315 = scmp.lt.s32.totalorder %s314, 15
        %s316 = scalar_select %p315, %s314, 15
        %s317 = smul.addr %s316, 8
        %s318 = smul.addr %s317, 8
        %s319 = scalar_lea.vmem %s0, %s318
        %s320 = smul.u32 2, %s20
        %s321 = smul.u32 2, %s20
        %p322 = scmp.lt.s32.totalorder %s321, 15
        %s323 = scalar_select %p322, %s321, 15
        %s324 = smul.addr %s323, 8
        %s325 = smul.addr %s324, 8
        %s326 = scalar_lea.vmem %s8, %s325
        %s327 = smul.u32 2, %s20
        %s328 = sld [smem:[#allocation2]]
        %s329 = sld [smem:[#allocation2 + $0x1]]
        %v330 = vld [vmem:[%s1] sm:$0xff]
        %v331 = vld [vmem:[%s1 + $0x8] sm:$0xff]
        %v332 = vld [vmem:[%s3] sm:$0x1]
        %v333 = vld [vmem:[%s4] sm:$0xff]
        %v334 = vld [vmem:[%s4 + $0x8] sm:$0xff]
        %v335 = vld [vmem:[%s4 + $0x10] sm:$0xff]
        %v336 = vld [vmem:[%s4 + $0x18] sm:$0xff]
        %v337 = vld [vmem:[%s4 + $0x20] sm:$0xff]
        %v338 = vld [vmem:[%s4 + $0x28] sm:$0xff]
        %v339 = vld [vmem:[%s4 + $0x30] sm:$0xff]
        %v340 = vld [vmem:[%s4 + $0x38] sm:$0xff]
        %v341 = vld [vmem:[%s5] sm:$0xff]
        %v342 = vld [vmem:[%s5 + $0x8] sm:$0xff]
        %v343 = vld [vmem:[%s5 + $0x10] sm:$0xff]
        %v344 = vld [vmem:[%s5 + $0x18] sm:$0xff]
        %v345 = vld [vmem:[%s5 + $0x20] sm:$0xff]
        %v346 = vld [vmem:[%s5 + $0x28] sm:$0xff]
        %v347 = vld [vmem:[%s5 + $0x30] sm:$0xff]
        %v348 = vld [vmem:[%s5 + $0x38] sm:$0xff]
        %v349 = vld [vmem:[%s7] sm:$0x1]
        %v350 = vld [vmem:[%s6] sm:$0xff]
        %v351 = vld [vmem:[%s6 + $0x8] sm:$0xff]
        %v352 = vlaneseq
        %v353 = vshrl.u32 %v352, 7
        %v354 = vadd.s32 %v353, 8
        %v355 = vadd.s32 %v353, 16
        %v356 = vadd.s32 %v353, 24
        %v357 = vadd.s32 %v353, 32
        %v358 = vadd.s32 %v353, 40
        %v359 = vadd.s32 %v353, 48
        %v360 = vadd.s32 %v353, 56
        %v361 = vlaneseq
        %v362 = vand.u32 %v361, 127
        %vm363 = vcmp.eq.s32.totalorder %v353, %v362
        %vm364 = vcmp.eq.s32.totalorder %v354, %v362
        %vm365 = vcmp.eq.s32.totalorder %v355, %v362
        %vm366 = vcmp.eq.s32.totalorder %v356, %v362
        %vm367 = vcmp.eq.s32.totalorder %v357, %v362
        %vm368 = vcmp.eq.s32.totalorder %v358, %v362
        %vm369 = vcmp.eq.s32.totalorder %v359, %v362
        %vm370 = vcmp.eq.s32.totalorder %v360, %v362
        loop: start=0, step=1, limit=2
        $region57: #{fab_forward.2} parent=51 // loop_pre_header
          _
        $region58: #{fab_forward.2} parent=51 // loop_header
          %s372 = sphi 0, %s376
          %p373 = scmp.ge.s32.totalorder %s372, 2
        $region59: #{fab_forward.2} parent=51 // loop_header_branch
          %375 = sbr.rel (%p373) target = $region63
        $region60: #{fab_forward.2} parent=51 // loop_body
          %s377 = smul.u32 %s372, 64
          %s378 = scalar_lea.vmem %s319, %s377
          %v379 = vld [vmem:[%s378] sm:$0xff]
          %v380 = vld [vmem:[%s378 + $0x8] sm:$0xff]
          %v381 = vld [vmem:[%s378 + $0x10] sm:$0xff]
          %v382 = vld [vmem:[%s378 + $0x18] sm:$0xff]
          %v383 = vld [vmem:[%s378 + $0x20] sm:$0xff]
          %v384 = vld [vmem:[%s378 + $0x28] sm:$0xff]
          %v385 = vld [vmem:[%s378 + $0x30] sm:$0xff]
          %v386 = vld [vmem:[%s378 + $0x38] sm:$0xff]
          %vm387 = vcmask 130048
          %v388 = vsel %vm387, %v379, 0.0
          %389 = vadd.xlane.f32.xlu0 %v388
          %v390 = vpop.xlane.xlu0 %389
          %v391 = vsel %vm387, %v380, 0.0
          %392 = vadd.xlane.f32.xlu0 %v391
          %v393 = vpop.xlane.xlu0 %392
          %v394 = vsel %vm387, %v381, 0.0
          %395 = vadd.xlane.f32.xlu0 %v394
          %v396 = vpop.xlane.xlu0 %395
          %v397 = vsel %vm387, %v382, 0.0
          %398 = vadd.xlane.f32.xlu0 %v397
          %v399 = vpop.xlane.xlu0 %398
          %v400 = vsel %vm387, %v383, 0.0
          %401 = vadd.xlane.f32.xlu0 %v400
          %v402 = vpop.xlane.xlu0 %401
          %v403 = vsel %vm387, %v384, 0.0
          %404 = vadd.xlane.f32.xlu0 %v403
          %v405 = vpop.xlane.xlu0 %404
          %v406 = vsel %vm387, %v385, 0.0
          %407 = vadd.xlane.f32.xlu0 %v406
          %v408 = vpop.xlane.xlu0 %407
          %v409 = vsel %vm387, %v386, 0.0
          %410 = vadd.xlane.f32.xlu0 %v409
          %v411 = vpop.xlane.xlu0 %410
          %v412 = vrcp.pop 16.0
          %v413 = vmul.f32 16.0, %v412
          %v414 = vsub.f32 1.0, %v413
          %v415 = vmul.f32 %v412, %v414
          %v416 = vadd.f32 %v412, %v415
          %vm417 = vweird.f32 %v412
          %v418 = vsel %vm417, %v412, %v416
          %v419 = vmul.f32 %v390, %v418
          %v420 = vmul.f32 %v393, %v418
          %v421 = vmul.f32 %v396, %v418
          %v422 = vmul.f32 %v399, %v418
          %v423 = vmul.f32 %v402, %v418
          %v424 = vmul.f32 %v405, %v418
          %v425 = vmul.f32 %v408, %v418
          %v426 = vmul.f32 %v411, %v418
          %v427 = vsub.f32 %v379, %v419
          %v428 = vsub.f32 %v380, %v420
          %v429 = vsub.f32 %v381, %v421
          %v430 = vsub.f32 %v382, %v422
          %v431 = vsub.f32 %v383, %v423
          %v432 = vsub.f32 %v384, %v424
          %v433 = vsub.f32 %v385, %v425
          %v434 = vsub.f32 %v386, %v426
          %v435 = vmul.f32 %v427, %v427
          %v436 = vmul.f32 %v428, %v428
          %v437 = vmul.f32 %v429, %v429
          %v438 = vmul.f32 %v430, %v430
          %v439 = vmul.f32 %v431, %v431
          %v440 = vmul.f32 %v432, %v432
          %v441 = vmul.f32 %v433, %v433
          %v442 = vmul.f32 %v434, %v434
          %v443 = vsel %vm387, %v435, 0.0
          %444 = vadd.xlane.f32.xlu0 %v443
          %v445 = vpop.xlane.xlu0 %444
          %v446 = vsel %vm387, %v436, 0.0
          %447 = vadd.xlane.f32.xlu0 %v446
          %v448 = vpop.xlane.xlu0 %447
          %v449 = vsel %vm387, %v437, 0.0
          %450 = vadd.xlane.f32.xlu0 %v449
          %v451 = vpop.xlane.xlu0 %450
          %v452 = vsel %vm387, %v438, 0.0
          %453 = vadd.xlane.f32.xlu0 %v452
          %v454 = vpop.xlane.xlu0 %453
          %v455 = vsel %vm387, %v439, 0.0
          %456 = vadd.xlane.f32.xlu0 %v455
          %v457 = vpop.xlane.xlu0 %456
          %v458 = vsel %vm387, %v440, 0.0
          %459 = vadd.xlane.f32.xlu0 %v458
          %v460 = vpop.xlane.xlu0 %459
          %v461 = vsel %vm387, %v441, 0.0
          %462 = vadd.xlane.f32.xlu0 %v461
          %v463 = vpop.xlane.xlu0 %462
          %v464 = vsel %vm387, %v442, 0.0
          %465 = vadd.xlane.f32.xlu0 %v464
          %v466 = vpop.xlane.xlu0 %465
          %v467 = vmul.f32 %v445, %v418
          %v468 = vmul.f32 %v448, %v418
          %v469 = vmul.f32 %v451, %v418
          %v470 = vmul.f32 %v454, %v418
          %v471 = vmul.f32 %v457, %v418
          %v472 = vmul.f32 %v460, %v418
          %v473 = vmul.f32 %v463, %v418
          %v474 = vmul.f32 %v466, %v418
          %v475 = vadd.f32 %v467, 1e-05
          %v476 = vadd.f32 %v468, 1e-05
          %v477 = vadd.f32 %v469, 1e-05
          %v478 = vadd.f32 %v470, 1e-05
          %v479 = vadd.f32 %v471, 1e-05
          %v480 = vadd.f32 %v472, 1e-05
          %v481 = vadd.f32 %v473, 1e-05
          %v482 = vadd.f32 %v474, 1e-05
          %v483 = vrsqrt.pop %v475
          %v484 = vmul.f32 %v483, %v475
          %v485 = vmul.f32 %v484, %v483
          %v486 = vmul.f32 0.5, %v485
          %v487 = vsub.f32 1.5, %v486
          %v488 = vmul.f32 %v483, %v487
          %vm489 = vweird.f32 %v475
          %vm490 = vweird.f32 %v483
          %vm491 = vmor %vm489, %vm490
          %v492 = vsel %vm491, %v483, %v488
          %v493 = vrsqrt.pop %v476
          %v494 = vmul.f32 %v493, %v476
          %v495 = vmul.f32 %v494, %v493
          %v496 = vmul.f32 0.5, %v495
          %v497 = vsub.f32 1.5, %v496
          %v498 = vmul.f32 %v493, %v497
          %vm499 = vweird.f32 %v476
          %vm500 = vweird.f32 %v493
          %vm501 = vmor %vm499, %vm500
          %v502 = vsel %vm501, %v493, %v498
          %v503 = vrsqrt.pop %v477
          %v504 = vmul.f32 %v503, %v477
          %v505 = vmul.f32 %v504, %v503
          %v506 = vmul.f32 0.5, %v505
          %v507 = vsub.f32 1.5, %v506
          %v508 = vmul.f32 %v503, %v507
          %vm509 = vweird.f32 %v477
          %vm510 = vweird.f32 %v503
          %vm511 = vmor %vm509, %vm510
          %v512 = vsel %vm511, %v503, %v508
          %v513 = vrsqrt.pop %v478
          %v514 = vmul.f32 %v513, %v478
          %v515 = vmul.f32 %v514, %v513
          %v516 = vmul.f32 0.5, %v515
          %v517 = vsub.f32 1.5, %v516
          %v518 = vmul.f32 %v513, %v517
          %vm519 = vweird.f32 %v478
          %vm520 = vweird.f32 %v513
          %vm521 = vmor %vm519, %vm520
          %v522 = vsel %vm521, %v513, %v518
          %v523 = vrsqrt.pop %v479
          %v524 = vmul.f32 %v523, %v479
          %v525 = vmul.f32 %v524, %v523
          %v526 = vmul.f32 0.5, %v525
          %v527 = vsub.f32 1.5, %v526
          %v528 = vmul.f32 %v523, %v527
          %vm529 = vweird.f32 %v479
          %vm530 = vweird.f32 %v523
          %vm531 = vmor %vm529, %vm530
          %v532 = vsel %vm531, %v523, %v528
          %v533 = vrsqrt.pop %v480
          %v534 = vmul.f32 %v533, %v480
          %v535 = vmul.f32 %v534, %v533
          %v536 = vmul.f32 0.5, %v535
          %v537 = vsub.f32 1.5, %v536
          %v538 = vmul.f32 %v533, %v537
          %vm539 = vweird.f32 %v480
          %vm540 = vweird.f32 %v533
          %vm541 = vmor %vm539, %vm540
          %v542 = vsel %vm541, %v533, %v538
          %v543 = vrsqrt.pop %v481
          %v544 = vmul.f32 %v543, %v481
          %v545 = vmul.f32 %v544, %v543
          %v546 = vmul.f32 0.5, %v545
          %v547 = vsub.f32 1.5, %v546
          %v548 = vmul.f32 %v543, %v547
          %vm549 = vweird.f32 %v481
          %vm550 = vweird.f32 %v543
          %vm551 = vmor %vm549, %vm550
          %v552 = vsel %vm551, %v543, %v548
          %v553 = vrsqrt.pop %v482
          %v554 = vmul.f32 %v553, %v482
          %v555 = vmul.f32 %v554, %v553
          %v556 = vmul.f32 0.5, %v555
          %v557 = vsub.f32 1.5, %v556
          %v558 = vmul.f32 %v553, %v557
          %vm559 = vweird.f32 %v482
          %vm560 = vweird.f32 %v553
          %vm561 = vmor %vm559, %vm560
          %v562 = vsel %vm561, %v553, %v558
          %v563 = vmul.f32 %v427, %v492
          %v564 = vmul.f32 %v428, %v502
          %v565 = vmul.f32 %v429, %v512
          %v566 = vmul.f32 %v430, %v522
          %v567 = vmul.f32 %v431, %v532
          %v568 = vmul.f32 %v432, %v542
          %v569 = vmul.f32 %v433, %v552
          %v570 = vmul.f32 %v434, %v562
          %v572 = vsel %vm387, %v563, 0
          %v575 = vsel %vm387, %v564, 0
          %v578 = vsel %vm387, %v565, 0
          %v581 = vsel %vm387, %v566, 0
          %v584 = vsel %vm387, %v567, 0
          %v587 = vsel %vm387, %v568, 0
          %v590 = vsel %vm387, %v569, 0
          %v593 = vsel %vm387, %v570, 0
          %595 = vmatpush.msra.mxu0 0.0
          %596 = vmatpush.msra.mxu0 0.0
          %597 = vmatpush.msra.mxu0 0.0
          %598 = vmatpush.msra.mxu0 0.0
          %599 = vmatpush.msra.mxu0 0.0
          %600 = vmatpush.msra.mxu0 0.0
          %601 = vmatpush.msra.mxu0 0.0
          %602 = vmatpush.msra.mxu0 0.0
          %603 = vmatpush.msra.mxu0 0.0
          %604 = vmatpush.msra.mxu0 0.0
          %605 = vmatpush.msra.mxu0 0.0
          %606 = vmatpush.msra.mxu0 0.0
          %607 = vmatpush.msra.mxu0 0.0
          %608 = vmatpush.msra.mxu0 0.0
          %609 = vmatpush.msra.mxu0 %v331
          %610 = vmatpush.msra.mxu0 %v330
          %611 = vmatmul.f32.gmra.mxu0 %v572
          %v612 = vpop.f32.mrf.mxu0
          %v613 = vadd.f32 0.0, %v612
          %614 = vmatmul.f32.gmra.mxu0 %v575
          %v615 = vpop.f32.mrf.mxu0
          %v616 = vadd.f32 0.0, %v615
          %617 = vmatmul.f32.gmra.mxu0 %v578
          %v618 = vpop.f32.mrf.mxu0
          %v619 = vadd.f32 0.0, %v618
          %620 = vmatmul.f32.gmra.mxu0 %v581
          %v621 = vpop.f32.mrf.mxu0
          %v622 = vadd.f32 0.0, %v621
          %623 = vmatmul.f32.gmra.mxu0 %v584
          %v624 = vpop.f32.mrf.mxu0
          %v625 = vadd.f32 0.0, %v624
          %626 = vmatmul.f32.gmra.mxu0 %v587
          %v627 = vpop.f32.mrf.mxu0
          %v628 = vadd.f32 0.0, %v627
          %629 = vmatmul.f32.gmra.mxu0 %v590
          %v630 = vpop.f32.mrf.mxu0
          %v631 = vadd.f32 0.0, %v630
          %632 = vmatmul.f32.gmra.mxu0 %v593
          %v633 = vpop.f32.mrf.mxu0
          %v634 = vadd.f32 0.0, %v633
          %635 = vdwg.mxu0
          %v636 = vstv %s328
          %v637 = vadd.f32 %v613, %v636
          %v638 = vadd.f32 %v616, %v636
          %v639 = vadd.f32 %v619, %v636
          %v640 = vadd.f32 %v622, %v636
          %v641 = vadd.f32 %v625, %v636
          %v642 = vadd.f32 %v628, %v636
          %v643 = vadd.f32 %v631, %v636
          %v644 = vadd.f32 %v634, %v636
          %v645 = vstv %s329
          %v646 = vadd.f32 %v613, %v645
          %v647 = vadd.f32 %v616, %v645
          %v648 = vadd.f32 %v619, %v645
          %v649 = vadd.f32 %v622, %v645
          %v650 = vadd.f32 %v625, %v645
          %v651 = vadd.f32 %v628, %v645
          %v652 = vadd.f32 %v631, %v645
          %v653 = vadd.f32 %v634, %v645
          %662 = vrot.lane.b32.xlu0 %v613, 112
          %v663 = vpop.permute.xlu0 %662
          %664 = vrot.lane.b32.xlu0 %v616, 112
          %v665 = vpop.permute.xlu0 %664
          %666 = vrot.lane.b32.xlu0 %v619, 112
          %v667 = vpop.permute.xlu0 %666
          %668 = vrot.lane.b32.xlu0 %v622, 112
          %v669 = vpop.permute.xlu0 %668
          %670 = vrot.lane.b32.xlu0 %v625, 112
          %v671 = vpop.permute.xlu0 %670
          %672 = vrot.lane.b32.xlu0 %v628, 112
          %v673 = vpop.permute.xlu0 %672
          %674 = vrot.lane.b32.xlu0 %v631, 112
          %v675 = vpop.permute.xlu0 %674
          %676 = vrot.lane.b32.xlu0 %v634, 112
          %v677 = vpop.permute.xlu0 %676
          %vm678 = vcmask 64512
          %v679 = vsel %vm678, %v613, 0
          %v681 = vsel %vm678, %v616, 0
          %v683 = vsel %vm678, %v619, 0
          %v685 = vsel %vm678, %v622, 0
          %v687 = vsel %vm678, %v625, 0
          %v689 = vsel %vm678, %v628, 0
          %v691 = vsel %vm678, %v631, 0
          %v693 = vsel %vm678, %v634, 0
          %v695 = vsel %vm678, %v663, 0
          %v697 = vsel %vm678, %v665, 0
          %v699 = vsel %vm678, %v667, 0
          %v701 = vsel %vm678, %v669, 0
          %v703 = vsel %vm678, %v671, 0
          %v705 = vsel %vm678, %v673, 0
          %v707 = vsel %vm678, %v675, 0
          %v709 = vsel %vm678, %v677, 0
          %711 = vmatpush.xpose.msra.mxu0 0.0
          %712 = vmatpush.xpose.msra.mxu0 0.0
          %713 = vmatpush.xpose.msra.mxu0 0.0
          %714 = vmatpush.xpose.msra.mxu0 0.0
          %715 = vmatpush.xpose.msra.mxu0 0.0
          %716 = vmatpush.xpose.msra.mxu0 0.0
          %717 = vmatpush.xpose.msra.mxu0 0.0
          %718 = vmatpush.xpose.msra.mxu0 0.0
          %719 = vmatpush.xpose.msra.mxu0 %v709
          %720 = vmatpush.xpose.msra.mxu0 %v707
          %721 = vmatpush.xpose.msra.mxu0 %v705
          %722 = vmatpush.xpose.msra.mxu0 %v703
          %723 = vmatpush.xpose.msra.mxu0 %v701
          %724 = vmatpush.xpose.msra.mxu0 %v699
          %725 = vmatpush.xpose.msra.mxu0 %v697
          %726 = vmatpush.xpose.msra.mxu0 %v695
          %727 = vmatmul.f32.gmra.mxu0 %v679
          %v728 = vpop.f32.mrf.mxu0
          %v729 = vadd.f32 0.0, %v728
          %730 = vmatmul.f32.gmra.mxu0 %v681
          %v731 = vpop.f32.mrf.mxu0
          %v732 = vadd.f32 0.0, %v731
          %733 = vmatmul.f32.gmra.mxu0 %v683
          %v734 = vpop.f32.mrf.mxu0
          %v735 = vadd.f32 0.0, %v734
          %736 = vmatmul.f32.gmra.mxu0 %v685
          %v737 = vpop.f32.mrf.mxu0
          %v738 = vadd.f32 0.0, %v737
          %739 = vmatmul.f32.gmra.mxu0 %v687
          %v740 = vpop.f32.mrf.mxu0
          %v741 = vadd.f32 0.0, %v740
          %742 = vmatmul.f32.gmra.mxu0 %v689
          %v743 = vpop.f32.mrf.mxu0
          %v744 = vadd.f32 0.0, %v743
          %745 = vmatmul.f32.gmra.mxu0 %v691
          %v746 = vpop.f32.mrf.mxu0
          %v747 = vadd.f32 0.0, %v746
          %748 = vmatmul.f32.gmra.mxu0 %v693
          %v749 = vpop.f32.mrf.mxu0
          %v750 = vadd.f32 0.0, %v749
          %751 = vdwg.mxu0
          %753 = vset.pattern.permute.xlu0 48
          %754 = vperm.xlu0 %753, %v637
          %v755 = vpop.permute.xlu0 %754
          %758 = vset.pattern.permute.xlu0 48
          %759 = vperm.xlu0 %758, %v638
          %v760 = vpop.permute.xlu0 %759
          %763 = vset.pattern.permute.xlu0 48
          %764 = vperm.xlu0 %763, %v639
          %v765 = vpop.permute.xlu0 %764
          %768 = vset.pattern.permute.xlu0 48
          %769 = vperm.xlu0 %768, %v640
          %v770 = vpop.permute.xlu0 %769
          %773 = vset.pattern.permute.xlu0 48
          %774 = vperm.xlu0 %773, %v641
          %v775 = vpop.permute.xlu0 %774
          %778 = vset.pattern.permute.xlu0 48
          %779 = vperm.xlu0 %778, %v642
          %v780 = vpop.permute.xlu0 %779
          %783 = vset.pattern.permute.xlu0 48
          %784 = vperm.xlu0 %783, %v643
          %v785 = vpop.permute.xlu0 %784
          %788 = vset.pattern.permute.xlu0 48
          %789 = vperm.xlu0 %788, %v644
          %v790 = vpop.permute.xlu0 %789
          %v792 = vmul.f32 %v613, %v755
          %v793 = vmul.f32 %v616, %v760
          %v794 = vmul.f32 %v619, %v765
          %v795 = vmul.f32 %v622, %v770
          %v796 = vmul.f32 %v625, %v775
          %v797 = vmul.f32 %v628, %v780
          %v798 = vmul.f32 %v631, %v785
          %v799 = vmul.f32 %v634, %v790
          %801 = vset.pattern.permute.xlu0 50
          %802 = vperm.xlu0 %801, %v646
          %v803 = vpop.permute.xlu0 %802
          %806 = vset.pattern.permute.xlu0 50
          %807 = vperm.xlu0 %806, %v647
          %v808 = vpop.permute.xlu0 %807
          %811 = vset.pattern.permute.xlu0 50
          %812 = vperm.xlu0 %811, %v648
          %v813 = vpop.permute.xlu0 %812
          %816 = vset.pattern.permute.xlu0 50
          %817 = vperm.xlu0 %816, %v649
          %v818 = vpop.permute.xlu0 %817
          %821 = vset.pattern.permute.xlu0 50
          %822 = vperm.xlu0 %821, %v650
          %v823 = vpop.permute.xlu0 %822
          %826 = vset.pattern.permute.xlu0 50
          %827 = vperm.xlu0 %826, %v651
          %v828 = vpop.permute.xlu0 %827
          %831 = vset.pattern.permute.xlu0 50
          %832 = vperm.xlu0 %831, %v652
          %v833 = vpop.permute.xlu0 %832
          %836 = vset.pattern.permute.xlu0 50
          %837 = vperm.xlu0 %836, %v653
          %v838 = vpop.permute.xlu0 %837
          %v840 = vmul.f32 %v613, %v803
          %v841 = vmul.f32 %v616, %v808
          %v842 = vmul.f32 %v619, %v813
          %v843 = vmul.f32 %v622, %v818
          %v844 = vmul.f32 %v625, %v823
          %v845 = vmul.f32 %v628, %v828
          %v846 = vmul.f32 %v631, %v833
          %v847 = vmul.f32 %v634, %v838
          %856 = vrot.lane.b32.xlu0 %v840, 112
          %v857 = vpop.permute.xlu0 %856
          %858 = vrot.lane.b32.xlu0 %v841, 112
          %v859 = vpop.permute.xlu0 %858
          %860 = vrot.lane.b32.xlu0 %v842, 112
          %v861 = vpop.permute.xlu0 %860
          %862 = vrot.lane.b32.xlu0 %v843, 112
          %v863 = vpop.permute.xlu0 %862
          %864 = vrot.lane.b32.xlu0 %v844, 112
          %v865 = vpop.permute.xlu0 %864
          %866 = vrot.lane.b32.xlu0 %v845, 112
          %v867 = vpop.permute.xlu0 %866
          %868 = vrot.lane.b32.xlu0 %v846, 112
          %v869 = vpop.permute.xlu0 %868
          %870 = vrot.lane.b32.xlu0 %v847, 112
          %v871 = vpop.permute.xlu0 %870
          %v873 = vsel %vm678, %v792, 0
          %v876 = vsel %vm678, %v793, 0
          %v879 = vsel %vm678, %v794, 0
          %v882 = vsel %vm678, %v795, 0
          %v885 = vsel %vm678, %v796, 0
          %v888 = vsel %vm678, %v797, 0
          %v891 = vsel %vm678, %v798, 0
          %v894 = vsel %vm678, %v799, 0
          %v896 = vsel %vm678, %v857, 0
          %v898 = vsel %vm678, %v859, 0
          %v900 = vsel %vm678, %v861, 0
          %v902 = vsel %vm678, %v863, 0
          %v904 = vsel %vm678, %v865, 0
          %v906 = vsel %vm678, %v867, 0
          %v908 = vsel %vm678, %v869, 0
          %v910 = vsel %vm678, %v871, 0
          %912 = vmatpush.xpose.msra.mxu0 0.0
          %913 = vmatpush.xpose.msra.mxu0 0.0
          %914 = vmatpush.xpose.msra.mxu0 0.0
          %915 = vmatpush.xpose.msra.mxu0 0.0
          %916 = vmatpush.xpose.msra.mxu0 0.0
          %917 = vmatpush.xpose.msra.mxu0 0.0
          %918 = vmatpush.xpose.msra.mxu0 0.0
          %919 = vmatpush.xpose.msra.mxu0 0.0
          %920 = vmatpush.xpose.msra.mxu0 %v910
          %921 = vmatpush.xpose.msra.mxu0 %v908
          %922 = vmatpush.xpose.msra.mxu0 %v906
          %923 = vmatpush.xpose.msra.mxu0 %v904
          %924 = vmatpush.xpose.msra.mxu0 %v902
          %925 = vmatpush.xpose.msra.mxu0 %v900
          %926 = vmatpush.xpose.msra.mxu0 %v898
          %927 = vmatpush.xpose.msra.mxu0 %v896
          %928 = vmatmul.f32.gmra.mxu0 %v873
          %v929 = vpop.f32.mrf.mxu0
          %v930 = vadd.f32 0.0, %v929
          %931 = vmatmul.f32.gmra.mxu0 %v876
          %v932 = vpop.f32.mrf.mxu0
          %v933 = vadd.f32 0.0, %v932
          %934 = vmatmul.f32.gmra.mxu0 %v879
          %v935 = vpop.f32.mrf.mxu0
          %v936 = vadd.f32 0.0, %v935
          %937 = vmatmul.f32.gmra.mxu0 %v882
          %v938 = vpop.f32.mrf.mxu0
          %v939 = vadd.f32 0.0, %v938
          %940 = vmatmul.f32.gmra.mxu0 %v885
          %v941 = vpop.f32.mrf.mxu0
          %v942 = vadd.f32 0.0, %v941
          %943 = vmatmul.f32.gmra.mxu0 %v888
          %v944 = vpop.f32.mrf.mxu0
          %v945 = vadd.f32 0.0, %v944
          %946 = vmatmul.f32.gmra.mxu0 %v891
          %v947 = vpop.f32.mrf.mxu0
          %v948 = vadd.f32 0.0, %v947
          %949 = vmatmul.f32.gmra.mxu0 %v894
          %v950 = vpop.f32.mrf.mxu0
          %v951 = vadd.f32 0.0, %v950
          %952 = vdwg.mxu0
          %v953 = vsel %vm363, 0.0, %v729
          %v954 = vsel %vm364, 0.0, %v732
          %v955 = vsel %vm365, 0.0, %v735
          %v956 = vsel %vm366, 0.0, %v738
          %v957 = vsel %vm367, 0.0, %v741
          %v958 = vsel %vm368, 0.0, %v744
          %v959 = vsel %vm369, 0.0, %v747
          %v960 = vsel %vm370, 0.0, %v750
          %v962 = vperm.slane %v332, 0
          %v964 = vmul.f32 %v953, %v962
          %v965 = vmul.f32 %v954, %v962
          %v966 = vmul.f32 %v955, %v962
          %v967 = vmul.f32 %v956, %v962
          %v968 = vmul.f32 %v957, %v962
          %v969 = vmul.f32 %v958, %v962
          %v970 = vmul.f32 %v959, %v962
          %v971 = vmul.f32 %v960, %v962
          %vm972 = vcmask 523264
          %v973 = vsel %vm972, %v964, 0.0
          %974 = vadd.xlane.f32.xlu0 %v973
          %v975 = vpop.xlane.xlu0 %974
          %v976 = vsel %vm972, %v965, 0.0
          %977 = vadd.xlane.f32.xlu0 %v976
          %v978 = vpop.xlane.xlu0 %977
          %v979 = vsel %vm972, %v966, 0.0
          %980 = vadd.xlane.f32.xlu0 %v979
          %v981 = vpop.xlane.xlu0 %980
          %v982 = vsel %vm972, %v967, 0.0
          %983 = vadd.xlane.f32.xlu0 %v982
          %v984 = vpop.xlane.xlu0 %983
          %v985 = vsel %vm972, %v968, 0.0
          %986 = vadd.xlane.f32.xlu0 %v985
          %v987 = vpop.xlane.xlu0 %986
          %v988 = vsel %vm972, %v969, 0.0
          %989 = vadd.xlane.f32.xlu0 %v988
          %v990 = vpop.xlane.xlu0 %989
          %v991 = vsel %vm972, %v970, 0.0
          %992 = vadd.xlane.f32.xlu0 %v991
          %v993 = vpop.xlane.xlu0 %992
          %v994 = vsel %vm972, %v971, 0.0
          %995 = vadd.xlane.f32.xlu0 %v994
          %v996 = vpop.xlane.xlu0 %995
          %v998 = vsel %vm972, %v333, 0
          %v1001 = vsel %vm972, %v334, 0
          %v1004 = vsel %vm972, %v335, 0
          %v1007 = vsel %vm972, %v336, 0
          %v1010 = vsel %vm972, %v337, 0
          %v1013 = vsel %vm972, %v338, 0
          %v1016 = vsel %vm972, %v339, 0
          %v1019 = vsel %vm972, %v340, 0
          %1021 = vmatpush.msra.mxu0 0.0
          %1022 = vmatpush.msra.mxu0 0.0
          %1023 = vmatpush.msra.mxu0 0.0
          %1024 = vmatpush.msra.mxu0 0.0
          %1025 = vmatpush.msra.mxu0 0.0
          %1026 = vmatpush.msra.mxu0 0.0
          %1027 = vmatpush.msra.mxu0 0.0
          %1028 = vmatpush.msra.mxu0 0.0
          %1029 = vmatpush.msra.mxu0 %v996
          %1030 = vmatpush.msra.mxu0 %v993
          %1031 = vmatpush.msra.mxu0 %v990
          %1032 = vmatpush.msra.mxu0 %v987
          %1033 = vmatpush.msra.mxu0 %v984
          %1034 = vmatpush.msra.mxu0 %v981
          %1035 = vmatpush.msra.mxu0 %v978
          %1036 = vmatpush.msra.mxu0 %v975
          %1037 = vmatmul.f32.gmra.mxu0 %v998
          %v1038 = vpop.f32.mrf.mxu0
          %v1039 = vadd.f32 0.0, %v1038
          %1040 = vmatmul.f32.gmra.mxu0 %v1001
          %v1041 = vpop.f32.mrf.mxu0
          %v1042 = vadd.f32 0.0, %v1041
          %1043 = vmatmul.f32.gmra.mxu0 %v1004
          %v1044 = vpop.f32.mrf.mxu0
          %v1045 = vadd.f32 0.0, %v1044
          %1046 = vmatmul.f32.gmra.mxu0 %v1007
          %v1047 = vpop.f32.mrf.mxu0
          %v1048 = vadd.f32 0.0, %v1047
          %1049 = vmatmul.f32.gmra.mxu0 %v1010
          %v1050 = vpop.f32.mrf.mxu0
          %v1051 = vadd.f32 0.0, %v1050
          %1052 = vmatmul.f32.gmra.mxu0 %v1013
          %v1053 = vpop.f32.mrf.mxu0
          %v1054 = vadd.f32 0.0, %v1053
          %1055 = vmatmul.f32.gmra.mxu0 %v1016
          %v1056 = vpop.f32.mrf.mxu0
          %v1057 = vadd.f32 0.0, %v1056
          %1058 = vmatmul.f32.gmra.mxu0 %v1019
          %v1059 = vpop.f32.mrf.mxu0
          %v1060 = vadd.f32 0.0, %v1059
          %1061 = vdwg.mxu0
          %vm1062 = vcmp.gt.f32.partialorder %v1039, 0.0
          %vm1063 = vcmp.gt.f32.partialorder %v1042, 0.0
          %vm1064 = vcmp.gt.f32.partialorder %v1045, 0.0
          %vm1065 = vcmp.gt.f32.partialorder %v1048, 0.0
          %vm1066 = vcmp.gt.f32.partialorder %v1051, 0.0
          %vm1067 = vcmp.gt.f32.partialorder %v1054, 0.0
          %vm1068 = vcmp.gt.f32.partialorder %v1057, 0.0
          %vm1069 = vcmp.gt.f32.partialorder %v1060, 0.0
          %v1070 = vmul.f32 %v1039, 0.1
          %v1071 = vmul.f32 %v1042, 0.1
          %v1072 = vmul.f32 %v1045, 0.1
          %v1073 = vmul.f32 %v1048, 0.1
          %v1074 = vmul.f32 %v1051, 0.1
          %v1075 = vmul.f32 %v1054, 0.1
          %v1076 = vmul.f32 %v1057, 0.1
          %v1077 = vmul.f32 %v1060, 0.1
          %v1078 = vsel %vm1062, %v1039, %v1070
          %v1079 = vsel %vm1063, %v1042, %v1071
          %v1080 = vsel %vm1064, %v1045, %v1072
          %v1081 = vsel %vm1065, %v1048, %v1073
          %v1082 = vsel %vm1066, %v1051, %v1074
          %v1083 = vsel %vm1067, %v1054, %v1075
          %v1084 = vsel %vm1068, %v1057, %v1076
          %v1085 = vsel %vm1069, %v1060, %v1077
          %v1086 = vmul.f32 %v341, %v1078
          %v1087 = vmul.f32 %v342, %v1079
          %v1088 = vmul.f32 %v343, %v1080
          %v1089 = vmul.f32 %v344, %v1081
          %v1090 = vmul.f32 %v345, %v1082
          %v1091 = vmul.f32 %v346, %v1083
          %v1092 = vmul.f32 %v347, %v1084
          %v1093 = vmul.f32 %v348, %v1085
          %vm1094 = vcmask 7168
          %v1095 = vsel %vm1094, %v1086, 0.0
          %v1096 = vsel %vm1094, %v1087, 0.0
          %v1097 = vadd.f32 %v1095, %v1096
          %v1098 = vsel %vm1094, %v1088, 0.0
          %v1099 = vadd.f32 %v1097, %v1098
          %v1100 = vsel %vm1094, %v1089, 0.0
          %v1101 = vadd.f32 %v1099, %v1100
          %v1102 = vsel %vm1094, %v1090, 0.0
          %v1103 = vadd.f32 %v1101, %v1102
          %v1104 = vsel %vm1094, %v1091, 0.0
          %v1105 = vadd.f32 %v1103, %v1104
          %v1106 = vsel %vm1094, %v1092, 0.0
          %v1107 = vadd.f32 %v1105, %v1106
          %v1108 = vsel %vm1094, %v1093, 0.0
          %v1109 = vadd.f32 %v1107, %v1108
          %v1110 = vrot.slane %v1109, 4
          %v1111 = vadd.f32 %v1109, %v1110
          %v1112 = vrot.slane %v1111, 2
          %v1113 = vadd.f32 %v1111, %v1112
          %v1114 = vrot.slane %v1113, 1
          %v1115 = vadd.f32 %v1113, %v1114
          %v1116 = vsel %vm972, %v930, -inf
          %1117 = vmax.xlane.f32.xlu0 %v1116
          %v1118 = vpop.xlane.xlu0 %1117
          %v1119 = vsel %vm972, %v933, -inf
          %1120 = vmax.xlane.f32.xlu0 %v1119
          %v1121 = vpop.xlane.xlu0 %1120
          %v1122 = vsel %vm972, %v936, -inf
          %1123 = vmax.xlane.f32.xlu0 %v1122
          %v1124 = vpop.xlane.xlu0 %1123
          %v1125 = vsel %vm972, %v939, -inf
          %1126 = vmax.xlane.f32.xlu0 %v1125
          %v1127 = vpop.xlane.xlu0 %1126
          %v1128 = vsel %vm972, %v942, -inf
          %1129 = vmax.xlane.f32.xlu0 %v1128
          %v1130 = vpop.xlane.xlu0 %1129
          %v1131 = vsel %vm972, %v945, -inf
          %1132 = vmax.xlane.f32.xlu0 %v1131
          %v1133 = vpop.xlane.xlu0 %1132
          %v1134 = vsel %vm972, %v948, -inf
          %1135 = vmax.xlane.f32.xlu0 %v1134
          %v1136 = vpop.xlane.xlu0 %1135
          %v1137 = vsel %vm972, %v951, -inf
          %1138 = vmax.xlane.f32.xlu0 %v1137
          %v1139 = vpop.xlane.xlu0 %1138
          %v1140 = vsub.f32 %v930, %v1118
          %v1141 = vsub.f32 %v933, %v1121
          %v1142 = vsub.f32 %v936, %v1124
          %v1143 = vsub.f32 %v939, %v1127
          %v1144 = vsub.f32 %v942, %v1130
          %v1145 = vsub.f32 %v945, %v1133
          %v1146 = vsub.f32 %v948, %v1136
          %v1147 = vsub.f32 %v951, %v1139
          %v1148 = vmul.f32 %v1140, 1.442695
          %v1149 = vpow.pop %v1148
          %v1150 = vmul.f32 %v1141, 1.442695
          %v1151 = vpow.pop %v1150
          %v1152 = vmul.f32 %v1142, 1.442695
          %v1153 = vpow.pop %v1152
          %v1154 = vmul.f32 %v1143, 1.442695
          %v1155 = vpow.pop %v1154
          %v1156 = vmul.f32 %v1144, 1.442695
          %v1157 = vpow.pop %v1156
          %v1158 = vmul.f32 %v1145, 1.442695
          %v1159 = vpow.pop %v1158
          %v1160 = vmul.f32 %v1146, 1.442695
          %v1161 = vpow.pop %v1160
          %v1162 = vmul.f32 %v1147, 1.442695
          %v1163 = vpow.pop %v1162
          %v1164 = vsel %vm972, %v1149, 0.0
          %1165 = vadd.xlane.f32.xlu0 %v1164
          %v1166 = vpop.xlane.xlu0 %1165
          %v1167 = vsel %vm972, %v1151, 0.0
          %1168 = vadd.xlane.f32.xlu0 %v1167
          %v1169 = vpop.xlane.xlu0 %1168
          %v1170 = vsel %vm972, %v1153, 0.0
          %1171 = vadd.xlane.f32.xlu0 %v1170
          %v1172 = vpop.xlane.xlu0 %1171
          %v1173 = vsel %vm972, %v1155, 0.0
          %1174 = vadd.xlane.f32.xlu0 %v1173
          %v1175 = vpop.xlane.xlu0 %1174
          %v1176 = vsel %vm972, %v1157, 0.0
          %1177 = vadd.xlane.f32.xlu0 %v1176
          %v1178 = vpop.xlane.xlu0 %1177
          %v1179 = vsel %vm972, %v1159, 0.0
          %1180 = vadd.xlane.f32.xlu0 %v1179
          %v1181 = vpop.xlane.xlu0 %1180
          %v1182 = vsel %vm972, %v1161, 0.0
          %1183 = vadd.xlane.f32.xlu0 %v1182
          %v1184 = vpop.xlane.xlu0 %1183
          %v1185 = vsel %vm972, %v1163, 0.0
          %1186 = vadd.xlane.f32.xlu0 %v1185
          %v1187 = vpop.xlane.xlu0 %1186
          %v1188 = vrcp.pop %v1166
          %v1189 = vrcp.pop %v1169
          %v1190 = vrcp.pop %v1172
          %v1191 = vrcp.pop %v1175
          %v1192 = vrcp.pop %v1178
          %v1193 = vrcp.pop %v1181
          %v1194 = vrcp.pop %v1184
          %v1195 = vrcp.pop %v1187
          %1197 = vset.pattern.permute.xlu0 0
          %1198 = vperm.xlu0 %1197, %v1115
          %v1199 = vpop.permute.xlu0 %1198
          %vm1201 = vcmp.gt.f32.partialorder %v930, %v1199
          %vm1202 = vcmp.gt.f32.partialorder %v933, %v1199
          %vm1203 = vcmp.gt.f32.partialorder %v936, %v1199
          %vm1204 = vcmp.gt.f32.partialorder %v939, %v1199
          %vm1205 = vcmp.gt.f32.partialorder %v942, %v1199
          %vm1206 = vcmp.gt.f32.partialorder %v945, %v1199
          %vm1207 = vcmp.gt.f32.partialorder %v948, %v1199
          %vm1208 = vcmp.gt.f32.partialorder %v951, %v1199
          %v1209 = vsel %vm1201, %v1149, 0.0
          %v1210 = vsel %vm1202, %v1151, 0.0
          %v1211 = vsel %vm1203, %v1153, 0.0
          %v1212 = vsel %vm1204, %v1155, 0.0
          %v1213 = vsel %vm1205, %v1157, 0.0
          %v1214 = vsel %vm1206, %v1159, 0.0
          %v1215 = vsel %vm1207, %v1161, 0.0
          %v1216 = vsel %vm1208, %v1163, 0.0
          %v1217 = vmul.f32 %v1209, %v1188
          %v1218 = vmul.f32 %v1210, %v1189
          %v1219 = vmul.f32 %v1211, %v1190
          %v1220 = vmul.f32 %v1212, %v1191
          %v1221 = vmul.f32 %v1213, %v1192
          %v1222 = vmul.f32 %v1214, %v1193
          %v1223 = vmul.f32 %v1215, %v1194
          %v1224 = vmul.f32 %v1216, %v1195
          %1225 = vrot.lane.b32.xlu0 %v613, 96
          %v1226 = vpop.permute.xlu0 %1225
          %1227 = vrot.lane.b32.xlu0 %v616, 96
          %v1228 = vpop.permute.xlu0 %1227
          %1229 = vrot.lane.b32.xlu0 %v619, 96
          %v1230 = vpop.permute.xlu0 %1229
          %1231 = vrot.lane.b32.xlu0 %v622, 96
          %v1232 = vpop.permute.xlu0 %1231
          %1233 = vrot.lane.b32.xlu0 %v625, 96
          %v1234 = vpop.permute.xlu0 %1233
          %1235 = vrot.lane.b32.xlu0 %v628, 96
          %v1236 = vpop.permute.xlu0 %1235
          %1237 = vrot.lane.b32.xlu0 %v631, 96
          %v1238 = vpop.permute.xlu0 %1237
          %1239 = vrot.lane.b32.xlu0 %v634, 96
          %v1240 = vpop.permute.xlu0 %1239
          %v1250 = vsel %vm972, %v1217, 0
          %v1253 = vsel %vm972, %v1218, 0
          %v1256 = vsel %vm972, %v1219, 0
          %v1259 = vsel %vm972, %v1220, 0
          %v1262 = vsel %vm972, %v1221, 0
          %v1265 = vsel %vm972, %v1222, 0
          %v1268 = vsel %vm972, %v1223, 0
          %v1271 = vsel %vm972, %v1224, 0
          %1273 = vmatpush.msra.mxu0 0.0
          %1274 = vmatpush.msra.mxu0 0.0
          %1275 = vmatpush.msra.mxu0 0.0
          %1276 = vmatpush.msra.mxu0 0.0
          %1277 = vmatpush.msra.mxu0 0.0
          %1278 = vmatpush.msra.mxu0 0.0
          %1279 = vmatpush.msra.mxu0 0.0
          %1280 = vmatpush.msra.mxu0 0.0
          %1281 = vmatpush.msra.mxu0 %v1240
          %1282 = vmatpush.msra.mxu0 %v1238
          %1283 = vmatpush.msra.mxu0 %v1236
          %1284 = vmatpush.msra.mxu0 %v1234
          %1285 = vmatpush.msra.mxu0 %v1232
          %1286 = vmatpush.msra.mxu0 %v1230
          %1287 = vmatpush.msra.mxu0 %v1228
          %1288 = vmatpush.msra.mxu0 %v1226
          %1289 = vmatmul.f32.gmra.mxu0 %v1250
          %v1290 = vpop.f32.mrf.mxu0
          %v1291 = vadd.f32 0.0, %v1290
          %1292 = vmatmul.f32.gmra.mxu0 %v1253
          %v1293 = vpop.f32.mrf.mxu0
          %v1294 = vadd.f32 0.0, %v1293
          %1295 = vmatmul.f32.gmra.mxu0 %v1256
          %v1296 = vpop.f32.mrf.mxu0
          %v1297 = vadd.f32 0.0, %v1296
          %1298 = vmatmul.f32.gmra.mxu0 %v1259
          %v1299 = vpop.f32.mrf.mxu0
          %v1300 = vadd.f32 0.0, %v1299
          %1301 = vmatmul.f32.gmra.mxu0 %v1262
          %v1302 = vpop.f32.mrf.mxu0
          %v1303 = vadd.f32 0.0, %v1302
          %1304 = vmatmul.f32.gmra.mxu0 %v1265
          %v1305 = vpop.f32.mrf.mxu0
          %v1306 = vadd.f32 0.0, %v1305
          %1307 = vmatmul.f32.gmra.mxu0 %v1268
          %v1308 = vpop.f32.mrf.mxu0
          %v1309 = vadd.f32 0.0, %v1308
          %1310 = vmatmul.f32.gmra.mxu0 %v1271
          %v1311 = vpop.f32.mrf.mxu0
          %v1312 = vadd.f32 0.0, %v1311
          %1313 = vdwg.mxu0
          %1314 = vrot.lane.b32.xlu0 %v613, 120
          %v1315 = vpop.permute.xlu0 %1314
          %1316 = vrot.lane.b32.xlu0 %v616, 120
          %v1317 = vpop.permute.xlu0 %1316
          %1318 = vrot.lane.b32.xlu0 %v619, 120
          %v1319 = vpop.permute.xlu0 %1318
          %1320 = vrot.lane.b32.xlu0 %v622, 120
          %v1321 = vpop.permute.xlu0 %1320
          %1322 = vrot.lane.b32.xlu0 %v625, 120
          %v1323 = vpop.permute.xlu0 %1322
          %1324 = vrot.lane.b32.xlu0 %v628, 120
          %v1325 = vpop.permute.xlu0 %1324
          %1326 = vrot.lane.b32.xlu0 %v631, 120
          %v1327 = vpop.permute.xlu0 %1326
          %1328 = vrot.lane.b32.xlu0 %v634, 120
          %v1329 = vpop.permute.xlu0 %1328
          %1330 = vrot.lane.b32.xlu0 %v613, 104
          %v1331 = vpop.permute.xlu0 %1330
          %1332 = vrot.lane.b32.xlu0 %v616, 104
          %v1333 = vpop.permute.xlu0 %1332
          %1334 = vrot.lane.b32.xlu0 %v619, 104
          %v1335 = vpop.permute.xlu0 %1334
          %1336 = vrot.lane.b32.xlu0 %v622, 104
          %v1337 = vpop.permute.xlu0 %1336
          %1338 = vrot.lane.b32.xlu0 %v625, 104
          %v1339 = vpop.permute.xlu0 %1338
          %1340 = vrot.lane.b32.xlu0 %v628, 104
          %v1341 = vpop.permute.xlu0 %1340
          %1342 = vrot.lane.b32.xlu0 %v631, 104
          %v1343 = vpop.permute.xlu0 %1342
          %1344 = vrot.lane.b32.xlu0 %v634, 104
          %v1345 = vpop.permute.xlu0 %1344
          %v1346 = vsel %vm678, %v1315, 0
          %v1348 = vsel %vm678, %v1317, 0
          %v1350 = vsel %vm678, %v1319, 0
          %v1352 = vsel %vm678, %v1321, 0
          %v1354 = vsel %vm678, %v1323, 0
          %v1356 = vsel %vm678, %v1325, 0
          %v1358 = vsel %vm678, %v1327, 0
          %v1360 = vsel %vm678, %v1329, 0
          %v1362 = vsel %vm678, %v1331, 0
          %v1364 = vsel %vm678, %v1333, 0
          %v1366 = vsel %vm678, %v1335, 0
          %v1368 = vsel %vm678, %v1337, 0
          %v1370 = vsel %vm678, %v1339, 0
          %v1372 = vsel %vm678, %v1341, 0
          %v1374 = vsel %vm678, %v1343, 0
          %v1376 = vsel %vm678, %v1345, 0
          %1378 = vmatpush.xpose.msra.mxu0 0.0
          %1379 = vmatpush.xpose.msra.mxu0 0.0
          %1380 = vmatpush.xpose.msra.mxu0 0.0
          %1381 = vmatpush.xpose.msra.mxu0 0.0
          %1382 = vmatpush.xpose.msra.mxu0 0.0
          %1383 = vmatpush.xpose.msra.mxu0 0.0
          %1384 = vmatpush.xpose.msra.mxu0 0.0
          %1385 = vmatpush.xpose.msra.mxu0 0.0
          %1386 = vmatpush.xpose.msra.mxu0 %v1376
          %1387 = vmatpush.xpose.msra.mxu0 %v1374
          %1388 = vmatpush.xpose.msra.mxu0 %v1372
          %1389 = vmatpush.xpose.msra.mxu0 %v1370
          %1390 = vmatpush.xpose.msra.mxu0 %v1368
          %1391 = vmatpush.xpose.msra.mxu0 %v1366
          %1392 = vmatpush.xpose.msra.mxu0 %v1364
          %1393 = vmatpush.xpose.msra.mxu0 %v1362
          %1394 = vmatmul.f32.gmra.mxu0 %v1346
          %v1395 = vpop.f32.mrf.mxu0
          %v1396 = vadd.f32 0.0, %v1395
          %1397 = vmatmul.f32.gmra.mxu0 %v1348
          %v1398 = vpop.f32.mrf.mxu0
          %v1399 = vadd.f32 0.0, %v1398
          %1400 = vmatmul.f32.gmra.mxu0 %v1350
          %v1401 = vpop.f32.mrf.mxu0
          %v1402 = vadd.f32 0.0, %v1401
          %1403 = vmatmul.f32.gmra.mxu0 %v1352
          %v1404 = vpop.f32.mrf.mxu0
          %v1405 = vadd.f32 0.0, %v1404
          %1406 = vmatmul.f32.gmra.mxu0 %v1354
          %v1407 = vpop.f32.mrf.mxu0
          %v1408 = vadd.f32 0.0, %v1407
          %1409 = vmatmul.f32.gmra.mxu0 %v1356
          %v1410 = vpop.f32.mrf.mxu0
          %v1411 = vadd.f32 0.0, %v1410
          %1412 = vmatmul.f32.gmra.mxu0 %v1358
          %v1413 = vpop.f32.mrf.mxu0
          %v1414 = vadd.f32 0.0, %v1413
          %1415 = vmatmul.f32.gmra.mxu0 %v1360
          %v1416 = vpop.f32.mrf.mxu0
          %v1417 = vadd.f32 0.0, %v1416
          %1418 = vdwg.mxu0
          %1419 = vset.pattern.permute.xlu0 49
          %1420 = vperm.xlu0 %1419, %v637
          %v1421 = vpop.permute.xlu0 %1420
          %1423 = vset.pattern.permute.xlu0 49
          %1424 = vperm.xlu0 %1423, %v638
          %v1425 = vpop.permute.xlu0 %1424
          %1427 = vset.pattern.permute.xlu0 49
          %1428 = vperm.xlu0 %1427, %v639
          %v1429 = vpop.permute.xlu0 %1428
          %1431 = vset.pattern.permute.xlu0 49
          %1432 = vperm.xlu0 %1431, %v640
          %v1433 = vpop.permute.xlu0 %1432
          %1435 = vset.pattern.permute.xlu0 49
          %1436 = vperm.xlu0 %1435, %v641
          %v1437 = vpop.permute.xlu0 %1436
          %1439 = vset.pattern.permute.xlu0 49
          %1440 = vperm.xlu0 %1439, %v642
          %v1441 = vpop.permute.xlu0 %1440
          %1443 = vset.pattern.permute.xlu0 49
          %1444 = vperm.xlu0 %1443, %v643
          %v1445 = vpop.permute.xlu0 %1444
          %1447 = vset.pattern.permute.xlu0 49
          %1448 = vperm.xlu0 %1447, %v644
          %v1449 = vpop.permute.xlu0 %1448
          %v1451 = vmul.f32 %v613, %v1421
          %v1452 = vmul.f32 %v616, %v1425
          %v1453 = vmul.f32 %v619, %v1429
          %v1454 = vmul.f32 %v622, %v1433
          %v1455 = vmul.f32 %v625, %v1437
          %v1456 = vmul.f32 %v628, %v1441
          %v1457 = vmul.f32 %v631, %v1445
          %v1458 = vmul.f32 %v634, %v1449
          %1459 = vset.pattern.permute.xlu0 51
          %1460 = vperm.xlu0 %1459, %v646
          %v1461 = vpop.permute.xlu0 %1460
          %1463 = vset.pattern.permute.xlu0 51
          %1464 = vperm.xlu0 %1463, %v647
          %v1465 = vpop.permute.xlu0 %1464
          %1467 = vset.pattern.permute.xlu0 51
          %1468 = vperm.xlu0 %1467, %v648
          %v1469 = vpop.permute.xlu0 %1468
          %1471 = vset.pattern.permute.xlu0 51
          %1472 = vperm.xlu0 %1471, %v649
          %v1473 = vpop.permute.xlu0 %1472
          %1475 = vset.pattern.permute.xlu0 51
          %1476 = vperm.xlu0 %1475, %v650
          %v1477 = vpop.permute.xlu0 %1476
          %1479 = vset.pattern.permute.xlu0 51
          %1480 = vperm.xlu0 %1479, %v651
          %v1481 = vpop.permute.xlu0 %1480
          %1483 = vset.pattern.permute.xlu0 51
          %1484 = vperm.xlu0 %1483, %v652
          %v1485 = vpop.permute.xlu0 %1484
          %1487 = vset.pattern.permute.xlu0 51
          %1488 = vperm.xlu0 %1487, %v653
          %v1489 = vpop.permute.xlu0 %1488
          %v1491 = vmul.f32 %v613, %v1461
          %v1492 = vmul.f32 %v616, %v1465
          %v1493 = vmul.f32 %v619, %v1469
          %v1494 = vmul.f32 %v622, %v1473
          %v1495 = vmul.f32 %v625, %v1477
          %v1496 = vmul.f32 %v628, %v1481
          %v1497 = vmul.f32 %v631, %v1485
          %v1498 = vmul.f32 %v634, %v1489
          %1507 = vrot.lane.b32.xlu0 %v1451, 120
          %v1508 = vpop.permute.xlu0 %1507
          %1509 = vrot.lane.b32.xlu0 %v1452, 120
          %v1510 = vpop.permute.xlu0 %1509
          %1511 = vrot.lane.b32.xlu0 %v1453, 120
          %v1512 = vpop.permute.xlu0 %1511
          %1513 = vrot.lane.b32.xlu0 %v1454, 120
          %v1514 = vpop.permute.xlu0 %1513
          %1515 = vrot.lane.b32.xlu0 %v1455, 120
          %v1516 = vpop.permute.xlu0 %1515
          %1517 = vrot.lane.b32.xlu0 %v1456, 120
          %v1518 = vpop.permute.xlu0 %1517
          %1519 = vrot.lane.b32.xlu0 %v1457, 120
          %v1520 = vpop.permute.xlu0 %1519
          %1521 = vrot.lane.b32.xlu0 %v1458, 120
          %v1522 = vpop.permute.xlu0 %1521
          %1531 = vrot.lane.b32.xlu0 %v1491, 104
          %v1532 = vpop.permute.xlu0 %1531
          %1533 = vrot.lane.b32.xlu0 %v1492, 104
          %v1534 = vpop.permute.xlu0 %1533
          %1535 = vrot.lane.b32.xlu0 %v1493, 104
          %v1536 = vpop.permute.xlu0 %1535
          %1537 = vrot.lane.b32.xlu0 %v1494, 104
          %v1538 = vpop.permute.xlu0 %1537
          %1539 = vrot.lane.b32.xlu0 %v1495, 104
          %v1540 = vpop.permute.xlu0 %1539
          %1541 = vrot.lane.b32.xlu0 %v1496, 104
          %v1542 = vpop.permute.xlu0 %1541
          %1543 = vrot.lane.b32.xlu0 %v1497, 104
          %v1544 = vpop.permute.xlu0 %1543
          %1545 = vrot.lane.b32.xlu0 %v1498, 104
          %v1546 = vpop.permute.xlu0 %1545
          %v1547 = vsel %vm678, %v1508, 0
          %v1549 = vsel %vm678, %v1510, 0
          %v1551 = vsel %vm678, %v1512, 0
          %v1553 = vsel %vm678, %v1514, 0
          %v1555 = vsel %vm678, %v1516, 0
          %v1557 = vsel %vm678, %v1518, 0
          %v1559 = vsel %vm678, %v1520, 0
          %v1561 = vsel %vm678, %v1522, 0
          %v1563 = vsel %vm678, %v1532, 0
          %v1565 = vsel %vm678, %v1534, 0
          %v1567 = vsel %vm678, %v1536, 0
          %v1569 = vsel %vm678, %v1538, 0
          %v1571 = vsel %vm678, %v1540, 0
          %v1573 = vsel %vm678, %v1542, 0
          %v1575 = vsel %vm678, %v1544, 0
          %v1577 = vsel %vm678, %v1546, 0
          %1579 = vmatpush.xpose.msra.mxu0 0.0
          %1580 = vmatpush.xpose.msra.mxu0 0.0
          %1581 = vmatpush.xpose.msra.mxu0 0.0
          %1582 = vmatpush.xpose.msra.mxu0 0.0
          %1583 = vmatpush.xpose.msra.mxu0 0.0
          %1584 = vmatpush.xpose.msra.mxu0 0.0
          %1585 = vmatpush.xpose.msra.mxu0 0.0
          %1586 = vmatpush.xpose.msra.mxu0 0.0
          %1587 = vmatpush.xpose.msra.mxu0 %v1577
          %1588 = vmatpush.xpose.msra.mxu0 %v1575
          %1589 = vmatpush.xpose.msra.mxu0 %v1573
          %1590 = vmatpush.xpose.msra.mxu0 %v1571
          %1591 = vmatpush.xpose.msra.mxu0 %v1569
          %1592 = vmatpush.xpose.msra.mxu0 %v1567
          %1593 = vmatpush.xpose.msra.mxu0 %v1565
          %1594 = vmatpush.xpose.msra.mxu0 %v1563
          %1595 = vmatmul.f32.gmra.mxu0 %v1547
          %v1596 = vpop.f32.mrf.mxu0
          %v1597 = vadd.f32 0.0, %v1596
          %1598 = vmatmul.f32.gmra.mxu0 %v1549
          %v1599 = vpop.f32.mrf.mxu0
          %v1600 = vadd.f32 0.0, %v1599
          %1601 = vmatmul.f32.gmra.mxu0 %v1551
          %v1602 = vpop.f32.mrf.mxu0
          %v1603 = vadd.f32 0.0, %v1602
          %1604 = vmatmul.f32.gmra.mxu0 %v1553
          %v1605 = vpop.f32.mrf.mxu0
          %v1606 = vadd.f32 0.0, %v1605
          %1607 = vmatmul.f32.gmra.mxu0 %v1555
          %v1608 = vpop.f32.mrf.mxu0
          %v1609 = vadd.f32 0.0, %v1608
          %1610 = vmatmul.f32.gmra.mxu0 %v1557
          %v1611 = vpop.f32.mrf.mxu0
          %v1612 = vadd.f32 0.0, %v1611
          %1613 = vmatmul.f32.gmra.mxu0 %v1559
          %v1614 = vpop.f32.mrf.mxu0
          %v1615 = vadd.f32 0.0, %v1614
          %1616 = vmatmul.f32.gmra.mxu0 %v1561
          %v1617 = vpop.f32.mrf.mxu0
          %v1618 = vadd.f32 0.0, %v1617
          %1619 = vdwg.mxu0
          %v1620 = vsel %vm363, 0.0, %v1396
          %v1621 = vsel %vm364, 0.0, %v1399
          %v1622 = vsel %vm365, 0.0, %v1402
          %v1623 = vsel %vm366, 0.0, %v1405
          %v1624 = vsel %vm367, 0.0, %v1408
          %v1625 = vsel %vm368, 0.0, %v1411
          %v1626 = vsel %vm369, 0.0, %v1414
          %v1627 = vsel %vm370, 0.0, %v1417
          %v1628 = vmul.f32 %v1620, %v962
          %v1629 = vmul.f32 %v1621, %v962
          %v1630 = vmul.f32 %v1622, %v962
          %v1631 = vmul.f32 %v1623, %v962
          %v1632 = vmul.f32 %v1624, %v962
          %v1633 = vmul.f32 %v1625, %v962
          %v1634 = vmul.f32 %v1626, %v962
          %v1635 = vmul.f32 %v1627, %v962
          %v1636 = vsel %vm972, %v1628, 0.0
          %1637 = vadd.xlane.f32.xlu0 %v1636
          %v1638 = vpop.xlane.xlu0 %1637
          %v1639 = vsel %vm972, %v1629, 0.0
          %1640 = vadd.xlane.f32.xlu0 %v1639
          %v1641 = vpop.xlane.xlu0 %1640
          %v1642 = vsel %vm972, %v1630, 0.0
          %1643 = vadd.xlane.f32.xlu0 %v1642
          %v1644 = vpop.xlane.xlu0 %1643
          %v1645 = vsel %vm972, %v1631, 0.0
          %1646 = vadd.xlane.f32.xlu0 %v1645
          %v1647 = vpop.xlane.xlu0 %1646
          %v1648 = vsel %vm972, %v1632, 0.0
          %1649 = vadd.xlane.f32.xlu0 %v1648
          %v1650 = vpop.xlane.xlu0 %1649
          %v1651 = vsel %vm972, %v1633, 0.0
          %1652 = vadd.xlane.f32.xlu0 %v1651
          %v1653 = vpop.xlane.xlu0 %1652
          %v1654 = vsel %vm972, %v1634, 0.0
          %1655 = vadd.xlane.f32.xlu0 %v1654
          %v1656 = vpop.xlane.xlu0 %1655
          %v1657 = vsel %vm972, %v1635, 0.0
          %1658 = vadd.xlane.f32.xlu0 %v1657
          %v1659 = vpop.xlane.xlu0 %1658
          %1660 = vmatpush.msra.mxu0 0.0
          %1661 = vmatpush.msra.mxu0 0.0
          %1662 = vmatpush.msra.mxu0 0.0
          %1663 = vmatpush.msra.mxu0 0.0
          %1664 = vmatpush.msra.mxu0 0.0
          %1665 = vmatpush.msra.mxu0 0.0
          %1666 = vmatpush.msra.mxu0 0.0
          %1667 = vmatpush.msra.mxu0 0.0
          %1668 = vmatpush.msra.mxu0 %v1659
          %1669 = vmatpush.msra.mxu0 %v1656
          %1670 = vmatpush.msra.mxu0 %v1653
          %1671 = vmatpush.msra.mxu0 %v1650
          %1672 = vmatpush.msra.mxu0 %v1647
          %1673 = vmatpush.msra.mxu0 %v1644
          %1674 = vmatpush.msra.mxu0 %v1641
          %1675 = vmatpush.msra.mxu0 %v1638
          %1676 = vmatmul.f32.gmra.mxu0 %v998
          %v1677 = vpop.f32.mrf.mxu0
          %v1678 = vadd.f32 0.0, %v1677
          %1679 = vmatmul.f32.gmra.mxu0 %v1001
          %v1680 = vpop.f32.mrf.mxu0
          %v1681 = vadd.f32 0.0, %v1680
          %1682 = vmatmul.f32.gmra.mxu0 %v1004
          %v1683 = vpop.f32.mrf.mxu0
          %v1684 = vadd.f32 0.0, %v1683
          %1685 = vmatmul.f32.gmra.mxu0 %v1007
          %v1686 = vpop.f32.mrf.mxu0
          %v1687 = vadd.f32 0.0, %v1686
          %1688 = vmatmul.f32.gmra.mxu0 %v1010
          %v1689 = vpop.f32.mrf.mxu0
          %v1690 = vadd.f32 0.0, %v1689
          %1691 = vmatmul.f32.gmra.mxu0 %v1013
          %v1692 = vpop.f32.mrf.mxu0
          %v1693 = vadd.f32 0.0, %v1692
          %1694 = vmatmul.f32.gmra.mxu0 %v1016
          %v1695 = vpop.f32.mrf.mxu0
          %v1696 = vadd.f32 0.0, %v1695
          %1697 = vmatmul.f32.gmra.mxu0 %v1019
          %v1698 = vpop.f32.mrf.mxu0
          %v1699 = vadd.f32 0.0, %v1698
          %1700 = vdwg.mxu0
          %vm1701 = vcmp.gt.f32.partialorder %v1678, 0.0
          %vm1702 = vcmp.gt.f32.partialorder %v1681, 0.0
          %vm1703 = vcmp.gt.f32.partialorder %v1684, 0.0
          %vm1704 = vcmp.gt.f32.partialorder %v1687, 0.0
          %vm1705 = vcmp.gt.f32.partialorder %v1690, 0.0
          %vm1706 = vcmp.gt.f32.partialorder %v1693, 0.0
          %vm1707 = vcmp.gt.f32.partialorder %v1696, 0.0
          %vm1708 = vcmp.gt.f32.partialorder %v1699, 0.0
          %v1709 = vmul.f32 %v1678, 0.1
          %v1710 = vmul.f32 %v1681, 0.1
          %v1711 = vmul.f32 %v1684, 0.1
          %v1712 = vmul.f32 %v1687, 0.1
          %v1713 = vmul.f32 %v1690, 0.1
          %v1714 = vmul.f32 %v1693, 0.1
          %v1715 = vmul.f32 %v1696, 0.1
          %v1716 = vmul.f32 %v1699, 0.1
          %v1717 = vsel %vm1701, %v1678, %v1709
          %v1718 = vsel %vm1702, %v1681, %v1710
          %v1719 = vsel %vm1703, %v1684, %v1711
          %v1720 = vsel %vm1704, %v1687, %v1712
          %v1721 = vsel %vm1705, %v1690, %v1713
          %v1722 = vsel %vm1706, %v1693, %v1714
          %v1723 = vsel %vm1707, %v1696, %v1715
          %v1724 = vsel %vm1708, %v1699, %v1716
          %v1725 = vmul.f32 %v341, %v1717
          %v1726 = vmul.f32 %v342, %v1718
          %v1727 = vmul.f32 %v343, %v1719
          %v1728 = vmul.f32 %v344, %v1720
          %v1729 = vmul.f32 %v345, %v1721
          %v1730 = vmul.f32 %v346, %v1722
          %v1731 = vmul.f32 %v347, %v1723
          %v1732 = vmul.f32 %v348, %v1724
          %v1733 = vsel %vm1094, %v1725, 0.0
          %v1734 = vsel %vm1094, %v1726, 0.0
          %v1735 = vadd.f32 %v1733, %v1734
          %v1736 = vsel %vm1094, %v1727, 0.0
          %v1737 = vadd.f32 %v1735, %v1736
          %v1738 = vsel %vm1094, %v1728, 0.0
          %v1739 = vadd.f32 %v1737, %v1738
          %v1740 = vsel %vm1094, %v1729, 0.0
          %v1741 = vadd.f32 %v1739, %v1740
          %v1742 = vsel %vm1094, %v1730, 0.0
          %v1743 = vadd.f32 %v1741, %v1742
          %v1744 = vsel %vm1094, %v1731, 0.0
          %v1745 = vadd.f32 %v1743, %v1744
          %v1746 = vsel %vm1094, %v1732, 0.0
          %v1747 = vadd.f32 %v1745, %v1746
          %v1748 = vrot.slane %v1747, 4
          %v1749 = vadd.f32 %v1747, %v1748
          %v1750 = vrot.slane %v1749, 2
          %v1751 = vadd.f32 %v1749, %v1750
          %v1752 = vrot.slane %v1751, 1
          %v1753 = vadd.f32 %v1751, %v1752
          %v1754 = vsel %vm972, %v1597, -inf
          %1755 = vmax.xlane.f32.xlu0 %v1754
          %v1756 = vpop.xlane.xlu0 %1755
          %v1757 = vsel %vm972, %v1600, -inf
          %1758 = vmax.xlane.f32.xlu0 %v1757
          %v1759 = vpop.xlane.xlu0 %1758
          %v1760 = vsel %vm972, %v1603, -inf
          %1761 = vmax.xlane.f32.xlu0 %v1760
          %v1762 = vpop.xlane.xlu0 %1761
          %v1763 = vsel %vm972, %v1606, -inf
          %1764 = vmax.xlane.f32.xlu0 %v1763
          %v1765 = vpop.xlane.xlu0 %1764
          %v1766 = vsel %vm972, %v1609, -inf
          %1767 = vmax.xlane.f32.xlu0 %v1766
          %v1768 = vpop.xlane.xlu0 %1767
          %v1769 = vsel %vm972, %v1612, -inf
          %1770 = vmax.xlane.f32.xlu0 %v1769
          %v1771 = vpop.xlane.xlu0 %1770
          %v1772 = vsel %vm972, %v1615, -inf
          %1773 = vmax.xlane.f32.xlu0 %v1772
          %v1774 = vpop.xlane.xlu0 %1773
          %v1775 = vsel %vm972, %v1618, -inf
          %1776 = vmax.xlane.f32.xlu0 %v1775
          %v1777 = vpop.xlane.xlu0 %1776
          %v1778 = vsub.f32 %v1597, %v1756
          %v1779 = vsub.f32 %v1600, %v1759
          %v1780 = vsub.f32 %v1603, %v1762
          %v1781 = vsub.f32 %v1606, %v1765
          %v1782 = vsub.f32 %v1609, %v1768
          %v1783 = vsub.f32 %v1612, %v1771
          %v1784 = vsub.f32 %v1615, %v1774
          %v1785 = vsub.f32 %v1618, %v1777
          %v1786 = vmul.f32 %v1778, 1.442695
          %v1787 = vpow.pop %v1786
          %v1788 = vmul.f32 %v1779, 1.442695
          %v1789 = vpow.pop %v1788
          %v1790 = vmul.f32 %v1780, 1.442695
          %v1791 = vpow.pop %v1790
          %v1792 = vmul.f32 %v1781, 1.442695
          %v1793 = vpow.pop %v1792
          %v1794 = vmul.f32 %v1782, 1.442695
          %v1795 = vpow.pop %v1794
          %v1796 = vmul.f32 %v1783, 1.442695
          %v1797 = vpow.pop %v1796
          %v1798 = vmul.f32 %v1784, 1.442695
          %v1799 = vpow.pop %v1798
          %v1800 = vmul.f32 %v1785, 1.442695
          %v1801 = vpow.pop %v1800
          %v1802 = vsel %vm972, %v1787, 0.0
          %1803 = vadd.xlane.f32.xlu0 %v1802
          %v1804 = vpop.xlane.xlu0 %1803
          %v1805 = vsel %vm972, %v1789, 0.0
          %1806 = vadd.xlane.f32.xlu0 %v1805
          %v1807 = vpop.xlane.xlu0 %1806
          %v1808 = vsel %vm972, %v1791, 0.0
          %1809 = vadd.xlane.f32.xlu0 %v1808
          %v1810 = vpop.xlane.xlu0 %1809
          %v1811 = vsel %vm972, %v1793, 0.0
          %1812 = vadd.xlane.f32.xlu0 %v1811
          %v1813 = vpop.xlane.xlu0 %1812
          %v1814 = vsel %vm972, %v1795, 0.0
          %1815 = vadd.xlane.f32.xlu0 %v1814
          %v1816 = vpop.xlane.xlu0 %1815
          %v1817 = vsel %vm972, %v1797, 0.0
          %1818 = vadd.xlane.f32.xlu0 %v1817
          %v1819 = vpop.xlane.xlu0 %1818
          %v1820 = vsel %vm972, %v1799, 0.0
          %1821 = vadd.xlane.f32.xlu0 %v1820
          %v1822 = vpop.xlane.xlu0 %1821
          %v1823 = vsel %vm972, %v1801, 0.0
          %1824 = vadd.xlane.f32.xlu0 %v1823
          %v1825 = vpop.xlane.xlu0 %1824
          %v1826 = vrcp.pop %v1804
          %v1827 = vrcp.pop %v1807
          %v1828 = vrcp.pop %v1810
          %v1829 = vrcp.pop %v1813
          %v1830 = vrcp.pop %v1816
          %v1831 = vrcp.pop %v1819
          %v1832 = vrcp.pop %v1822
          %v1833 = vrcp.pop %v1825
          %1835 = vset.pattern.permute.xlu0 0
          %1836 = vperm.xlu0 %1835, %v1753
          %v1837 = vpop.permute.xlu0 %1836
          %vm1839 = vcmp.gt.f32.partialorder %v1597, %v1837
          %vm1840 = vcmp.gt.f32.partialorder %v1600, %v1837
          %vm1841 = vcmp.gt.f32.partialorder %v1603, %v1837
          %vm1842 = vcmp.gt.f32.partialorder %v1606, %v1837
          %vm1843 = vcmp.gt.f32.partialorder %v1609, %v1837
          %vm1844 = vcmp.gt.f32.partialorder %v1612, %v1837
          %vm1845 = vcmp.gt.f32.partialorder %v1615, %v1837
          %vm1846 = vcmp.gt.f32.partialorder %v1618, %v1837
          %v1847 = vsel %vm1839, %v1787, 0.0
          %v1848 = vsel %vm1840, %v1789, 0.0
          %v1849 = vsel %vm1841, %v1791, 0.0
          %v1850 = vsel %vm1842, %v1793, 0.0
          %v1851 = vsel %vm1843, %v1795, 0.0
          %v1852 = vsel %vm1844, %v1797, 0.0
          %v1853 = vsel %vm1845, %v1799, 0.0
          %v1854 = vsel %vm1846, %v1801, 0.0
          %v1855 = vmul.f32 %v1847, %v1826
          %v1856 = vmul.f32 %v1848, %v1827
          %v1857 = vmul.f32 %v1849, %v1828
          %v1858 = vmul.f32 %v1850, %v1829
          %v1859 = vmul.f32 %v1851, %v1830
          %v1860 = vmul.f32 %v1852, %v1831
          %v1861 = vmul.f32 %v1853, %v1832
          %v1862 = vmul.f32 %v1854, %v1833
          %1863 = vrot.lane.b32.xlu0 %v613, 88
          %v1864 = vpop.permute.xlu0 %1863
          %1865 = vrot.lane.b32.xlu0 %v616, 88
          %v1866 = vpop.permute.xlu0 %1865
          %1867 = vrot.lane.b32.xlu0 %v619, 88
          %v1868 = vpop.permute.xlu0 %1867
          %1869 = vrot.lane.b32.xlu0 %v622, 88
          %v1870 = vpop.permute.xlu0 %1869
          %1871 = vrot.lane.b32.xlu0 %v625, 88
          %v1872 = vpop.permute.xlu0 %1871
          %1873 = vrot.lane.b32.xlu0 %v628, 88
          %v1874 = vpop.permute.xlu0 %1873
          %1875 = vrot.lane.b32.xlu0 %v631, 88
          %v1876 = vpop.permute.xlu0 %1875
          %1877 = vrot.lane.b32.xlu0 %v634, 88
          %v1878 = vpop.permute.xlu0 %1877
          %v1888 = vsel %vm972, %v1855, 0
          %v1891 = vsel %vm972, %v1856, 0
          %v1894 = vsel %vm972, %v1857, 0
          %v1897 = vsel %vm972, %v1858, 0
          %v1900 = vsel %vm972, %v1859, 0
          %v1903 = vsel %vm972, %v1860, 0
          %v1906 = vsel %vm972, %v1861, 0
          %v1909 = vsel %vm972, %v1862, 0
          %1911 = vmatpush.msra.mxu0 0.0
          %1912 = vmatpush.msra.mxu0 0.0
          %1913 = vmatpush.msra.mxu0 0.0
          %1914 = vmatpush.msra.mxu0 0.0
          %1915 = vmatpush.msra.mxu0 0.0
          %1916 = vmatpush.msra.mxu0 0.0
          %1917 = vmatpush.msra.mxu0 0.0
          %1918 = vmatpush.msra.mxu0 0.0
          %1919 = vmatpush.msra.mxu0 %v1878
          %1920 = vmatpush.msra.mxu0 %v1876
          %1921 = vmatpush.msra.mxu0 %v1874
          %1922 = vmatpush.msra.mxu0 %v1872
          %1923 = vmatpush.msra.mxu0 %v1870
          %1924 = vmatpush.msra.mxu0 %v1868
          %1925 = vmatpush.msra.mxu0 %v1866
          %1926 = vmatpush.msra.mxu0 %v1864
          %1927 = vmatmul.f32.gmra.mxu0 %v1888
          %v1928 = vpop.f32.mrf.mxu0
          %v1929 = vadd.f32 0.0, %v1928
          %1930 = vmatmul.f32.gmra.mxu0 %v1891
          %v1931 = vpop.f32.mrf.mxu0
          %v1932 = vadd.f32 0.0, %v1931
          %1933 = vmatmul.f32.gmra.mxu0 %v1894
          %v1934 = vpop.f32.mrf.mxu0
          %v1935 = vadd.f32 0.0, %v1934
          %1936 = vmatmul.f32.gmra.mxu0 %v1897
          %v1937 = vpop.f32.mrf.mxu0
          %v1938 = vadd.f32 0.0, %v1937
          %1939 = vmatmul.f32.gmra.mxu0 %v1900
          %v1940 = vpop.f32.mrf.mxu0
          %v1941 = vadd.f32 0.0, %v1940
          %1942 = vmatmul.f32.gmra.mxu0 %v1903
          %v1943 = vpop.f32.mrf.mxu0
          %v1944 = vadd.f32 0.0, %v1943
          %1945 = vmatmul.f32.gmra.mxu0 %v1906
          %v1946 = vpop.f32.mrf.mxu0
          %v1947 = vadd.f32 0.0, %v1946
          %1948 = vmatmul.f32.gmra.mxu0 %v1909
          %v1949 = vpop.f32.mrf.mxu0
          %v1950 = vadd.f32 0.0, %v1949
          %1951 = vdwg.mxu0
          %v1953 = vsel %vm678, %v1929, 0
          %v1956 = vsel %vm678, %v1932, 0
          %v1959 = vsel %vm678, %v1935, 0
          %v1962 = vsel %vm678, %v1938, 0
          %v1965 = vsel %vm678, %v1941, 0
          %v1968 = vsel %vm678, %v1944, 0
          %v1971 = vsel %vm678, %v1947, 0
          %v1974 = vsel %vm678, %v1950, 0
          %1976 = vmatpush.msra.mxu0 0.0
          %1977 = vmatpush.msra.mxu0 0.0
          %1978 = vmatpush.msra.mxu0 0.0
          %1979 = vmatpush.msra.mxu0 0.0
          %1980 = vmatpush.msra.mxu0 0.0
          %1981 = vmatpush.msra.mxu0 0.0
          %1982 = vmatpush.msra.mxu0 0.0
          %1983 = vmatpush.msra.mxu0 0.0
          %1984 = vmatpush.msra.mxu0 0.0
          %1985 = vmatpush.msra.mxu0 0.0
          %1986 = vmatpush.msra.mxu0 0.0
          %1987 = vmatpush.msra.mxu0 0.0
          %1988 = vmatpush.msra.mxu0 0.0
          %1989 = vmatpush.msra.mxu0 0.0
          %1990 = vmatpush.msra.mxu0 0.0
          %1991 = vmatpush.msra.mxu0 %v351
          %1992 = vmatmul.f32.gmra.mxu0 %v1953
          %v1993 = vpop.f32.mrf.mxu0
          %v1994 = vadd.f32 0.0, %v1993
          %1995 = vmatmul.f32.gmra.mxu0 %v1956
          %v1996 = vpop.f32.mrf.mxu0
          %v1997 = vadd.f32 0.0, %v1996
          %1998 = vmatmul.f32.gmra.mxu0 %v1959
          %v1999 = vpop.f32.mrf.mxu0
          %v2000 = vadd.f32 0.0, %v1999
          %2001 = vmatmul.f32.gmra.mxu0 %v1962
          %v2002 = vpop.f32.mrf.mxu0
          %v2003 = vadd.f32 0.0, %v2002
          %2004 = vmatmul.f32.gmra.mxu0 %v1965
          %v2005 = vpop.f32.mrf.mxu0
          %v2006 = vadd.f32 0.0, %v2005
          %2007 = vmatmul.f32.gmra.mxu0 %v1968
          %v2008 = vpop.f32.mrf.mxu0
          %v2009 = vadd.f32 0.0, %v2008
          %2010 = vmatmul.f32.gmra.mxu0 %v1971
          %v2011 = vpop.f32.mrf.mxu0
          %v2012 = vadd.f32 0.0, %v2011
          %2013 = vmatmul.f32.gmra.mxu0 %v1974
          %v2014 = vpop.f32.mrf.mxu0
          %v2015 = vadd.f32 0.0, %v2014
          %2016 = vdwg.mxu0
          %v2018 = vsel %vm678, %v1291, 0
          %v2021 = vsel %vm678, %v1294, 0
          %v2024 = vsel %vm678, %v1297, 0
          %v2027 = vsel %vm678, %v1300, 0
          %v2030 = vsel %vm678, %v1303, 0
          %v2033 = vsel %vm678, %v1306, 0
          %v2036 = vsel %vm678, %v1309, 0
          %v2039 = vsel %vm678, %v1312, 0
          %2041 = vmatpush.msra.mxu0 0.0
          %2042 = vmatpush.msra.mxu0 0.0
          %2043 = vmatpush.msra.mxu0 0.0
          %2044 = vmatpush.msra.mxu0 0.0
          %2045 = vmatpush.msra.mxu0 0.0
          %2046 = vmatpush.msra.mxu0 0.0
          %2047 = vmatpush.msra.mxu0 0.0
          %2048 = vmatpush.msra.mxu0 0.0
          %2049 = vmatpush.msra.mxu0 0.0
          %2050 = vmatpush.msra.mxu0 0.0
          %2051 = vmatpush.msra.mxu0 0.0
          %2052 = vmatpush.msra.mxu0 0.0
          %2053 = vmatpush.msra.mxu0 0.0
          %2054 = vmatpush.msra.mxu0 0.0
          %2055 = vmatpush.msra.mxu0 0.0
          %2056 = vmatpush.msra.mxu0 %v350
          %2057 = vmatmul.f32.gmra.mxu0 %v2018
          %v2058 = vpop.f32.mrf.mxu0
          %v2059 = vadd.f32 %v1994, %v2058
          %2060 = vmatmul.f32.gmra.mxu0 %v2021
          %v2061 = vpop.f32.mrf.mxu0
          %v2062 = vadd.f32 %v1997, %v2061
          %2063 = vmatmul.f32.gmra.mxu0 %v2024
          %v2064 = vpop.f32.mrf.mxu0
          %v2065 = vadd.f32 %v2000, %v2064
          %2066 = vmatmul.f32.gmra.mxu0 %v2027
          %v2067 = vpop.f32.mrf.mxu0
          %v2068 = vadd.f32 %v2003, %v2067
          %2069 = vmatmul.f32.gmra.mxu0 %v2030
          %v2070 = vpop.f32.mrf.mxu0
          %v2071 = vadd.f32 %v2006, %v2070
          %2072 = vmatmul.f32.gmra.mxu0 %v2033
          %v2073 = vpop.f32.mrf.mxu0
          %v2074 = vadd.f32 %v2009, %v2073
          %2075 = vmatmul.f32.gmra.mxu0 %v2036
          %v2076 = vpop.f32.mrf.mxu0
          %v2077 = vadd.f32 %v2012, %v2076
          %2078 = vmatmul.f32.gmra.mxu0 %v2039
          %v2079 = vpop.f32.mrf.mxu0
          %v2080 = vadd.f32 %v2015, %v2079
          %2081 = vdwg.mxu0
          %v2083 = vperm.slane %v349, 0
          %v2085 = vadd.f32 %v2059, %v2083
          %v2086 = vadd.f32 %v2062, %v2083
          %v2087 = vadd.f32 %v2065, %v2083
          %v2088 = vadd.f32 %v2068, %v2083
          %v2089 = vadd.f32 %v2071, %v2083
          %v2090 = vadd.f32 %v2074, %v2083
          %v2091 = vadd.f32 %v2077, %v2083
          %v2092 = vadd.f32 %v2080, %v2083
          %v2093 = vadd.f32 %v2085, %v379
          %v2094 = vadd.f32 %v2086, %v380
          %v2095 = vadd.f32 %v2087, %v381
          %v2096 = vadd.f32 %v2088, %v382
          %v2097 = vadd.f32 %v2089, %v383
          %v2098 = vadd.f32 %v2090, %v384
          %v2099 = vadd.f32 %v2091, %v385
          %v2100 = vadd.f32 %v2092, %v386
          %s2101 = scalar_lea.vmem %s326, %s377
          %2102 = vst.msk [vmem:[%s2101] sm:$0xff] %vm387, %v2093
          %2103 = vst.msk [vmem:[%s2101 + $0x8] sm:$0xff] %vm387, %v2094
          %2104 = vst.msk [vmem:[%s2101 + $0x10] sm:$0xff] %vm387, %v2095
          %2105 = vst.msk [vmem:[%s2101 + $0x18] sm:$0xff] %vm387, %v2096
          %2106 = vst.msk [vmem:[%s2101 + $0x20] sm:$0xff] %vm387, %v2097
          %2107 = vst.msk [vmem:[%s2101 + $0x28] sm:$0xff] %vm387, %v2098
          %2108 = vst.msk [vmem:[%s2101 + $0x30] sm:$0xff] %vm387, %v2099
          %2109 = vst.msk [vmem:[%s2101 + $0x38] sm:$0xff] %vm387, %v2100
        $region61: #{fab_forward.2} parent=51 // loop_footer
          %s376 = sadd.s32 1, %s372
        $region62: #{fab_forward.2} parent=51 // loop_footer_branch
          %371 = sbr.rel target = $region58
        $region63: #{fab_forward.2} parent=51 // loop_exit
          _
        %s2110 = smul.u32 2, %s20
        %p2111 = scmp.lt.s32.totalorder %s2110, 15
        %s2112 = scalar_select %p2111, %s2110, 15
        %s2113 = smul.addr %s2112, 8
        %s2114 = smul.addr %s2113, 8
        %s2115 = scalar_lea.vmem %s8, %s2114
        // Predicated region
        $region64: #{fab_forward.2} parent=51 // pred_check
          %p2116 = pneg %p211
        $region65: #{fab_forward.2} parent=51 // pred_check_branch
          %2118 = sbr.rel (%p2116) target = $region67
        $region66: #{fab_forward.2} parent=51 // pred_region
          %s2119 = smul.u32 2, %s20
        $region67: #{fab_forward.2} parent=51 // pred_fallthru
          _
      $region52: #{fab_forward.2} parent=5 // pred_fallthru
        _
      %p2120 = scmp.le.s32.totalorder 2, %s15
      // Predicated region
      $region68: #{fab_forward.2} parent=5 // pred_check
        %p2121 = pneg %p2120
      $region69: #{fab_forward.2} parent=5 // pred_check_branch
        %2123 = sbr.rel (%p2121) target = $region71
      $region70: #{fab_forward.2} parent=5 // pred_region
        %s2124 = ssub.s32 %s15, 2
        // Predicated region
        $region72: #{fab_forward.2} parent=70 // pred_check
          %p2125 = pneg %p217
        $region73: #{fab_forward.2} parent=70 // pred_check_branch
          %2127 = sbr.rel (%p2125) target = $region75
        $region74: #{fab_forward.2} parent=70 // pred_region
          %s2128 = smul.u32 2, %s21
          %p2129 = scmp.lt.s32.totalorder %s2128, 15
          %s2130 = scalar_select %p2129, %s2128, 15
          %s2131 = smul.addr %s2130, 8
          %s2132 = smul.addr %s2131, 8
          %s2133 = scalar_lea.vmem %s8, %s2132
        $region75: #{fab_forward.2} parent=70 // pred_fallthru
          _
      $region71: #{fab_forward.2} parent=5 // pred_fallthru
        _
    $region6: #{fab_forward.2} parent=1 // loop_footer
      %s19 = sadd.s32 1, %s15
    $region7: #{fab_forward.2} parent=1 // loop_footer_branch
      %14 = sbr.rel target = $region3
    $region8: #{fab_forward.2} parent=1 // loop_exit
      _
    %2134 = vsyncpa [#allocation3], 1
    %s2135 = scalar_lea.sflag [#allocation3], 1
    %2136 = vsyncpa %s2135, 1

// kernel: fab_forward.3
$region0: #{fab_forward.3}
  #allocation0 [shape = 'u32[]', space=smem, size = 0x4, offset = 0x4, fixed_abs, tag = 'smem constant byte address 0x4 - core index']
  #allocation1 [shape = 'u32[72,128]{1,0:T(1,128)}', space=vmem, size = 0x9000, scoped, tag = 'internal scratch']
  #allocation2 [shape = 'f32[3,18,18,64]{3,2,1,0:T(8,128)}', space=vmem, size = 0xa2000, scoped, tag = 'scratch operand']
  %s0 = inlined_call_operand.vmem [shape: f32[2,2,16,16,16], index: 0, kind: input, shape index: {}, may-alias: {0,1}]
  %s1 = inlined_call_operand.vmem [shape: f32[2,2,16,16,16], index: 1, kind: input, shape index: {}, may-alias: {0,1}]
  %s2 = inlined_call_operand.vmem [shape: f32[16,64], index: 2, kind: input, shape index: {}]
  %s3 = inlined_call_operand.vmem [shape: f32[27,64], index: 3, kind: input, shape index: {}]
  %s4 = inlined_call_operand.vmem [shape: f32[64,16], index: 4, kind: input, shape index: {}]
  %s5 = inlined_call_operand.vmem [shape: f32[2,2,16,16,16], index: 5, kind: output, shape index: {}]
  %s6 = sld [smem:[#allocation0]]
  $region65: #{fab_forward.3} parent=0
    _
  %s8 = ssub.s32 1, %s6
  %s9 = scalar_select 0, %s8, %s6
  loop: start=0, step=1, limit=6
  $region2: #{fab_forward.3} parent=0 // loop_pre_header
    _
  $region3: #{fab_forward.3} parent=0 // loop_header
    %s11 = sphi 0, %s15
    %p12 = scmp.ge.s32.totalorder %s11, 6
    %s18 = sphi 0, %s30
    %s19 = sphi 0, %s26
    %s20 = sphi 0, %s18
    %s21 = sphi 0, %s19
    %s22 = sphi 0, %s20
    %s23 = sphi 0, %s21
    %s35 = sphi 0, %s37
    %s38 = sphi 0, %s35
    %s39 = sphi 0, %s38
    %s55 = sphi 0, %s39
    %s69 = sphi 0, %s71
    %s72 = sphi 0, %s69
    %s73 = sphi 0, %s72
    %s89 = sphi 0, %s73
    %s93 = sphi 0, %s93
    %s95 = sphi 0, %s93
    %s96 = sphi 0, %s95
    %s110 = sphi 0, %s96
    %s114 = sphi 0, %s114
    %s116 = sphi 0, %s114
    %s117 = sphi 0, %s116
    %s131 = sphi 0, %s117
    %s135 = sphi 0, %s135
    %s137 = sphi 0, %s135
    %s138 = sphi 0, %s137
    %s152 = sphi 0, %s138
    %s160 = sphi 0, %s162
    %s163 = sphi 0, %s160
    %s164 = sphi 0, %s163
    %s180 = sphi 0, %s164
  $region4: #{fab_forward.3} parent=0 // loop_header_branch
    %14 = sbr.rel (%p12) target = $region8
  $region5: #{fab_forward.3} parent=0 // loop_body
    %s16 = ssub.s32 %s11, 1
    %s17 = ssub.s32 %s11, 2
    %s24 = sadd.s32 1, %s19
    %p25 = scmp.ge.s32.totalorder %s24, 2
    %s26 = scalar_select %p25, 0, %s24
    %s27 = sadd.s32 1, %s18
    %s28 = scalar_select %p25, %s27, %s18
    %p29 = scmp.ge.s32.totalorder %s28, 2
    %s30 = scalar_select %p29, 0, %s28
    %s31 = ssub.s32 %s18, %s30
    %s32 = ssub.s32 %s19, %s26
    %s33 = sor.u32 %s31, %s32
    %p34 = scmp.eq.s32.totalorder %s33, 0
    %s36 = sadd.s32 %s35, 1
    %s37 = scalar_select %p34, %s35, %s36
    %p40 = pneg %p34
    %p41 = scmp.eq.s32.totalorder %s11, 3
    %p42 = por %p40, %p41
    %p43 = scmp.ne.s32.totalorder %s35, %s38
    %p44 = scmp.eq.s32.totalorder %s11, 0
    %p45 = por %p43, %p44
    %p46 = scmp.ne.s32.totalorder %s35, %s38
    %p47 = scmp.eq.s32.totalorder %s16, 3
    %p48 = por %p46, %p47
    %p49 = scmp.ne.s32.totalorder %s38, %s39
    %p50 = scmp.eq.s32.totalorder %s16, 0
    %p51 = por %p49, %p50
    %p52 = scmp.ne.s32.totalorder %s38, %s39
    %p53 = scmp.eq.s32.totalorder %s17, 3
    %p54 = por %p52, %p53
    %p56 = scmp.ne.s32.totalorder %s39, %s55
    %p57 = scmp.eq.s32.totalorder %s17, 0
    %p58 = por %p56, %p57
    %s59 = sadd.s32 %s19, 1
    %p60 = scmp.lt.s32.totalorder %s59, 1
    %s61 = scalar_select %p60, %s59, 1
    %s62 = sadd.s32 %s26, 1
    %p63 = scmp.lt.s32.totalorder %s62, 1
    %s64 = scalar_select %p63, %s62, 1
    %s65 = ssub.s32 %s18, %s30
    %s66 = ssub.s32 %s61, %s64
    %s67 = sor.u32 %s65, %s66
    %p68 = scmp.eq.s32.totalorder %s67, 0
    %s70 = sadd.s32 %s69, 1
    %s71 = scalar_select %p68, %s69, %s70
    %p74 = pneg %p68
    %p75 = scmp.eq.s32.totalorder %s11, 3
    %p76 = por %p74, %p75
    %p77 = scmp.ne.s32.totalorder %s69, %s72
    %p78 = scmp.eq.s32.totalorder %s11, 0
    %p79 = por %p77, %p78
    %p80 = scmp.ne.s32.totalorder %s69, %s72
    %p81 = scmp.eq.s32.totalorder %s16, 3
    %p82 = por %p80, %p81
    %p83 = scmp.ne.s32.totalorder %s72, %s73
    %p84 = scmp.eq.s32.totalorder %s16, 0
    %p85 = por %p83, %p84
    %p86 = scmp.ne.s32.totalorder %s72, %s73
    %p87 = scmp.eq.s32.totalorder %s17, 3
    %p88 = por %p86, %p87
    %p90 = scmp.ne.s32.totalorder %s73, %s89
    %p91 = scmp.eq.s32.totalorder %s17, 0
    %p92 = por %p90, %p91
    %s94 = sadd.s32 %s93, 1
    %p97 = scmp.eq.s32.totalorder %s11, 3
    %p98 = scmp.ne.s32.totalorder %s93, %s95
    %p99 = scmp.eq.s32.totalorder %s11, 0
    %p100 = por %p98, %p99
    %p101 = scmp.ne.s32.totalorder %s93, %s95
    %p102 = scmp.eq.s32.totalorder %s16, 3
    %p103 = por %p101, %p102
    %p104 = scmp.ne.s32.totalorder %s95, %s96
    %p105 = scmp.eq.s32.totalorder %s16, 0
    %p106 = por %p104, %p105
    %p107 = scmp.ne.s32.totalorder %s95, %s96
    %p108 = scmp.eq.s32.totalorder %s17, 3
    %p109 = por %p107, %p108
    %p111 = scmp.ne.s32.totalorder %s96, %s110
    %p112 = scmp.eq.s32.totalorder %s17, 0
    %p113 = por %p111, %p112
    %s115 = sadd.s32 %s114, 1
    %p118 = scmp.eq.s32.totalorder %s11, 3
    %p119 = scmp.ne.s32.totalorder %s114, %s116
    %p120 = scmp.eq.s32.totalorder %s11, 0
    %p121 = por %p119, %p120
    %p122 = scmp.ne.s32.totalorder %s114, %s116
    %p123 = scmp.eq.s32.totalorder %s16, 3
    %p124 = por %p122, %p123
    %p125 = scmp.ne.s32.totalorder %s116, %s117
    %p126 = scmp.eq.s32.totalorder %s16, 0
    %p127 = por %p125, %p126
    %p128 = scmp.ne.s32.totalorder %s116, %s117
    %p129 = scmp.eq.s32.totalorder %s17, 3
    %p130 = por %p128, %p129
    %p132 = scmp.ne.s32.totalorder %s117, %s131
    %p133 = scmp.eq.s32.totalorder %s17, 0
    %p134 = por %p132, %p133
    %s136 = sadd.s32 %s135, 1
    %p139 = scmp.eq.s32.totalorder %s11, 3
    %p140 = scmp.ne.s32.totalorder %s135, %s137
    %p141 = scmp.eq.s32.totalorder %s11, 0
    %p142 = por %p140, %p141
    %p143 = scmp.ne.s32.totalorder %s135, %s137
    %p144 = scmp.eq.s32.totalorder %s16, 3
    %p145 = por %p143, %p144
    %p146 = scmp.ne.s32.totalorder %s137, %s138
    %p147 = scmp.eq.s32.totalorder %s16, 0
    %p148 = por %p146, %p147
    %p149 = scmp.ne.s32.totalorder %s137, %s138
    %p150 = scmp.eq.s32.totalorder %s17, 3
    %p151 = por %p149, %p150
    %p153 = scmp.ne.s32.totalorder %s138, %s152
    %p154 = scmp.eq.s32.totalorder %s17, 0
    %p155 = por %p153, %p154
    %s156 = ssub.s32 %s18, %s30
    %s157 = ssub.s32 %s19, %s26
    %s158 = sor.u32 %s156, %s157
    %p159 = scmp.eq.s32.totalorder %s158, 0
    %s161 = sadd.s32 %s160, 1
    %s162 = scalar_select %p159, %s160, %s161
    %p165 = pneg %p159
    %p166 = scmp.eq.s32.totalorder %s11, 3
    %p167 = por %p165, %p166
    %p168 = scmp.ne.s32.totalorder %s160, %s163
    %p169 = scmp.eq.s32.totalorder %s11, 0
    %p170 = por %p168, %p169
    %p171 = scmp.ne.s32.totalorder %s160, %s163
    %p172 = scmp.eq.s32.totalorder %s16, 3
    %p173 = por %p171, %p172
    %p174 = scmp.ne.s32.totalorder %s163, %s164
    %p175 = scmp.eq.s32.totalorder %s16, 0
    %p176 = por %p174, %p175
    %p177 = scmp.ne.s32.totalorder %s163, %s164
    %p178 = scmp.eq.s32.totalorder %s17, 3
    %p179 = por %p177, %p178
    %p181 = scmp.ne.s32.totalorder %s164, %s180
    %p182 = scmp.eq.s32.totalorder %s17, 0
    %p183 = por %p181, %p182
    %p184 = scmp.le.s32.totalorder 1, %s11
    %p185 = scmp.lt.s32.totalorder %s11, 5
    %p186 = pnand %p184, %p185
    %p187 = pneg %p186
    // Predicated region
    $region9: #{fab_forward.3} parent=5 // pred_check
      _
    $region10: #{fab_forward.3} parent=5 // pred_check_branch
      %189 = sbr.rel (%p186) target = $region12
    $region11: #{fab_forward.3} parent=5 // pred_region
      %s190 = ssub.s32 %s11, 1
      // Predicated region
      $region13: #{fab_forward.3} parent=11 // pred_check
        %p191 = pneg %p106
      $region14: #{fab_forward.3} parent=11 // pred_check_branch
        %193 = sbr.rel (%p191) target = $region16
      $region15: #{fab_forward.3} parent=11 // pred_region
        _
      $region16: #{fab_forward.3} parent=11 // pred_fallthru
        _
      // Predicated region
      $region17: #{fab_forward.3} parent=11 // pred_check
        %p194 = pneg %p127
      $region18: #{fab_forward.3} parent=11 // pred_check_branch
        %196 = sbr.rel (%p194) target = $region20
      $region19: #{fab_forward.3} parent=11 // pred_region
        _
      $region20: #{fab_forward.3} parent=11 // pred_fallthru
        _
      // Predicated region
      $region21: #{fab_forward.3} parent=11 // pred_check
        %p197 = pneg %p148
      $region22: #{fab_forward.3} parent=11 // pred_check_branch
        %199 = sbr.rel (%p197) target = $region24
      $region23: #{fab_forward.3} parent=11 // pred_region
        _
      $region24: #{fab_forward.3} parent=11 // pred_fallthru
        _
    $region12: #{fab_forward.3} parent=5 // pred_fallthru
      _
    %p200 = scmp.lt.s32.totalorder %s11, 4
    // Predicated region
    $region25: #{fab_forward.3} parent=5 // pred_check
      %p201 = pneg %p200
    $region26: #{fab_forward.3} parent=5 // pred_check_branch
      %203 = sbr.rel (%p201) target = $region28
    $region27: #{fab_forward.3} parent=5 // pred_region
      // Predicated region
      $region29: #{fab_forward.3} parent=27 // pred_check
        %p204 = pneg %p45
      $region30: #{fab_forward.3} parent=27 // pred_check_branch
        %206 = sbr.rel (%p204) target = $region32
      $region31: #{fab_forward.3} parent=27 // pred_region
        %p207 = scmp.lt.s32.totalorder %s18, 1
        %s208 = scalar_select %p207, %s18, 1
        %p209 = scmp.lt.s32.totalorder %s19, 1
        %s210 = scalar_select %p209, %s19, 1
        %s211 = smul.addr %s210, 32
        %s212 = smul.addr %s208, 64
        %s213 = sadd.s32 %s211, %s212
        %s214 = smul.addr %s213, 8
        %s215 = scalar_lea.vmem %s0, %s214
      $region32: #{fab_forward.3} parent=27 // pred_fallthru
        _
      // Predicated region
      $region33: #{fab_forward.3} parent=27 // pred_check
        %p216 = pneg %p79
      $region34: #{fab_forward.3} parent=27 // pred_check_branch
        %218 = sbr.rel (%p216) target = $region36
      $region35: #{fab_forward.3} parent=27 // pred_region
        %s219 = sadd.s32 %s19, 1
        %p220 = scmp.lt.s32.totalorder %s219, 1
        %s221 = scalar_select %p220, %s219, 1
        %p222 = scmp.lt.s32.totalorder %s18, 1
        %s223 = scalar_select %p222, %s18, 1
        %p224 = scmp.lt.s32.totalorder %s221, 1
        %s225 = scalar_select %p224, %s221, 1
        %s226 = smul.addr %s225, 32
        %s227 = smul.addr %s223, 64
        %s228 = sadd.s32 %s226, %s227
        %s229 = smul.addr %s228, 8
        %s230 = scalar_lea.vmem %s1, %s229
        %s231 = sadd.s32 %s19, 1
        %p232 = scmp.lt.s32.totalorder %s231, 1
        %s233 = scalar_select %p232, %s231, 1
      $region36: #{fab_forward.3} parent=27 // pred_fallthru
        _
    $region28: #{fab_forward.3} parent=5 // pred_fallthru
      _
    %p234 = scmp.le.s32.totalorder 1, %s11
    %p235 = scmp.lt.s32.totalorder %s11, 5
    %p236 = pnand %p234, %p235
    %p237 = pneg %p236
    // Predicated region
    $region37: #{fab_forward.3} parent=5 // pred_check
      _
    $region38: #{fab_forward.3} parent=5 // pred_check_branch
      %239 = sbr.rel (%p236) target = $region40
    $region39: #{fab_forward.3} parent=5 // pred_region
      %s240 = ssub.s32 %s11, 1
      %p241 = scmp.lt.s32.totalorder %s20, 1
      %s242 = scalar_select %p241, %s20, 1
      %p243 = scmp.lt.s32.totalorder %s21, 1
      %s244 = scalar_select %p243, %s21, 1
      %s245 = smul.addr %s244, 32
      %s246 = smul.addr %s242, 64
      %s247 = sadd.s32 %s245, %s246
      %s248 = smul.addr %s247, 8
      %s249 = scalar_lea.vmem %s0, %s248
      %p250 = pneg %p51
      %p251 = pneg %p48
      %s252 = sadd.s32 %s21, 1
      %p253 = scmp.lt.s32.totalorder %s252, 1
      %s254 = scalar_select %p253, %s252, 1
      %p255 = scmp.lt.s32.totalorder %s20, 1
      %s256 = scalar_select %p255, %s20, 1
      %p257 = scmp.lt.s32.totalorder %s254, 1
      %s258 = scalar_select %p257, %s254, 1
      %s259 = smul.addr %s258, 32
      %s260 = smul.addr %s256, 64
      %s261 = sadd.s32 %s259, %s260
      %s262 = smul.addr %s261, 8
      %s263 = scalar_lea.vmem %s1, %s262
      %p264 = pneg %p85
      %p265 = pneg %p82
      %p266 = pneg %p106
      %p267 = pneg %p103
      %p268 = pneg %p127
      %p269 = pneg %p124
      %p270 = pneg %p148
      %p271 = pneg %p145
      %p272 = pneg %p176
      %p273 = pneg %p173
      %p274 = scmp.lt.s32.totalorder %s20, 1
      %s275 = scalar_select %p274, %s20, 1
      %p276 = scmp.lt.s32.totalorder %s21, 1
      %s277 = scalar_select %p276, %s21, 1
      %s278 = smul.addr %s277, 32
      %s279 = smul.addr %s275, 64
      %s280 = sadd.s32 %s278, %s279
      %s281 = smul.addr %s280, 8
      %s282 = scalar_lea.vmem %s5, %s281
      %p283 = scmp.lt.s32.totalorder %s20, 1
      %s284 = scalar_select %p283, %s20, 1
      %p285 = scmp.lt.s32.totalorder %s21, 1
      %s286 = scalar_select %p285, %s21, 1
      %s287 = smul.addr %s286, 32
      %s288 = smul.addr %s284, 64
      %s289 = sadd.s32 %s287, %s288
      %s290 = smul.addr %s289, 8
      %s291 = scalar_lea.vmem %s0, %s290
      %s292 = sadd.s32 %s21, 1
      %p293 = scmp.lt.s32.totalorder %s292, 1
      %s294 = scalar_select %p293, %s292, 1
      %p295 = scmp.lt.s32.totalorder %s20, 1
      %s296 = scalar_select %p295, %s20, 1
      %p297 = scmp.lt.s32.totalorder %s294, 1
      %s298 = scalar_select %p297, %s294, 1
      %s299 = smul.addr %s298, 32
      %s300 = smul.addr %s296, 64
      %s301 = sadd.s32 %s299, %s300
      %s302 = smul.addr %s301, 8
      %s303 = scalar_lea.vmem %s1, %s302
      %s304 = sadd.s32 %s21, 1
      %p305 = scmp.lt.s32.totalorder %s304, 1
      %s306 = scalar_select %p305, %s304, 1
      %p307 = scmp.lt.s32.totalorder %s20, 1
      %s308 = scalar_select %p307, %s20, 1
      %p309 = scmp.lt.s32.totalorder %s21, 1
      %s310 = scalar_select %p309, %s21, 1
      %s311 = smul.addr %s310, 32
      %s312 = smul.addr %s308, 64
      %s313 = sadd.s32 %s311, %s312
      %s314 = smul.addr %s313, 8
      %s315 = scalar_lea.vmem %s5, %s314
      %p316 = scmp.eq.s32.totalorder %s21, 0
      // Predicated region
      $region41: #{fab_forward.3} parent=39 // pred_check
        %p317 = pneg %p316
      $region42: #{fab_forward.3} parent=39 // pred_check_branch
        %319 = sbr.rel (%p317) target = $region44
      $region43: #{fab_forward.3} parent=39 // pred_region
        %s320 = scalar_lea.vmem [#allocation2], 864
        %vm321 = vcmask 523264
        %322 = vst.msk [vmem:[%s320] sm:$0xff] %vm321, 0.0
        %323 = vst.msk [vmem:[%s320 + $0x8] sm:$0xff] %vm321, 0.0
        %vm324 = vcmask 517120
        %325 = vst.msk [vmem:[%s320 + $0x10] sm:$0x3] %vm324, 0.0
        %326 = vst.msk [vmem:[%s320 + $0x18] sm:$0xff] %vm321, 0.0
        %327 = vst.msk [vmem:[%s320 + $0x20] sm:$0xff] %vm321, 0.0
        %328 = vst.msk [vmem:[%s320 + $0x28] sm:$0x3] %vm324, 0.0
        %329 = vst.msk [vmem:[%s320 + $0x30] sm:$0xff] %vm321, 0.0
        %330 = vst.msk [vmem:[%s320 + $0x38] sm:$0xff] %vm321, 0.0
        %331 = vst.msk [vmem:[%s320 + $0x40] sm:$0x3] %vm324, 0.0
        %332 = vst.msk [vmem:[%s320 + $0x48] sm:$0xff] %vm321, 0.0
        %333 = vst.msk [vmem:[%s320 + $0x50] sm:$0xff] %vm321, 0.0
        %334 = vst.msk [vmem:[%s320 + $0x58] sm:$0x3] %vm324, 0.0
        %335 = vst.msk [vmem:[%s320 + $0x60] sm:$0xff] %vm321, 0.0
        %336 = vst.msk [vmem:[%s320 + $0x68] sm:$0xff] %vm321, 0.0
        %337 = vst.msk [vmem:[%s320 + $0x70] sm:$0x3] %vm324, 0.0
        %338 = vst.msk [vmem:[%s320 + $0x78] sm:$0xff] %vm321, 0.0
        %339 = vst.msk [vmem:[%s320 + $0x80] sm:$0xff] %vm321, 0.0
        %340 = vst.msk [vmem:[%s320 + $0x88] sm:$0x3] %vm324, 0.0
        %341 = vst.msk [vmem:[%s320 + $0x90] sm:$0xff] %vm321, 0.0
        %342 = vst.msk [vmem:[%s320 + $0x98] sm:$0xff] %vm321, 0.0
        %343 = vst.msk [vmem:[%s320 + $0xa0] sm:$0x3] %vm324, 0.0
        %344 = vst.msk [vmem:[%s320 + $0xa8] sm:$0xff] %vm321, 0.0
        %345 = vst.msk [vmem:[%s320 + $0xb0] sm:$0xff] %vm321, 0.0
        %346 = vst.msk [vmem:[%s320 + $0xb8] sm:$0x3] %vm324, 0.0
        %347 = vst.msk [vmem:[%s320 + $0xc0] sm:$0xff] %vm321, 0.0
        %348 = vst.msk [vmem:[%s320 + $0xc8] sm:$0xff] %vm321, 0.0
        %349 = vst.msk [vmem:[%s320 + $0xd0] sm:$0x3] %vm324, 0.0
        %350 = vst.msk [vmem:[%s320 + $0xd8] sm:$0xff] %vm321, 0.0
        %351 = vst.msk [vmem:[%s320 + $0xe0] sm:$0xff] %vm321, 0.0
        %352 = vst.msk [vmem:[%s320 + $0xe8] sm:$0x3] %vm324, 0.0
        %353 = vst.msk [vmem:[%s320 + $0xf0] sm:$0xff] %vm321, 0.0
        %354 = vst.msk [vmem:[%s320 + $0xf8] sm:$0xff] %vm321, 0.0
        %355 = vst.msk [vmem:[%s320 + $0x100] sm:$0x3] %vm324, 0.0
        %356 = vst.msk [vmem:[%s320 + $0x108] sm:$0xff] %vm321, 0.0
        %357 = vst.msk [vmem:[%s320 + $0x110] sm:$0xff] %vm321, 0.0
        %358 = vst.msk [vmem:[%s320 + $0x118] sm:$0x3] %vm324, 0.0
        %359 = vst.msk [vmem:[%s320 + $0x120] sm:$0xff] %vm321, 0.0
        %360 = vst.msk [vmem:[%s320 + $0x128] sm:$0xff] %vm321, 0.0
        %361 = vst.msk [vmem:[%s320 + $0x130] sm:$0x3] %vm324, 0.0
        %362 = vst.msk [vmem:[%s320 + $0x138] sm:$0xff] %vm321, 0.0
        %363 = vst.msk [vmem:[%s320 + $0x140] sm:$0xff] %vm321, 0.0
        %364 = vst.msk [vmem:[%s320 + $0x148] sm:$0x3] %vm324, 0.0
        %365 = vst.msk [vmem:[%s320 + $0x150] sm:$0xff] %vm321, 0.0
        %366 = vst.msk [vmem:[%s320 + $0x158] sm:$0xff] %vm321, 0.0
        %367 = vst.msk [vmem:[%s320 + $0x160] sm:$0x3] %vm324, 0.0
        %368 = vst.msk [vmem:[%s320 + $0x168] sm:$0xff] %vm321, 0.0
        %369 = vst.msk [vmem:[%s320 + $0x170] sm:$0xff] %vm321, 0.0
        %370 = vst.msk [vmem:[%s320 + $0x178] sm:$0x3] %vm324, 0.0
        %371 = vst.msk [vmem:[%s320 + $0x180] sm:$0xff] %vm321, 0.0
        %372 = vst.msk [vmem:[%s320 + $0x188] sm:$0xff] %vm321, 0.0
        %373 = vst.msk [vmem:[%s320 + $0x190] sm:$0x3] %vm324, 0.0
        %374 = vst.msk [vmem:[%s320 + $0x198] sm:$0xff] %vm321, 0.0
        %375 = vst.msk [vmem:[%s320 + $0x1a0] sm:$0xff] %vm321, 0.0
        %376 = vst.msk [vmem:[%s320 + $0x1a8] sm:$0x3] %vm324, 0.0
        %377 = vst.msk [vmem:[#allocation2] sm:$0xff] %vm321, 0.0
        %378 = vst.msk [vmem:[#allocation2 + $0x8] sm:$0xff] %vm321, 0.0
        %379 = vst.msk [vmem:[#allocation2 + $0x10] sm:$0x3] %vm324, 0.0
        %s380 = scalar_lea.vmem [#allocation2], 408
        %381 = vst.msk [vmem:[%s380] sm:$0xff] %vm321, 0.0
        %382 = vst.msk [vmem:[%s380 + $0x8] sm:$0xff] %vm321, 0.0
        %383 = vst.msk [vmem:[%s380 + $0x10] sm:$0x3] %vm324, 0.0
        %s384 = scalar_lea.vmem [#allocation2], 432
        %385 = vst.msk [vmem:[%s384] sm:$0xff] %vm321, 0.0
        %386 = vst.msk [vmem:[%s384 + $0x8] sm:$0xff] %vm321, 0.0
        %387 = vst.msk [vmem:[%s384 + $0x10] sm:$0x3] %vm324, 0.0
        %s388 = scalar_lea.vmem [#allocation2], 840
        %389 = vst.msk [vmem:[%s388] sm:$0xff] %vm321, 0.0
        %390 = vst.msk [vmem:[%s388 + $0x8] sm:$0xff] %vm321, 0.0
        %391 = vst.msk [vmem:[%s388 + $0x10] sm:$0x3] %vm324, 0.0
        %v392 = vld [vmem:[%s291] sm:$0xff]
        %v393 = vld [vmem:[%s291 + $0x8] sm:$0xff]
        %v394 = vld [vmem:[%s291 + $0x10] sm:$0xff]
        %v395 = vld [vmem:[%s291 + $0x18] sm:$0xff]
        %v396 = vld [vmem:[%s291 + $0x20] sm:$0xff]
        %v397 = vld [vmem:[%s291 + $0x28] sm:$0xff]
        %v398 = vld [vmem:[%s291 + $0x30] sm:$0xff]
        %v399 = vld [vmem:[%s291 + $0x38] sm:$0xff]
        %v400 = vld [vmem:[%s291 + $0x40] sm:$0xff]
        %v401 = vld [vmem:[%s291 + $0x48] sm:$0xff]
        %v402 = vld [vmem:[%s291 + $0x50] sm:$0xff]
        %v403 = vld [vmem:[%s291 + $0x58] sm:$0xff]
        %v404 = vld [vmem:[%s291 + $0x60] sm:$0xff]
        %v405 = vld [vmem:[%s291 + $0x68] sm:$0xff]
        %v406 = vld [vmem:[%s291 + $0x70] sm:$0xff]
        %v407 = vld [vmem:[%s291 + $0x78] sm:$0xff]
        %v408 = vld [vmem:[%s291 + $0x80] sm:$0xff]
        %v409 = vld [vmem:[%s291 + $0x88] sm:$0xff]
        %v410 = vld [vmem:[%s291 + $0x90] sm:$0xff]
        %v411 = vld [vmem:[%s291 + $0x98] sm:$0xff]
        %v412 = vld [vmem:[%s291 + $0xa0] sm:$0xff]
        %v413 = vld [vmem:[%s291 + $0xa8] sm:$0xff]
        %v414 = vld [vmem:[%s291 + $0xb0] sm:$0xff]
        %v415 = vld [vmem:[%s291 + $0xb8] sm:$0xff]
        %v416 = vld [vmem:[%s291 + $0xc0] sm:$0xff]
        %v417 = vld [vmem:[%s291 + $0xc8] sm:$0xff]
        %v418 = vld [vmem:[%s291 + $0xd0] sm:$0xff]
        %v419 = vld [vmem:[%s291 + $0xd8] sm:$0xff]
        %v420 = vld [vmem:[%s291 + $0xe0] sm:$0xff]
        %v421 = vld [vmem:[%s291 + $0xe8] sm:$0xff]
        %v422 = vld [vmem:[%s291 + $0xf0] sm:$0xff]
        %v423 = vld [vmem:[%s291 + $0xf8] sm:$0xff]
        %vm424 = vcmask 130048
        %v425 = vsel %vm424, %v392, 0.0
        %426 = vadd.xlane.f32.xlu0 %v425
        %v427 = vpop.xlane.xlu0 %426
        %v428 = vsel %vm424, %v393, 0.0
        %429 = vadd.xlane.f32.xlu0 %v428
        %v430 = vpop.xlane.xlu0 %429
        %v431 = vsel %vm424, %v394, 0.0
        %432 = vadd.xlane.f32.xlu0 %v431
        %v433 = vpop.xlane.xlu0 %432
        %v434 = vsel %vm424, %v395, 0.0
        %435 = vadd.xlane.f32.xlu0 %v434
        %v436 = vpop.xlane.xlu0 %435
        %v437 = vsel %vm424, %v396, 0.0
        %438 = vadd.xlane.f32.xlu0 %v437
        %v439 = vpop.xlane.xlu0 %438
        %v440 = vsel %vm424, %v397, 0.0
        %441 = vadd.xlane.f32.xlu0 %v440
        %v442 = vpop.xlane.xlu0 %441
        %v443 = vsel %vm424, %v398, 0.0
        %444 = vadd.xlane.f32.xlu0 %v443
        %v445 = vpop.xlane.xlu0 %444
        %v446 = vsel %vm424, %v399, 0.0
        %447 = vadd.xlane.f32.xlu0 %v446
        %v448 = vpop.xlane.xlu0 %447
        %v449 = vsel %vm424, %v400, 0.0
        %450 = vadd.xlane.f32.xlu0 %v449
        %v451 = vpop.xlane.xlu0 %450
        %v452 = vsel %vm424, %v401, 0.0
        %453 = vadd.xlane.f32.xlu0 %v452
        %v454 = vpop.xlane.xlu0 %453
        %v455 = vsel %vm424, %v402, 0.0
        %456 = vadd.xlane.f32.xlu0 %v455
        %v457 = vpop.xlane.xlu0 %456
        %v458 = vsel %vm424, %v403, 0.0
        %459 = vadd.xlane.f32.xlu0 %v458
        %v460 = vpop.xlane.xlu0 %459
        %v461 = vsel %vm424, %v404, 0.0
        %462 = vadd.xlane.f32.xlu0 %v461
        %v463 = vpop.xlane.xlu0 %462
        %v464 = vsel %vm424, %v405, 0.0
        %465 = vadd.xlane.f32.xlu0 %v464
        %v466 = vpop.xlane.xlu0 %465
        %v467 = vsel %vm424, %v406, 0.0
        %468 = vadd.xlane.f32.xlu0 %v467
        %v469 = vpop.xlane.xlu0 %468
        %v470 = vsel %vm424, %v407, 0.0
        %471 = vadd.xlane.f32.xlu0 %v470
        %v472 = vpop.xlane.xlu0 %471
        %v473 = vsel %vm424, %v408, 0.0
        %474 = vadd.xlane.f32.xlu0 %v473
        %v475 = vpop.xlane.xlu0 %474
        %v476 = vsel %vm424, %v409, 0.0
        %477 = vadd.xlane.f32.xlu0 %v476
        %v478 = vpop.xlane.xlu0 %477
        %v479 = vsel %vm424, %v410, 0.0
        %480 = vadd.xlane.f32.xlu0 %v479
        %v481 = vpop.xlane.xlu0 %480
        %v482 = vsel %vm424, %v411, 0.0
        %483 = vadd.xlane.f32.xlu0 %v482
        %v484 = vpop.xlane.xlu0 %483
        %v485 = vsel %vm424, %v412, 0.0
        %486 = vadd.xlane.f32.xlu0 %v485
        %v487 = vpop.xlane.xlu0 %486
        %v488 = vsel %vm424, %v413, 0.0
        %489 = vadd.xlane.f32.xlu0 %v488
        %v490 = vpop.xlane.xlu0 %489
        %v491 = vsel %vm424, %v414, 0.0
        %492 = vadd.xlane.f32.xlu0 %v491
        %v493 = vpop.xlane.xlu0 %492
        %v494 = vsel %vm424, %v415, 0.0
        %495 = vadd.xlane.f32.xlu0 %v494
        %v496 = vpop.xlane.xlu0 %495
        %v497 = vsel %vm424, %v416, 0.0
        %498 = vadd.xlane.f32.xlu0 %v497
        %v499 = vpop.xlane.xlu0 %498
        %v500 = vsel %vm424, %v417, 0.0
        %501 = vadd.xlane.f32.xlu0 %v500
        %v502 = vpop.xlane.xlu0 %501
        %v503 = vsel %vm424, %v418, 0.0
        %504 = vadd.xlane.f32.xlu0 %v503
        %v505 = vpop.xlane.xlu0 %504
        %v506 = vsel %vm424, %v419, 0.0
        %507 = vadd.xlane.f32.xlu0 %v506
        %v508 = vpop.xlane.xlu0 %507
        %v509 = vsel %vm424, %v420, 0.0
        %510 = vadd.xlane.f32.xlu0 %v509
        %v511 = vpop.xlane.xlu0 %510
        %v512 = vsel %vm424, %v421, 0.0
        %513 = vadd.xlane.f32.xlu0 %v512
        %v514 = vpop.xlane.xlu0 %513
        %v515 = vsel %vm424, %v422, 0.0
        %516 = vadd.xlane.f32.xlu0 %v515
        %v517 = vpop.xlane.xlu0 %516
        %v518 = vsel %vm424, %v423, 0.0
        %519 = vadd.xlane.f32.xlu0 %v518
        %v520 = vpop.xlane.xlu0 %519
        %v521 = vrcp.pop 16.0
        %v522 = vmul.f32 16.0, %v521
        %v523 = vsub.f32 1.0, %v522
        %v524 = vmul.f32 %v521, %v523
        %v525 = vadd.f32 %v521, %v524
        %vm526 = vweird.f32 %v521
        %v527 = vsel %vm526, %v521, %v525
        %v528 = vmul.f32 %v427, %v527
        %v529 = vmul.f32 %v430, %v527
        %v530 = vmul.f32 %v433, %v527
        %v531 = vmul.f32 %v436, %v527
        %v532 = vmul.f32 %v439, %v527
        %v533 = vmul.f32 %v442, %v527
        %v534 = vmul.f32 %v445, %v527
        %v535 = vmul.f32 %v448, %v527
        %v536 = vmul.f32 %v451, %v527
        %v537 = vmul.f32 %v454, %v527
        %v538 = vmul.f32 %v457, %v527
        %v539 = vmul.f32 %v460, %v527
        %v540 = vmul.f32 %v463, %v527
        %v541 = vmul.f32 %v466, %v527
        %v542 = vmul.f32 %v469, %v527
        %v543 = vmul.f32 %v472, %v527
        %v544 = vmul.f32 %v475, %v527
        %v545 = vmul.f32 %v478, %v527
        %v546 = vmul.f32 %v481, %v527
        %v547 = vmul.f32 %v484, %v527
        %v548 = vmul.f32 %v487, %v527
        %v549 = vmul.f32 %v490, %v527
        %v550 = vmul.f32 %v493, %v527
        %v551 = vmul.f32 %v496, %v527
        %v552 = vmul.f32 %v499, %v527
        %v553 = vmul.f32 %v502, %v527
        %v554 = vmul.f32 %v505, %v527
        %v555 = vmul.f32 %v508, %v527
        %v556 = vmul.f32 %v511, %v527
        %v557 = vmul.f32 %v514, %v527
        %v558 = vmul.f32 %v517, %v527
        %v559 = vmul.f32 %v520, %v527
        %v560 = vsub.f32 %v392, %v528
        %v561 = vsub.f32 %v393, %v529
        %v562 = vsub.f32 %v394, %v530
        %v563 = vsub.f32 %v395, %v531
        %v564 = vsub.f32 %v396, %v532
        %v565 = vsub.f32 %v397, %v533
        %v566 = vsub.f32 %v398, %v534
        %v567 = vsub.f32 %v399, %v535
        %v568 = vsub.f32 %v400, %v536
        %v569 = vsub.f32 %v401, %v537
        %v570 = vsub.f32 %v402, %v538
        %v571 = vsub.f32 %v403, %v539
        %v572 = vsub.f32 %v404, %v540
        %v573 = vsub.f32 %v405, %v541
        %v574 = vsub.f32 %v406, %v542
        %v575 = vsub.f32 %v407, %v543
        %v576 = vsub.f32 %v408, %v544
        %v577 = vsub.f32 %v409, %v545
        %v578 = vsub.f32 %v410, %v546
        %v579 = vsub.f32 %v411, %v547
        %v580 = vsub.f32 %v412, %v548
        %v581 = vsub.f32 %v413, %v549
        %v582 = vsub.f32 %v414, %v550
        %v583 = vsub.f32 %v415, %v551
        %v584 = vsub.f32 %v416, %v552
        %v585 = vsub.f32 %v417, %v553
        %v586 = vsub.f32 %v418, %v554
        %v587 = vsub.f32 %v419, %v555
        %v588 = vsub.f32 %v420, %v556
        %v589 = vsub.f32 %v421, %v557
        %v590 = vsub.f32 %v422, %v558
        %v591 = vsub.f32 %v423, %v559
        %v592 = vmul.f32 %v560, %v560
        %v593 = vmul.f32 %v561, %v561
        %v594 = vmul.f32 %v562, %v562
        %v595 = vmul.f32 %v563, %v563
        %v596 = vmul.f32 %v564, %v564
        %v597 = vmul.f32 %v565, %v565
        %v598 = vmul.f32 %v566, %v566
        %v599 = vmul.f32 %v567, %v567
        %v600 = vmul.f32 %v568, %v568
        %v601 = vmul.f32 %v569, %v569
        %v602 = vmul.f32 %v570, %v570
        %v603 = vmul.f32 %v571, %v571
        %v604 = vmul.f32 %v572, %v572
        %v605 = vmul.f32 %v573, %v573
        %v606 = vmul.f32 %v574, %v574
        %v607 = vmul.f32 %v575, %v575
        %v608 = vmul.f32 %v576, %v576
        %v609 = vmul.f32 %v577, %v577
        %v610 = vmul.f32 %v578, %v578
        %v611 = vmul.f32 %v579, %v579
        %v612 = vmul.f32 %v580, %v580
        %v613 = vmul.f32 %v581, %v581
        %v614 = vmul.f32 %v582, %v582
        %v615 = vmul.f32 %v583, %v583
        %v616 = vmul.f32 %v584, %v584
        %v617 = vmul.f32 %v585, %v585
        %v618 = vmul.f32 %v586, %v586
        %v619 = vmul.f32 %v587, %v587
        %v620 = vmul.f32 %v588, %v588
        %v621 = vmul.f32 %v589, %v589
        %v622 = vmul.f32 %v590, %v590
        %v623 = vmul.f32 %v591, %v591
        %v624 = vsel %vm424, %v592, 0.0
        %625 = vadd.xlane.f32.xlu0 %v624
        %v626 = vpop.xlane.xlu0 %625
        %v627 = vsel %vm424, %v593, 0.0
        %628 = vadd.xlane.f32.xlu0 %v627
        %v629 = vpop.xlane.xlu0 %628
        %v630 = vsel %vm424, %v594, 0.0
        %631 = vadd.xlane.f32.xlu0 %v630
        %v632 = vpop.xlane.xlu0 %631
        %v633 = vsel %vm424, %v595, 0.0
        %634 = vadd.xlane.f32.xlu0 %v633
        %v635 = vpop.xlane.xlu0 %634
        %v636 = vsel %vm424, %v596, 0.0
        %637 = vadd.xlane.f32.xlu0 %v636
        %v638 = vpop.xlane.xlu0 %637
        %v639 = vsel %vm424, %v597, 0.0
        %640 = vadd.xlane.f32.xlu0 %v639
        %v641 = vpop.xlane.xlu0 %640
        %v642 = vsel %vm424, %v598, 0.0
        %643 = vadd.xlane.f32.xlu0 %v642
        %v644 = vpop.xlane.xlu0 %643
        %v645 = vsel %vm424, %v599, 0.0
        %646 = vadd.xlane.f32.xlu0 %v645
        %v647 = vpop.xlane.xlu0 %646
        %v648 = vsel %vm424, %v600, 0.0
        %649 = vadd.xlane.f32.xlu0 %v648
        %v650 = vpop.xlane.xlu0 %649
        %v651 = vsel %vm424, %v601, 0.0
        %652 = vadd.xlane.f32.xlu0 %v651
        %v653 = vpop.xlane.xlu0 %652
        %v654 = vsel %vm424, %v602, 0.0
        %655 = vadd.xlane.f32.xlu0 %v654
        %v656 = vpop.xlane.xlu0 %655
        %v657 = vsel %vm424, %v603, 0.0
        %658 = vadd.xlane.f32.xlu0 %v657
        %v659 = vpop.xlane.xlu0 %658
        %v660 = vsel %vm424, %v604, 0.0
        %661 = vadd.xlane.f32.xlu0 %v660
        %v662 = vpop.xlane.xlu0 %661
        %v663 = vsel %vm424, %v605, 0.0
        %664 = vadd.xlane.f32.xlu0 %v663
        %v665 = vpop.xlane.xlu0 %664
        %v666 = vsel %vm424, %v606, 0.0
        %667 = vadd.xlane.f32.xlu0 %v666
        %v668 = vpop.xlane.xlu0 %667
        %v669 = vsel %vm424, %v607, 0.0
        %670 = vadd.xlane.f32.xlu0 %v669
        %v671 = vpop.xlane.xlu0 %670
        %v672 = vsel %vm424, %v608, 0.0
        %673 = vadd.xlane.f32.xlu0 %v672
        %v674 = vpop.xlane.xlu0 %673
        %v675 = vsel %vm424, %v609, 0.0
        %676 = vadd.xlane.f32.xlu0 %v675
        %v677 = vpop.xlane.xlu0 %676
        %v678 = vsel %vm424, %v610, 0.0
        %679 = vadd.xlane.f32.xlu0 %v678
        %v680 = vpop.xlane.xlu0 %679
        %v681 = vsel %vm424, %v611, 0.0
        %682 = vadd.xlane.f32.xlu0 %v681
        %v683 = vpop.xlane.xlu0 %682
        %v684 = vsel %vm424, %v612, 0.0
        %685 = vadd.xlane.f32.xlu0 %v684
        %v686 = vpop.xlane.xlu0 %685
        %v687 = vsel %vm424, %v613, 0.0
        %688 = vadd.xlane.f32.xlu0 %v687
        %v689 = vpop.xlane.xlu0 %688
        %v690 = vsel %vm424, %v614, 0.0
        %691 = vadd.xlane.f32.xlu0 %v690
        %v692 = vpop.xlane.xlu0 %691
        %v693 = vsel %vm424, %v615, 0.0
        %694 = vadd.xlane.f32.xlu0 %v693
        %v695 = vpop.xlane.xlu0 %694
        %v696 = vsel %vm424, %v616, 0.0
        %697 = vadd.xlane.f32.xlu0 %v696
        %v698 = vpop.xlane.xlu0 %697
        %v699 = vsel %vm424, %v617, 0.0
        %700 = vadd.xlane.f32.xlu0 %v699
        %v701 = vpop.xlane.xlu0 %700
        %v702 = vsel %vm424, %v618, 0.0
        %703 = vadd.xlane.f32.xlu0 %v702
        %v704 = vpop.xlane.xlu0 %703
        %v705 = vsel %vm424, %v619, 0.0
        %706 = vadd.xlane.f32.xlu0 %v705
        %v707 = vpop.xlane.xlu0 %706
        %v708 = vsel %vm424, %v620, 0.0
        %709 = vadd.xlane.f32.xlu0 %v708
        %v710 = vpop.xlane.xlu0 %709
        %v711 = vsel %vm424, %v621, 0.0
        %712 = vadd.xlane.f32.xlu0 %v711
        %v713 = vpop.xlane.xlu0 %712
        %v714 = vsel %vm424, %v622, 0.0
        %715 = vadd.xlane.f32.xlu0 %v714
        %v716 = vpop.xlane.xlu0 %715
        %v717 = vsel %vm424, %v623, 0.0
        %718 = vadd.xlane.f32.xlu0 %v717
        %v719 = vpop.xlane.xlu0 %718
        %v720 = vmul.f32 %v626, %v527
        %v721 = vmul.f32 %v629, %v527
        %v722 = vmul.f32 %v632, %v527
        %v723 = vmul.f32 %v635, %v527
        %v724 = vmul.f32 %v638, %v527
        %v725 = vmul.f32 %v641, %v527
        %v726 = vmul.f32 %v644, %v527
        %v727 = vmul.f32 %v647, %v527
        %v728 = vmul.f32 %v650, %v527
        %v729 = vmul.f32 %v653, %v527
        %v730 = vmul.f32 %v656, %v527
        %v731 = vmul.f32 %v659, %v527
        %v732 = vmul.f32 %v662, %v527
        %v733 = vmul.f32 %v665, %v527
        %v734 = vmul.f32 %v668, %v527
        %v735 = vmul.f32 %v671, %v527
        %v736 = vmul.f32 %v674, %v527
        %v737 = vmul.f32 %v677, %v527
        %v738 = vmul.f32 %v680, %v527
        %v739 = vmul.f32 %v683, %v527
        %v740 = vmul.f32 %v686, %v527
        %v741 = vmul.f32 %v689, %v527
        %v742 = vmul.f32 %v692, %v527
        %v743 = vmul.f32 %v695, %v527
        %v744 = vmul.f32 %v698, %v527
        %v745 = vmul.f32 %v701, %v527
        %v746 = vmul.f32 %v704, %v527
        %v747 = vmul.f32 %v707, %v527
        %v748 = vmul.f32 %v710, %v527
        %v749 = vmul.f32 %v713, %v527
        %v750 = vmul.f32 %v716, %v527
        %v751 = vmul.f32 %v719, %v527
        %v752 = vadd.f32 %v720, 1e-05
        %v753 = vadd.f32 %v721, 1e-05
        %v754 = vadd.f32 %v722, 1e-05
        %v755 = vadd.f32 %v723, 1e-05
        %v756 = vadd.f32 %v724, 1e-05
        %v757 = vadd.f32 %v725, 1e-05
        %v758 = vadd.f32 %v726, 1e-05
        %v759 = vadd.f32 %v727, 1e-05
        %v760 = vadd.f32 %v728, 1e-05
        %v761 = vadd.f32 %v729, 1e-05
        %v762 = vadd.f32 %v730, 1e-05
        %v763 = vadd.f32 %v731, 1e-05
        %v764 = vadd.f32 %v732, 1e-05
        %v765 = vadd.f32 %v733, 1e-05
        %v766 = vadd.f32 %v734, 1e-05
        %v767 = vadd.f32 %v735, 1e-05
        %v768 = vadd.f32 %v736, 1e-05
        %v769 = vadd.f32 %v737, 1e-05
        %v770 = vadd.f32 %v738, 1e-05
        %v771 = vadd.f32 %v739, 1e-05
        %v772 = vadd.f32 %v740, 1e-05
        %v773 = vadd.f32 %v741, 1e-05
        %v774 = vadd.f32 %v742, 1e-05
        %v775 = vadd.f32 %v743, 1e-05
        %v776 = vadd.f32 %v744, 1e-05
        %v777 = vadd.f32 %v745, 1e-05
        %v778 = vadd.f32 %v746, 1e-05
        %v779 = vadd.f32 %v747, 1e-05
        %v780 = vadd.f32 %v748, 1e-05
        %v781 = vadd.f32 %v749, 1e-05
        %v782 = vadd.f32 %v750, 1e-05
        %v783 = vadd.f32 %v751, 1e-05
        %v784 = vrsqrt.pop %v752
        %v785 = vmul.f32 %v784, %v752
        %v786 = vmul.f32 %v785, %v784
        %v787 = vmul.f32 0.5, %v786
        %v788 = vsub.f32 1.5, %v787
        %v789 = vmul.f32 %v784, %v788
        %vm790 = vweird.f32 %v752
        %vm791 = vweird.f32 %v784
        %vm792 = vmor %vm790, %vm791
        %v793 = vsel %vm792, %v784, %v789
        %v794 = vrsqrt.pop %v753
        %v795 = vmul.f32 %v794, %v753
        %v796 = vmul.f32 %v795, %v794
        %v797 = vmul.f32 0.5, %v796
        %v798 = vsub.f32 1.5, %v797
        %v799 = vmul.f32 %v794, %v798
        %vm800 = vweird.f32 %v753
        %vm801 = vweird.f32 %v794
        %vm802 = vmor %vm800, %vm801
        %v803 = vsel %vm802, %v794, %v799
        %v804 = vrsqrt.pop %v754
        %v805 = vmul.f32 %v804, %v754
        %v806 = vmul.f32 %v805, %v804
        %v807 = vmul.f32 0.5, %v806
        %v808 = vsub.f32 1.5, %v807
        %v809 = vmul.f32 %v804, %v808
        %vm810 = vweird.f32 %v754
        %vm811 = vweird.f32 %v804
        %vm812 = vmor %vm810, %vm811
        %v813 = vsel %vm812, %v804, %v809
        %v814 = vrsqrt.pop %v755
        %v815 = vmul.f32 %v814, %v755
        %v816 = vmul.f32 %v815, %v814
        %v817 = vmul.f32 0.5, %v816
        %v818 = vsub.f32 1.5, %v817
        %v819 = vmul.f32 %v814, %v818
        %vm820 = vweird.f32 %v755
        %vm821 = vweird.f32 %v814
        %vm822 = vmor %vm820, %vm821
        %v823 = vsel %vm822, %v814, %v819
        %v824 = vrsqrt.pop %v756
        %v825 = vmul.f32 %v824, %v756
        %v826 = vmul.f32 %v825, %v824
        %v827 = vmul.f32 0.5, %v826
        %v828 = vsub.f32 1.5, %v827
        %v829 = vmul.f32 %v824, %v828
        %vm830 = vweird.f32 %v756
        %vm831 = vweird.f32 %v824
        %vm832 = vmor %vm830, %vm831
        %v833 = vsel %vm832, %v824, %v829
        %v834 = vrsqrt.pop %v757
        %v835 = vmul.f32 %v834, %v757
        %v836 = vmul.f32 %v835, %v834
        %v837 = vmul.f32 0.5, %v836
        %v838 = vsub.f32 1.5, %v837
        %v839 = vmul.f32 %v834, %v838
        %vm840 = vweird.f32 %v757
        %vm841 = vweird.f32 %v834
        %vm842 = vmor %vm840, %vm841
        %v843 = vsel %vm842, %v834, %v839
        %v844 = vrsqrt.pop %v758
        %v845 = vmul.f32 %v844, %v758
        %v846 = vmul.f32 %v845, %v844
        %v847 = vmul.f32 0.5, %v846
        %v848 = vsub.f32 1.5, %v847
        %v849 = vmul.f32 %v844, %v848
        %vm850 = vweird.f32 %v758
        %vm851 = vweird.f32 %v844
        %vm852 = vmor %vm850, %vm851
        %v853 = vsel %vm852, %v844, %v849
        %v854 = vrsqrt.pop %v759
        %v855 = vmul.f32 %v854, %v759
        %v856 = vmul.f32 %v855, %v854
        %v857 = vmul.f32 0.5, %v856
        %v858 = vsub.f32 1.5, %v857
        %v859 = vmul.f32 %v854, %v858
        %vm860 = vweird.f32 %v759
        %vm861 = vweird.f32 %v854
        %vm862 = vmor %vm860, %vm861
        %v863 = vsel %vm862, %v854, %v859
        %v864 = vrsqrt.pop %v760
        %v865 = vmul.f32 %v864, %v760
        %v866 = vmul.f32 %v865, %v864
        %v867 = vmul.f32 0.5, %v866
        %v868 = vsub.f32 1.5, %v867
        %v869 = vmul.f32 %v864, %v868
        %vm870 = vweird.f32 %v760
        %vm871 = vweird.f32 %v864
        %vm872 = vmor %vm870, %vm871
        %v873 = vsel %vm872, %v864, %v869
        %v874 = vrsqrt.pop %v761
        %v875 = vmul.f32 %v874, %v761
        %v876 = vmul.f32 %v875, %v874
        %v877 = vmul.f32 0.5, %v876
        %v878 = vsub.f32 1.5, %v877
        %v879 = vmul.f32 %v874, %v878
        %vm880 = vweird.f32 %v761
        %vm881 = vweird.f32 %v874
        %vm882 = vmor %vm880, %vm881
        %v883 = vsel %vm882, %v874, %v879
        %v884 = vrsqrt.pop %v762
        %v885 = vmul.f32 %v884, %v762
        %v886 = vmul.f32 %v885, %v884
        %v887 = vmul.f32 0.5, %v886
        %v888 = vsub.f32 1.5, %v887
        %v889 = vmul.f32 %v884, %v888
        %vm890 = vweird.f32 %v762
        %vm891 = vweird.f32 %v884
        %vm892 = vmor %vm890, %vm891
        %v893 = vsel %vm892, %v884, %v889
        %v894 = vrsqrt.pop %v763
        %v895 = vmul.f32 %v894, %v763
        %v896 = vmul.f32 %v895, %v894
        %v897 = vmul.f32 0.5, %v896
        %v898 = vsub.f32 1.5, %v897
        %v899 = vmul.f32 %v894, %v898
        %vm900 = vweird.f32 %v763
        %vm901 = vweird.f32 %v894
        %vm902 = vmor %vm900, %vm901
        %v903 = vsel %vm902, %v894, %v899
        %v904 = vrsqrt.pop %v764
        %v905 = vmul.f32 %v904, %v764
        %v906 = vmul.f32 %v905, %v904
        %v907 = vmul.f32 0.5, %v906
        %v908 = vsub.f32 1.5, %v907
        %v909 = vmul.f32 %v904, %v908
        %vm910 = vweird.f32 %v764
        %vm911 = vweird.f32 %v904
        %vm912 = vmor %vm910, %vm911
        %v913 = vsel %vm912, %v904, %v909
        %v914 = vrsqrt.pop %v765
        %v915 = vmul.f32 %v914, %v765
        %v916 = vmul.f32 %v915, %v914
        %v917 = vmul.f32 0.5, %v916
        %v918 = vsub.f32 1.5, %v917
        %v919 = vmul.f32 %v914, %v918
        %vm920 = vweird.f32 %v765
        %vm921 = vweird.f32 %v914
        %vm922 = vmor %vm920, %vm921
        %v923 = vsel %vm922, %v914, %v919
        %v924 = vrsqrt.pop %v766
        %v925 = vmul.f32 %v924, %v766
        %v926 = vmul.f32 %v925, %v924
        %v927 = vmul.f32 0.5, %v926
        %v928 = vsub.f32 1.5, %v927
        %v929 = vmul.f32 %v924, %v928
        %vm930 = vweird.f32 %v766
        %vm931 = vweird.f32 %v924
        %vm932 = vmor %vm930, %vm931
        %v933 = vsel %vm932, %v924, %v929
        %v934 = vrsqrt.pop %v767
        %v935 = vmul.f32 %v934, %v767
        %v936 = vmul.f32 %v935, %v934
        %v937 = vmul.f32 0.5, %v936
        %v938 = vsub.f32 1.5, %v937
        %v939 = vmul.f32 %v934, %v938
        %vm940 = vweird.f32 %v767
        %vm941 = vweird.f32 %v934
        %vm942 = vmor %vm940, %vm941
        %v943 = vsel %vm942, %v934, %v939
        %v944 = vrsqrt.pop %v768
        %v945 = vmul.f32 %v944, %v768
        %v946 = vmul.f32 %v945, %v944
        %v947 = vmul.f32 0.5, %v946
        %v948 = vsub.f32 1.5, %v947
        %v949 = vmul.f32 %v944, %v948
        %vm950 = vweird.f32 %v768
        %vm951 = vweird.f32 %v944
        %vm952 = vmor %vm950, %vm951
        %v953 = vsel %vm952, %v944, %v949
        %v954 = vrsqrt.pop %v769
        %v955 = vmul.f32 %v954, %v769
        %v956 = vmul.f32 %v955, %v954
        %v957 = vmul.f32 0.5, %v956
        %v958 = vsub.f32 1.5, %v957
        %v959 = vmul.f32 %v954, %v958
        %vm960 = vweird.f32 %v769
        %vm961 = vweird.f32 %v954
        %vm962 = vmor %vm960, %vm961
        %v963 = vsel %vm962, %v954, %v959
        %v964 = vrsqrt.pop %v770
        %v965 = vmul.f32 %v964, %v770
        %v966 = vmul.f32 %v965, %v964
        %v967 = vmul.f32 0.5, %v966
        %v968 = vsub.f32 1.5, %v967
        %v969 = vmul.f32 %v964, %v968
        %vm970 = vweird.f32 %v770
        %vm971 = vweird.f32 %v964
        %vm972 = vmor %vm970, %vm971
        %v973 = vsel %vm972, %v964, %v969
        %v974 = vrsqrt.pop %v771
        %v975 = vmul.f32 %v974, %v771
        %v976 = vmul.f32 %v975, %v974
        %v977 = vmul.f32 0.5, %v976
        %v978 = vsub.f32 1.5, %v977
        %v979 = vmul.f32 %v974, %v978
        %vm980 = vweird.f32 %v771
        %vm981 = vweird.f32 %v974
        %vm982 = vmor %vm980, %vm981
        %v983 = vsel %vm982, %v974, %v979
        %v984 = vrsqrt.pop %v772
        %v985 = vmul.f32 %v984, %v772
        %v986 = vmul.f32 %v985, %v984
        %v987 = vmul.f32 0.5, %v986
        %v988 = vsub.f32 1.5, %v987
        %v989 = vmul.f32 %v984, %v988
        %vm990 = vweird.f32 %v772
        %vm991 = vweird.f32 %v984
        %vm992 = vmor %vm990, %vm991
        %v993 = vsel %vm992, %v984, %v989
        %v994 = vrsqrt.pop %v773
        %v995 = vmul.f32 %v994, %v773
        %v996 = vmul.f32 %v995, %v994
        %v997 = vmul.f32 0.5, %v996
        %v998 = vsub.f32 1.5, %v997
        %v999 = vmul.f32 %v994, %v998
        %vm1000 = vweird.f32 %v773
        %vm1001 = vweird.f32 %v994
        %vm1002 = vmor %vm1000, %vm1001
        %v1003 = vsel %vm1002, %v994, %v999
        %v1004 = vrsqrt.pop %v774
        %v1005 = vmul.f32 %v1004, %v774
        %v1006 = vmul.f32 %v1005, %v1004
        %v1007 = vmul.f32 0.5, %v1006
        %v1008 = vsub.f32 1.5, %v1007
        %v1009 = vmul.f32 %v1004, %v1008
        %vm1010 = vweird.f32 %v774
        %vm1011 = vweird.f32 %v1004
        %vm1012 = vmor %vm1010, %vm1011
        %v1013 = vsel %vm1012, %v1004, %v1009
        %v1014 = vrsqrt.pop %v775
        %v1015 = vmul.f32 %v1014, %v775
        %v1016 = vmul.f32 %v1015, %v1014
        %v1017 = vmul.f32 0.5, %v1016
        %v1018 = vsub.f32 1.5, %v1017
        %v1019 = vmul.f32 %v1014, %v1018
        %vm1020 = vweird.f32 %v775
        %vm1021 = vweird.f32 %v1014
        %vm1022 = vmor %vm1020, %vm1021
        %v1023 = vsel %vm1022, %v1014, %v1019
        %v1024 = vrsqrt.pop %v776
        %v1025 = vmul.f32 %v1024, %v776
        %v1026 = vmul.f32 %v1025, %v1024
        %v1027 = vmul.f32 0.5, %v1026
        %v1028 = vsub.f32 1.5, %v1027
        %v1029 = vmul.f32 %v1024, %v1028
        %vm1030 = vweird.f32 %v776
        %vm1031 = vweird.f32 %v1024
        %vm1032 = vmor %vm1030, %vm1031
        %v1033 = vsel %vm1032, %v1024, %v1029
        %v1034 = vrsqrt.pop %v777
        %v1035 = vmul.f32 %v1034, %v777
        %v1036 = vmul.f32 %v1035, %v1034
        %v1037 = vmul.f32 0.5, %v1036
        %v1038 = vsub.f32 1.5, %v1037
        %v1039 = vmul.f32 %v1034, %v1038
        %vm1040 = vweird.f32 %v777
        %vm1041 = vweird.f32 %v1034
        %vm1042 = vmor %vm1040, %vm1041
        %v1043 = vsel %vm1042, %v1034, %v1039
        %v1044 = vrsqrt.pop %v778
        %v1045 = vmul.f32 %v1044, %v778
        %v1046 = vmul.f32 %v1045, %v1044
        %v1047 = vmul.f32 0.5, %v1046
        %v1048 = vsub.f32 1.5, %v1047
        %v1049 = vmul.f32 %v1044, %v1048
        %vm1050 = vweird.f32 %v778
        %vm1051 = vweird.f32 %v1044
        %vm1052 = vmor %vm1050, %vm1051
        %v1053 = vsel %vm1052, %v1044, %v1049
        %v1054 = vrsqrt.pop %v779
        %v1055 = vmul.f32 %v1054, %v779
        %v1056 = vmul.f32 %v1055, %v1054
        %v1057 = vmul.f32 0.5, %v1056
        %v1058 = vsub.f32 1.5, %v1057
        %v1059 = vmul.f32 %v1054, %v1058
        %vm1060 = vweird.f32 %v779
        %vm1061 = vweird.f32 %v1054
        %vm1062 = vmor %vm1060, %vm1061
        %v1063 = vsel %vm1062, %v1054, %v1059
        %v1064 = vrsqrt.pop %v780
        %v1065 = vmul.f32 %v1064, %v780
        %v1066 = vmul.f32 %v1065, %v1064
        %v1067 = vmul.f32 0.5, %v1066
        %v1068 = vsub.f32 1.5, %v1067
        %v1069 = vmul.f32 %v1064, %v1068
        %vm1070 = vweird.f32 %v780
        %vm1071 = vweird.f32 %v1064
        %vm1072 = vmor %vm1070, %vm1071
        %v1073 = vsel %vm1072, %v1064, %v1069
        %v1074 = vrsqrt.pop %v781
        %v1075 = vmul.f32 %v1074, %v781
        %v1076 = vmul.f32 %v1075, %v1074
        %v1077 = vmul.f32 0.5, %v1076
        %v1078 = vsub.f32 1.5, %v1077
        %v1079 = vmul.f32 %v1074, %v1078
        %vm1080 = vweird.f32 %v781
        %vm1081 = vweird.f32 %v1074
        %vm1082 = vmor %vm1080, %vm1081
        %v1083 = vsel %vm1082, %v1074, %v1079
        %v1084 = vrsqrt.pop %v782
        %v1085 = vmul.f32 %v1084, %v782
        %v1086 = vmul.f32 %v1085, %v1084
        %v1087 = vmul.f32 0.5, %v1086
        %v1088 = vsub.f32 1.5, %v1087
        %v1089 = vmul.f32 %v1084, %v1088
        %vm1090 = vweird.f32 %v782
        %vm1091 = vweird.f32 %v1084
        %vm1092 = vmor %vm1090, %vm1091
        %v1093 = vsel %vm1092, %v1084, %v1089
        %v1094 = vrsqrt.pop %v783
        %v1095 = vmul.f32 %v1094, %v783
        %v1096 = vmul.f32 %v1095, %v1094
        %v1097 = vmul.f32 0.5, %v1096
        %v1098 = vsub.f32 1.5, %v1097
        %v1099 = vmul.f32 %v1094, %v1098
        %vm1100 = vweird.f32 %v783
        %vm1101 = vweird.f32 %v1094
        %vm1102 = vmor %vm1100, %vm1101
        %v1103 = vsel %vm1102, %v1094, %v1099
        %v1104 = vmul.f32 %v560, %v793
        %v1105 = vmul.f32 %v561, %v803
        %v1106 = vmul.f32 %v562, %v813
        %v1107 = vmul.f32 %v563, %v823
        %v1108 = vmul.f32 %v564, %v833
        %v1109 = vmul.f32 %v565, %v843
        %v1110 = vmul.f32 %v566, %v853
        %v1111 = vmul.f32 %v567, %v863
        %v1112 = vmul.f32 %v568, %v873
        %v1113 = vmul.f32 %v569, %v883
        %v1114 = vmul.f32 %v570, %v893
        %v1115 = vmul.f32 %v571, %v903
        %v1116 = vmul.f32 %v572, %v913
        %v1117 = vmul.f32 %v573, %v923
        %v1118 = vmul.f32 %v574, %v933
        %v1119 = vmul.f32 %v575, %v943
        %v1120 = vmul.f32 %v576, %v953
        %v1121 = vmul.f32 %v577, %v963
        %v1122 = vmul.f32 %v578, %v973
        %v1123 = vmul.f32 %v579, %v983
        %v1124 = vmul.f32 %v580, %v993
        %v1125 = vmul.f32 %v581, %v1003
        %v1126 = vmul.f32 %v582, %v1013
        %v1127 = vmul.f32 %v583, %v1023
        %v1128 = vmul.f32 %v584, %v1033
        %v1129 = vmul.f32 %v585, %v1043
        %v1130 = vmul.f32 %v586, %v1053
        %v1131 = vmul.f32 %v587, %v1063
        %v1132 = vmul.f32 %v588, %v1073
        %v1133 = vmul.f32 %v589, %v1083
        %v1134 = vmul.f32 %v590, %v1093
        %v1135 = vmul.f32 %v591, %v1103
        %v1136 = vld [vmem:[%s2] sm:$0xff]
        %v1137 = vld [vmem:[%s2 + $0x8] sm:$0xff]
        %v1139 = vsel %vm424, %v1104, 0
        %v1142 = vsel %vm424, %v1105, 0
        %v1145 = vsel %vm424, %v1106, 0
        %v1148 = vsel %vm424, %v1107, 0
        %v1151 = vsel %vm424, %v1108, 0
        %v1154 = vsel %vm424, %v1109, 0
        %v1157 = vsel %vm424, %v1110, 0
        %v1160 = vsel %vm424, %v1111, 0
        %v1163 = vsel %vm424, %v1112, 0
        %v1166 = vsel %vm424, %v1113, 0
        %v1169 = vsel %vm424, %v1114, 0
        %v1172 = vsel %vm424, %v1115, 0
        %v1175 = vsel %vm424, %v1116, 0
        %v1178 = vsel %vm424, %v1117, 0
        %v1181 = vsel %vm424, %v1118, 0
        %v1184 = vsel %vm424, %v1119, 0
        %v1187 = vsel %vm424, %v1120, 0
        %v1190 = vsel %vm424, %v1121, 0
        %v1193 = vsel %vm424, %v1122, 0
        %v1196 = vsel %vm424, %v1123, 0
        %v1199 = vsel %vm424, %v1124, 0
        %v1202 = vsel %vm424, %v1125, 0
        %v1205 = vsel %vm424, %v1126, 0
        %v1208 = vsel %vm424, %v1127, 0
        %v1211 = vsel %vm424, %v1128, 0
        %v1214 = vsel %vm424, %v1129, 0
        %v1217 = vsel %vm424, %v1130, 0
        %v1220 = vsel %vm424, %v1131, 0
        %v1223 = vsel %vm424, %v1132, 0
        %v1226 = vsel %vm424, %v1133, 0
        %v1229 = vsel %vm424, %v1134, 0
        %v1232 = vsel %vm424, %v1135, 0
        %1234 = vmatpush.msra.mxu0 0.0
        %1235 = vmatpush.msra.mxu0 0.0
        %1236 = vmatpush.msra.mxu0 0.0
        %1237 = vmatpush.msra.mxu0 0.0
        %1238 = vmatpush.msra.mxu0 0.0
        %1239 = vmatpush.msra.mxu0 0.0
        %1240 = vmatpush.msra.mxu0 0.0
        %1241 = vmatpush.msra.mxu0 0.0
        %1242 = vmatpush.msra.mxu0 0.0
        %1243 = vmatpush.msra.mxu0 0.0
        %1244 = vmatpush.msra.mxu0 0.0
        %1245 = vmatpush.msra.mxu0 0.0
        %1246 = vmatpush.msra.mxu0 0.0
        %1247 = vmatpush.msra.mxu0 0.0
        %1248 = vmatpush.msra.mxu0 %v1137
        %1249 = vmatpush.msra.mxu0 %v1136
        %1250 = vmatmul.f32.gmra.mxu0 %v1139
        %v1251 = vpop.f32.mrf.mxu0
        %v1252 = vadd.f32 0.0, %v1251
        %1253 = vmatmul.f32.gmra.mxu0 %v1142
        %v1254 = vpop.f32.mrf.mxu0
        %v1255 = vadd.f32 0.0, %v1254
        %1256 = vmatmul.f32.gmra.mxu0 %v1145
        %v1257 = vpop.f32.mrf.mxu0
        %v1258 = vadd.f32 0.0, %v1257
        %1259 = vmatmul.f32.gmra.mxu0 %v1148
        %v1260 = vpop.f32.mrf.mxu0
        %v1261 = vadd.f32 0.0, %v1260
        %1262 = vmatmul.f32.gmra.mxu0 %v1151
        %v1263 = vpop.f32.mrf.mxu0
        %v1264 = vadd.f32 0.0, %v1263
        %1265 = vmatmul.f32.gmra.mxu0 %v1154
        %v1266 = vpop.f32.mrf.mxu0
        %v1267 = vadd.f32 0.0, %v1266
        %1268 = vmatmul.f32.gmra.mxu0 %v1157
        %v1269 = vpop.f32.mrf.mxu0
        %v1270 = vadd.f32 0.0, %v1269
        %1271 = vmatmul.f32.gmra.mxu0 %v1160
        %v1272 = vpop.f32.mrf.mxu0
        %v1273 = vadd.f32 0.0, %v1272
        %1274 = vmatmul.f32.gmra.mxu0 %v1163
        %v1275 = vpop.f32.mrf.mxu0
        %v1276 = vadd.f32 0.0, %v1275
        %1277 = vmatmul.f32.gmra.mxu0 %v1166
        %v1278 = vpop.f32.mrf.mxu0
        %v1279 = vadd.f32 0.0, %v1278
        %1280 = vmatmul.f32.gmra.mxu0 %v1169
        %v1281 = vpop.f32.mrf.mxu0
        %v1282 = vadd.f32 0.0, %v1281
        %1283 = vmatmul.f32.gmra.mxu0 %v1172
        %v1284 = vpop.f32.mrf.mxu0
        %v1285 = vadd.f32 0.0, %v1284
        %1286 = vmatmul.f32.gmra.mxu0 %v1175
        %v1287 = vpop.f32.mrf.mxu0
        %v1288 = vadd.f32 0.0, %v1287
        %1289 = vmatmul.f32.gmra.mxu0 %v1178
        %v1290 = vpop.f32.mrf.mxu0
        %v1291 = vadd.f32 0.0, %v1290
        %1292 = vmatmul.f32.gmra.mxu0 %v1181
        %v1293 = vpop.f32.mrf.mxu0
        %v1294 = vadd.f32 0.0, %v1293
        %1295 = vmatmul.f32.gmra.mxu0 %v1184
        %v1296 = vpop.f32.mrf.mxu0
        %v1297 = vadd.f32 0.0, %v1296
        %1298 = vmatmul.f32.gmra.mxu0 %v1187
        %v1299 = vpop.f32.mrf.mxu0
        %v1300 = vadd.f32 0.0, %v1299
        %1301 = vmatmul.f32.gmra.mxu0 %v1190
        %v1302 = vpop.f32.mrf.mxu0
        %v1303 = vadd.f32 0.0, %v1302
        %1304 = vmatmul.f32.gmra.mxu0 %v1193
        %v1305 = vpop.f32.mrf.mxu0
        %v1306 = vadd.f32 0.0, %v1305
        %1307 = vmatmul.f32.gmra.mxu0 %v1196
        %v1308 = vpop.f32.mrf.mxu0
        %v1309 = vadd.f32 0.0, %v1308
        %1310 = vmatmul.f32.gmra.mxu0 %v1199
        %v1311 = vpop.f32.mrf.mxu0
        %v1312 = vadd.f32 0.0, %v1311
        %1313 = vmatmul.f32.gmra.mxu0 %v1202
        %v1314 = vpop.f32.mrf.mxu0
        %v1315 = vadd.f32 0.0, %v1314
        %1316 = vmatmul.f32.gmra.mxu0 %v1205
        %v1317 = vpop.f32.mrf.mxu0
        %v1318 = vadd.f32 0.0, %v1317
        %1319 = vmatmul.f32.gmra.mxu0 %v1208
        %v1320 = vpop.f32.mrf.mxu0
        %v1321 = vadd.f32 0.0, %v1320
        %1322 = vmatmul.f32.gmra.mxu0 %v1211
        %v1323 = vpop.f32.mrf.mxu0
        %v1324 = vadd.f32 0.0, %v1323
        %1325 = vmatmul.f32.gmra.mxu0 %v1214
        %v1326 = vpop.f32.mrf.mxu0
        %v1327 = vadd.f32 0.0, %v1326
        %1328 = vmatmul.f32.gmra.mxu0 %v1217
        %v1329 = vpop.f32.mrf.mxu0
        %v1330 = vadd.f32 0.0, %v1329
        %1331 = vmatmul.f32.gmra.mxu0 %v1220
        %v1332 = vpop.f32.mrf.mxu0
        %v1333 = vadd.f32 0.0, %v1332
        %1334 = vmatmul.f32.gmra.mxu0 %v1223
        %v1335 = vpop.f32.mrf.mxu0
        %v1336 = vadd.f32 0.0, %v1335
        %1337 = vmatmul.f32.gmra.mxu0 %v1226
        %v1338 = vpop.f32.mrf.mxu0
        %v1339 = vadd.f32 0.0, %v1338
        %1340 = vmatmul.f32.gmra.mxu0 %v1229
        %v1341 = vpop.f32.mrf.mxu0
        %v1342 = vadd.f32 0.0, %v1341
        %1343 = vmatmul.f32.gmra.mxu0 %v1232
        %v1344 = vpop.f32.mrf.mxu0
        %v1345 = vadd.f32 0.0, %v1344
        %1346 = vdwg.mxu0
        %v1347 = vmul.f32 %v1252, %v1252
        %v1348 = vmul.f32 %v1255, %v1255
        %v1349 = vmul.f32 %v1258, %v1258
        %v1350 = vmul.f32 %v1261, %v1261
        %v1351 = vmul.f32 %v1264, %v1264
        %v1352 = vmul.f32 %v1267, %v1267
        %v1353 = vmul.f32 %v1270, %v1270
        %v1354 = vmul.f32 %v1273, %v1273
        %v1355 = vmul.f32 %v1276, %v1276
        %v1356 = vmul.f32 %v1279, %v1279
        %v1357 = vmul.f32 %v1282, %v1282
        %v1358 = vmul.f32 %v1285, %v1285
        %v1359 = vmul.f32 %v1288, %v1288
        %v1360 = vmul.f32 %v1291, %v1291
        %v1361 = vmul.f32 %v1294, %v1294
        %v1362 = vmul.f32 %v1297, %v1297
        %v1363 = vmul.f32 %v1300, %v1300
        %v1364 = vmul.f32 %v1303, %v1303
        %v1365 = vmul.f32 %v1306, %v1306
        %v1366 = vmul.f32 %v1309, %v1309
        %v1367 = vmul.f32 %v1312, %v1312
        %v1368 = vmul.f32 %v1315, %v1315
        %v1369 = vmul.f32 %v1318, %v1318
        %v1370 = vmul.f32 %v1321, %v1321
        %v1371 = vmul.f32 %v1324, %v1324
        %v1372 = vmul.f32 %v1327, %v1327
        %v1373 = vmul.f32 %v1330, %v1330
        %v1374 = vmul.f32 %v1333, %v1333
        %v1375 = vmul.f32 %v1336, %v1336
        %v1376 = vmul.f32 %v1339, %v1339
        %v1377 = vmul.f32 %v1342, %v1342
        %v1378 = vmul.f32 %v1345, %v1345
        %v1379 = vmul.f32 %v1252, %v1347
        %v1380 = vmul.f32 %v1255, %v1348
        %v1381 = vmul.f32 %v1258, %v1349
        %v1382 = vmul.f32 %v1261, %v1350
        %v1383 = vmul.f32 %v1264, %v1351
        %v1384 = vmul.f32 %v1267, %v1352
        %v1385 = vmul.f32 %v1270, %v1353
        %v1386 = vmul.f32 %v1273, %v1354
        %v1387 = vmul.f32 %v1276, %v1355
        %v1388 = vmul.f32 %v1279, %v1356
        %v1389 = vmul.f32 %v1282, %v1357
        %v1390 = vmul.f32 %v1285, %v1358
        %v1391 = vmul.f32 %v1288, %v1359
        %v1392 = vmul.f32 %v1291, %v1360
        %v1393 = vmul.f32 %v1294, %v1361
        %v1394 = vmul.f32 %v1297, %v1362
        %v1395 = vmul.f32 %v1300, %v1363
        %v1396 = vmul.f32 %v1303, %v1364
        %v1397 = vmul.f32 %v1306, %v1365
        %v1398 = vmul.f32 %v1309, %v1366
        %v1399 = vmul.f32 %v1312, %v1367
        %v1400 = vmul.f32 %v1315, %v1368
        %v1401 = vmul.f32 %v1318, %v1369
        %v1402 = vmul.f32 %v1321, %v1370
        %v1403 = vmul.f32 %v1324, %v1371
        %v1404 = vmul.f32 %v1327, %v1372
        %v1405 = vmul.f32 %v1330, %v1373
        %v1406 = vmul.f32 %v1333, %v1374
        %v1407 = vmul.f32 %v1336, %v1375
        %v1408 = vmul.f32 %v1339, %v1376
        %v1409 = vmul.f32 %v1342, %v1377
        %v1410 = vmul.f32 %v1345, %v1378
        %v1411 = vmul.f32 %v1379, 0.044715
        %v1412 = vmul.f32 %v1380, 0.044715
        %v1413 = vmul.f32 %v1381, 0.044715
        %v1414 = vmul.f32 %v1382, 0.044715
        %v1415 = vmul.f32 %v1383, 0.044715
        %v1416 = vmul.f32 %v1384, 0.044715
        %v1417 = vmul.f32 %v1385, 0.044715
        %v1418 = vmul.f32 %v1386, 0.044715
        %v1419 = vmul.f32 %v1387, 0.044715
        %v1420 = vmul.f32 %v1388, 0.044715
        %v1421 = vmul.f32 %v1389, 0.044715
        %v1422 = vmul.f32 %v1390, 0.044715
        %v1423 = vmul.f32 %v1391, 0.044715
        %v1424 = vmul.f32 %v1392, 0.044715
        %v1425 = vmul.f32 %v1393, 0.044715
        %v1426 = vmul.f32 %v1394, 0.044715
        %v1427 = vmul.f32 %v1395, 0.044715
        %v1428 = vmul.f32 %v1396, 0.044715
        %v1429 = vmul.f32 %v1397, 0.044715
        %v1430 = vmul.f32 %v1398, 0.044715
        %v1431 = vmul.f32 %v1399, 0.044715
        %v1432 = vmul.f32 %v1400, 0.044715
        %v1433 = vmul.f32 %v1401, 0.044715
        %v1434 = vmul.f32 %v1402, 0.044715
        %v1435 = vmul.f32 %v1403, 0.044715
        %v1436 = vmul.f32 %v1404, 0.044715
        %v1437 = vmul.f32 %v1405, 0.044715
        %v1438 = vmul.f32 %v1406, 0.044715
        %v1439 = vmul.f32 %v1407, 0.044715
        %v1440 = vmul.f32 %v1408, 0.044715
        %v1441 = vmul.f32 %v1409, 0.044715
        %v1442 = vmul.f32 %v1410, 0.044715
        %v1443 = vadd.f32 %v1252, %v1411
        %v1444 = vadd.f32 %v1255, %v1412
        %v1445 = vadd.f32 %v1258, %v1413
        %v1446 = vadd.f32 %v1261, %v1414
        %v1447 = vadd.f32 %v1264, %v1415
        %v1448 = vadd.f32 %v1267, %v1416
        %v1449 = vadd.f32 %v1270, %v1417
        %v1450 = vadd.f32 %v1273, %v1418
        %v1451 = vadd.f32 %v1276, %v1419
        %v1452 = vadd.f32 %v1279, %v1420
        %v1453 = vadd.f32 %v1282, %v1421
        %v1454 = vadd.f32 %v1285, %v1422
        %v1455 = vadd.f32 %v1288, %v1423
        %v1456 = vadd.f32 %v1291, %v1424
        %v1457 = vadd.f32 %v1294, %v1425
        %v1458 = vadd.f32 %v1297, %v1426
        %v1459 = vadd.f32 %v1300, %v1427
        %v1460 = vadd.f32 %v1303, %v1428
        %v1461 = vadd.f32 %v1306, %v1429
        %v1462 = vadd.f32 %v1309, %v1430
        %v1463 = vadd.f32 %v1312, %v1431
        %v1464 = vadd.f32 %v1315, %v1432
        %v1465 = vadd.f32 %v1318, %v1433
        %v1466 = vadd.f32 %v1321, %v1434
        %v1467 = vadd.f32 %v1324, %v1435
        %v1468 = vadd.f32 %v1327, %v1436
        %v1469 = vadd.f32 %v1330, %v1437
        %v1470 = vadd.f32 %v1333, %v1438
        %v1471 = vadd.f32 %v1336, %v1439
        %v1472 = vadd.f32 %v1339, %v1440
        %v1473 = vadd.f32 %v1342, %v1441
        %v1474 = vadd.f32 %v1345, %v1442
        %v1475 = vmul.f32 %v1443, 0.7978846
        %v1476 = vmul.f32 %v1444, 0.7978846
        %v1477 = vmul.f32 %v1445, 0.7978846
        %v1478 = vmul.f32 %v1446, 0.7978846
        %v1479 = vmul.f32 %v1447, 0.7978846
        %v1480 = vmul.f32 %v1448, 0.7978846
        %v1481 = vmul.f32 %v1449, 0.7978846
        %v1482 = vmul.f32 %v1450, 0.7978846
        %v1483 = vmul.f32 %v1451, 0.7978846
        %v1484 = vmul.f32 %v1452, 0.7978846
        %v1485 = vmul.f32 %v1453, 0.7978846
        %v1486 = vmul.f32 %v1454, 0.7978846
        %v1487 = vmul.f32 %v1455, 0.7978846
        %v1488 = vmul.f32 %v1456, 0.7978846
        %v1489 = vmul.f32 %v1457, 0.7978846
        %v1490 = vmul.f32 %v1458, 0.7978846
        %v1491 = vmul.f32 %v1459, 0.7978846
        %v1492 = vmul.f32 %v1460, 0.7978846
        %v1493 = vmul.f32 %v1461, 0.7978846
        %v1494 = vmul.f32 %v1462, 0.7978846
        %v1495 = vmul.f32 %v1463, 0.7978846
        %v1496 = vmul.f32 %v1464, 0.7978846
        %v1497 = vmul.f32 %v1465, 0.7978846
        %v1498 = vmul.f32 %v1466, 0.7978846
        %v1499 = vmul.f32 %v1467, 0.7978846
        %v1500 = vmul.f32 %v1468, 0.7978846
        %v1501 = vmul.f32 %v1469, 0.7978846
        %v1502 = vmul.f32 %v1470, 0.7978846
        %v1503 = vmul.f32 %v1471, 0.7978846
        %v1504 = vmul.f32 %v1472, 0.7978846
        %v1505 = vmul.f32 %v1473, 0.7978846
        %v1506 = vmul.f32 %v1474, 0.7978846
        %v1507 = vtanh.pop %v1475
        %v1508 = vtanh.pop %v1476
        %v1509 = vtanh.pop %v1477
        %v1510 = vtanh.pop %v1478
        %v1511 = vtanh.pop %v1479
        %v1512 = vtanh.pop %v1480
        %v1513 = vtanh.pop %v1481
        %v1514 = vtanh.pop %v1482
        %v1515 = vtanh.pop %v1483
        %v1516 = vtanh.pop %v1484
        %v1517 = vtanh.pop %v1485
        %v1518 = vtanh.pop %v1486
        %v1519 = vtanh.pop %v1487
        %v1520 = vtanh.pop %v1488
        %v1521 = vtanh.pop %v1489
        %v1522 = vtanh.pop %v1490
        %v1523 = vtanh.pop %v1491
        %v1524 = vtanh.pop %v1492
        %v1525 = vtanh.pop %v1493
        %v1526 = vtanh.pop %v1494
        %v1527 = vtanh.pop %v1495
        %v1528 = vtanh.pop %v1496
        %v1529 = vtanh.pop %v1497
        %v1530 = vtanh.pop %v1498
        %v1531 = vtanh.pop %v1499
        %v1532 = vtanh.pop %v1500
        %v1533 = vtanh.pop %v1501
        %v1534 = vtanh.pop %v1502
        %v1535 = vtanh.pop %v1503
        %v1536 = vtanh.pop %v1504
        %v1537 = vtanh.pop %v1505
        %v1538 = vtanh.pop %v1506
        %v1539 = vadd.f32 %v1507, 1.0
        %v1540 = vadd.f32 %v1508, 1.0
        %v1541 = vadd.f32 %v1509, 1.0
        %v1542 = vadd.f32 %v1510, 1.0
        %v1543 = vadd.f32 %v1511, 1.0
        %v1544 = vadd.f32 %v1512, 1.0
        %v1545 = vadd.f32 %v1513, 1.0
        %v1546 = vadd.f32 %v1514, 1.0
        %v1547 = vadd.f32 %v1515, 1.0
        %v1548 = vadd.f32 %v1516, 1.0
        %v1549 = vadd.f32 %v1517, 1.0
        %v1550 = vadd.f32 %v1518, 1.0
        %v1551 = vadd.f32 %v1519, 1.0
        %v1552 = vadd.f32 %v1520, 1.0
        %v1553 = vadd.f32 %v1521, 1.0
        %v1554 = vadd.f32 %v1522, 1.0
        %v1555 = vadd.f32 %v1523, 1.0
        %v1556 = vadd.f32 %v1524, 1.0
        %v1557 = vadd.f32 %v1525, 1.0
        %v1558 = vadd.f32 %v1526, 1.0
        %v1559 = vadd.f32 %v1527, 1.0
        %v1560 = vadd.f32 %v1528, 1.0
        %v1561 = vadd.f32 %v1529, 1.0
        %v1562 = vadd.f32 %v1530, 1.0
        %v1563 = vadd.f32 %v1531, 1.0
        %v1564 = vadd.f32 %v1532, 1.0
        %v1565 = vadd.f32 %v1533, 1.0
        %v1566 = vadd.f32 %v1534, 1.0
        %v1567 = vadd.f32 %v1535, 1.0
        %v1568 = vadd.f32 %v1536, 1.0
        %v1569 = vadd.f32 %v1537, 1.0
        %v1570 = vadd.f32 %v1538, 1.0
        %v1571 = vmul.f32 %v1539, 0.5
        %v1572 = vmul.f32 %v1540, 0.5
        %v1573 = vmul.f32 %v1541, 0.5
        %v1574 = vmul.f32 %v1542, 0.5
        %v1575 = vmul.f32 %v1543, 0.5
        %v1576 = vmul.f32 %v1544, 0.5
        %v1577 = vmul.f32 %v1545, 0.5
        %v1578 = vmul.f32 %v1546, 0.5
        %v1579 = vmul.f32 %v1547, 0.5
        %v1580 = vmul.f32 %v1548, 0.5
        %v1581 = vmul.f32 %v1549, 0.5
        %v1582 = vmul.f32 %v1550, 0.5
        %v1583 = vmul.f32 %v1551, 0.5
        %v1584 = vmul.f32 %v1552, 0.5
        %v1585 = vmul.f32 %v1553, 0.5
        %v1586 = vmul.f32 %v1554, 0.5
        %v1587 = vmul.f32 %v1555, 0.5
        %v1588 = vmul.f32 %v1556, 0.5
        %v1589 = vmul.f32 %v1557, 0.5
        %v1590 = vmul.f32 %v1558, 0.5
        %v1591 = vmul.f32 %v1559, 0.5
        %v1592 = vmul.f32 %v1560, 0.5
        %v1593 = vmul.f32 %v1561, 0.5
        %v1594 = vmul.f32 %v1562, 0.5
        %v1595 = vmul.f32 %v1563, 0.5
        %v1596 = vmul.f32 %v1564, 0.5
        %v1597 = vmul.f32 %v1565, 0.5
        %v1598 = vmul.f32 %v1566, 0.5
        %v1599 = vmul.f32 %v1567, 0.5
        %v1600 = vmul.f32 %v1568, 0.5
        %v1601 = vmul.f32 %v1569, 0.5
        %v1602 = vmul.f32 %v1570, 0.5
        %v1603 = vmul.f32 %v1252, %v1571
        %v1604 = vmul.f32 %v1255, %v1572
        %v1605 = vmul.f32 %v1258, %v1573
        %v1606 = vmul.f32 %v1261, %v1574
        %v1607 = vmul.f32 %v1264, %v1575
        %v1608 = vmul.f32 %v1267, %v1576
        %v1609 = vmul.f32 %v1270, %v1577
        %v1610 = vmul.f32 %v1273, %v1578
        %v1611 = vmul.f32 %v1276, %v1579
        %v1612 = vmul.f32 %v1279, %v1580
        %v1613 = vmul.f32 %v1282, %v1581
        %v1614 = vmul.f32 %v1285, %v1582
        %v1615 = vmul.f32 %v1288, %v1583
        %v1616 = vmul.f32 %v1291, %v1584
        %v1617 = vmul.f32 %v1294, %v1585
        %v1618 = vmul.f32 %v1297, %v1586
        %v1619 = vmul.f32 %v1300, %v1587
        %v1620 = vmul.f32 %v1303, %v1588
        %v1621 = vmul.f32 %v1306, %v1589
        %v1622 = vmul.f32 %v1309, %v1590
        %v1623 = vmul.f32 %v1312, %v1591
        %v1624 = vmul.f32 %v1315, %v1592
        %v1625 = vmul.f32 %v1318, %v1593
        %v1626 = vmul.f32 %v1321, %v1594
        %v1627 = vmul.f32 %v1324, %v1595
        %v1628 = vmul.f32 %v1327, %v1596
        %v1629 = vmul.f32 %v1330, %v1597
        %v1630 = vmul.f32 %v1333, %v1598
        %v1631 = vmul.f32 %v1336, %v1599
        %v1632 = vmul.f32 %v1339, %v1600
        %v1633 = vmul.f32 %v1342, %v1601
        %v1634 = vmul.f32 %v1345, %v1602
        %vm1667 = vcmask 1040384
        %v1668 = vrot.slane %v1603, 7
        %v1669 = vrot.slane %v1604, 7
        %v1670 = vsel %vm1667, %v1668, %v1669
        %v1671 = vrot.slane %v1605, 7
        %v1672 = vrot.slane %v1606, 7
        %v1673 = vsel %vm1667, %v1671, %v1672
        %v1674 = vrot.slane %v1607, 7
        %v1675 = vrot.slane %v1608, 7
        %v1676 = vsel %vm1667, %v1674, %v1675
        %v1677 = vrot.slane %v1609, 7
        %v1678 = vrot.slane %v1610, 7
        %v1679 = vsel %vm1667, %v1677, %v1678
        %v1680 = vrot.slane %v1611, 7
        %v1681 = vrot.slane %v1612, 7
        %v1682 = vsel %vm1667, %v1680, %v1681
        %v1683 = vrot.slane %v1613, 7
        %v1684 = vrot.slane %v1614, 7
        %v1685 = vsel %vm1667, %v1683, %v1684
        %v1686 = vrot.slane %v1615, 7
        %v1687 = vrot.slane %v1616, 7
        %v1688 = vsel %vm1667, %v1686, %v1687
        %v1689 = vrot.slane %v1617, 7
        %v1690 = vrot.slane %v1618, 7
        %v1691 = vsel %vm1667, %v1689, %v1690
        %v1692 = vrot.slane %v1619, 7
        %v1693 = vrot.slane %v1620, 7
        %v1694 = vsel %vm1667, %v1692, %v1693
        %v1695 = vrot.slane %v1621, 7
        %v1696 = vrot.slane %v1622, 7
        %v1697 = vsel %vm1667, %v1695, %v1696
        %v1698 = vrot.slane %v1623, 7
        %v1699 = vrot.slane %v1624, 7
        %v1700 = vsel %vm1667, %v1698, %v1699
        %v1701 = vrot.slane %v1625, 7
        %v1702 = vrot.slane %v1626, 7
        %v1703 = vsel %vm1667, %v1701, %v1702
        %v1704 = vrot.slane %v1627, 7
        %v1705 = vrot.slane %v1628, 7
        %v1706 = vsel %vm1667, %v1704, %v1705
        %v1707 = vrot.slane %v1629, 7
        %v1708 = vrot.slane %v1630, 7
        %v1709 = vsel %vm1667, %v1707, %v1708
        %v1710 = vrot.slane %v1631, 7
        %v1711 = vrot.slane %v1632, 7
        %v1712 = vsel %vm1667, %v1710, %v1711
        %v1713 = vrot.slane %v1633, 7
        %v1714 = vrot.slane %v1634, 7
        %v1715 = vsel %vm1667, %v1713, %v1714
        %v1764 = vsel %vm1667, 0.0, %v1668
        %v1765 = vsel %vm1667, 0.0, %v1671
        %v1766 = vsel %vm1667, 0.0, %v1674
        %v1767 = vsel %vm1667, 0.0, %v1677
        %v1768 = vsel %vm1667, 0.0, %v1680
        %v1769 = vsel %vm1667, 0.0, %v1683
        %v1770 = vsel %vm1667, 0.0, %v1686
        %v1771 = vsel %vm1667, 0.0, %v1689
        %v1772 = vsel %vm1667, 0.0, %v1692
        %v1773 = vsel %vm1667, 0.0, %v1695
        %v1774 = vsel %vm1667, 0.0, %v1698
        %v1775 = vsel %vm1667, 0.0, %v1701
        %v1776 = vsel %vm1667, 0.0, %v1704
        %v1777 = vsel %vm1667, 0.0, %v1707
        %v1778 = vsel %vm1667, 0.0, %v1710
        %v1779 = vsel %vm1667, 0.0, %v1713
        %v1780 = vsel %vm1667, %v1669, 0.0
        %v1781 = vsel %vm1667, %v1672, 0.0
        %v1782 = vsel %vm1667, %v1675, 0.0
        %v1783 = vsel %vm1667, %v1678, 0.0
        %v1784 = vsel %vm1667, %v1681, 0.0
        %v1785 = vsel %vm1667, %v1684, 0.0
        %v1786 = vsel %vm1667, %v1687, 0.0
        %v1787 = vsel %vm1667, %v1690, 0.0
        %v1788 = vsel %vm1667, %v1693, 0.0
        %v1789 = vsel %vm1667, %v1696, 0.0
        %v1790 = vsel %vm1667, %v1699, 0.0
        %v1791 = vsel %vm1667, %v1702, 0.0
        %v1792 = vsel %vm1667, %v1705, 0.0
        %v1793 = vsel %vm1667, %v1708, 0.0
        %v1794 = vsel %vm1667, %v1711, 0.0
        %v1795 = vsel %vm1667, %v1714, 0.0
        %s1796 = scalar_lea.vmem [#allocation2], 24
        %1797 = vst.msk [vmem:[%s1796] sm:$0xff] %vm321, %v1764
        %1798 = vst.msk [vmem:[%s1796 + $0x8] sm:$0xff] %vm321, %v1670
        %1799 = vst.msk [vmem:[%s1796 + $0x10] sm:$0x3] %vm324, %v1780
        %1800 = vst.msk [vmem:[%s1796 + $0x18] sm:$0xff] %vm321, %v1765
        %1801 = vst.msk [vmem:[%s1796 + $0x20] sm:$0xff] %vm321, %v1673
        %1802 = vst.msk [vmem:[%s1796 + $0x28] sm:$0x3] %vm324, %v1781
        %1803 = vst.msk [vmem:[%s1796 + $0x30] sm:$0xff] %vm321, %v1766
        %1804 = vst.msk [vmem:[%s1796 + $0x38] sm:$0xff] %vm321, %v1676
        %1805 = vst.msk [vmem:[%s1796 + $0x40] sm:$0x3] %vm324, %v1782
        %1806 = vst.msk [vmem:[%s1796 + $0x48] sm:$0xff] %vm321, %v1767
        %1807 = vst.msk [vmem:[%s1796 + $0x50] sm:$0xff] %vm321, %v1679
        %1808 = vst.msk [vmem:[%s1796 + $0x58] sm:$0x3] %vm324, %v1783
        %1809 = vst.msk [vmem:[%s1796 + $0x60] sm:$0xff] %vm321, %v1768
        %1810 = vst.msk [vmem:[%s1796 + $0x68] sm:$0xff] %vm321, %v1682
        %1811 = vst.msk [vmem:[%s1796 + $0x70] sm:$0x3] %vm324, %v1784
        %1812 = vst.msk [vmem:[%s1796 + $0x78] sm:$0xff] %vm321, %v1769
        %1813 = vst.msk [vmem:[%s1796 + $0x80] sm:$0xff] %vm321, %v1685
        %1814 = vst.msk [vmem:[%s1796 + $0x88] sm:$0x3] %vm324, %v1785
        %1815 = vst.msk [vmem:[%s1796 + $0x90] sm:$0xff] %vm321, %v1770
        %1816 = vst.msk [vmem:[%s1796 + $0x98] sm:$0xff] %vm321, %v1688
        %1817 = vst.msk [vmem:[%s1796 + $0xa0] sm:$0x3] %vm324, %v1786
        %1818 = vst.msk [vmem:[%s1796 + $0xa8] sm:$0xff] %vm321, %v1771
        %1819 = vst.msk [vmem:[%s1796 + $0xb0] sm:$0xff] %vm321, %v1691
        %1820 = vst.msk [vmem:[%s1796 + $0xb8] sm:$0x3] %vm324, %v1787
        %1821 = vst.msk [vmem:[%s1796 + $0xc0] sm:$0xff] %vm321, %v1772
        %1822 = vst.msk [vmem:[%s1796 + $0xc8] sm:$0xff] %vm321, %v1694
        %1823 = vst.msk [vmem:[%s1796 + $0xd0] sm:$0x3] %vm324, %v1788
        %1824 = vst.msk [vmem:[%s1796 + $0xd8] sm:$0xff] %vm321, %v1773
        %1825 = vst.msk [vmem:[%s1796 + $0xe0] sm:$0xff] %vm321, %v1697
        %1826 = vst.msk [vmem:[%s1796 + $0xe8] sm:$0x3] %vm324, %v1789
        %1827 = vst.msk [vmem:[%s1796 + $0xf0] sm:$0xff] %vm321, %v1774
        %1828 = vst.msk [vmem:[%s1796 + $0xf8] sm:$0xff] %vm321, %v1700
        %1829 = vst.msk [vmem:[%s1796 + $0x100] sm:$0x3] %vm324, %v1790
        %1830 = vst.msk [vmem:[%s1796 + $0x108] sm:$0xff] %vm321, %v1775
        %1831 = vst.msk [vmem:[%s1796 + $0x110] sm:$0xff] %vm321, %v1703
        %1832 = vst.msk [vmem:[%s1796 + $0x118] sm:$0x3] %vm324, %v1791
        %1833 = vst.msk [vmem:[%s1796 + $0x120] sm:$0xff] %vm321, %v1776
        %1834 = vst.msk [vmem:[%s1796 + $0x128] sm:$0xff] %vm321, %v1706
        %1835 = vst.msk [vmem:[%s1796 + $0x130] sm:$0x3] %vm324, %v1792
        %1836 = vst.msk [vmem:[%s1796 + $0x138] sm:$0xff] %vm321, %v1777
        %1837 = vst.msk [vmem:[%s1796 + $0x140] sm:$0xff] %vm321, %v1709
        %1838 = vst.msk [vmem:[%s1796 + $0x148] sm:$0x3] %vm324, %v1793
        %1839 = vst.msk [vmem:[%s1796 + $0x150] sm:$0xff] %vm321, %v1778
        %1840 = vst.msk [vmem:[%s1796 + $0x158] sm:$0xff] %vm321, %v1712
        %1841 = vst.msk [vmem:[%s1796 + $0x160] sm:$0x3] %vm324, %v1794
        %1842 = vst.msk [vmem:[%s1796 + $0x168] sm:$0xff] %vm321, %v1779
        %1843 = vst.msk [vmem:[%s1796 + $0x170] sm:$0xff] %vm321, %v1715
        %1844 = vst.msk [vmem:[%s1796 + $0x178] sm:$0x3] %vm324, %v1795
      $region44: #{fab_forward.3} parent=39 // pred_fallthru
        _
      %s1845 = sadd.s32 %s21, 1
      %p1846 = scmp.lt.s32.totalorder %s1845, 0
      %s1847 = ssub.s32 0, %s1845
      %s1848 = scalar_select %p1846, %s1847, %s1845
      %s1849 = sdiv.u32.pop %s1848, 3
      %s1850 = srem.u32.pop %s1848, 3
      %s1851 = ssub.s32 0, %s1850
      %s1852 = scalar_select %p1846, %s1851, %s1850
      %p1853 = scmp.ne.s32.totalorder %s1852, 0
      %p1854 = scmp.lt.s32.totalorder %s1852, 0
      %p1855 = pnand %p1854, %p1853
      %p1856 = pneg %p1855
      %s1857 = sadd.s32 %s1852, 3
      %s1858 = scalar_select %p1856, %s1857, %s1852
      %p1859 = scmp.lt.s32.totalorder %s1845, 2
      // Predicated region
      $region45: #{fab_forward.3} parent=39 // pred_check
        %p1860 = pneg %p1859
      $region46: #{fab_forward.3} parent=39 // pred_check_branch
        %1862 = sbr.rel (%p1860) target = $region48
      $region47: #{fab_forward.3} parent=39 // pred_region
        %v1863 = vld [vmem:[%s303] sm:$0xff]
        %v1864 = vld [vmem:[%s303 + $0x8] sm:$0xff]
        %v1865 = vld [vmem:[%s303 + $0x10] sm:$0xff]
        %v1866 = vld [vmem:[%s303 + $0x18] sm:$0xff]
        %v1867 = vld [vmem:[%s303 + $0x20] sm:$0xff]
        %v1868 = vld [vmem:[%s303 + $0x28] sm:$0xff]
        %v1869 = vld [vmem:[%s303 + $0x30] sm:$0xff]
        %v1870 = vld [vmem:[%s303 + $0x38] sm:$0xff]
        %v1871 = vld [vmem:[%s303 + $0x40] sm:$0xff]
        %v1872 = vld [vmem:[%s303 + $0x48] sm:$0xff]
        %v1873 = vld [vmem:[%s303 + $0x50] sm:$0xff]
        %v1874 = vld [vmem:[%s303 + $0x58] sm:$0xff]
        %v1875 = vld [vmem:[%s303 + $0x60] sm:$0xff]
        %v1876 = vld [vmem:[%s303 + $0x68] sm:$0xff]
        %v1877 = vld [vmem:[%s303 + $0x70] sm:$0xff]
        %v1878 = vld [vmem:[%s303 + $0x78] sm:$0xff]
        %v1879 = vld [vmem:[%s303 + $0x80] sm:$0xff]
        %v1880 = vld [vmem:[%s303 + $0x88] sm:$0xff]
        %v1881 = vld [vmem:[%s303 + $0x90] sm:$0xff]
        %v1882 = vld [vmem:[%s303 + $0x98] sm:$0xff]
        %v1883 = vld [vmem:[%s303 + $0xa0] sm:$0xff]
        %v1884 = vld [vmem:[%s303 + $0xa8] sm:$0xff]
        %v1885 = vld [vmem:[%s303 + $0xb0] sm:$0xff]
        %v1886 = vld [vmem:[%s303 + $0xb8] sm:$0xff]
        %v1887 = vld [vmem:[%s303 + $0xc0] sm:$0xff]
        %v1888 = vld [vmem:[%s303 + $0xc8] sm:$0xff]
        %v1889 = vld [vmem:[%s303 + $0xd0] sm:$0xff]
        %v1890 = vld [vmem:[%s303 + $0xd8] sm:$0xff]
        %v1891 = vld [vmem:[%s303 + $0xe0] sm:$0xff]
        %v1892 = vld [vmem:[%s303 + $0xe8] sm:$0xff]
        %v1893 = vld [vmem:[%s303 + $0xf0] sm:$0xff]
        %v1894 = vld [vmem:[%s303 + $0xf8] sm:$0xff]
        %vm1895 = vcmask 130048
        %v1896 = vsel %vm1895, %v1863, 0.0
        %1897 = vadd.xlane.f32.xlu0 %v1896
        %v1898 = vpop.xlane.xlu0 %1897
        %v1899 = vsel %vm1895, %v1864, 0.0
        %1900 = vadd.xlane.f32.xlu0 %v1899
        %v1901 = vpop.xlane.xlu0 %1900
        %v1902 = vsel %vm1895, %v1865, 0.0
        %1903 = vadd.xlane.f32.xlu0 %v1902
        %v1904 = vpop.xlane.xlu0 %1903
        %v1905 = vsel %vm1895, %v1866, 0.0
        %1906 = vadd.xlane.f32.xlu0 %v1905
        %v1907 = vpop.xlane.xlu0 %1906
        %v1908 = vsel %vm1895, %v1867, 0.0
        %1909 = vadd.xlane.f32.xlu0 %v1908
        %v1910 = vpop.xlane.xlu0 %1909
        %v1911 = vsel %vm1895, %v1868, 0.0
        %1912 = vadd.xlane.f32.xlu0 %v1911
        %v1913 = vpop.xlane.xlu0 %1912
        %v1914 = vsel %vm1895, %v1869, 0.0
        %1915 = vadd.xlane.f32.xlu0 %v1914
        %v1916 = vpop.xlane.xlu0 %1915
        %v1917 = vsel %vm1895, %v1870, 0.0
        %1918 = vadd.xlane.f32.xlu0 %v1917
        %v1919 = vpop.xlane.xlu0 %1918
        %v1920 = vsel %vm1895, %v1871, 0.0
        %1921 = vadd.xlane.f32.xlu0 %v1920
        %v1922 = vpop.xlane.xlu0 %1921
        %v1923 = vsel %vm1895, %v1872, 0.0
        %1924 = vadd.xlane.f32.xlu0 %v1923
        %v1925 = vpop.xlane.xlu0 %1924
        %v1926 = vsel %vm1895, %v1873, 0.0
        %1927 = vadd.xlane.f32.xlu0 %v1926
        %v1928 = vpop.xlane.xlu0 %1927
        %v1929 = vsel %vm1895, %v1874, 0.0
        %1930 = vadd.xlane.f32.xlu0 %v1929
        %v1931 = vpop.xlane.xlu0 %1930
        %v1932 = vsel %vm1895, %v1875, 0.0
        %1933 = vadd.xlane.f32.xlu0 %v1932
        %v1934 = vpop.xlane.xlu0 %1933
        %v1935 = vsel %vm1895, %v1876, 0.0
        %1936 = vadd.xlane.f32.xlu0 %v1935
        %v1937 = vpop.xlane.xlu0 %1936
        %v1938 = vsel %vm1895, %v1877, 0.0
        %1939 = vadd.xlane.f32.xlu0 %v1938
        %v1940 = vpop.xlane.xlu0 %1939
        %v1941 = vsel %vm1895, %v1878, 0.0
        %1942 = vadd.xlane.f32.xlu0 %v1941
        %v1943 = vpop.xlane.xlu0 %1942
        %v1944 = vsel %vm1895, %v1879, 0.0
        %1945 = vadd.xlane.f32.xlu0 %v1944
        %v1946 = vpop.xlane.xlu0 %1945
        %v1947 = vsel %vm1895, %v1880, 0.0
        %1948 = vadd.xlane.f32.xlu0 %v1947
        %v1949 = vpop.xlane.xlu0 %1948
        %v1950 = vsel %vm1895, %v1881, 0.0
        %1951 = vadd.xlane.f32.xlu0 %v1950
        %v1952 = vpop.xlane.xlu0 %1951
        %v1953 = vsel %vm1895, %v1882, 0.0
        %1954 = vadd.xlane.f32.xlu0 %v1953
        %v1955 = vpop.xlane.xlu0 %1954
        %v1956 = vsel %vm1895, %v1883, 0.0
        %1957 = vadd.xlane.f32.xlu0 %v1956
        %v1958 = vpop.xlane.xlu0 %1957
        %v1959 = vsel %vm1895, %v1884, 0.0
        %1960 = vadd.xlane.f32.xlu0 %v1959
        %v1961 = vpop.xlane.xlu0 %1960
        %v1962 = vsel %vm1895, %v1885, 0.0
        %1963 = vadd.xlane.f32.xlu0 %v1962
        %v1964 = vpop.xlane.xlu0 %1963
        %v1965 = vsel %vm1895, %v1886, 0.0
        %1966 = vadd.xlane.f32.xlu0 %v1965
        %v1967 = vpop.xlane.xlu0 %1966
        %v1968 = vsel %vm1895, %v1887, 0.0
        %1969 = vadd.xlane.f32.xlu0 %v1968
        %v1970 = vpop.xlane.xlu0 %1969
        %v1971 = vsel %vm1895, %v1888, 0.0
        %1972 = vadd.xlane.f32.xlu0 %v1971
        %v1973 = vpop.xlane.xlu0 %1972
        %v1974 = vsel %vm1895, %v1889, 0.0
        %1975 = vadd.xlane.f32.xlu0 %v1974
        %v1976 = vpop.xlane.xlu0 %1975
        %v1977 = vsel %vm1895, %v1890, 0.0
        %1978 = vadd.xlane.f32.xlu0 %v1977
        %v1979 = vpop.xlane.xlu0 %1978
        %v1980 = vsel %vm1895, %v1891, 0.0
        %1981 = vadd.xlane.f32.xlu0 %v1980
        %v1982 = vpop.xlane.xlu0 %1981
        %v1983 = vsel %vm1895, %v1892, 0.0
        %1984 = vadd.xlane.f32.xlu0 %v1983
        %v1985 = vpop.xlane.xlu0 %1984
        %v1986 = vsel %vm1895, %v1893, 0.0
        %1987 = vadd.xlane.f32.xlu0 %v1986
        %v1988 = vpop.xlane.xlu0 %1987
        %v1989 = vsel %vm1895, %v1894, 0.0
        %1990 = vadd.xlane.f32.xlu0 %v1989
        %v1991 = vpop.xlane.xlu0 %1990
        %v1992 = vrcp.pop 16.0
        %v1993 = vmul.f32 16.0, %v1992
        %v1994 = vsub.f32 1.0, %v1993
        %v1995 = vmul.f32 %v1992, %v1994
        %v1996 = vadd.f32 %v1992, %v1995
        %vm1997 = vweird.f32 %v1992
        %v1998 = vsel %vm1997, %v1992, %v1996
        %v1999 = vmul.f32 %v1898, %v1998
        %v2000 = vmul.f32 %v1901, %v1998
        %v2001 = vmul.f32 %v1904, %v1998
        %v2002 = vmul.f32 %v1907, %v1998
        %v2003 = vmul.f32 %v1910, %v1998
        %v2004 = vmul.f32 %v1913, %v1998
        %v2005 = vmul.f32 %v1916, %v1998
        %v2006 = vmul.f32 %v1919, %v1998
        %v2007 = vmul.f32 %v1922, %v1998
        %v2008 = vmul.f32 %v1925, %v1998
        %v2009 = vmul.f32 %v1928, %v1998
        %v2010 = vmul.f32 %v1931, %v1998
        %v2011 = vmul.f32 %v1934, %v1998
        %v2012 = vmul.f32 %v1937, %v1998
        %v2013 = vmul.f32 %v1940, %v1998
        %v2014 = vmul.f32 %v1943, %v1998
        %v2015 = vmul.f32 %v1946, %v1998
        %v2016 = vmul.f32 %v1949, %v1998
        %v2017 = vmul.f32 %v1952, %v1998
        %v2018 = vmul.f32 %v1955, %v1998
        %v2019 = vmul.f32 %v1958, %v1998
        %v2020 = vmul.f32 %v1961, %v1998
        %v2021 = vmul.f32 %v1964, %v1998
        %v2022 = vmul.f32 %v1967, %v1998
        %v2023 = vmul.f32 %v1970, %v1998
        %v2024 = vmul.f32 %v1973, %v1998
        %v2025 = vmul.f32 %v1976, %v1998
        %v2026 = vmul.f32 %v1979, %v1998
        %v2027 = vmul.f32 %v1982, %v1998
        %v2028 = vmul.f32 %v1985, %v1998
        %v2029 = vmul.f32 %v1988, %v1998
        %v2030 = vmul.f32 %v1991, %v1998
        %v2031 = vsub.f32 %v1863, %v1999
        %v2032 = vsub.f32 %v1864, %v2000
        %v2033 = vsub.f32 %v1865, %v2001
        %v2034 = vsub.f32 %v1866, %v2002
        %v2035 = vsub.f32 %v1867, %v2003
        %v2036 = vsub.f32 %v1868, %v2004
        %v2037 = vsub.f32 %v1869, %v2005
        %v2038 = vsub.f32 %v1870, %v2006
        %v2039 = vsub.f32 %v1871, %v2007
        %v2040 = vsub.f32 %v1872, %v2008
        %v2041 = vsub.f32 %v1873, %v2009
        %v2042 = vsub.f32 %v1874, %v2010
        %v2043 = vsub.f32 %v1875, %v2011
        %v2044 = vsub.f32 %v1876, %v2012
        %v2045 = vsub.f32 %v1877, %v2013
        %v2046 = vsub.f32 %v1878, %v2014
        %v2047 = vsub.f32 %v1879, %v2015
        %v2048 = vsub.f32 %v1880, %v2016
        %v2049 = vsub.f32 %v1881, %v2017
        %v2050 = vsub.f32 %v1882, %v2018
        %v2051 = vsub.f32 %v1883, %v2019
        %v2052 = vsub.f32 %v1884, %v2020
        %v2053 = vsub.f32 %v1885, %v2021
        %v2054 = vsub.f32 %v1886, %v2022
        %v2055 = vsub.f32 %v1887, %v2023
        %v2056 = vsub.f32 %v1888, %v2024
        %v2057 = vsub.f32 %v1889, %v2025
        %v2058 = vsub.f32 %v1890, %v2026
        %v2059 = vsub.f32 %v1891, %v2027
        %v2060 = vsub.f32 %v1892, %v2028
        %v2061 = vsub.f32 %v1893, %v2029
        %v2062 = vsub.f32 %v1894, %v2030
        %v2063 = vmul.f32 %v2031, %v2031
        %v2064 = vmul.f32 %v2032, %v2032
        %v2065 = vmul.f32 %v2033, %v2033
        %v2066 = vmul.f32 %v2034, %v2034
        %v2067 = vmul.f32 %v2035, %v2035
        %v2068 = vmul.f32 %v2036, %v2036
        %v2069 = vmul.f32 %v2037, %v2037
        %v2070 = vmul.f32 %v2038, %v2038
        %v2071 = vmul.f32 %v2039, %v2039
        %v2072 = vmul.f32 %v2040, %v2040
        %v2073 = vmul.f32 %v2041, %v2041
        %v2074 = vmul.f32 %v2042, %v2042
        %v2075 = vmul.f32 %v2043, %v2043
        %v2076 = vmul.f32 %v2044, %v2044
        %v2077 = vmul.f32 %v2045, %v2045
        %v2078 = vmul.f32 %v2046, %v2046
        %v2079 = vmul.f32 %v2047, %v2047
        %v2080 = vmul.f32 %v2048, %v2048
        %v2081 = vmul.f32 %v2049, %v2049
        %v2082 = vmul.f32 %v2050, %v2050
        %v2083 = vmul.f32 %v2051, %v2051
        %v2084 = vmul.f32 %v2052, %v2052
        %v2085 = vmul.f32 %v2053, %v2053
        %v2086 = vmul.f32 %v2054, %v2054
        %v2087 = vmul.f32 %v2055, %v2055
        %v2088 = vmul.f32 %v2056, %v2056
        %v2089 = vmul.f32 %v2057, %v2057
        %v2090 = vmul.f32 %v2058, %v2058
        %v2091 = vmul.f32 %v2059, %v2059
        %v2092 = vmul.f32 %v2060, %v2060
        %v2093 = vmul.f32 %v2061, %v2061
        %v2094 = vmul.f32 %v2062, %v2062
        %v2095 = vsel %vm1895, %v2063, 0.0
        %2096 = vadd.xlane.f32.xlu0 %v2095
        %v2097 = vpop.xlane.xlu0 %2096
        %v2098 = vsel %vm1895, %v2064, 0.0
        %2099 = vadd.xlane.f32.xlu0 %v2098
        %v2100 = vpop.xlane.xlu0 %2099
        %v2101 = vsel %vm1895, %v2065, 0.0
        %2102 = vadd.xlane.f32.xlu0 %v2101
        %v2103 = vpop.xlane.xlu0 %2102
        %v2104 = vsel %vm1895, %v2066, 0.0
        %2105 = vadd.xlane.f32.xlu0 %v2104
        %v2106 = vpop.xlane.xlu0 %2105
        %v2107 = vsel %vm1895, %v2067, 0.0
        %2108 = vadd.xlane.f32.xlu0 %v2107
        %v2109 = vpop.xlane.xlu0 %2108
        %v2110 = vsel %vm1895, %v2068, 0.0
        %2111 = vadd.xlane.f32.xlu0 %v2110
        %v2112 = vpop.xlane.xlu0 %2111
        %v2113 = vsel %vm1895, %v2069, 0.0
        %2114 = vadd.xlane.f32.xlu0 %v2113
        %v2115 = vpop.xlane.xlu0 %2114
        %v2116 = vsel %vm1895, %v2070, 0.0
        %2117 = vadd.xlane.f32.xlu0 %v2116
        %v2118 = vpop.xlane.xlu0 %2117
        %v2119 = vsel %vm1895, %v2071, 0.0
        %2120 = vadd.xlane.f32.xlu0 %v2119
        %v2121 = vpop.xlane.xlu0 %2120
        %v2122 = vsel %vm1895, %v2072, 0.0
        %2123 = vadd.xlane.f32.xlu0 %v2122
        %v2124 = vpop.xlane.xlu0 %2123
        %v2125 = vsel %vm1895, %v2073, 0.0
        %2126 = vadd.xlane.f32.xlu0 %v2125
        %v2127 = vpop.xlane.xlu0 %2126
        %v2128 = vsel %vm1895, %v2074, 0.0
        %2129 = vadd.xlane.f32.xlu0 %v2128
        %v2130 = vpop.xlane.xlu0 %2129
        %v2131 = vsel %vm1895, %v2075, 0.0
        %2132 = vadd.xlane.f32.xlu0 %v2131
        %v2133 = vpop.xlane.xlu0 %2132
        %v2134 = vsel %vm1895, %v2076, 0.0
        %2135 = vadd.xlane.f32.xlu0 %v2134
        %v2136 = vpop.xlane.xlu0 %2135
        %v2137 = vsel %vm1895, %v2077, 0.0
        %2138 = vadd.xlane.f32.xlu0 %v2137
        %v2139 = vpop.xlane.xlu0 %2138
        %v2140 = vsel %vm1895, %v2078, 0.0
        %2141 = vadd.xlane.f32.xlu0 %v2140
        %v2142 = vpop.xlane.xlu0 %2141
        %v2143 = vsel %vm1895, %v2079, 0.0
        %2144 = vadd.xlane.f32.xlu0 %v2143
        %v2145 = vpop.xlane.xlu0 %2144
        %v2146 = vsel %vm1895, %v2080, 0.0
        %2147 = vadd.xlane.f32.xlu0 %v2146
        %v2148 = vpop.xlane.xlu0 %2147
        %v2149 = vsel %vm1895, %v2081, 0.0
        %2150 = vadd.xlane.f32.xlu0 %v2149
        %v2151 = vpop.xlane.xlu0 %2150
        %v2152 = vsel %vm1895, %v2082, 0.0
        %2153 = vadd.xlane.f32.xlu0 %v2152
        %v2154 = vpop.xlane.xlu0 %2153
        %v2155 = vsel %vm1895, %v2083, 0.0
        %2156 = vadd.xlane.f32.xlu0 %v2155
        %v2157 = vpop.xlane.xlu0 %2156
        %v2158 = vsel %vm1895, %v2084, 0.0
        %2159 = vadd.xlane.f32.xlu0 %v2158
        %v2160 = vpop.xlane.xlu0 %2159
        %v2161 = vsel %vm1895, %v2085, 0.0
        %2162 = vadd.xlane.f32.xlu0 %v2161
        %v2163 = vpop.xlane.xlu0 %2162
        %v2164 = vsel %vm1895, %v2086, 0.0
        %2165 = vadd.xlane.f32.xlu0 %v2164
        %v2166 = vpop.xlane.xlu0 %2165
        %v2167 = vsel %vm1895, %v2087, 0.0
        %2168 = vadd.xlane.f32.xlu0 %v2167
        %v2169 = vpop.xlane.xlu0 %2168
        %v2170 = vsel %vm1895, %v2088, 0.0
        %2171 = vadd.xlane.f32.xlu0 %v2170
        %v2172 = vpop.xlane.xlu0 %2171
        %v2173 = vsel %vm1895, %v2089, 0.0
        %2174 = vadd.xlane.f32.xlu0 %v2173
        %v2175 = vpop.xlane.xlu0 %2174
        %v2176 = vsel %vm1895, %v2090, 0.0
        %2177 = vadd.xlane.f32.xlu0 %v2176
        %v2178 = vpop.xlane.xlu0 %2177
        %v2179 = vsel %vm1895, %v2091, 0.0
        %2180 = vadd.xlane.f32.xlu0 %v2179
        %v2181 = vpop.xlane.xlu0 %2180
        %v2182 = vsel %vm1895, %v2092, 0.0
        %2183 = vadd.xlane.f32.xlu0 %v2182
        %v2184 = vpop.xlane.xlu0 %2183
        %v2185 = vsel %vm1895, %v2093, 0.0
        %2186 = vadd.xlane.f32.xlu0 %v2185
        %v2187 = vpop.xlane.xlu0 %2186
        %v2188 = vsel %vm1895, %v2094, 0.0
        %2189 = vadd.xlane.f32.xlu0 %v2188
        %v2190 = vpop.xlane.xlu0 %2189
        %v2191 = vmul.f32 %v2097, %v1998
        %v2192 = vmul.f32 %v2100, %v1998
        %v2193 = vmul.f32 %v2103, %v1998
        %v2194 = vmul.f32 %v2106, %v1998
        %v2195 = vmul.f32 %v2109, %v1998
        %v2196 = vmul.f32 %v2112, %v1998
        %v2197 = vmul.f32 %v2115, %v1998
        %v2198 = vmul.f32 %v2118, %v1998
        %v2199 = vmul.f32 %v2121, %v1998
        %v2200 = vmul.f32 %v2124, %v1998
        %v2201 = vmul.f32 %v2127, %v1998
        %v2202 = vmul.f32 %v2130, %v1998
        %v2203 = vmul.f32 %v2133, %v1998
        %v2204 = vmul.f32 %v2136, %v1998
        %v2205 = vmul.f32 %v2139, %v1998
        %v2206 = vmul.f32 %v2142, %v1998
        %v2207 = vmul.f32 %v2145, %v1998
        %v2208 = vmul.f32 %v2148, %v1998
        %v2209 = vmul.f32 %v2151, %v1998
        %v2210 = vmul.f32 %v2154, %v1998
        %v2211 = vmul.f32 %v2157, %v1998
        %v2212 = vmul.f32 %v2160, %v1998
        %v2213 = vmul.f32 %v2163, %v1998
        %v2214 = vmul.f32 %v2166, %v1998
        %v2215 = vmul.f32 %v2169, %v1998
        %v2216 = vmul.f32 %v2172, %v1998
        %v2217 = vmul.f32 %v2175, %v1998
        %v2218 = vmul.f32 %v2178, %v1998
        %v2219 = vmul.f32 %v2181, %v1998
        %v2220 = vmul.f32 %v2184, %v1998
        %v2221 = vmul.f32 %v2187, %v1998
        %v2222 = vmul.f32 %v2190, %v1998
        %v2223 = vadd.f32 %v2191, 1e-05
        %v2224 = vadd.f32 %v2192, 1e-05
        %v2225 = vadd.f32 %v2193, 1e-05
        %v2226 = vadd.f32 %v2194, 1e-05
        %v2227 = vadd.f32 %v2195, 1e-05
        %v2228 = vadd.f32 %v2196, 1e-05
        %v2229 = vadd.f32 %v2197, 1e-05
        %v2230 = vadd.f32 %v2198, 1e-05
        %v2231 = vadd.f32 %v2199, 1e-05
        %v2232 = vadd.f32 %v2200, 1e-05
        %v2233 = vadd.f32 %v2201, 1e-05
        %v2234 = vadd.f32 %v2202, 1e-05
        %v2235 = vadd.f32 %v2203, 1e-05
        %v2236 = vadd.f32 %v2204, 1e-05
        %v2237 = vadd.f32 %v2205, 1e-05
        %v2238 = vadd.f32 %v2206, 1e-05
        %v2239 = vadd.f32 %v2207, 1e-05
        %v2240 = vadd.f32 %v2208, 1e-05
        %v2241 = vadd.f32 %v2209, 1e-05
        %v2242 = vadd.f32 %v2210, 1e-05
        %v2243 = vadd.f32 %v2211, 1e-05
        %v2244 = vadd.f32 %v2212, 1e-05
        %v2245 = vadd.f32 %v2213, 1e-05
        %v2246 = vadd.f32 %v2214, 1e-05
        %v2247 = vadd.f32 %v2215, 1e-05
        %v2248 = vadd.f32 %v2216, 1e-05
        %v2249 = vadd.f32 %v2217, 1e-05
        %v2250 = vadd.f32 %v2218, 1e-05
        %v2251 = vadd.f32 %v2219, 1e-05
        %v2252 = vadd.f32 %v2220, 1e-05
        %v2253 = vadd.f32 %v2221, 1e-05
        %v2254 = vadd.f32 %v2222, 1e-05
        %v2255 = vrsqrt.pop %v2223
        %v2256 = vmul.f32 %v2255, %v2223
        %v2257 = vmul.f32 %v2256, %v2255
        %v2258 = vmul.f32 0.5, %v2257
        %v2259 = vsub.f32 1.5, %v2258
        %v2260 = vmul.f32 %v2255, %v2259
        %vm2261 = vweird.f32 %v2223
        %vm2262 = vweird.f32 %v2255
        %vm2263 = vmor %vm2261, %vm2262
        %v2264 = vsel %vm2263, %v2255, %v2260
        %v2265 = vrsqrt.pop %v2224
        %v2266 = vmul.f32 %v2265, %v2224
        %v2267 = vmul.f32 %v2266, %v2265
        %v2268 = vmul.f32 0.5, %v2267
        %v2269 = vsub.f32 1.5, %v2268
        %v2270 = vmul.f32 %v2265, %v2269
        %vm2271 = vweird.f32 %v2224
        %vm2272 = vweird.f32 %v2265
        %vm2273 = vmor %vm2271, %vm2272
        %v2274 = vsel %vm2273, %v2265, %v2270
        %v2275 = vrsqrt.pop %v2225
        %v2276 = vmul.f32 %v2275, %v2225
        %v2277 = vmul.f32 %v2276, %v2275
        %v2278 = vmul.f32 0.5, %v2277
        %v2279 = vsub.f32 1.5, %v2278
        %v2280 = vmul.f32 %v2275, %v2279
        %vm2281 = vweird.f32 %v2225
        %vm2282 = vweird.f32 %v2275
        %vm2283 = vmor %vm2281, %vm2282
        %v2284 = vsel %vm2283, %v2275, %v2280
        %v2285 = vrsqrt.pop %v2226
        %v2286 = vmul.f32 %v2285, %v2226
        %v2287 = vmul.f32 %v2286, %v2285
        %v2288 = vmul.f32 0.5, %v2287
        %v2289 = vsub.f32 1.5, %v2288
        %v2290 = vmul.f32 %v2285, %v2289
        %vm2291 = vweird.f32 %v2226
        %vm2292 = vweird.f32 %v2285
        %vm2293 = vmor %vm2291, %vm2292
        %v2294 = vsel %vm2293, %v2285, %v2290
        %v2295 = vrsqrt.pop %v2227
        %v2296 = vmul.f32 %v2295, %v2227
        %v2297 = vmul.f32 %v2296, %v2295
        %v2298 = vmul.f32 0.5, %v2297
        %v2299 = vsub.f32 1.5, %v2298
        %v2300 = vmul.f32 %v2295, %v2299
        %vm2301 = vweird.f32 %v2227
        %vm2302 = vweird.f32 %v2295
        %vm2303 = vmor %vm2301, %vm2302
        %v2304 = vsel %vm2303, %v2295, %v2300
        %v2305 = vrsqrt.pop %v2228
        %v2306 = vmul.f32 %v2305, %v2228
        %v2307 = vmul.f32 %v2306, %v2305
        %v2308 = vmul.f32 0.5, %v2307
        %v2309 = vsub.f32 1.5, %v2308
        %v2310 = vmul.f32 %v2305, %v2309
        %vm2311 = vweird.f32 %v2228
        %vm2312 = vweird.f32 %v2305
        %vm2313 = vmor %vm2311, %vm2312
        %v2314 = vsel %vm2313, %v2305, %v2310
        %v2315 = vrsqrt.pop %v2229
        %v2316 = vmul.f32 %v2315, %v2229
        %v2317 = vmul.f32 %v2316, %v2315
        %v2318 = vmul.f32 0.5, %v2317
        %v2319 = vsub.f32 1.5, %v2318
        %v2320 = vmul.f32 %v2315, %v2319
        %vm2321 = vweird.f32 %v2229
        %vm2322 = vweird.f32 %v2315
        %vm2323 = vmor %vm2321, %vm2322
        %v2324 = vsel %vm2323, %v2315, %v2320
        %v2325 = vrsqrt.pop %v2230
        %v2326 = vmul.f32 %v2325, %v2230
        %v2327 = vmul.f32 %v2326, %v2325
        %v2328 = vmul.f32 0.5, %v2327
        %v2329 = vsub.f32 1.5, %v2328
        %v2330 = vmul.f32 %v2325, %v2329
        %vm2331 = vweird.f32 %v2230
        %vm2332 = vweird.f32 %v2325
        %vm2333 = vmor %vm2331, %vm2332
        %v2334 = vsel %vm2333, %v2325, %v2330
        %v2335 = vrsqrt.pop %v2231
        %v2336 = vmul.f32 %v2335, %v2231
        %v2337 = vmul.f32 %v2336, %v2335
        %v2338 = vmul.f32 0.5, %v2337
        %v2339 = vsub.f32 1.5, %v2338
        %v2340 = vmul.f32 %v2335, %v2339
        %vm2341 = vweird.f32 %v2231
        %vm2342 = vweird.f32 %v2335
        %vm2343 = vmor %vm2341, %vm2342
        %v2344 = vsel %vm2343, %v2335, %v2340
        %v2345 = vrsqrt.pop %v2232
        %v2346 = vmul.f32 %v2345, %v2232
        %v2347 = vmul.f32 %v2346, %v2345
        %v2348 = vmul.f32 0.5, %v2347
        %v2349 = vsub.f32 1.5, %v2348
        %v2350 = vmul.f32 %v2345, %v2349
        %vm2351 = vweird.f32 %v2232
        %vm2352 = vweird.f32 %v2345
        %vm2353 = vmor %vm2351, %vm2352
        %v2354 = vsel %vm2353, %v2345, %v2350
        %v2355 = vrsqrt.pop %v2233
        %v2356 = vmul.f32 %v2355, %v2233
        %v2357 = vmul.f32 %v2356, %v2355
        %v2358 = vmul.f32 0.5, %v2357
        %v2359 = vsub.f32 1.5, %v2358
        %v2360 = vmul.f32 %v2355, %v2359
        %vm2361 = vweird.f32 %v2233
        %vm2362 = vweird.f32 %v2355
        %vm2363 = vmor %vm2361, %vm2362
        %v2364 = vsel %vm2363, %v2355, %v2360
        %v2365 = vrsqrt.pop %v2234
        %v2366 = vmul.f32 %v2365, %v2234
        %v2367 = vmul.f32 %v2366, %v2365
        %v2368 = vmul.f32 0.5, %v2367
        %v2369 = vsub.f32 1.5, %v2368
        %v2370 = vmul.f32 %v2365, %v2369
        %vm2371 = vweird.f32 %v2234
        %vm2372 = vweird.f32 %v2365
        %vm2373 = vmor %vm2371, %vm2372
        %v2374 = vsel %vm2373, %v2365, %v2370
        %v2375 = vrsqrt.pop %v2235
        %v2376 = vmul.f32 %v2375, %v2235
        %v2377 = vmul.f32 %v2376, %v2375
        %v2378 = vmul.f32 0.5, %v2377
        %v2379 = vsub.f32 1.5, %v2378
        %v2380 = vmul.f32 %v2375, %v2379
        %vm2381 = vweird.f32 %v2235
        %vm2382 = vweird.f32 %v2375
        %vm2383 = vmor %vm2381, %vm2382
        %v2384 = vsel %vm2383, %v2375, %v2380
        %v2385 = vrsqrt.pop %v2236
        %v2386 = vmul.f32 %v2385, %v2236
        %v2387 = vmul.f32 %v2386, %v2385
        %v2388 = vmul.f32 0.5, %v2387
        %v2389 = vsub.f32 1.5, %v2388
        %v2390 = vmul.f32 %v2385, %v2389
        %vm2391 = vweird.f32 %v2236
        %vm2392 = vweird.f32 %v2385
        %vm2393 = vmor %vm2391, %vm2392
        %v2394 = vsel %vm2393, %v2385, %v2390
        %v2395 = vrsqrt.pop %v2237
        %v2396 = vmul.f32 %v2395, %v2237
        %v2397 = vmul.f32 %v2396, %v2395
        %v2398 = vmul.f32 0.5, %v2397
        %v2399 = vsub.f32 1.5, %v2398
        %v2400 = vmul.f32 %v2395, %v2399
        %vm2401 = vweird.f32 %v2237
        %vm2402 = vweird.f32 %v2395
        %vm2403 = vmor %vm2401, %vm2402
        %v2404 = vsel %vm2403, %v2395, %v2400
        %v2405 = vrsqrt.pop %v2238
        %v2406 = vmul.f32 %v2405, %v2238
        %v2407 = vmul.f32 %v2406, %v2405
        %v2408 = vmul.f32 0.5, %v2407
        %v2409 = vsub.f32 1.5, %v2408
        %v2410 = vmul.f32 %v2405, %v2409
        %vm2411 = vweird.f32 %v2238
        %vm2412 = vweird.f32 %v2405
        %vm2413 = vmor %vm2411, %vm2412
        %v2414 = vsel %vm2413, %v2405, %v2410
        %v2415 = vrsqrt.pop %v2239
        %v2416 = vmul.f32 %v2415, %v2239
        %v2417 = vmul.f32 %v2416, %v2415
        %v2418 = vmul.f32 0.5, %v2417
        %v2419 = vsub.f32 1.5, %v2418
        %v2420 = vmul.f32 %v2415, %v2419
        %vm2421 = vweird.f32 %v2239
        %vm2422 = vweird.f32 %v2415
        %vm2423 = vmor %vm2421, %vm2422
        %v2424 = vsel %vm2423, %v2415, %v2420
        %v2425 = vrsqrt.pop %v2240
        %v2426 = vmul.f32 %v2425, %v2240
        %v2427 = vmul.f32 %v2426, %v2425
        %v2428 = vmul.f32 0.5, %v2427
        %v2429 = vsub.f32 1.5, %v2428
        %v2430 = vmul.f32 %v2425, %v2429
        %vm2431 = vweird.f32 %v2240
        %vm2432 = vweird.f32 %v2425
        %vm2433 = vmor %vm2431, %vm2432
        %v2434 = vsel %vm2433, %v2425, %v2430
        %v2435 = vrsqrt.pop %v2241
        %v2436 = vmul.f32 %v2435, %v2241
        %v2437 = vmul.f32 %v2436, %v2435
        %v2438 = vmul.f32 0.5, %v2437
        %v2439 = vsub.f32 1.5, %v2438
        %v2440 = vmul.f32 %v2435, %v2439
        %vm2441 = vweird.f32 %v2241
        %vm2442 = vweird.f32 %v2435
        %vm2443 = vmor %vm2441, %vm2442
        %v2444 = vsel %vm2443, %v2435, %v2440
        %v2445 = vrsqrt.pop %v2242
        %v2446 = vmul.f32 %v2445, %v2242
        %v2447 = vmul.f32 %v2446, %v2445
        %v2448 = vmul.f32 0.5, %v2447
        %v2449 = vsub.f32 1.5, %v2448
        %v2450 = vmul.f32 %v2445, %v2449
        %vm2451 = vweird.f32 %v2242
        %vm2452 = vweird.f32 %v2445
        %vm2453 = vmor %vm2451, %vm2452
        %v2454 = vsel %vm2453, %v2445, %v2450
        %v2455 = vrsqrt.pop %v2243
        %v2456 = vmul.f32 %v2455, %v2243
        %v2457 = vmul.f32 %v2456, %v2455
        %v2458 = vmul.f32 0.5, %v2457
        %v2459 = vsub.f32 1.5, %v2458
        %v2460 = vmul.f32 %v2455, %v2459
        %vm2461 = vweird.f32 %v2243
        %vm2462 = vweird.f32 %v2455
        %vm2463 = vmor %vm2461, %vm2462
        %v2464 = vsel %vm2463, %v2455, %v2460
        %v2465 = vrsqrt.pop %v2244
        %v2466 = vmul.f32 %v2465, %v2244
        %v2467 = vmul.f32 %v2466, %v2465
        %v2468 = vmul.f32 0.5, %v2467
        %v2469 = vsub.f32 1.5, %v2468
        %v2470 = vmul.f32 %v2465, %v2469
        %vm2471 = vweird.f32 %v2244
        %vm2472 = vweird.f32 %v2465
        %vm2473 = vmor %vm2471, %vm2472
        %v2474 = vsel %vm2473, %v2465, %v2470
        %v2475 = vrsqrt.pop %v2245
        %v2476 = vmul.f32 %v2475, %v2245
        %v2477 = vmul.f32 %v2476, %v2475
        %v2478 = vmul.f32 0.5, %v2477
        %v2479 = vsub.f32 1.5, %v2478
        %v2480 = vmul.f32 %v2475, %v2479
        %vm2481 = vweird.f32 %v2245
        %vm2482 = vweird.f32 %v2475
        %vm2483 = vmor %vm2481, %vm2482
        %v2484 = vsel %vm2483, %v2475, %v2480
        %v2485 = vrsqrt.pop %v2246
        %v2486 = vmul.f32 %v2485, %v2246
        %v2487 = vmul.f32 %v2486, %v2485
        %v2488 = vmul.f32 0.5, %v2487
        %v2489 = vsub.f32 1.5, %v2488
        %v2490 = vmul.f32 %v2485, %v2489
        %vm2491 = vweird.f32 %v2246
        %vm2492 = vweird.f32 %v2485
        %vm2493 = vmor %vm2491, %vm2492
        %v2494 = vsel %vm2493, %v2485, %v2490
        %v2495 = vrsqrt.pop %v2247
        %v2496 = vmul.f32 %v2495, %v2247
        %v2497 = vmul.f32 %v2496, %v2495
        %v2498 = vmul.f32 0.5, %v2497
        %v2499 = vsub.f32 1.5, %v2498
        %v2500 = vmul.f32 %v2495, %v2499
        %vm2501 = vweird.f32 %v2247
        %vm2502 = vweird.f32 %v2495
        %vm2503 = vmor %vm2501, %vm2502
        %v2504 = vsel %vm2503, %v2495, %v2500
        %v2505 = vrsqrt.pop %v2248
        %v2506 = vmul.f32 %v2505, %v2248
        %v2507 = vmul.f32 %v2506, %v2505
        %v2508 = vmul.f32 0.5, %v2507
        %v2509 = vsub.f32 1.5, %v2508
        %v2510 = vmul.f32 %v2505, %v2509
        %vm2511 = vweird.f32 %v2248
        %vm2512 = vweird.f32 %v2505
        %vm2513 = vmor %vm2511, %vm2512
        %v2514 = vsel %vm2513, %v2505, %v2510
        %v2515 = vrsqrt.pop %v2249
        %v2516 = vmul.f32 %v2515, %v2249
        %v2517 = vmul.f32 %v2516, %v2515
        %v2518 = vmul.f32 0.5, %v2517
        %v2519 = vsub.f32 1.5, %v2518
        %v2520 = vmul.f32 %v2515, %v2519
        %vm2521 = vweird.f32 %v2249
        %vm2522 = vweird.f32 %v2515
        %vm2523 = vmor %vm2521, %vm2522
        %v2524 = vsel %vm2523, %v2515, %v2520
        %v2525 = vrsqrt.pop %v2250
        %v2526 = vmul.f32 %v2525, %v2250
        %v2527 = vmul.f32 %v2526, %v2525
        %v2528 = vmul.f32 0.5, %v2527
        %v2529 = vsub.f32 1.5, %v2528
        %v2530 = vmul.f32 %v2525, %v2529
        %vm2531 = vweird.f32 %v2250
        %vm2532 = vweird.f32 %v2525
        %vm2533 = vmor %vm2531, %vm2532
        %v2534 = vsel %vm2533, %v2525, %v2530
        %v2535 = vrsqrt.pop %v2251
        %v2536 = vmul.f32 %v2535, %v2251
        %v2537 = vmul.f32 %v2536, %v2535
        %v2538 = vmul.f32 0.5, %v2537
        %v2539 = vsub.f32 1.5, %v2538
        %v2540 = vmul.f32 %v2535, %v2539
        %vm2541 = vweird.f32 %v2251
        %vm2542 = vweird.f32 %v2535
        %vm2543 = vmor %vm2541, %vm2542
        %v2544 = vsel %vm2543, %v2535, %v2540
        %v2545 = vrsqrt.pop %v2252
        %v2546 = vmul.f32 %v2545, %v2252
        %v2547 = vmul.f32 %v2546, %v2545
        %v2548 = vmul.f32 0.5, %v2547
        %v2549 = vsub.f32 1.5, %v2548
        %v2550 = vmul.f32 %v2545, %v2549
        %vm2551 = vweird.f32 %v2252
        %vm2552 = vweird.f32 %v2545
        %vm2553 = vmor %vm2551, %vm2552
        %v2554 = vsel %vm2553, %v2545, %v2550
        %v2555 = vrsqrt.pop %v2253
        %v2556 = vmul.f32 %v2555, %v2253
        %v2557 = vmul.f32 %v2556, %v2555
        %v2558 = vmul.f32 0.5, %v2557
        %v2559 = vsub.f32 1.5, %v2558
        %v2560 = vmul.f32 %v2555, %v2559
        %vm2561 = vweird.f32 %v2253
        %vm2562 = vweird.f32 %v2555
        %vm2563 = vmor %vm2561, %vm2562
        %v2564 = vsel %vm2563, %v2555, %v2560
        %v2565 = vrsqrt.pop %v2254
        %v2566 = vmul.f32 %v2565, %v2254
        %v2567 = vmul.f32 %v2566, %v2565
        %v2568 = vmul.f32 0.5, %v2567
        %v2569 = vsub.f32 1.5, %v2568
        %v2570 = vmul.f32 %v2565, %v2569
        %vm2571 = vweird.f32 %v2254
        %vm2572 = vweird.f32 %v2565
        %vm2573 = vmor %vm2571, %vm2572
        %v2574 = vsel %vm2573, %v2565, %v2570
        %v2575 = vmul.f32 %v2031, %v2264
        %v2576 = vmul.f32 %v2032, %v2274
        %v2577 = vmul.f32 %v2033, %v2284
        %v2578 = vmul.f32 %v2034, %v2294
        %v2579 = vmul.f32 %v2035, %v2304
        %v2580 = vmul.f32 %v2036, %v2314
        %v2581 = vmul.f32 %v2037, %v2324
        %v2582 = vmul.f32 %v2038, %v2334
        %v2583 = vmul.f32 %v2039, %v2344
        %v2584 = vmul.f32 %v2040, %v2354
        %v2585 = vmul.f32 %v2041, %v2364
        %v2586 = vmul.f32 %v2042, %v2374
        %v2587 = vmul.f32 %v2043, %v2384
        %v2588 = vmul.f32 %v2044, %v2394
        %v2589 = vmul.f32 %v2045, %v2404
        %v2590 = vmul.f32 %v2046, %v2414
        %v2591 = vmul.f32 %v2047, %v2424
        %v2592 = vmul.f32 %v2048, %v2434
        %v2593 = vmul.f32 %v2049, %v2444
        %v2594 = vmul.f32 %v2050, %v2454
        %v2595 = vmul.f32 %v2051, %v2464
        %v2596 = vmul.f32 %v2052, %v2474
        %v2597 = vmul.f32 %v2053, %v2484
        %v2598 = vmul.f32 %v2054, %v2494
        %v2599 = vmul.f32 %v2055, %v2504
        %v2600 = vmul.f32 %v2056, %v2514
        %v2601 = vmul.f32 %v2057, %v2524
        %v2602 = vmul.f32 %v2058, %v2534
        %v2603 = vmul.f32 %v2059, %v2544
        %v2604 = vmul.f32 %v2060, %v2554
        %v2605 = vmul.f32 %v2061, %v2564
        %v2606 = vmul.f32 %v2062, %v2574
        %v2607 = vld [vmem:[%s2] sm:$0xff]
        %v2608 = vld [vmem:[%s2 + $0x8] sm:$0xff]
        %v2610 = vsel %vm1895, %v2575, 0
        %v2613 = vsel %vm1895, %v2576, 0
        %v2616 = vsel %vm1895, %v2577, 0
        %v2619 = vsel %vm1895, %v2578, 0
        %v2622 = vsel %vm1895, %v2579, 0
        %v2625 = vsel %vm1895, %v2580, 0
        %v2628 = vsel %vm1895, %v2581, 0
        %v2631 = vsel %vm1895, %v2582, 0
        %v2634 = vsel %vm1895, %v2583, 0
        %v2637 = vsel %vm1895, %v2584, 0
        %v2640 = vsel %vm1895, %v2585, 0
        %v2643 = vsel %vm1895, %v2586, 0
        %v2646 = vsel %vm1895, %v2587, 0
        %v2649 = vsel %vm1895, %v2588, 0
        %v2652 = vsel %vm1895, %v2589, 0
        %v2655 = vsel %vm1895, %v2590, 0
        %v2658 = vsel %vm1895, %v2591, 0
        %v2661 = vsel %vm1895, %v2592, 0
        %v2664 = vsel %vm1895, %v2593, 0
        %v2667 = vsel %vm1895, %v2594, 0
        %v2670 = vsel %vm1895, %v2595, 0
        %v2673 = vsel %vm1895, %v2596, 0
        %v2676 = vsel %vm1895, %v2597, 0
        %v2679 = vsel %vm1895, %v2598, 0
        %v2682 = vsel %vm1895, %v2599, 0
        %v2685 = vsel %vm1895, %v2600, 0
        %v2688 = vsel %vm1895, %v2601, 0
        %v2691 = vsel %vm1895, %v2602, 0
        %v2694 = vsel %vm1895, %v2603, 0
        %v2697 = vsel %vm1895, %v2604, 0
        %v2700 = vsel %vm1895, %v2605, 0
        %v2703 = vsel %vm1895, %v2606, 0
        %2705 = vmatpush.msra.mxu0 0.0
        %2706 = vmatpush.msra.mxu0 0.0
        %2707 = vmatpush.msra.mxu0 0.0
        %2708 = vmatpush.msra.mxu0 0.0
        %2709 = vmatpush.msra.mxu0 0.0
        %2710 = vmatpush.msra.mxu0 0.0
        %2711 = vmatpush.msra.mxu0 0.0
        %2712 = vmatpush.msra.mxu0 0.0
        %2713 = vmatpush.msra.mxu0 0.0
        %2714 = vmatpush.msra.mxu0 0.0
        %2715 = vmatpush.msra.mxu0 0.0
        %2716 = vmatpush.msra.mxu0 0.0
        %2717 = vmatpush.msra.mxu0 0.0
        %2718 = vmatpush.msra.mxu0 0.0
        %2719 = vmatpush.msra.mxu0 %v2608
        %2720 = vmatpush.msra.mxu0 %v2607
        %2721 = vmatmul.f32.gmra.mxu0 %v2610
        %v2722 = vpop.f32.mrf.mxu0
        %v2723 = vadd.f32 0.0, %v2722
        %2724 = vmatmul.f32.gmra.mxu0 %v2613
        %v2725 = vpop.f32.mrf.mxu0
        %v2726 = vadd.f32 0.0, %v2725
        %2727 = vmatmul.f32.gmra.mxu0 %v2616
        %v2728 = vpop.f32.mrf.mxu0
        %v2729 = vadd.f32 0.0, %v2728
        %2730 = vmatmul.f32.gmra.mxu0 %v2619
        %v2731 = vpop.f32.mrf.mxu0
        %v2732 = vadd.f32 0.0, %v2731
        %2733 = vmatmul.f32.gmra.mxu0 %v2622
        %v2734 = vpop.f32.mrf.mxu0
        %v2735 = vadd.f32 0.0, %v2734
        %2736 = vmatmul.f32.gmra.mxu0 %v2625
        %v2737 = vpop.f32.mrf.mxu0
        %v2738 = vadd.f32 0.0, %v2737
        %2739 = vmatmul.f32.gmra.mxu0 %v2628
        %v2740 = vpop.f32.mrf.mxu0
        %v2741 = vadd.f32 0.0, %v2740
        %2742 = vmatmul.f32.gmra.mxu0 %v2631
        %v2743 = vpop.f32.mrf.mxu0
        %v2744 = vadd.f32 0.0, %v2743
        %2745 = vmatmul.f32.gmra.mxu0 %v2634
        %v2746 = vpop.f32.mrf.mxu0
        %v2747 = vadd.f32 0.0, %v2746
        %2748 = vmatmul.f32.gmra.mxu0 %v2637
        %v2749 = vpop.f32.mrf.mxu0
        %v2750 = vadd.f32 0.0, %v2749
        %2751 = vmatmul.f32.gmra.mxu0 %v2640
        %v2752 = vpop.f32.mrf.mxu0
        %v2753 = vadd.f32 0.0, %v2752
        %2754 = vmatmul.f32.gmra.mxu0 %v2643
        %v2755 = vpop.f32.mrf.mxu0
        %v2756 = vadd.f32 0.0, %v2755
        %2757 = vmatmul.f32.gmra.mxu0 %v2646
        %v2758 = vpop.f32.mrf.mxu0
        %v2759 = vadd.f32 0.0, %v2758
        %2760 = vmatmul.f32.gmra.mxu0 %v2649
        %v2761 = vpop.f32.mrf.mxu0
        %v2762 = vadd.f32 0.0, %v2761
        %2763 = vmatmul.f32.gmra.mxu0 %v2652
        %v2764 = vpop.f32.mrf.mxu0
        %v2765 = vadd.f32 0.0, %v2764
        %2766 = vmatmul.f32.gmra.mxu0 %v2655
        %v2767 = vpop.f32.mrf.mxu0
        %v2768 = vadd.f32 0.0, %v2767
        %2769 = vmatmul.f32.gmra.mxu0 %v2658
        %v2770 = vpop.f32.mrf.mxu0
        %v2771 = vadd.f32 0.0, %v2770
        %2772 = vmatmul.f32.gmra.mxu0 %v2661
        %v2773 = vpop.f32.mrf.mxu0
        %v2774 = vadd.f32 0.0, %v2773
        %2775 = vmatmul.f32.gmra.mxu0 %v2664
        %v2776 = vpop.f32.mrf.mxu0
        %v2777 = vadd.f32 0.0, %v2776
        %2778 = vmatmul.f32.gmra.mxu0 %v2667
        %v2779 = vpop.f32.mrf.mxu0
        %v2780 = vadd.f32 0.0, %v2779
        %2781 = vmatmul.f32.gmra.mxu0 %v2670
        %v2782 = vpop.f32.mrf.mxu0
        %v2783 = vadd.f32 0.0, %v2782
        %2784 = vmatmul.f32.gmra.mxu0 %v2673
        %v2785 = vpop.f32.mrf.mxu0
        %v2786 = vadd.f32 0.0, %v2785
        %2787 = vmatmul.f32.gmra.mxu0 %v2676
        %v2788 = vpop.f32.mrf.mxu0
        %v2789 = vadd.f32 0.0, %v2788
        %2790 = vmatmul.f32.gmra.mxu0 %v2679
        %v2791 = vpop.f32.mrf.mxu0
        %v2792 = vadd.f32 0.0, %v2791
        %2793 = vmatmul.f32.gmra.mxu0 %v2682
        %v2794 = vpop.f32.mrf.mxu0
        %v2795 = vadd.f32 0.0, %v2794
        %2796 = vmatmul.f32.gmra.mxu0 %v2685
        %v2797 = vpop.f32.mrf.mxu0
        %v2798 = vadd.f32 0.0, %v2797
        %2799 = vmatmul.f32.gmra.mxu0 %v2688
        %v2800 = vpop.f32.mrf.mxu0
        %v2801 = vadd.f32 0.0, %v2800
        %2802 = vmatmul.f32.gmra.mxu0 %v2691
        %v2803 = vpop.f32.mrf.mxu0
        %v2804 = vadd.f32 0.0, %v2803
        %2805 = vmatmul.f32.gmra.mxu0 %v2694
        %v2806 = vpop.f32.mrf.mxu0
        %v2807 = vadd.f32 0.0, %v2806
        %2808 = vmatmul.f32.gmra.mxu0 %v2697
        %v2809 = vpop.f32.mrf.mxu0
        %v2810 = vadd.f32 0.0, %v2809
        %2811 = vmatmul.f32.gmra.mxu0 %v2700
        %v2812 = vpop.f32.mrf.mxu0
        %v2813 = vadd.f32 0.0, %v2812
        %2814 = vmatmul.f32.gmra.mxu0 %v2703
        %v2815 = vpop.f32.mrf.mxu0
        %v2816 = vadd.f32 0.0, %v2815
        %2817 = vdwg.mxu0
        %v2818 = vmul.f32 %v2723, %v2723
        %v2819 = vmul.f32 %v2726, %v2726
        %v2820 = vmul.f32 %v2729, %v2729
        %v2821 = vmul.f32 %v2732, %v2732
        %v2822 = vmul.f32 %v2735, %v2735
        %v2823 = vmul.f32 %v2738, %v2738
        %v2824 = vmul.f32 %v2741, %v2741
        %v2825 = vmul.f32 %v2744, %v2744
        %v2826 = vmul.f32 %v2747, %v2747
        %v2827 = vmul.f32 %v2750, %v2750
        %v2828 = vmul.f32 %v2753, %v2753
        %v2829 = vmul.f32 %v2756, %v2756
        %v2830 = vmul.f32 %v2759, %v2759
        %v2831 = vmul.f32 %v2762, %v2762
        %v2832 = vmul.f32 %v2765, %v2765
        %v2833 = vmul.f32 %v2768, %v2768
        %v2834 = vmul.f32 %v2771, %v2771
        %v2835 = vmul.f32 %v2774, %v2774
        %v2836 = vmul.f32 %v2777, %v2777
        %v2837 = vmul.f32 %v2780, %v2780
        %v2838 = vmul.f32 %v2783, %v2783
        %v2839 = vmul.f32 %v2786, %v2786
        %v2840 = vmul.f32 %v2789, %v2789
        %v2841 = vmul.f32 %v2792, %v2792
        %v2842 = vmul.f32 %v2795, %v2795
        %v2843 = vmul.f32 %v2798, %v2798
        %v2844 = vmul.f32 %v2801, %v2801
        %v2845 = vmul.f32 %v2804, %v2804
        %v2846 = vmul.f32 %v2807, %v2807
        %v2847 = vmul.f32 %v2810, %v2810
        %v2848 = vmul.f32 %v2813, %v2813
        %v2849 = vmul.f32 %v2816, %v2816
        %v2850 = vmul.f32 %v2723, %v2818
        %v2851 = vmul.f32 %v2726, %v2819
        %v2852 = vmul.f32 %v2729, %v2820
        %v2853 = vmul.f32 %v2732, %v2821
        %v2854 = vmul.f32 %v2735, %v2822
        %v2855 = vmul.f32 %v2738, %v2823
        %v2856 = vmul.f32 %v2741, %v2824
        %v2857 = vmul.f32 %v2744, %v2825
        %v2858 = vmul.f32 %v2747, %v2826
        %v2859 = vmul.f32 %v2750, %v2827
        %v2860 = vmul.f32 %v2753, %v2828
        %v2861 = vmul.f32 %v2756, %v2829
        %v2862 = vmul.f32 %v2759, %v2830
        %v2863 = vmul.f32 %v2762, %v2831
        %v2864 = vmul.f32 %v2765, %v2832
        %v2865 = vmul.f32 %v2768, %v2833
        %v2866 = vmul.f32 %v2771, %v2834
        %v2867 = vmul.f32 %v2774, %v2835
        %v2868 = vmul.f32 %v2777, %v2836
        %v2869 = vmul.f32 %v2780, %v2837
        %v2870 = vmul.f32 %v2783, %v2838
        %v2871 = vmul.f32 %v2786, %v2839
        %v2872 = vmul.f32 %v2789, %v2840
        %v2873 = vmul.f32 %v2792, %v2841
        %v2874 = vmul.f32 %v2795, %v2842
        %v2875 = vmul.f32 %v2798, %v2843
        %v2876 = vmul.f32 %v2801, %v2844
        %v2877 = vmul.f32 %v2804, %v2845
        %v2878 = vmul.f32 %v2807, %v2846
        %v2879 = vmul.f32 %v2810, %v2847
        %v2880 = vmul.f32 %v2813, %v2848
        %v2881 = vmul.f32 %v2816, %v2849
        %v2882 = vmul.f32 %v2850, 0.044715
        %v2883 = vmul.f32 %v2851, 0.044715
        %v2884 = vmul.f32 %v2852, 0.044715
        %v2885 = vmul.f32 %v2853, 0.044715
        %v2886 = vmul.f32 %v2854, 0.044715
        %v2887 = vmul.f32 %v2855, 0.044715
        %v2888 = vmul.f32 %v2856, 0.044715
        %v2889 = vmul.f32 %v2857, 0.044715
        %v2890 = vmul.f32 %v2858, 0.044715
        %v2891 = vmul.f32 %v2859, 0.044715
        %v2892 = vmul.f32 %v2860, 0.044715
        %v2893 = vmul.f32 %v2861, 0.044715
        %v2894 = vmul.f32 %v2862, 0.044715
        %v2895 = vmul.f32 %v2863, 0.044715
        %v2896 = vmul.f32 %v2864, 0.044715
        %v2897 = vmul.f32 %v2865, 0.044715
        %v2898 = vmul.f32 %v2866, 0.044715
        %v2899 = vmul.f32 %v2867, 0.044715
        %v2900 = vmul.f32 %v2868, 0.044715
        %v2901 = vmul.f32 %v2869, 0.044715
        %v2902 = vmul.f32 %v2870, 0.044715
        %v2903 = vmul.f32 %v2871, 0.044715
        %v2904 = vmul.f32 %v2872, 0.044715
        %v2905 = vmul.f32 %v2873, 0.044715
        %v2906 = vmul.f32 %v2874, 0.044715
        %v2907 = vmul.f32 %v2875, 0.044715
        %v2908 = vmul.f32 %v2876, 0.044715
        %v2909 = vmul.f32 %v2877, 0.044715
        %v2910 = vmul.f32 %v2878, 0.044715
        %v2911 = vmul.f32 %v2879, 0.044715
        %v2912 = vmul.f32 %v2880, 0.044715
        %v2913 = vmul.f32 %v2881, 0.044715
        %v2914 = vadd.f32 %v2723, %v2882
        %v2915 = vadd.f32 %v2726, %v2883
        %v2916 = vadd.f32 %v2729, %v2884
        %v2917 = vadd.f32 %v2732, %v2885
        %v2918 = vadd.f32 %v2735, %v2886
        %v2919 = vadd.f32 %v2738, %v2887
        %v2920 = vadd.f32 %v2741, %v2888
        %v2921 = vadd.f32 %v2744, %v2889
        %v2922 = vadd.f32 %v2747, %v2890
        %v2923 = vadd.f32 %v2750, %v2891
        %v2924 = vadd.f32 %v2753, %v2892
        %v2925 = vadd.f32 %v2756, %v2893
        %v2926 = vadd.f32 %v2759, %v2894
        %v2927 = vadd.f32 %v2762, %v2895
        %v2928 = vadd.f32 %v2765, %v2896
        %v2929 = vadd.f32 %v2768, %v2897
        %v2930 = vadd.f32 %v2771, %v2898
        %v2931 = vadd.f32 %v2774, %v2899
        %v2932 = vadd.f32 %v2777, %v2900
        %v2933 = vadd.f32 %v2780, %v2901
        %v2934 = vadd.f32 %v2783, %v2902
        %v2935 = vadd.f32 %v2786, %v2903
        %v2936 = vadd.f32 %v2789, %v2904
        %v2937 = vadd.f32 %v2792, %v2905
        %v2938 = vadd.f32 %v2795, %v2906
        %v2939 = vadd.f32 %v2798, %v2907
        %v2940 = vadd.f32 %v2801, %v2908
        %v2941 = vadd.f32 %v2804, %v2909
        %v2942 = vadd.f32 %v2807, %v2910
        %v2943 = vadd.f32 %v2810, %v2911
        %v2944 = vadd.f32 %v2813, %v2912
        %v2945 = vadd.f32 %v2816, %v2913
        %v2946 = vmul.f32 %v2914, 0.7978846
        %v2947 = vmul.f32 %v2915, 0.7978846
        %v2948 = vmul.f32 %v2916, 0.7978846
        %v2949 = vmul.f32 %v2917, 0.7978846
        %v2950 = vmul.f32 %v2918, 0.7978846
        %v2951 = vmul.f32 %v2919, 0.7978846
        %v2952 = vmul.f32 %v2920, 0.7978846
        %v2953 = vmul.f32 %v2921, 0.7978846
        %v2954 = vmul.f32 %v2922, 0.7978846
        %v2955 = vmul.f32 %v2923, 0.7978846
        %v2956 = vmul.f32 %v2924, 0.7978846
        %v2957 = vmul.f32 %v2925, 0.7978846
        %v2958 = vmul.f32 %v2926, 0.7978846
        %v2959 = vmul.f32 %v2927, 0.7978846
        %v2960 = vmul.f32 %v2928, 0.7978846
        %v2961 = vmul.f32 %v2929, 0.7978846
        %v2962 = vmul.f32 %v2930, 0.7978846
        %v2963 = vmul.f32 %v2931, 0.7978846
        %v2964 = vmul.f32 %v2932, 0.7978846
        %v2965 = vmul.f32 %v2933, 0.7978846
        %v2966 = vmul.f32 %v2934, 0.7978846
        %v2967 = vmul.f32 %v2935, 0.7978846
        %v2968 = vmul.f32 %v2936, 0.7978846
        %v2969 = vmul.f32 %v2937, 0.7978846
        %v2970 = vmul.f32 %v2938, 0.7978846
        %v2971 = vmul.f32 %v2939, 0.7978846
        %v2972 = vmul.f32 %v2940, 0.7978846
        %v2973 = vmul.f32 %v2941, 0.7978846
        %v2974 = vmul.f32 %v2942, 0.7978846
        %v2975 = vmul.f32 %v2943, 0.7978846
        %v2976 = vmul.f32 %v2944, 0.7978846
        %v2977 = vmul.f32 %v2945, 0.7978846
        %v2978 = vtanh.pop %v2946
        %v2979 = vtanh.pop %v2947
        %v2980 = vtanh.pop %v2948
        %v2981 = vtanh.pop %v2949
        %v2982 = vtanh.pop %v2950
        %v2983 = vtanh.pop %v2951
        %v2984 = vtanh.pop %v2952
        %v2985 = vtanh.pop %v2953
        %v2986 = vtanh.pop %v2954
        %v2987 = vtanh.pop %v2955
        %v2988 = vtanh.pop %v2956
        %v2989 = vtanh.pop %v2957
        %v2990 = vtanh.pop %v2958
        %v2991 = vtanh.pop %v2959
        %v2992 = vtanh.pop %v2960
        %v2993 = vtanh.pop %v2961
        %v2994 = vtanh.pop %v2962
        %v2995 = vtanh.pop %v2963
        %v2996 = vtanh.pop %v2964
        %v2997 = vtanh.pop %v2965
        %v2998 = vtanh.pop %v2966
        %v2999 = vtanh.pop %v2967
        %v3000 = vtanh.pop %v2968
        %v3001 = vtanh.pop %v2969
        %v3002 = vtanh.pop %v2970
        %v3003 = vtanh.pop %v2971
        %v3004 = vtanh.pop %v2972
        %v3005 = vtanh.pop %v2973
        %v3006 = vtanh.pop %v2974
        %v3007 = vtanh.pop %v2975
        %v3008 = vtanh.pop %v2976
        %v3009 = vtanh.pop %v2977
        %v3010 = vadd.f32 %v2978, 1.0
        %v3011 = vadd.f32 %v2979, 1.0
        %v3012 = vadd.f32 %v2980, 1.0
        %v3013 = vadd.f32 %v2981, 1.0
        %v3014 = vadd.f32 %v2982, 1.0
        %v3015 = vadd.f32 %v2983, 1.0
        %v3016 = vadd.f32 %v2984, 1.0
        %v3017 = vadd.f32 %v2985, 1.0
        %v3018 = vadd.f32 %v2986, 1.0
        %v3019 = vadd.f32 %v2987, 1.0
        %v3020 = vadd.f32 %v2988, 1.0
        %v3021 = vadd.f32 %v2989, 1.0
        %v3022 = vadd.f32 %v2990, 1.0
        %v3023 = vadd.f32 %v2991, 1.0
        %v3024 = vadd.f32 %v2992, 1.0
        %v3025 = vadd.f32 %v2993, 1.0
        %v3026 = vadd.f32 %v2994, 1.0
        %v3027 = vadd.f32 %v2995, 1.0
        %v3028 = vadd.f32 %v2996, 1.0
        %v3029 = vadd.f32 %v2997, 1.0
        %v3030 = vadd.f32 %v2998, 1.0
        %v3031 = vadd.f32 %v2999, 1.0
        %v3032 = vadd.f32 %v3000, 1.0
        %v3033 = vadd.f32 %v3001, 1.0
        %v3034 = vadd.f32 %v3002, 1.0
        %v3035 = vadd.f32 %v3003, 1.0
        %v3036 = vadd.f32 %v3004, 1.0
        %v3037 = vadd.f32 %v3005, 1.0
        %v3038 = vadd.f32 %v3006, 1.0
        %v3039 = vadd.f32 %v3007, 1.0
        %v3040 = vadd.f32 %v3008, 1.0
        %v3041 = vadd.f32 %v3009, 1.0
        %v3042 = vmul.f32 %v3010, 0.5
        %v3043 = vmul.f32 %v3011, 0.5
        %v3044 = vmul.f32 %v3012, 0.5
        %v3045 = vmul.f32 %v3013, 0.5
        %v3046 = vmul.f32 %v3014, 0.5
        %v3047 = vmul.f32 %v3015, 0.5
        %v3048 = vmul.f32 %v3016, 0.5
        %v3049 = vmul.f32 %v3017, 0.5
        %v3050 = vmul.f32 %v3018, 0.5
        %v3051 = vmul.f32 %v3019, 0.5
        %v3052 = vmul.f32 %v3020, 0.5
        %v3053 = vmul.f32 %v3021, 0.5
        %v3054 = vmul.f32 %v3022, 0.5
        %v3055 = vmul.f32 %v3023, 0.5
        %v3056 = vmul.f32 %v3024, 0.5
        %v3057 = vmul.f32 %v3025, 0.5
        %v3058 = vmul.f32 %v3026, 0.5
        %v3059 = vmul.f32 %v3027, 0.5
        %v3060 = vmul.f32 %v3028, 0.5
        %v3061 = vmul.f32 %v3029, 0.5
        %v3062 = vmul.f32 %v3030, 0.5
        %v3063 = vmul.f32 %v3031, 0.5
        %v3064 = vmul.f32 %v3032, 0.5
        %v3065 = vmul.f32 %v3033, 0.5
        %v3066 = vmul.f32 %v3034, 0.5
        %v3067 = vmul.f32 %v3035, 0.5
        %v3068 = vmul.f32 %v3036, 0.5
        %v3069 = vmul.f32 %v3037, 0.5
        %v3070 = vmul.f32 %v3038, 0.5
        %v3071 = vmul.f32 %v3039, 0.5
        %v3072 = vmul.f32 %v3040, 0.5
        %v3073 = vmul.f32 %v3041, 0.5
        %v3074 = vmul.f32 %v2723, %v3042
        %v3075 = vmul.f32 %v2726, %v3043
        %v3076 = vmul.f32 %v2729, %v3044
        %v3077 = vmul.f32 %v2732, %v3045
        %v3078 = vmul.f32 %v2735, %v3046
        %v3079 = vmul.f32 %v2738, %v3047
        %v3080 = vmul.f32 %v2741, %v3048
        %v3081 = vmul.f32 %v2744, %v3049
        %v3082 = vmul.f32 %v2747, %v3050
        %v3083 = vmul.f32 %v2750, %v3051
        %v3084 = vmul.f32 %v2753, %v3052
        %v3085 = vmul.f32 %v2756, %v3053
        %v3086 = vmul.f32 %v2759, %v3054
        %v3087 = vmul.f32 %v2762, %v3055
        %v3088 = vmul.f32 %v2765, %v3056
        %v3089 = vmul.f32 %v2768, %v3057
        %v3090 = vmul.f32 %v2771, %v3058
        %v3091 = vmul.f32 %v2774, %v3059
        %v3092 = vmul.f32 %v2777, %v3060
        %v3093 = vmul.f32 %v2780, %v3061
        %v3094 = vmul.f32 %v2783, %v3062
        %v3095 = vmul.f32 %v2786, %v3063
        %v3096 = vmul.f32 %v2789, %v3064
        %v3097 = vmul.f32 %v2792, %v3065
        %v3098 = vmul.f32 %v2795, %v3066
        %v3099 = vmul.f32 %v2798, %v3067
        %v3100 = vmul.f32 %v2801, %v3068
        %v3101 = vmul.f32 %v2804, %v3069
        %v3102 = vmul.f32 %v2807, %v3070
        %v3103 = vmul.f32 %v2810, %v3071
        %v3104 = vmul.f32 %v2813, %v3072
        %v3105 = vmul.f32 %v2816, %v3073
        %vm3138 = vcmask 1040384
        %v3139 = vrot.slane %v3074, 7
        %v3140 = vrot.slane %v3075, 7
        %v3141 = vsel %vm3138, %v3139, %v3140
        %v3142 = vrot.slane %v3076, 7
        %v3143 = vrot.slane %v3077, 7
        %v3144 = vsel %vm3138, %v3142, %v3143
        %v3145 = vrot.slane %v3078, 7
        %v3146 = vrot.slane %v3079, 7
        %v3147 = vsel %vm3138, %v3145, %v3146
        %v3148 = vrot.slane %v3080, 7
        %v3149 = vrot.slane %v3081, 7
        %v3150 = vsel %vm3138, %v3148, %v3149
        %v3151 = vrot.slane %v3082, 7
        %v3152 = vrot.slane %v3083, 7
        %v3153 = vsel %vm3138, %v3151, %v3152
        %v3154 = vrot.slane %v3084, 7
        %v3155 = vrot.slane %v3085, 7
        %v3156 = vsel %vm3138, %v3154, %v3155
        %v3157 = vrot.slane %v3086, 7
        %v3158 = vrot.slane %v3087, 7
        %v3159 = vsel %vm3138, %v3157, %v3158
        %v3160 = vrot.slane %v3088, 7
        %v3161 = vrot.slane %v3089, 7
        %v3162 = vsel %vm3138, %v3160, %v3161
        %v3163 = vrot.slane %v3090, 7
        %v3164 = vrot.slane %v3091, 7
        %v3165 = vsel %vm3138, %v3163, %v3164
        %v3166 = vrot.slane %v3092, 7
        %v3167 = vrot.slane %v3093, 7
        %v3168 = vsel %vm3138, %v3166, %v3167
        %v3169 = vrot.slane %v3094, 7
        %v3170 = vrot.slane %v3095, 7
        %v3171 = vsel %vm3138, %v3169, %v3170
        %v3172 = vrot.slane %v3096, 7
        %v3173 = vrot.slane %v3097, 7
        %v3174 = vsel %vm3138, %v3172, %v3173
        %v3175 = vrot.slane %v3098, 7
        %v3176 = vrot.slane %v3099, 7
        %v3177 = vsel %vm3138, %v3175, %v3176
        %v3178 = vrot.slane %v3100, 7
        %v3179 = vrot.slane %v3101, 7
        %v3180 = vsel %vm3138, %v3178, %v3179
        %v3181 = vrot.slane %v3102, 7
        %v3182 = vrot.slane %v3103, 7
        %v3183 = vsel %vm3138, %v3181, %v3182
        %v3184 = vrot.slane %v3104, 7
        %v3185 = vrot.slane %v3105, 7
        %v3186 = vsel %vm3138, %v3184, %v3185
        %v3235 = vsel %vm3138, 0.0, %v3139
        %v3236 = vsel %vm3138, 0.0, %v3142
        %v3237 = vsel %vm3138, 0.0, %v3145
        %v3238 = vsel %vm3138, 0.0, %v3148
        %v3239 = vsel %vm3138, 0.0, %v3151
        %v3240 = vsel %vm3138, 0.0, %v3154
        %v3241 = vsel %vm3138, 0.0, %v3157
        %v3242 = vsel %vm3138, 0.0, %v3160
        %v3243 = vsel %vm3138, 0.0, %v3163
        %v3244 = vsel %vm3138, 0.0, %v3166
        %v3245 = vsel %vm3138, 0.0, %v3169
        %v3246 = vsel %vm3138, 0.0, %v3172
        %v3247 = vsel %vm3138, 0.0, %v3175
        %v3248 = vsel %vm3138, 0.0, %v3178
        %v3249 = vsel %vm3138, 0.0, %v3181
        %v3250 = vsel %vm3138, 0.0, %v3184
        %v3251 = vsel %vm3138, %v3140, 0.0
        %v3252 = vsel %vm3138, %v3143, 0.0
        %v3253 = vsel %vm3138, %v3146, 0.0
        %v3254 = vsel %vm3138, %v3149, 0.0
        %v3255 = vsel %vm3138, %v3152, 0.0
        %v3256 = vsel %vm3138, %v3155, 0.0
        %v3257 = vsel %vm3138, %v3158, 0.0
        %v3258 = vsel %vm3138, %v3161, 0.0
        %v3259 = vsel %vm3138, %v3164, 0.0
        %v3260 = vsel %vm3138, %v3167, 0.0
        %v3261 = vsel %vm3138, %v3170, 0.0
        %v3262 = vsel %vm3138, %v3173, 0.0
        %v3263 = vsel %vm3138, %v3176, 0.0
        %v3264 = vsel %vm3138, %v3179, 0.0
        %v3265 = vsel %vm3138, %v3182, 0.0
        %v3266 = vsel %vm3138, %v3185, 0.0
        %s3267 = smul.u32 %s1858, 432
        %s3268 = sadd.s32 24, %s3267
        %s3269 = scalar_lea.vmem [#allocation2], %s3268
        %vm3270 = vcmask 523264
        %3271 = vst.msk [vmem:[%s3269] sm:$0xff] %vm3270, %v3235
        %3272 = vst.msk [vmem:[%s3269 + $0x8] sm:$0xff] %vm3270, %v3141
        %vm3273 = vcmask 517120
        %3274 = vst.msk [vmem:[%s3269 + $0x10] sm:$0x3] %vm3273, %v3251
        %3275 = vst.msk [vmem:[%s3269 + $0x18] sm:$0xff] %vm3270, %v3236
        %3276 = vst.msk [vmem:[%s3269 + $0x20] sm:$0xff] %vm3270, %v3144
        %3277 = vst.msk [vmem:[%s3269 + $0x28] sm:$0x3] %vm3273, %v3252
        %3278 = vst.msk [vmem:[%s3269 + $0x30] sm:$0xff] %vm3270, %v3237
        %3279 = vst.msk [vmem:[%s3269 + $0x38] sm:$0xff] %vm3270, %v3147
        %3280 = vst.msk [vmem:[%s3269 + $0x40] sm:$0x3] %vm3273, %v3253
        %3281 = vst.msk [vmem:[%s3269 + $0x48] sm:$0xff] %vm3270, %v3238
        %3282 = vst.msk [vmem:[%s3269 + $0x50] sm:$0xff] %vm3270, %v3150
        %3283 = vst.msk [vmem:[%s3269 + $0x58] sm:$0x3] %vm3273, %v3254
        %3284 = vst.msk [vmem:[%s3269 + $0x60] sm:$0xff] %vm3270, %v3239
        %3285 = vst.msk [vmem:[%s3269 + $0x68] sm:$0xff] %vm3270, %v3153
        %3286 = vst.msk [vmem:[%s3269 + $0x70] sm:$0x3] %vm3273, %v3255
        %3287 = vst.msk [vmem:[%s3269 + $0x78] sm:$0xff] %vm3270, %v3240
        %3288 = vst.msk [vmem:[%s3269 + $0x80] sm:$0xff] %vm3270, %v3156
        %3289 = vst.msk [vmem:[%s3269 + $0x88] sm:$0x3] %vm3273, %v3256
        %3290 = vst.msk [vmem:[%s3269 + $0x90] sm:$0xff] %vm3270, %v3241
        %3291 = vst.msk [vmem:[%s3269 + $0x98] sm:$0xff] %vm3270, %v3159
        %3292 = vst.msk [vmem:[%s3269 + $0xa0] sm:$0x3] %vm3273, %v3257
        %3293 = vst.msk [vmem:[%s3269 + $0xa8] sm:$0xff] %vm3270, %v3242
        %3294 = vst.msk [vmem:[%s3269 + $0xb0] sm:$0xff] %vm3270, %v3162
        %3295 = vst.msk [vmem:[%s3269 + $0xb8] sm:$0x3] %vm3273, %v3258
        %3296 = vst.msk [vmem:[%s3269 + $0xc0] sm:$0xff] %vm3270, %v3243
        %3297 = vst.msk [vmem:[%s3269 + $0xc8] sm:$0xff] %vm3270, %v3165
        %3298 = vst.msk [vmem:[%s3269 + $0xd0] sm:$0x3] %vm3273, %v3259
        %3299 = vst.msk [vmem:[%s3269 + $0xd8] sm:$0xff] %vm3270, %v3244
        %3300 = vst.msk [vmem:[%s3269 + $0xe0] sm:$0xff] %vm3270, %v3168
        %3301 = vst.msk [vmem:[%s3269 + $0xe8] sm:$0x3] %vm3273, %v3260
        %3302 = vst.msk [vmem:[%s3269 + $0xf0] sm:$0xff] %vm3270, %v3245
        %3303 = vst.msk [vmem:[%s3269 + $0xf8] sm:$0xff] %vm3270, %v3171
        %3304 = vst.msk [vmem:[%s3269 + $0x100] sm:$0x3] %vm3273, %v3261
        %3305 = vst.msk [vmem:[%s3269 + $0x108] sm:$0xff] %vm3270, %v3246
        %3306 = vst.msk [vmem:[%s3269 + $0x110] sm:$0xff] %vm3270, %v3174
        %3307 = vst.msk [vmem:[%s3269 + $0x118] sm:$0x3] %vm3273, %v3262
        %3308 = vst.msk [vmem:[%s3269 + $0x120] sm:$0xff] %vm3270, %v3247
        %3309 = vst.msk [vmem:[%s3269 + $0x128] sm:$0xff] %vm3270, %v3177
        %3310 = vst.msk [vmem:[%s3269 + $0x130] sm:$0x3] %vm3273, %v3263
        %3311 = vst.msk [vmem:[%s3269 + $0x138] sm:$0xff] %vm3270, %v3248
        %3312 = vst.msk [vmem:[%s3269 + $0x140] sm:$0xff] %vm3270, %v3180
        %3313 = vst.msk [vmem:[%s3269 + $0x148] sm:$0x3] %vm3273, %v3264
        %3314 = vst.msk [vmem:[%s3269 + $0x150] sm:$0xff] %vm3270, %v3249
        %3315 = vst.msk [vmem:[%s3269 + $0x158] sm:$0xff] %vm3270, %v3183
        %3316 = vst.msk [vmem:[%s3269 + $0x160] sm:$0x3] %vm3273, %v3265
        %3317 = vst.msk [vmem:[%s3269 + $0x168] sm:$0xff] %vm3270, %v3250
        %3318 = vst.msk [vmem:[%s3269 + $0x170] sm:$0xff] %vm3270, %v3186
        %3319 = vst.msk [vmem:[%s3269 + $0x178] sm:$0x3] %vm3273, %v3266
      $region48: #{fab_forward.3} parent=39 // pred_fallthru
        _
      %p3320 = scmp.eq.s32.totalorder %s1845, 2
      // Predicated region
      $region49: #{fab_forward.3} parent=39 // pred_check
        %p3321 = pneg %p3320
      $region50: #{fab_forward.3} parent=39 // pred_check_branch
        %3323 = sbr.rel (%p3321) target = $region52
      $region51: #{fab_forward.3} parent=39 // pred_region
        %s3324 = smul.u32 %s1858, 432
        %s3325 = scalar_lea.vmem [#allocation2], %s3324
        %vm3326 = vcmask 523264
        %3327 = vst.msk [vmem:[%s3325] sm:$0xff] %vm3326, 0.0
        %3328 = vst.msk [vmem:[%s3325 + $0x8] sm:$0xff] %vm3326, 0.0
        %vm3329 = vcmask 517120
        %3330 = vst.msk [vmem:[%s3325 + $0x10] sm:$0x3] %vm3329, 0.0
        %3331 = vst.msk [vmem:[%s3325 + $0x18] sm:$0xff] %vm3326, 0.0
        %3332 = vst.msk [vmem:[%s3325 + $0x20] sm:$0xff] %vm3326, 0.0
        %3333 = vst.msk [vmem:[%s3325 + $0x28] sm:$0x3] %vm3329, 0.0
        %3334 = vst.msk [vmem:[%s3325 + $0x30] sm:$0xff] %vm3326, 0.0
        %3335 = vst.msk [vmem:[%s3325 + $0x38] sm:$0xff] %vm3326, 0.0
        %3336 = vst.msk [vmem:[%s3325 + $0x40] sm:$0x3] %vm3329, 0.0
        %3337 = vst.msk [vmem:[%s3325 + $0x48] sm:$0xff] %vm3326, 0.0
        %3338 = vst.msk [vmem:[%s3325 + $0x50] sm:$0xff] %vm3326, 0.0
        %3339 = vst.msk [vmem:[%s3325 + $0x58] sm:$0x3] %vm3329, 0.0
        %3340 = vst.msk [vmem:[%s3325 + $0x60] sm:$0xff] %vm3326, 0.0
        %3341 = vst.msk [vmem:[%s3325 + $0x68] sm:$0xff] %vm3326, 0.0
        %3342 = vst.msk [vmem:[%s3325 + $0x70] sm:$0x3] %vm3329, 0.0
        %3343 = vst.msk [vmem:[%s3325 + $0x78] sm:$0xff] %vm3326, 0.0
        %3344 = vst.msk [vmem:[%s3325 + $0x80] sm:$0xff] %vm3326, 0.0
        %3345 = vst.msk [vmem:[%s3325 + $0x88] sm:$0x3] %vm3329, 0.0
        %3346 = vst.msk [vmem:[%s3325 + $0x90] sm:$0xff] %vm3326, 0.0
        %3347 = vst.msk [vmem:[%s3325 + $0x98] sm:$0xff] %vm3326, 0.0
        %3348 = vst.msk [vmem:[%s3325 + $0xa0] sm:$0x3] %vm3329, 0.0
        %3349 = vst.msk [vmem:[%s3325 + $0xa8] sm:$0xff] %vm3326, 0.0
        %3350 = vst.msk [vmem:[%s3325 + $0xb0] sm:$0xff] %vm3326, 0.0
        %3351 = vst.msk [vmem:[%s3325 + $0xb8] sm:$0x3] %vm3329, 0.0
        %3352 = vst.msk [vmem:[%s3325 + $0xc0] sm:$0xff] %vm3326, 0.0
        %3353 = vst.msk [vmem:[%s3325 + $0xc8] sm:$0xff] %vm3326, 0.0
        %3354 = vst.msk [vmem:[%s3325 + $0xd0] sm:$0x3] %vm3329, 0.0
        %3355 = vst.msk [vmem:[%s3325 + $0xd8] sm:$0xff] %vm3326, 0.0
        %3356 = vst.msk [vmem:[%s3325 + $0xe0] sm:$0xff] %vm3326, 0.0
        %3357 = vst.msk [vmem:[%s3325 + $0xe8] sm:$0x3] %vm3329, 0.0
        %3358 = vst.msk [vmem:[%s3325 + $0xf0] sm:$0xff] %vm3326, 0.0
        %3359 = vst.msk [vmem:[%s3325 + $0xf8] sm:$0xff] %vm3326, 0.0
        %3360 = vst.msk [vmem:[%s3325 + $0x100] sm:$0x3] %vm3329, 0.0
        %3361 = vst.msk [vmem:[%s3325 + $0x108] sm:$0xff] %vm3326, 0.0
        %3362 = vst.msk [vmem:[%s3325 + $0x110] sm:$0xff] %vm3326, 0.0
        %3363 = vst.msk [vmem:[%s3325 + $0x118] sm:$0x3] %vm3329, 0.0
        %3364 = vst.msk [vmem:[%s3325 + $0x120] sm:$0xff] %vm3326, 0.0
        %3365 = vst.msk [vmem:[%s3325 + $0x128] sm:$0xff] %vm3326, 0.0
        %3366 = vst.msk [vmem:[%s3325 + $0x130] sm:$0x3] %vm3329, 0.0
        %3367 = vst.msk [vmem:[%s3325 + $0x138] sm:$0xff] %vm3326, 0.0
        %3368 = vst.msk [vmem:[%s3325 + $0x140] sm:$0xff] %vm3326, 0.0
        %3369 = vst.msk [vmem:[%s3325 + $0x148] sm:$0x3] %vm3329, 0.0
        %3370 = vst.msk [vmem:[%s3325 + $0x150] sm:$0xff] %vm3326, 0.0
        %3371 = vst.msk [vmem:[%s3325 + $0x158] sm:$0xff] %vm3326, 0.0
        %3372 = vst.msk [vmem:[%s3325 + $0x160] sm:$0x3] %vm3329, 0.0
        %3373 = vst.msk [vmem:[%s3325 + $0x168] sm:$0xff] %vm3326, 0.0
        %3374 = vst.msk [vmem:[%s3325 + $0x170] sm:$0xff] %vm3326, 0.0
        %3375 = vst.msk [vmem:[%s3325 + $0x178] sm:$0x3] %vm3329, 0.0
        %3376 = vst.msk [vmem:[%s3325 + $0x180] sm:$0xff] %vm3326, 0.0
        %3377 = vst.msk [vmem:[%s3325 + $0x188] sm:$0xff] %vm3326, 0.0
        %3378 = vst.msk [vmem:[%s3325 + $0x190] sm:$0x3] %vm3329, 0.0
        %3379 = vst.msk [vmem:[%s3325 + $0x198] sm:$0xff] %vm3326, 0.0
        %3380 = vst.msk [vmem:[%s3325 + $0x1a0] sm:$0xff] %vm3326, 0.0
        %3381 = vst.msk [vmem:[%s3325 + $0x1a8] sm:$0x3] %vm3329, 0.0
      $region52: #{fab_forward.3} parent=39 // pred_fallthru
        _
      %v3382 = vld [vmem:[%s3] sm:$0x1]
      %v3383 = vld [vmem:[%s3 + $0x1] sm:$0x1]
      %v3384 = vld [vmem:[%s3 + $0x2] sm:$0x1]
      %v3385 = vld [vmem:[%s3 + $0x3] sm:$0x1]
      %v3386 = vld [vmem:[%s3 + $0x4] sm:$0x1]
      %v3387 = vld [vmem:[%s3 + $0x5] sm:$0x1]
      %v3388 = vld [vmem:[%s3 + $0x6] sm:$0x1]
      %v3389 = vld [vmem:[%s3 + $0x7] sm:$0x1]
      %v3390 = vld [vmem:[%s3 + $0x8] sm:$0x1]
      %v3391 = vld [vmem:[%s3 + $0x9] sm:$0x1]
      %v3392 = vld [vmem:[%s3 + $0xa] sm:$0x1]
      %v3393 = vld [vmem:[%s3 + $0xb] sm:$0x1]
      %v3394 = vld [vmem:[%s3 + $0xc] sm:$0x1]
      %v3395 = vld [vmem:[%s3 + $0xd] sm:$0x1]
      %v3396 = vld [vmem:[%s3 + $0xe] sm:$0x1]
      %v3397 = vld [vmem:[%s3 + $0xf] sm:$0x1]
      %v3398 = vld [vmem:[%s3 + $0x10] sm:$0x1]
      %v3399 = vld [vmem:[%s3 + $0x11] sm:$0x1]
      %v3400 = vld [vmem:[%s3 + $0x12] sm:$0x1]
      %v3401 = vld [vmem:[%s3 + $0x13] sm:$0x1]
      %v3402 = vld [vmem:[%s3 + $0x14] sm:$0x1]
      %v3403 = vld [vmem:[%s3 + $0x15] sm:$0x1]
      %v3404 = vld [vmem:[%s3 + $0x16] sm:$0x1]
      %v3405 = vld [vmem:[%s3 + $0x17] sm:$0x1]
      %v3406 = vld [vmem:[%s3 + $0x18] sm:$0x1]
      %v3407 = vld [vmem:[%s3 + $0x19] sm:$0x1]
      %v3408 = vld [vmem:[%s3 + $0x1a] sm:$0x1]
      %s3409 = sadd.s32 %s21, 2
      %p3410 = scmp.lt.s32.totalorder %s3409, 0
      %s3411 = ssub.s32 0, %s3409
      %s3412 = scalar_select %p3410, %s3411, %s3409
      %s3413 = sdiv.u32.pop %s3412, 3
      %s3414 = srem.u32.pop %s3412, 3
      %s3415 = ssub.s32 0, %s3414
      %s3416 = scalar_select %p3410, %s3415, %s3414
      %p3417 = scmp.ne.s32.totalorder %s3416, 0
      %p3418 = scmp.lt.s32.totalorder %s3416, 0
      %p3419 = pnand %p3418, %p3417
      %p3420 = pneg %p3419
      %s3421 = sadd.s32 %s3416, 3
      %s3422 = scalar_select %p3420, %s3421, %s3416
      %s3423 = smul.u32 %s3422, 432
      %s3424 = scalar_lea.vmem [#allocation2], %s3423
      %v3425 = vld [vmem:[%s3424] sm:$0xff]
      %v3426 = vld [vmem:[%s3424 + $0x8] sm:$0xff]
      %v3427 = vld [vmem:[%s3424 + $0x10] sm:$0x3]
      %v3428 = vld [vmem:[%s3424 + $0x18] sm:$0xff]
      %v3429 = vld [vmem:[%s3424 + $0x20] sm:$0xff]
      %v3430 = vld [vmem:[%s3424 + $0x28] sm:$0x3]
      %v3431 = vld [vmem:[%s3424 + $0x30] sm:$0xff]
      %v3432 = vld [vmem:[%s3424 + $0x38] sm:$0xff]
      %v3433 = vld [vmem:[%s3424 + $0x40] sm:$0x3]
      %v3434 = vld [vmem:[%s3424 + $0x48] sm:$0xff]
      %v3435 = vld [vmem:[%s3424 + $0x50] sm:$0xff]
      %v3436 = vld [vmem:[%s3424 + $0x58] sm:$0x3]
      %v3437 = vld [vmem:[%s3424 + $0x60] sm:$0xff]
      %v3438 = vld [vmem:[%s3424 + $0x68] sm:$0xff]
      %v3439 = vld [vmem:[%s3424 + $0x70] sm:$0x3]
      %v3440 = vld [vmem:[%s3424 + $0x78] sm:$0xff]
      %v3441 = vld [vmem:[%s3424 + $0x80] sm:$0xff]
      %v3442 = vld [vmem:[%s3424 + $0x88] sm:$0x3]
      %v3443 = vld [vmem:[%s3424 + $0x90] sm:$0xff]
      %v3444 = vld [vmem:[%s3424 + $0x98] sm:$0xff]
      %v3445 = vld [vmem:[%s3424 + $0xa0] sm:$0x3]
      %v3446 = vld [vmem:[%s3424 + $0xa8] sm:$0xff]
      %v3447 = vld [vmem:[%s3424 + $0xb0] sm:$0xff]
      %v3448 = vld [vmem:[%s3424 + $0xb8] sm:$0x3]
      %v3449 = vld [vmem:[%s3424 + $0xc0] sm:$0xff]
      %v3450 = vld [vmem:[%s3424 + $0xc8] sm:$0xff]
      %v3451 = vld [vmem:[%s3424 + $0xd0] sm:$0x3]
      %v3452 = vld [vmem:[%s3424 + $0xd8] sm:$0xff]
      %v3453 = vld [vmem:[%s3424 + $0xe0] sm:$0xff]
      %v3454 = vld [vmem:[%s3424 + $0xe8] sm:$0x3]
      %v3455 = vld [vmem:[%s3424 + $0xf0] sm:$0xff]
      %v3456 = vld [vmem:[%s3424 + $0xf8] sm:$0xff]
      %v3457 = vld [vmem:[%s3424 + $0x100] sm:$0x3]
      %v3458 = vld [vmem:[%s3424 + $0x108] sm:$0xff]
      %v3459 = vld [vmem:[%s3424 + $0x110] sm:$0xff]
      %v3460 = vld [vmem:[%s3424 + $0x118] sm:$0x3]
      %v3461 = vld [vmem:[%s3424 + $0x120] sm:$0xff]
      %v3462 = vld [vmem:[%s3424 + $0x128] sm:$0xff]
      %v3463 = vld [vmem:[%s3424 + $0x130] sm:$0x3]
      %v3464 = vld [vmem:[%s3424 + $0x138] sm:$0xff]
      %v3465 = vld [vmem:[%s3424 + $0x140] sm:$0xff]
      %v3466 = vld [vmem:[%s3424 + $0x148] sm:$0x3]
      %v3467 = vld [vmem:[%s3424 + $0x150] sm:$0xff]
      %v3468 = vld [vmem:[%s3424 + $0x158] sm:$0xff]
      %v3469 = vld [vmem:[%s3424 + $0x160] sm:$0x3]
      %v3470 = vld [vmem:[%s3424 + $0x168] sm:$0xff]
      %v3471 = vld [vmem:[%s3424 + $0x170] sm:$0xff]
      %v3472 = vld [vmem:[%s3424 + $0x178] sm:$0x3]
      %v3473 = vld [vmem:[%s3424 + $0x180] sm:$0xff]
      %v3474 = vld [vmem:[%s3424 + $0x188] sm:$0xff]
      %v3475 = vld [vmem:[%s3424 + $0x190] sm:$0x3]
      %v3476 = vld [vmem:[%s3424 + $0x198] sm:$0xff]
      %v3477 = vld [vmem:[%s3424 + $0x1a0] sm:$0xff]
      %v3478 = vld [vmem:[%s3424 + $0x1a8] sm:$0x3]
      %v3479 = vperm.slane %v3382, 0
      %v3480 = vmul.f32 %v3425, %v3479
      %v3481 = vmul.f32 %v3426, %v3479
      %v3482 = vmul.f32 %v3428, %v3479
      %v3483 = vmul.f32 %v3429, %v3479
      %v3484 = vmul.f32 %v3431, %v3479
      %v3485 = vmul.f32 %v3432, %v3479
      %v3486 = vmul.f32 %v3434, %v3479
      %v3487 = vmul.f32 %v3435, %v3479
      %v3488 = vmul.f32 %v3437, %v3479
      %v3489 = vmul.f32 %v3438, %v3479
      %v3490 = vmul.f32 %v3440, %v3479
      %v3491 = vmul.f32 %v3441, %v3479
      %v3492 = vmul.f32 %v3443, %v3479
      %v3493 = vmul.f32 %v3444, %v3479
      %v3494 = vmul.f32 %v3446, %v3479
      %v3495 = vmul.f32 %v3447, %v3479
      %v3496 = vmul.f32 %v3449, %v3479
      %v3497 = vmul.f32 %v3450, %v3479
      %v3498 = vmul.f32 %v3452, %v3479
      %v3499 = vmul.f32 %v3453, %v3479
      %v3500 = vmul.f32 %v3455, %v3479
      %v3501 = vmul.f32 %v3456, %v3479
      %v3502 = vmul.f32 %v3458, %v3479
      %v3503 = vmul.f32 %v3459, %v3479
      %v3504 = vmul.f32 %v3461, %v3479
      %v3505 = vmul.f32 %v3462, %v3479
      %v3506 = vmul.f32 %v3464, %v3479
      %v3507 = vmul.f32 %v3465, %v3479
      %v3508 = vmul.f32 %v3467, %v3479
      %v3509 = vmul.f32 %v3468, %v3479
      %v3510 = vmul.f32 %v3470, %v3479
      %v3511 = vmul.f32 %v3471, %v3479
      %v3512 = vadd.f32 %v3480, 0.0
      %v3513 = vadd.f32 %v3481, 0.0
      %v3514 = vadd.f32 %v3482, 0.0
      %v3515 = vadd.f32 %v3483, 0.0
      %v3516 = vadd.f32 %v3484, 0.0
      %v3517 = vadd.f32 %v3485, 0.0
      %v3518 = vadd.f32 %v3486, 0.0
      %v3519 = vadd.f32 %v3487, 0.0
      %v3520 = vadd.f32 %v3488, 0.0
      %v3521 = vadd.f32 %v3489, 0.0
      %v3522 = vadd.f32 %v3490, 0.0
      %v3523 = vadd.f32 %v3491, 0.0
      %v3524 = vadd.f32 %v3492, 0.0
      %v3525 = vadd.f32 %v3493, 0.0
      %v3526 = vadd.f32 %v3494, 0.0
      %v3527 = vadd.f32 %v3495, 0.0
      %v3528 = vadd.f32 %v3496, 0.0
      %v3529 = vadd.f32 %v3497, 0.0
      %v3530 = vadd.f32 %v3498, 0.0
      %v3531 = vadd.f32 %v3499, 0.0
      %v3532 = vadd.f32 %v3500, 0.0
      %v3533 = vadd.f32 %v3501, 0.0
      %v3534 = vadd.f32 %v3502, 0.0
      %v3535 = vadd.f32 %v3503, 0.0
      %v3536 = vadd.f32 %v3504, 0.0
      %v3537 = vadd.f32 %v3505, 0.0
      %v3538 = vadd.f32 %v3506, 0.0
      %v3539 = vadd.f32 %v3507, 0.0
      %v3540 = vadd.f32 %v3508, 0.0
      %v3541 = vadd.f32 %v3509, 0.0
      %v3542 = vadd.f32 %v3510, 0.0
      %v3543 = vadd.f32 %v3511, 0.0
      %v3544 = vperm.slane %v3385, 0
      %v3545 = vmul.f32 %v3428, %v3544
      %v3546 = vmul.f32 %v3429, %v3544
      %v3547 = vmul.f32 %v3431, %v3544
      %v3548 = vmul.f32 %v3432, %v3544
      %v3549 = vmul.f32 %v3434, %v3544
      %v3550 = vmul.f32 %v3435, %v3544
      %v3551 = vmul.f32 %v3437, %v3544
      %v3552 = vmul.f32 %v3438, %v3544
      %v3553 = vmul.f32 %v3440, %v3544
      %v3554 = vmul.f32 %v3441, %v3544
      %v3555 = vmul.f32 %v3443, %v3544
      %v3556 = vmul.f32 %v3444, %v3544
      %v3557 = vmul.f32 %v3446, %v3544
      %v3558 = vmul.f32 %v3447, %v3544
      %v3559 = vmul.f32 %v3449, %v3544
      %v3560 = vmul.f32 %v3450, %v3544
      %v3561 = vmul.f32 %v3452, %v3544
      %v3562 = vmul.f32 %v3453, %v3544
      %v3563 = vmul.f32 %v3455, %v3544
      %v3564 = vmul.f32 %v3456, %v3544
      %v3565 = vmul.f32 %v3458, %v3544
      %v3566 = vmul.f32 %v3459, %v3544
      %v3567 = vmul.f32 %v3461, %v3544
      %v3568 = vmul.f32 %v3462, %v3544
      %v3569 = vmul.f32 %v3464, %v3544
      %v3570 = vmul.f32 %v3465, %v3544
      %v3571 = vmul.f32 %v3467, %v3544
      %v3572 = vmul.f32 %v3468, %v3544
      %v3573 = vmul.f32 %v3470, %v3544
      %v3574 = vmul.f32 %v3471, %v3544
      %v3575 = vmul.f32 %v3473, %v3544
      %v3576 = vmul.f32 %v3474, %v3544
      %v3577 = vadd.f32 %v3512, %v3545
      %v3578 = vadd.f32 %v3513, %v3546
      %v3579 = vadd.f32 %v3514, %v3547
      %v3580 = vadd.f32 %v3515, %v3548
      %v3581 = vadd.f32 %v3516, %v3549
      %v3582 = vadd.f32 %v3517, %v3550
      %v3583 = vadd.f32 %v3518, %v3551
      %v3584 = vadd.f32 %v3519, %v3552
      %v3585 = vadd.f32 %v3520, %v3553
      %v3586 = vadd.f32 %v3521, %v3554
      %v3587 = vadd.f32 %v3522, %v3555
      %v3588 = vadd.f32 %v3523, %v3556
      %v3589 = vadd.f32 %v3524, %v3557
      %v3590 = vadd.f32 %v3525, %v3558
      %v3591 = vadd.f32 %v3526, %v3559
      %v3592 = vadd.f32 %v3527, %v3560
      %v3593 = vadd.f32 %v3528, %v3561
      %v3594 = vadd.f32 %v3529, %v3562
      %v3595 = vadd.f32 %v3530, %v3563
      %v3596 = vadd.f32 %v3531, %v3564
      %v3597 = vadd.f32 %v3532, %v3565
      %v3598 = vadd.f32 %v3533, %v3566
      %v3599 = vadd.f32 %v3534, %v3567
      %v3600 = vadd.f32 %v3535, %v3568
      %v3601 = vadd.f32 %v3536, %v3569
      %v3602 = vadd.f32 %v3537, %v3570
      %v3603 = vadd.f32 %v3538, %v3571
      %v3604 = vadd.f32 %v3539, %v3572
      %v3605 = vadd.f32 %v3540, %v3573
      %v3606 = vadd.f32 %v3541, %v3574
      %v3607 = vadd.f32 %v3542, %v3575
      %v3608 = vadd.f32 %v3543, %v3576
      %v3609 = vperm.slane %v3388, 0
      %v3610 = vmul.f32 %v3431, %v3609
      %v3611 = vmul.f32 %v3432, %v3609
      %v3612 = vmul.f32 %v3434, %v3609
      %v3613 = vmul.f32 %v3435, %v3609
      %v3614 = vmul.f32 %v3437, %v3609
      %v3615 = vmul.f32 %v3438, %v3609
      %v3616 = vmul.f32 %v3440, %v3609
      %v3617 = vmul.f32 %v3441, %v3609
      %v3618 = vmul.f32 %v3443, %v3609
      %v3619 = vmul.f32 %v3444, %v3609
      %v3620 = vmul.f32 %v3446, %v3609
      %v3621 = vmul.f32 %v3447, %v3609
      %v3622 = vmul.f32 %v3449, %v3609
      %v3623 = vmul.f32 %v3450, %v3609
      %v3624 = vmul.f32 %v3452, %v3609
      %v3625 = vmul.f32 %v3453, %v3609
      %v3626 = vmul.f32 %v3455, %v3609
      %v3627 = vmul.f32 %v3456, %v3609
      %v3628 = vmul.f32 %v3458, %v3609
      %v3629 = vmul.f32 %v3459, %v3609
      %v3630 = vmul.f32 %v3461, %v3609
      %v3631 = vmul.f32 %v3462, %v3609
      %v3632 = vmul.f32 %v3464, %v3609
      %v3633 = vmul.f32 %v3465, %v3609
      %v3634 = vmul.f32 %v3467, %v3609
      %v3635 = vmul.f32 %v3468, %v3609
      %v3636 = vmul.f32 %v3470, %v3609
      %v3637 = vmul.f32 %v3471, %v3609
      %v3638 = vmul.f32 %v3473, %v3609
      %v3639 = vmul.f32 %v3474, %v3609
      %v3640 = vmul.f32 %v3476, %v3609
      %v3641 = vmul.f32 %v3477, %v3609
      %v3642 = vadd.f32 %v3577, %v3610
      %v3643 = vadd.f32 %v3578, %v3611
      %v3644 = vadd.f32 %v3579, %v3612
      %v3645 = vadd.f32 %v3580, %v3613
      %v3646 = vadd.f32 %v3581, %v3614
      %v3647 = vadd.f32 %v3582, %v3615
      %v3648 = vadd.f32 %v3583, %v3616
      %v3649 = vadd.f32 %v3584, %v3617
      %v3650 = vadd.f32 %v3585, %v3618
      %v3651 = vadd.f32 %v3586, %v3619
      %v3652 = vadd.f32 %v3587, %v3620
      %v3653 = vadd.f32 %v3588, %v3621
      %v3654 = vadd.f32 %v3589, %v3622
      %v3655 = vadd.f32 %v3590, %v3623
      %v3656 = vadd.f32 %v3591, %v3624
      %v3657 = vadd.f32 %v3592, %v3625
      %v3658 = vadd.f32 %v3593, %v3626
      %v3659 = vadd.f32 %v3594, %v3627
      %v3660 = vadd.f32 %v3595, %v3628
      %v3661 = vadd.f32 %v3596, %v3629
      %v3662 = vadd.f32 %v3597, %v3630
      %v3663 = vadd.f32 %v3598, %v3631
      %v3664 = vadd.f32 %v3599, %v3632
      %v3665 = vadd.f32 %v3600, %v3633
      %v3666 = vadd.f32 %v3601, %v3634
      %v3667 = vadd.f32 %v3602, %v3635
      %v3668 = vadd.f32 %v3603, %v3636
      %v3669 = vadd.f32 %v3604, %v3637
      %v3670 = vadd.f32 %v3605, %v3638
      %v3671 = vadd.f32 %v3606, %v3639
      %v3672 = vadd.f32 %v3607, %v3640
      %v3673 = vadd.f32 %v3608, %v3641
      %v3674 = vperm.slane %v3383, 0
      %v3675 = vmul.f32 %v3425, %v3674
      %v3676 = vmul.f32 %v3426, %v3674
      %v3677 = vmul.f32 %v3427, %v3674
      %v3678 = vmul.f32 %v3428, %v3674
      %v3679 = vmul.f32 %v3429, %v3674
      %v3680 = vmul.f32 %v3430, %v3674
      %v3681 = vmul.f32 %v3431, %v3674
      %v3682 = vmul.f32 %v3432, %v3674
      %v3683 = vmul.f32 %v3433, %v3674
      %v3684 = vmul.f32 %v3434, %v3674
      %v3685 = vmul.f32 %v3435, %v3674
      %v3686 = vmul.f32 %v3436, %v3674
      %v3687 = vmul.f32 %v3437, %v3674
      %v3688 = vmul.f32 %v3438, %v3674
      %v3689 = vmul.f32 %v3439, %v3674
      %v3690 = vmul.f32 %v3440, %v3674
      %v3691 = vmul.f32 %v3441, %v3674
      %v3692 = vmul.f32 %v3442, %v3674
      %v3693 = vmul.f32 %v3443, %v3674
      %v3694 = vmul.f32 %v3444, %v3674
      %v3695 = vmul.f32 %v3445, %v3674
      %v3696 = vmul.f32 %v3446, %v3674
      %v3697 = vmul.f32 %v3447, %v3674
      %v3698 = vmul.f32 %v3448, %v3674
      %v3699 = vmul.f32 %v3449, %v3674
      %v3700 = vmul.f32 %v3450, %v3674
      %v3701 = vmul.f32 %v3451, %v3674
      %v3702 = vmul.f32 %v3452, %v3674
      %v3703 = vmul.f32 %v3453, %v3674
      %v3704 = vmul.f32 %v3454, %v3674
      %v3705 = vmul.f32 %v3455, %v3674
      %v3706 = vmul.f32 %v3456, %v3674
      %v3707 = vmul.f32 %v3457, %v3674
      %v3708 = vmul.f32 %v3458, %v3674
      %v3709 = vmul.f32 %v3459, %v3674
      %v3710 = vmul.f32 %v3460, %v3674
      %v3711 = vmul.f32 %v3461, %v3674
      %v3712 = vmul.f32 %v3462, %v3674
      %v3713 = vmul.f32 %v3463, %v3674
      %v3714 = vmul.f32 %v3464, %v3674
      %v3715 = vmul.f32 %v3465, %v3674
      %v3716 = vmul.f32 %v3466, %v3674
      %v3717 = vmul.f32 %v3467, %v3674
      %v3718 = vmul.f32 %v3468, %v3674
      %v3719 = vmul.f32 %v3469, %v3674
      %v3720 = vmul.f32 %v3470, %v3674
      %v3721 = vmul.f32 %v3471, %v3674
      %v3722 = vmul.f32 %v3472, %v3674
      %vm3771 = vcmask 1046528
      %v3772 = vrot.slane %v3675, 1
      %v3773 = vrot.slane %v3676, 1
      %v3774 = vsel %vm3771, %v3772, %v3773
      %v3775 = vrot.slane %v3677, 1
      %v3776 = vsel %vm3771, %v3773, %v3775
      %v3777 = vrot.slane %v3678, 1
      %v3778 = vrot.slane %v3679, 1
      %v3779 = vsel %vm3771, %v3777, %v3778
      %v3780 = vrot.slane %v3680, 1
      %v3781 = vsel %vm3771, %v3778, %v3780
      %v3782 = vrot.slane %v3681, 1
      %v3783 = vrot.slane %v3682, 1
      %v3784 = vsel %vm3771, %v3782, %v3783
      %v3785 = vrot.slane %v3683, 1
      %v3786 = vsel %vm3771, %v3783, %v3785
      %v3787 = vrot.slane %v3684, 1
      %v3788 = vrot.slane %v3685, 1
      %v3789 = vsel %vm3771, %v3787, %v3788
      %v3790 = vrot.slane %v3686, 1
      %v3791 = vsel %vm3771, %v3788, %v3790
      %v3792 = vrot.slane %v3687, 1
      %v3793 = vrot.slane %v3688, 1
      %v3794 = vsel %vm3771, %v3792, %v3793
      %v3795 = vrot.slane %v3689, 1
      %v3796 = vsel %vm3771, %v3793, %v3795
      %v3797 = vrot.slane %v3690, 1
      %v3798 = vrot.slane %v3691, 1
      %v3799 = vsel %vm3771, %v3797, %v3798
      %v3800 = vrot.slane %v3692, 1
      %v3801 = vsel %vm3771, %v3798, %v3800
      %v3802 = vrot.slane %v3693, 1
      %v3803 = vrot.slane %v3694, 1
      %v3804 = vsel %vm3771, %v3802, %v3803
      %v3805 = vrot.slane %v3695, 1
      %v3806 = vsel %vm3771, %v3803, %v3805
      %v3807 = vrot.slane %v3696, 1
      %v3808 = vrot.slane %v3697, 1
      %v3809 = vsel %vm3771, %v3807, %v3808
      %v3810 = vrot.slane %v3698, 1
      %v3811 = vsel %vm3771, %v3808, %v3810
      %v3812 = vrot.slane %v3699, 1
      %v3813 = vrot.slane %v3700, 1
      %v3814 = vsel %vm3771, %v3812, %v3813
      %v3815 = vrot.slane %v3701, 1
      %v3816 = vsel %vm3771, %v3813, %v3815
      %v3817 = vrot.slane %v3702, 1
      %v3818 = vrot.slane %v3703, 1
      %v3819 = vsel %vm3771, %v3817, %v3818
      %v3820 = vrot.slane %v3704, 1
      %v3821 = vsel %vm3771, %v3818, %v3820
      %v3822 = vrot.slane %v3705, 1
      %v3823 = vrot.slane %v3706, 1
      %v3824 = vsel %vm3771, %v3822, %v3823
      %v3825 = vrot.slane %v3707, 1
      %v3826 = vsel %vm3771, %v3823, %v3825
      %v3827 = vrot.slane %v3708, 1
      %v3828 = vrot.slane %v3709, 1
      %v3829 = vsel %vm3771, %v3827, %v3828
      %v3830 = vrot.slane %v3710, 1
      %v3831 = vsel %vm3771, %v3828, %v3830
      %v3832 = vrot.slane %v3711, 1
      %v3833 = vrot.slane %v3712, 1
      %v3834 = vsel %vm3771, %v3832, %v3833
      %v3835 = vrot.slane %v3713, 1
      %v3836 = vsel %vm3771, %v3833, %v3835
      %v3837 = vrot.slane %v3714, 1
      %v3838 = vrot.slane %v3715, 1
      %v3839 = vsel %vm3771, %v3837, %v3838
      %v3840 = vrot.slane %v3716, 1
      %v3841 = vsel %vm3771, %v3838, %v3840
      %v3842 = vrot.slane %v3717, 1
      %v3843 = vrot.slane %v3718, 1
      %v3844 = vsel %vm3771, %v3842, %v3843
      %v3845 = vrot.slane %v3719, 1
      %v3846 = vsel %vm3771, %v3843, %v3845
      %v3847 = vrot.slane %v3720, 1
      %v3848 = vrot.slane %v3721, 1
      %v3849 = vsel %vm3771, %v3847, %v3848
      %v3850 = vrot.slane %v3722, 1
      %v3851 = vsel %vm3771, %v3848, %v3850
      %v3884 = vadd.f32 %v3642, %v3774
      %v3885 = vadd.f32 %v3643, %v3776
      %v3886 = vadd.f32 %v3644, %v3779
      %v3887 = vadd.f32 %v3645, %v3781
      %v3888 = vadd.f32 %v3646, %v3784
      %v3889 = vadd.f32 %v3647, %v3786
      %v3890 = vadd.f32 %v3648, %v3789
      %v3891 = vadd.f32 %v3649, %v3791
      %v3892 = vadd.f32 %v3650, %v3794
      %v3893 = vadd.f32 %v3651, %v3796
      %v3894 = vadd.f32 %v3652, %v3799
      %v3895 = vadd.f32 %v3653, %v3801
      %v3896 = vadd.f32 %v3654, %v3804
      %v3897 = vadd.f32 %v3655, %v3806
      %v3898 = vadd.f32 %v3656, %v3809
      %v3899 = vadd.f32 %v3657, %v3811
      %v3900 = vadd.f32 %v3658, %v3814
      %v3901 = vadd.f32 %v3659, %v3816
      %v3902 = vadd.f32 %v3660, %v3819
      %v3903 = vadd.f32 %v3661, %v3821
      %v3904 = vadd.f32 %v3662, %v3824
      %v3905 = vadd.f32 %v3663, %v3826
      %v3906 = vadd.f32 %v3664, %v3829
      %v3907 = vadd.f32 %v3665, %v3831
      %v3908 = vadd.f32 %v3666, %v3834
      %v3909 = vadd.f32 %v3667, %v3836
      %v3910 = vadd.f32 %v3668, %v3839
      %v3911 = vadd.f32 %v3669, %v3841
      %v3912 = vadd.f32 %v3670, %v3844
      %v3913 = vadd.f32 %v3671, %v3846
      %v3914 = vadd.f32 %v3672, %v3849
      %v3915 = vadd.f32 %v3673, %v3851
      %v3916 = vperm.slane %v3386, 0
      %v3917 = vmul.f32 %v3428, %v3916
      %v3918 = vmul.f32 %v3429, %v3916
      %v3919 = vmul.f32 %v3430, %v3916
      %v3920 = vmul.f32 %v3431, %v3916
      %v3921 = vmul.f32 %v3432, %v3916
      %v3922 = vmul.f32 %v3433, %v3916
      %v3923 = vmul.f32 %v3434, %v3916
      %v3924 = vmul.f32 %v3435, %v3916
      %v3925 = vmul.f32 %v3436, %v3916
      %v3926 = vmul.f32 %v3437, %v3916
      %v3927 = vmul.f32 %v3438, %v3916
      %v3928 = vmul.f32 %v3439, %v3916
      %v3929 = vmul.f32 %v3440, %v3916
      %v3930 = vmul.f32 %v3441, %v3916
      %v3931 = vmul.f32 %v3442, %v3916
      %v3932 = vmul.f32 %v3443, %v3916
      %v3933 = vmul.f32 %v3444, %v3916
      %v3934 = vmul.f32 %v3445, %v3916
      %v3935 = vmul.f32 %v3446, %v3916
      %v3936 = vmul.f32 %v3447, %v3916
      %v3937 = vmul.f32 %v3448, %v3916
      %v3938 = vmul.f32 %v3449, %v3916
      %v3939 = vmul.f32 %v3450, %v3916
      %v3940 = vmul.f32 %v3451, %v3916
      %v3941 = vmul.f32 %v3452, %v3916
      %v3942 = vmul.f32 %v3453, %v3916
      %v3943 = vmul.f32 %v3454, %v3916
      %v3944 = vmul.f32 %v3455, %v3916
      %v3945 = vmul.f32 %v3456, %v3916
      %v3946 = vmul.f32 %v3457, %v3916
      %v3947 = vmul.f32 %v3458, %v3916
      %v3948 = vmul.f32 %v3459, %v3916
      %v3949 = vmul.f32 %v3460, %v3916
      %v3950 = vmul.f32 %v3461, %v3916
      %v3951 = vmul.f32 %v3462, %v3916
      %v3952 = vmul.f32 %v3463, %v3916
      %v3953 = vmul.f32 %v3464, %v3916
      %v3954 = vmul.f32 %v3465, %v3916
      %v3955 = vmul.f32 %v3466, %v3916
      %v3956 = vmul.f32 %v3467, %v3916
      %v3957 = vmul.f32 %v3468, %v3916
      %v3958 = vmul.f32 %v3469, %v3916
      %v3959 = vmul.f32 %v3470, %v3916
      %v3960 = vmul.f32 %v3471, %v3916
      %v3961 = vmul.f32 %v3472, %v3916
      %v3962 = vmul.f32 %v3473, %v3916
      %v3963 = vmul.f32 %v3474, %v3916
      %v3964 = vmul.f32 %v3475, %v3916
      %v4013 = vrot.slane %v3917, 1
      %v4014 = vrot.slane %v3918, 1
      %v4015 = vsel %vm3771, %v4013, %v4014
      %v4016 = vrot.slane %v3919, 1
      %v4017 = vsel %vm3771, %v4014, %v4016
      %v4018 = vrot.slane %v3920, 1
      %v4019 = vrot.slane %v3921, 1
      %v4020 = vsel %vm3771, %v4018, %v4019
      %v4021 = vrot.slane %v3922, 1
      %v4022 = vsel %vm3771, %v4019, %v4021
      %v4023 = vrot.slane %v3923, 1
      %v4024 = vrot.slane %v3924, 1
      %v4025 = vsel %vm3771, %v4023, %v4024
      %v4026 = vrot.slane %v3925, 1
      %v4027 = vsel %vm3771, %v4024, %v4026
      %v4028 = vrot.slane %v3926, 1
      %v4029 = vrot.slane %v3927, 1
      %v4030 = vsel %vm3771, %v4028, %v4029
      %v4031 = vrot.slane %v3928, 1
      %v4032 = vsel %vm3771, %v4029, %v4031
      %v4033 = vrot.slane %v3929, 1
      %v4034 = vrot.slane %v3930, 1
      %v4035 = vsel %vm3771, %v4033, %v4034
      %v4036 = vrot.slane %v3931, 1
      %v4037 = vsel %vm3771, %v4034, %v4036
      %v4038 = vrot.slane %v3932, 1
      %v4039 = vrot.slane %v3933, 1
      %v4040 = vsel %vm3771, %v4038, %v4039
      %v4041 = vrot.slane %v3934, 1
      %v4042 = vsel %vm3771, %v4039, %v4041
      %v4043 = vrot.slane %v3935, 1
      %v4044 = vrot.slane %v3936, 1
      %v4045 = vsel %vm3771, %v4043, %v4044
      %v4046 = vrot.slane %v3937, 1
      %v4047 = vsel %vm3771, %v4044, %v4046
      %v4048 = vrot.slane %v3938, 1
      %v4049 = vrot.slane %v3939, 1
      %v4050 = vsel %vm3771, %v4048, %v4049
      %v4051 = vrot.slane %v3940, 1
      %v4052 = vsel %vm3771, %v4049, %v4051
      %v4053 = vrot.slane %v3941, 1
      %v4054 = vrot.slane %v3942, 1
      %v4055 = vsel %vm3771, %v4053, %v4054
      %v4056 = vrot.slane %v3943, 1
      %v4057 = vsel %vm3771, %v4054, %v4056
      %v4058 = vrot.slane %v3944, 1
      %v4059 = vrot.slane %v3945, 1
      %v4060 = vsel %vm3771, %v4058, %v4059
      %v4061 = vrot.slane %v3946, 1
      %v4062 = vsel %vm3771, %v4059, %v4061
      %v4063 = vrot.slane %v3947, 1
      %v4064 = vrot.slane %v3948, 1
      %v4065 = vsel %vm3771, %v4063, %v4064
      %v4066 = vrot.slane %v3949, 1
      %v4067 = vsel %vm3771, %v4064, %v4066
      %v4068 = vrot.slane %v3950, 1
      %v4069 = vrot.slane %v3951, 1
      %v4070 = vsel %vm3771, %v4068, %v4069
      %v4071 = vrot.slane %v3952, 1
      %v4072 = vsel %vm3771, %v4069, %v4071
      %v4073 = vrot.slane %v3953, 1
      %v4074 = vrot.slane %v3954, 1
      %v4075 = vsel %vm3771, %v4073, %v4074
      %v4076 = vrot.slane %v3955, 1
      %v4077 = vsel %vm3771, %v4074, %v4076
      %v4078 = vrot.slane %v3956, 1
      %v4079 = vrot.slane %v3957, 1
      %v4080 = vsel %vm3771, %v4078, %v4079
      %v4081 = vrot.slane %v3958, 1
      %v4082 = vsel %vm3771, %v4079, %v4081
      %v4083 = vrot.slane %v3959, 1
      %v4084 = vrot.slane %v3960, 1
      %v4085 = vsel %vm3771, %v4083, %v4084
      %v4086 = vrot.slane %v3961, 1
      %v4087 = vsel %vm3771, %v4084, %v4086
      %v4088 = vrot.slane %v3962, 1
      %v4089 = vrot.slane %v3963, 1
      %v4090 = vsel %vm3771, %v4088, %v4089
      %v4091 = vrot.slane %v3964, 1
      %v4092 = vsel %vm3771, %v4089, %v4091
      %v4125 = vadd.f32 %v3884, %v4015
      %v4126 = vadd.f32 %v3885, %v4017
      %v4127 = vadd.f32 %v3886, %v4020
      %v4128 = vadd.f32 %v3887, %v4022
      %v4129 = vadd.f32 %v3888, %v4025
      %v4130 = vadd.f32 %v3889, %v4027
      %v4131 = vadd.f32 %v3890, %v4030
      %v4132 = vadd.f32 %v3891, %v4032
      %v4133 = vadd.f32 %v3892, %v4035
      %v4134 = vadd.f32 %v3893, %v4037
      %v4135 = vadd.f32 %v3894, %v4040
      %v4136 = vadd.f32 %v3895, %v4042
      %v4137 = vadd.f32 %v3896, %v4045
      %v4138 = vadd.f32 %v3897, %v4047
      %v4139 = vadd.f32 %v3898, %v4050
      %v4140 = vadd.f32 %v3899, %v4052
      %v4141 = vadd.f32 %v3900, %v4055
      %v4142 = vadd.f32 %v3901, %v4057
      %v4143 = vadd.f32 %v3902, %v4060
      %v4144 = vadd.f32 %v3903, %v4062
      %v4145 = vadd.f32 %v3904, %v4065
      %v4146 = vadd.f32 %v3905, %v4067
      %v4147 = vadd.f32 %v3906, %v4070
      %v4148 = vadd.f32 %v3907, %v4072
      %v4149 = vadd.f32 %v3908, %v4075
      %v4150 = vadd.f32 %v3909, %v4077
      %v4151 = vadd.f32 %v3910, %v4080
      %v4152 = vadd.f32 %v3911, %v4082
      %v4153 = vadd.f32 %v3912, %v4085
      %v4154 = vadd.f32 %v3913, %v4087
      %v4155 = vadd.f32 %v3914, %v4090
      %v4156 = vadd.f32 %v3915, %v4092
      %v4157 = vperm.slane %v3389, 0
      %v4158 = vmul.f32 %v3431, %v4157
      %v4159 = vmul.f32 %v3432, %v4157
      %v4160 = vmul.f32 %v3433, %v4157
      %v4161 = vmul.f32 %v3434, %v4157
      %v4162 = vmul.f32 %v3435, %v4157
      %v4163 = vmul.f32 %v3436, %v4157
      %v4164 = vmul.f32 %v3437, %v4157
      %v4165 = vmul.f32 %v3438, %v4157
      %v4166 = vmul.f32 %v3439, %v4157
      %v4167 = vmul.f32 %v3440, %v4157
      %v4168 = vmul.f32 %v3441, %v4157
      %v4169 = vmul.f32 %v3442, %v4157
      %v4170 = vmul.f32 %v3443, %v4157
      %v4171 = vmul.f32 %v3444, %v4157
      %v4172 = vmul.f32 %v3445, %v4157
      %v4173 = vmul.f32 %v3446, %v4157
      %v4174 = vmul.f32 %v3447, %v4157
      %v4175 = vmul.f32 %v3448, %v4157
      %v4176 = vmul.f32 %v3449, %v4157
      %v4177 = vmul.f32 %v3450, %v4157
      %v4178 = vmul.f32 %v3451, %v4157
      %v4179 = vmul.f32 %v3452, %v4157
      %v4180 = vmul.f32 %v3453, %v4157
      %v4181 = vmul.f32 %v3454, %v4157
      %v4182 = vmul.f32 %v3455, %v4157
      %v4183 = vmul.f32 %v3456, %v4157
      %v4184 = vmul.f32 %v3457, %v4157
      %v4185 = vmul.f32 %v3458, %v4157
      %v4186 = vmul.f32 %v3459, %v4157
      %v4187 = vmul.f32 %v3460, %v4157
      %v4188 = vmul.f32 %v3461, %v4157
      %v4189 = vmul.f32 %v3462, %v4157
      %v4190 = vmul.f32 %v3463, %v4157
      %v4191 = vmul.f32 %v3464, %v4157
      %v4192 = vmul.f32 %v3465, %v4157
      %v4193 = vmul.f32 %v3466, %v4157
      %v4194 = vmul.f32 %v3467, %v4157
      %v4195 = vmul.f32 %v3468, %v4157
      %v4196 = vmul.f32 %v3469, %v4157
      %v4197 = vmul.f32 %v3470, %v4157
      %v4198 = vmul.f32 %v3471, %v4157
      %v4199 = vmul.f32 %v3472, %v4157
      %v4200 = vmul.f32 %v3473, %v4157
      %v4201 = vmul.f32 %v3474, %v4157
      %v4202 = vmul.f32 %v3475, %v4157
      %v4203 = vmul.f32 %v3476, %v4157
      %v4204 = vmul.f32 %v3477, %v4157
      %v4205 = vmul.f32 %v3478, %v4157
      %v4254 = vrot.slane %v4158, 1
      %v4255 = vrot.slane %v4159, 1
      %v4256 = vsel %vm3771, %v4254, %v4255
      %v4257 = vrot.slane %v4160, 1
      %v4258 = vsel %vm3771, %v4255, %v4257
      %v4259 = vrot.slane %v4161, 1
      %v4260 = vrot.slane %v4162, 1
      %v4261 = vsel %vm3771, %v4259, %v4260
      %v4262 = vrot.slane %v4163, 1
      %v4263 = vsel %vm3771, %v4260, %v4262
      %v4264 = vrot.slane %v4164, 1
      %v4265 = vrot.slane %v4165, 1
      %v4266 = vsel %vm3771, %v4264, %v4265
      %v4267 = vrot.slane %v4166, 1
      %v4268 = vsel %vm3771, %v4265, %v4267
      %v4269 = vrot.slane %v4167, 1
      %v4270 = vrot.slane %v4168, 1
      %v4271 = vsel %vm3771, %v4269, %v4270
      %v4272 = vrot.slane %v4169, 1
      %v4273 = vsel %vm3771, %v4270, %v4272
      %v4274 = vrot.slane %v4170, 1
      %v4275 = vrot.slane %v4171, 1
      %v4276 = vsel %vm3771, %v4274, %v4275
      %v4277 = vrot.slane %v4172, 1
      %v4278 = vsel %vm3771, %v4275, %v4277
      %v4279 = vrot.slane %v4173, 1
      %v4280 = vrot.slane %v4174, 1
      %v4281 = vsel %vm3771, %v4279, %v4280
      %v4282 = vrot.slane %v4175, 1
      %v4283 = vsel %vm3771, %v4280, %v4282
      %v4284 = vrot.slane %v4176, 1
      %v4285 = vrot.slane %v4177, 1
      %v4286 = vsel %vm3771, %v4284, %v4285
      %v4287 = vrot.slane %v4178, 1
      %v4288 = vsel %vm3771, %v4285, %v4287
      %v4289 = vrot.slane %v4179, 1
      %v4290 = vrot.slane %v4180, 1
      %v4291 = vsel %vm3771, %v4289, %v4290
      %v4292 = vrot.slane %v4181, 1
      %v4293 = vsel %vm3771, %v4290, %v4292
      %v4294 = vrot.slane %v4182, 1
      %v4295 = vrot.slane %v4183, 1
      %v4296 = vsel %vm3771, %v4294, %v4295
      %v4297 = vrot.slane %v4184, 1
      %v4298 = vsel %vm3771, %v4295, %v4297
      %v4299 = vrot.slane %v4185, 1
      %v4300 = vrot.slane %v4186, 1
      %v4301 = vsel %vm3771, %v4299, %v4300
      %v4302 = vrot.slane %v4187, 1
      %v4303 = vsel %vm3771, %v4300, %v4302
      %v4304 = vrot.slane %v4188, 1
      %v4305 = vrot.slane %v4189, 1
      %v4306 = vsel %vm3771, %v4304, %v4305
      %v4307 = vrot.slane %v4190, 1
      %v4308 = vsel %vm3771, %v4305, %v4307
      %v4309 = vrot.slane %v4191, 1
      %v4310 = vrot.slane %v4192, 1
      %v4311 = vsel %vm3771, %v4309, %v4310
      %v4312 = vrot.slane %v4193, 1
      %v4313 = vsel %vm3771, %v4310, %v4312
      %v4314 = vrot.slane %v4194, 1
      %v4315 = vrot.slane %v4195, 1
      %v4316 = vsel %vm3771, %v4314, %v4315
      %v4317 = vrot.slane %v4196, 1
      %v4318 = vsel %vm3771, %v4315, %v4317
      %v4319 = vrot.slane %v4197, 1
      %v4320 = vrot.slane %v4198, 1
      %v4321 = vsel %vm3771, %v4319, %v4320
      %v4322 = vrot.slane %v4199, 1
      %v4323 = vsel %vm3771, %v4320, %v4322
      %v4324 = vrot.slane %v4200, 1
      %v4325 = vrot.slane %v4201, 1
      %v4326 = vsel %vm3771, %v4324, %v4325
      %v4327 = vrot.slane %v4202, 1
      %v4328 = vsel %vm3771, %v4325, %v4327
      %v4329 = vrot.slane %v4203, 1
      %v4330 = vrot.slane %v4204, 1
      %v4331 = vsel %vm3771, %v4329, %v4330
      %v4332 = vrot.slane %v4205, 1
      %v4333 = vsel %vm3771, %v4330, %v4332
      %v4366 = vadd.f32 %v4125, %v4256
      %v4367 = vadd.f32 %v4126, %v4258
      %v4368 = vadd.f32 %v4127, %v4261
      %v4369 = vadd.f32 %v4128, %v4263
      %v4370 = vadd.f32 %v4129, %v4266
      %v4371 = vadd.f32 %v4130, %v4268
      %v4372 = vadd.f32 %v4131, %v4271
      %v4373 = vadd.f32 %v4132, %v4273
      %v4374 = vadd.f32 %v4133, %v4276
      %v4375 = vadd.f32 %v4134, %v4278
      %v4376 = vadd.f32 %v4135, %v4281
      %v4377 = vadd.f32 %v4136, %v4283
      %v4378 = vadd.f32 %v4137, %v4286
      %v4379 = vadd.f32 %v4138, %v4288
      %v4380 = vadd.f32 %v4139, %v4291
      %v4381 = vadd.f32 %v4140, %v4293
      %v4382 = vadd.f32 %v4141, %v4296
      %v4383 = vadd.f32 %v4142, %v4298
      %v4384 = vadd.f32 %v4143, %v4301
      %v4385 = vadd.f32 %v4144, %v4303
      %v4386 = vadd.f32 %v4145, %v4306
      %v4387 = vadd.f32 %v4146, %v4308
      %v4388 = vadd.f32 %v4147, %v4311
      %v4389 = vadd.f32 %v4148, %v4313
      %v4390 = vadd.f32 %v4149, %v4316
      %v4391 = vadd.f32 %v4150, %v4318
      %v4392 = vadd.f32 %v4151, %v4321
      %v4393 = vadd.f32 %v4152, %v4323
      %v4394 = vadd.f32 %v4153, %v4326
      %v4395 = vadd.f32 %v4154, %v4328
      %v4396 = vadd.f32 %v4155, %v4331
      %v4397 = vadd.f32 %v4156, %v4333
      %v4398 = vperm.slane %v3384, 0
      %v4399 = vmul.f32 %v3425, %v4398
      %v4400 = vmul.f32 %v3426, %v4398
      %v4401 = vmul.f32 %v3427, %v4398
      %v4402 = vmul.f32 %v3428, %v4398
      %v4403 = vmul.f32 %v3429, %v4398
      %v4404 = vmul.f32 %v3430, %v4398
      %v4405 = vmul.f32 %v3431, %v4398
      %v4406 = vmul.f32 %v3432, %v4398
      %v4407 = vmul.f32 %v3433, %v4398
      %v4408 = vmul.f32 %v3434, %v4398
      %v4409 = vmul.f32 %v3435, %v4398
      %v4410 = vmul.f32 %v3436, %v4398
      %v4411 = vmul.f32 %v3437, %v4398
      %v4412 = vmul.f32 %v3438, %v4398
      %v4413 = vmul.f32 %v3439, %v4398
      %v4414 = vmul.f32 %v3440, %v4398
      %v4415 = vmul.f32 %v3441, %v4398
      %v4416 = vmul.f32 %v3442, %v4398
      %v4417 = vmul.f32 %v3443, %v4398
      %v4418 = vmul.f32 %v3444, %v4398
      %v4419 = vmul.f32 %v3445, %v4398
      %v4420 = vmul.f32 %v3446, %v4398
      %v4421 = vmul.f32 %v3447, %v4398
      %v4422 = vmul.f32 %v3448, %v4398
      %v4423 = vmul.f32 %v3449, %v4398
      %v4424 = vmul.f32 %v3450, %v4398
      %v4425 = vmul.f32 %v3451, %v4398
      %v4426 = vmul.f32 %v3452, %v4398
      %v4427 = vmul.f32 %v3453, %v4398
      %v4428 = vmul.f32 %v3454, %v4398
      %v4429 = vmul.f32 %v3455, %v4398
      %v4430 = vmul.f32 %v3456, %v4398
      %v4431 = vmul.f32 %v3457, %v4398
      %v4432 = vmul.f32 %v3458, %v4398
      %v4433 = vmul.f32 %v3459, %v4398
      %v4434 = vmul.f32 %v3460, %v4398
      %v4435 = vmul.f32 %v3461, %v4398
      %v4436 = vmul.f32 %v3462, %v4398
      %v4437 = vmul.f32 %v3463, %v4398
      %v4438 = vmul.f32 %v3464, %v4398
      %v4439 = vmul.f32 %v3465, %v4398
      %v4440 = vmul.f32 %v3466, %v4398
      %v4441 = vmul.f32 %v3467, %v4398
      %v4442 = vmul.f32 %v3468, %v4398
      %v4443 = vmul.f32 %v3469, %v4398
      %v4444 = vmul.f32 %v3470, %v4398
      %v4445 = vmul.f32 %v3471, %v4398
      %v4446 = vmul.f32 %v3472, %v4398
      %vm4495 = vcmask 1045504
      %v4496 = vrot.slane %v4399, 2
      %v4497 = vrot.slane %v4400, 2
      %v4498 = vsel %vm4495, %v4496, %v4497
      %v4499 = vrot.slane %v4401, 2
      %v4500 = vsel %vm4495, %v4497, %v4499
      %v4501 = vrot.slane %v4402, 2
      %v4502 = vrot.slane %v4403, 2
      %v4503 = vsel %vm4495, %v4501, %v4502
      %v4504 = vrot.slane %v4404, 2
      %v4505 = vsel %vm4495, %v4502, %v4504
      %v4506 = vrot.slane %v4405, 2
      %v4507 = vrot.slane %v4406, 2
      %v4508 = vsel %vm4495, %v4506, %v4507
      %v4509 = vrot.slane %v4407, 2
      %v4510 = vsel %vm4495, %v4507, %v4509
      %v4511 = vrot.slane %v4408, 2
      %v4512 = vrot.slane %v4409, 2
      %v4513 = vsel %vm4495, %v4511, %v4512
      %v4514 = vrot.slane %v4410, 2
      %v4515 = vsel %vm4495, %v4512, %v4514
      %v4516 = vrot.slane %v4411, 2
      %v4517 = vrot.slane %v4412, 2
      %v4518 = vsel %vm4495, %v4516, %v4517
      %v4519 = vrot.slane %v4413, 2
      %v4520 = vsel %vm4495, %v4517, %v4519
      %v4521 = vrot.slane %v4414, 2
      %v4522 = vrot.slane %v4415, 2
      %v4523 = vsel %vm4495, %v4521, %v4522
      %v4524 = vrot.slane %v4416, 2
      %v4525 = vsel %vm4495, %v4522, %v4524
      %v4526 = vrot.slane %v4417, 2
      %v4527 = vrot.slane %v4418, 2
      %v4528 = vsel %vm4495, %v4526, %v4527
      %v4529 = vrot.slane %v4419, 2
      %v4530 = vsel %vm4495, %v4527, %v4529
      %v4531 = vrot.slane %v4420, 2
      %v4532 = vrot.slane %v4421, 2
      %v4533 = vsel %vm4495, %v4531, %v4532
      %v4534 = vrot.slane %v4422, 2
      %v4535 = vsel %vm4495, %v4532, %v4534
      %v4536 = vrot.slane %v4423, 2
      %v4537 = vrot.slane %v4424, 2
      %v4538 = vsel %vm4495, %v4536, %v4537
      %v4539 = vrot.slane %v4425, 2
      %v4540 = vsel %vm4495, %v4537, %v4539
      %v4541 = vrot.slane %v4426, 2
      %v4542 = vrot.slane %v4427, 2
      %v4543 = vsel %vm4495, %v4541, %v4542
      %v4544 = vrot.slane %v4428, 2
      %v4545 = vsel %vm4495, %v4542, %v4544
      %v4546 = vrot.slane %v4429, 2
      %v4547 = vrot.slane %v4430, 2
      %v4548 = vsel %vm4495, %v4546, %v4547
      %v4549 = vrot.slane %v4431, 2
      %v4550 = vsel %vm4495, %v4547, %v4549
      %v4551 = vrot.slane %v4432, 2
      %v4552 = vrot.slane %v4433, 2
      %v4553 = vsel %vm4495, %v4551, %v4552
      %v4554 = vrot.slane %v4434, 2
      %v4555 = vsel %vm4495, %v4552, %v4554
      %v4556 = vrot.slane %v4435, 2
      %v4557 = vrot.slane %v4436, 2
      %v4558 = vsel %vm4495, %v4556, %v4557
      %v4559 = vrot.slane %v4437, 2
      %v4560 = vsel %vm4495, %v4557, %v4559
      %v4561 = vrot.slane %v4438, 2
      %v4562 = vrot.slane %v4439, 2
      %v4563 = vsel %vm4495, %v4561, %v4562
      %v4564 = vrot.slane %v4440, 2
      %v4565 = vsel %vm4495, %v4562, %v4564
      %v4566 = vrot.slane %v4441, 2
      %v4567 = vrot.slane %v4442, 2
      %v4568 = vsel %vm4495, %v4566, %v4567
      %v4569 = vrot.slane %v4443, 2
      %v4570 = vsel %vm4495, %v4567, %v4569
      %v4571 = vrot.slane %v4444, 2
      %v4572 = vrot.slane %v4445, 2
      %v4573 = vsel %vm4495, %v4571, %v4572
      %v4574 = vrot.slane %v4446, 2
      %v4575 = vsel %vm4495, %v4572, %v4574
      %v4608 = vadd.f32 %v4366, %v4498
      %v4609 = vadd.f32 %v4367, %v4500
      %v4610 = vadd.f32 %v4368, %v4503
      %v4611 = vadd.f32 %v4369, %v4505
      %v4612 = vadd.f32 %v4370, %v4508
      %v4613 = vadd.f32 %v4371, %v4510
      %v4614 = vadd.f32 %v4372, %v4513
      %v4615 = vadd.f32 %v4373, %v4515
      %v4616 = vadd.f32 %v4374, %v4518
      %v4617 = vadd.f32 %v4375, %v4520
      %v4618 = vadd.f32 %v4376, %v4523
      %v4619 = vadd.f32 %v4377, %v4525
      %v4620 = vadd.f32 %v4378, %v4528
      %v4621 = vadd.f32 %v4379, %v4530
      %v4622 = vadd.f32 %v4380, %v4533
      %v4623 = vadd.f32 %v4381, %v4535
      %v4624 = vadd.f32 %v4382, %v4538
      %v4625 = vadd.f32 %v4383, %v4540
      %v4626 = vadd.f32 %v4384, %v4543
      %v4627 = vadd.f32 %v4385, %v4545
      %v4628 = vadd.f32 %v4386, %v4548
      %v4629 = vadd.f32 %v4387, %v4550
      %v4630 = vadd.f32 %v4388, %v4553
      %v4631 = vadd.f32 %v4389, %v4555
      %v4632 = vadd.f32 %v4390, %v4558
      %v4633 = vadd.f32 %v4391, %v4560
      %v4634 = vadd.f32 %v4392, %v4563
      %v4635 = vadd.f32 %v4393, %v4565
      %v4636 = vadd.f32 %v4394, %v4568
      %v4637 = vadd.f32 %v4395, %v4570
      %v4638 = vadd.f32 %v4396, %v4573
      %v4639 = vadd.f32 %v4397, %v4575
      %v4640 = vperm.slane %v3387, 0
      %v4641 = vmul.f32 %v3428, %v4640
      %v4642 = vmul.f32 %v3429, %v4640
      %v4643 = vmul.f32 %v3430, %v4640
      %v4644 = vmul.f32 %v3431, %v4640
      %v4645 = vmul.f32 %v3432, %v4640
      %v4646 = vmul.f32 %v3433, %v4640
      %v4647 = vmul.f32 %v3434, %v4640
      %v4648 = vmul.f32 %v3435, %v4640
      %v4649 = vmul.f32 %v3436, %v4640
      %v4650 = vmul.f32 %v3437, %v4640
      %v4651 = vmul.f32 %v3438, %v4640
      %v4652 = vmul.f32 %v3439, %v4640
      %v4653 = vmul.f32 %v3440, %v4640
      %v4654 = vmul.f32 %v3441, %v4640
      %v4655 = vmul.f32 %v3442, %v4640
      %v4656 = vmul.f32 %v3443, %v4640
      %v4657 = vmul.f32 %v3444, %v4640
      %v4658 = vmul.f32 %v3445, %v4640
      %v4659 = vmul.f32 %v3446, %v4640
      %v4660 = vmul.f32 %v3447, %v4640
      %v4661 = vmul.f32 %v3448, %v4640
      %v4662 = vmul.f32 %v3449, %v4640
      %v4663 = vmul.f32 %v3450, %v4640
      %v4664 = vmul.f32 %v3451, %v4640
      %v4665 = vmul.f32 %v3452, %v4640
      %v4666 = vmul.f32 %v3453, %v4640
      %v4667 = vmul.f32 %v3454, %v4640
      %v4668 = vmul.f32 %v3455, %v4640
      %v4669 = vmul.f32 %v3456, %v4640
      %v4670 = vmul.f32 %v3457, %v4640
      %v4671 = vmul.f32 %v3458, %v4640
      %v4672 = vmul.f32 %v3459, %v4640
      %v4673 = vmul.f32 %v3460, %v4640
      %v4674 = vmul.f32 %v3461, %v4640
      %v4675 = vmul.f32 %v3462, %v4640
      %v4676 = vmul.f32 %v3463, %v4640
      %v4677 = vmul.f32 %v3464, %v4640
      %v4678 = vmul.f32 %v3465, %v4640
      %v4679 = vmul.f32 %v3466, %v4640
      %v4680 = vmul.f32 %v3467, %v4640
      %v4681 = vmul.f32 %v3468, %v4640
      %v4682 = vmul.f32 %v3469, %v4640
      %v4683 = vmul.f32 %v3470, %v4640
      %v4684 = vmul.f32 %v3471, %v4640
      %v4685 = vmul.f32 %v3472, %v4640
      %v4686 = vmul.f32 %v3473, %v4640
      %v4687 = vmul.f32 %v3474, %v4640
      %v4688 = vmul.f32 %v3475, %v4640
      %v4737 = vrot.slane %v4641, 2
      %v4738 = vrot.slane %v4642, 2
      %v4739 = vsel %vm4495, %v4737, %v4738
      %v4740 = vrot.slane %v4643, 2
      %v4741 = vsel %vm4495, %v4738, %v4740
      %v4742 = vrot.slane %v4644, 2
      %v4743 = vrot.slane %v4645, 2
      %v4744 = vsel %vm4495, %v4742, %v4743
      %v4745 = vrot.slane %v4646, 2
      %v4746 = vsel %vm4495, %v4743, %v4745
      %v4747 = vrot.slane %v4647, 2
      %v4748 = vrot.slane %v4648, 2
      %v4749 = vsel %vm4495, %v4747, %v4748
      %v4750 = vrot.slane %v4649, 2
      %v4751 = vsel %vm4495, %v4748, %v4750
      %v4752 = vrot.slane %v4650, 2
      %v4753 = vrot.slane %v4651, 2
      %v4754 = vsel %vm4495, %v4752, %v4753
      %v4755 = vrot.slane %v4652, 2
      %v4756 = vsel %vm4495, %v4753, %v4755
      %v4757 = vrot.slane %v4653, 2
      %v4758 = vrot.slane %v4654, 2
      %v4759 = vsel %vm4495, %v4757, %v4758
      %v4760 = vrot.slane %v4655, 2
      %v4761 = vsel %vm4495, %v4758, %v4760
      %v4762 = vrot.slane %v4656, 2
      %v4763 = vrot.slane %v4657, 2
      %v4764 = vsel %vm4495, %v4762, %v4763
      %v4765 = vrot.slane %v4658, 2
      %v4766 = vsel %vm4495, %v4763, %v4765
      %v4767 = vrot.slane %v4659, 2
      %v4768 = vrot.slane %v4660, 2
      %v4769 = vsel %vm4495, %v4767, %v4768
      %v4770 = vrot.slane %v4661, 2
      %v4771 = vsel %vm4495, %v4768, %v4770
      %v4772 = vrot.slane %v4662, 2
      %v4773 = vrot.slane %v4663, 2
      %v4774 = vsel %vm4495, %v4772, %v4773
      %v4775 = vrot.slane %v4664, 2
      %v4776 = vsel %vm4495, %v4773, %v4775
      %v4777 = vrot.slane %v4665, 2
      %v4778 = vrot.slane %v4666, 2
      %v4779 = vsel %vm4495, %v4777, %v4778
      %v4780 = vrot.slane %v4667, 2
      %v4781 = vsel %vm4495, %v4778, %v4780
      %v4782 = vrot.slane %v4668, 2
      %v4783 = vrot.slane %v4669, 2
      %v4784 = vsel %vm4495, %v4782, %v4783
      %v4785 = vrot.slane %v4670, 2
      %v4786 = vsel %vm4495, %v4783, %v4785
      %v4787 = vrot.slane %v4671, 2
      %v4788 = vrot.slane %v4672, 2
      %v4789 = vsel %vm4495, %v4787, %v4788
      %v4790 = vrot.slane %v4673, 2
      %v4791 = vsel %vm4495, %v4788, %v4790
      %v4792 = vrot.slane %v4674, 2
      %v4793 = vrot.slane %v4675, 2
      %v4794 = vsel %vm4495, %v4792, %v4793
      %v4795 = vrot.slane %v4676, 2
      %v4796 = vsel %vm4495, %v4793, %v4795
      %v4797 = vrot.slane %v4677, 2
      %v4798 = vrot.slane %v4678, 2
      %v4799 = vsel %vm4495, %v4797, %v4798
      %v4800 = vrot.slane %v4679, 2
      %v4801 = vsel %vm4495, %v4798, %v4800
      %v4802 = vrot.slane %v4680, 2
      %v4803 = vrot.slane %v4681, 2
      %v4804 = vsel %vm4495, %v4802, %v4803
      %v4805 = vrot.slane %v4682, 2
      %v4806 = vsel %vm4495, %v4803, %v4805
      %v4807 = vrot.slane %v4683, 2
      %v4808 = vrot.slane %v4684, 2
      %v4809 = vsel %vm4495, %v4807, %v4808
      %v4810 = vrot.slane %v4685, 2
      %v4811 = vsel %vm4495, %v4808, %v4810
      %v4812 = vrot.slane %v4686, 2
      %v4813 = vrot.slane %v4687, 2
      %v4814 = vsel %vm4495, %v4812, %v4813
      %v4815 = vrot.slane %v4688, 2
      %v4816 = vsel %vm4495, %v4813, %v4815
      %v4849 = vadd.f32 %v4608, %v4739
      %v4850 = vadd.f32 %v4609, %v4741
      %v4851 = vadd.f32 %v4610, %v4744
      %v4852 = vadd.f32 %v4611, %v4746
      %v4853 = vadd.f32 %v4612, %v4749
      %v4854 = vadd.f32 %v4613, %v4751
      %v4855 = vadd.f32 %v4614, %v4754
      %v4856 = vadd.f32 %v4615, %v4756
      %v4857 = vadd.f32 %v4616, %v4759
      %v4858 = vadd.f32 %v4617, %v4761
      %v4859 = vadd.f32 %v4618, %v4764
      %v4860 = vadd.f32 %v4619, %v4766
      %v4861 = vadd.f32 %v4620, %v4769
      %v4862 = vadd.f32 %v4621, %v4771
      %v4863 = vadd.f32 %v4622, %v4774
      %v4864 = vadd.f32 %v4623, %v4776
      %v4865 = vadd.f32 %v4624, %v4779
      %v4866 = vadd.f32 %v4625, %v4781
      %v4867 = vadd.f32 %v4626, %v4784
      %v4868 = vadd.f32 %v4627, %v4786
      %v4869 = vadd.f32 %v4628, %v4789
      %v4870 = vadd.f32 %v4629, %v4791
      %v4871 = vadd.f32 %v4630, %v4794
      %v4872 = vadd.f32 %v4631, %v4796
      %v4873 = vadd.f32 %v4632, %v4799
      %v4874 = vadd.f32 %v4633, %v4801
      %v4875 = vadd.f32 %v4634, %v4804
      %v4876 = vadd.f32 %v4635, %v4806
      %v4877 = vadd.f32 %v4636, %v4809
      %v4878 = vadd.f32 %v4637, %v4811
      %v4879 = vadd.f32 %v4638, %v4814
      %v4880 = vadd.f32 %v4639, %v4816
      %v4881 = vperm.slane %v3390, 0
      %v4882 = vmul.f32 %v3431, %v4881
      %v4883 = vmul.f32 %v3432, %v4881
      %v4884 = vmul.f32 %v3433, %v4881
      %v4885 = vmul.f32 %v3434, %v4881
      %v4886 = vmul.f32 %v3435, %v4881
      %v4887 = vmul.f32 %v3436, %v4881
      %v4888 = vmul.f32 %v3437, %v4881
      %v4889 = vmul.f32 %v3438, %v4881
      %v4890 = vmul.f32 %v3439, %v4881
      %v4891 = vmul.f32 %v3440, %v4881
      %v4892 = vmul.f32 %v3441, %v4881
      %v4893 = vmul.f32 %v3442, %v4881
      %v4894 = vmul.f32 %v3443, %v4881
      %v4895 = vmul.f32 %v3444, %v4881
      %v4896 = vmul.f32 %v3445, %v4881
      %v4897 = vmul.f32 %v3446, %v4881
      %v4898 = vmul.f32 %v3447, %v4881
      %v4899 = vmul.f32 %v3448, %v4881
      %v4900 = vmul.f32 %v3449, %v4881
      %v4901 = vmul.f32 %v3450, %v4881
      %v4902 = vmul.f32 %v3451, %v4881
      %v4903 = vmul.f32 %v3452, %v4881
      %v4904 = vmul.f32 %v3453, %v4881
      %v4905 = vmul.f32 %v3454, %v4881
      %v4906 = vmul.f32 %v3455, %v4881
      %v4907 = vmul.f32 %v3456, %v4881
      %v4908 = vmul.f32 %v3457, %v4881
      %v4909 = vmul.f32 %v3458, %v4881
      %v4910 = vmul.f32 %v3459, %v4881
      %v4911 = vmul.f32 %v3460, %v4881
      %v4912 = vmul.f32 %v3461, %v4881
      %v4913 = vmul.f32 %v3462, %v4881
      %v4914 = vmul.f32 %v3463, %v4881
      %v4915 = vmul.f32 %v3464, %v4881
      %v4916 = vmul.f32 %v3465, %v4881
      %v4917 = vmul.f32 %v3466, %v4881
      %v4918 = vmul.f32 %v3467, %v4881
      %v4919 = vmul.f32 %v3468, %v4881
      %v4920 = vmul.f32 %v3469, %v4881
      %v4921 = vmul.f32 %v3470, %v4881
      %v4922 = vmul.f32 %v3471, %v4881
      %v4923 = vmul.f32 %v3472, %v4881
      %v4924 = vmul.f32 %v3473, %v4881
      %v4925 = vmul.f32 %v3474, %v4881
      %v4926 = vmul.f32 %v3475, %v4881
      %v4927 = vmul.f32 %v3476, %v4881
      %v4928 = vmul.f32 %v3477, %v4881
      %v4929 = vmul.f32 %v3478, %v4881
      %v4978 = vrot.slane %v4882, 2
      %v4979 = vrot.slane %v4883, 2
      %v4980 = vsel %vm4495, %v4978, %v4979
      %v4981 = vrot.slane %v4884, 2
      %v4982 = vsel %vm4495, %v4979, %v4981
      %v4983 = vrot.slane %v4885, 2
      %v4984 = vrot.slane %v4886, 2
      %v4985 = vsel %vm4495, %v4983, %v4984
      %v4986 = vrot.slane %v4887, 2
      %v4987 = vsel %vm4495, %v4984, %v4986
      %v4988 = vrot.slane %v4888, 2
      %v4989 = vrot.slane %v4889, 2
      %v4990 = vsel %vm4495, %v4988, %v4989
      %v4991 = vrot.slane %v4890, 2
      %v4992 = vsel %vm4495, %v4989, %v4991
      %v4993 = vrot.slane %v4891, 2
      %v4994 = vrot.slane %v4892, 2
      %v4995 = vsel %vm4495, %v4993, %v4994
      %v4996 = vrot.slane %v4893, 2
      %v4997 = vsel %vm4495, %v4994, %v4996
      %v4998 = vrot.slane %v4894, 2
      %v4999 = vrot.slane %v4895, 2
      %v5000 = vsel %vm4495, %v4998, %v4999
      %v5001 = vrot.slane %v4896, 2
      %v5002 = vsel %vm4495, %v4999, %v5001
      %v5003 = vrot.slane %v4897, 2
      %v5004 = vrot.slane %v4898, 2
      %v5005 = vsel %vm4495, %v5003, %v5004
      %v5006 = vrot.slane %v4899, 2
      %v5007 = vsel %vm4495, %v5004, %v5006
      %v5008 = vrot.slane %v4900, 2
      %v5009 = vrot.slane %v4901, 2
      %v5010 = vsel %vm4495, %v5008, %v5009
      %v5011 = vrot.slane %v4902, 2
      %v5012 = vsel %vm4495, %v5009, %v5011
      %v5013 = vrot.slane %v4903, 2
      %v5014 = vrot.slane %v4904, 2
      %v5015 = vsel %vm4495, %v5013, %v5014
      %v5016 = vrot.slane %v4905, 2
      %v5017 = vsel %vm4495, %v5014, %v5016
      %v5018 = vrot.slane %v4906, 2
      %v5019 = vrot.slane %v4907, 2
      %v5020 = vsel %vm4495, %v5018, %v5019
      %v5021 = vrot.slane %v4908, 2
      %v5022 = vsel %vm4495, %v5019, %v5021
      %v5023 = vrot.slane %v4909, 2
      %v5024 = vrot.slane %v4910, 2
      %v5025 = vsel %vm4495, %v5023, %v5024
      %v5026 = vrot.slane %v4911, 2
      %v5027 = vsel %vm4495, %v5024, %v5026
      %v5028 = vrot.slane %v4912, 2
      %v5029 = vrot.slane %v4913, 2
      %v5030 = vsel %vm4495, %v5028, %v5029
      %v5031 = vrot.slane %v4914, 2
      %v5032 = vsel %vm4495, %v5029, %v5031
      %v5033 = vrot.slane %v4915, 2
      %v5034 = vrot.slane %v4916, 2
      %v5035 = vsel %vm4495, %v5033, %v5034
      %v5036 = vrot.slane %v4917, 2
      %v5037 = vsel %vm4495, %v5034, %v5036
      %v5038 = vrot.slane %v4918, 2
      %v5039 = vrot.slane %v4919, 2
      %v5040 = vsel %vm4495, %v5038, %v5039
      %v5041 = vrot.slane %v4920, 2
      %v5042 = vsel %vm4495, %v5039, %v5041
      %v5043 = vrot.slane %v4921, 2
      %v5044 = vrot.slane %v4922, 2
      %v5045 = vsel %vm4495, %v5043, %v5044
      %v5046 = vrot.slane %v4923, 2
      %v5047 = vsel %vm4495, %v5044, %v5046
      %v5048 = vrot.slane %v4924, 2
      %v5049 = vrot.slane %v4925, 2
      %v5050 = vsel %vm4495, %v5048, %v5049
      %v5051 = vrot.slane %v4926, 2
      %v5052 = vsel %vm4495, %v5049, %v5051
      %v5053 = vrot.slane %v4927, 2
      %v5054 = vrot.slane %v4928, 2
      %v5055 = vsel %vm4495, %v5053, %v5054
      %v5056 = vrot.slane %v4929, 2
      %v5057 = vsel %vm4495, %v5054, %v5056
      %v5090 = vadd.f32 %v4849, %v4980
      %v5091 = vadd.f32 %v4850, %v4982
      %v5092 = vadd.f32 %v4851, %v4985
      %v5093 = vadd.f32 %v4852, %v4987
      %v5094 = vadd.f32 %v4853, %v4990
      %v5095 = vadd.f32 %v4854, %v4992
      %v5096 = vadd.f32 %v4855, %v4995
      %v5097 = vadd.f32 %v4856, %v4997
      %v5098 = vadd.f32 %v4857, %v5000
      %v5099 = vadd.f32 %v4858, %v5002
      %v5100 = vadd.f32 %v4859, %v5005
      %v5101 = vadd.f32 %v4860, %v5007
      %v5102 = vadd.f32 %v4861, %v5010
      %v5103 = vadd.f32 %v4862, %v5012
      %v5104 = vadd.f32 %v4863, %v5015
      %v5105 = vadd.f32 %v4864, %v5017
      %v5106 = vadd.f32 %v4865, %v5020
      %v5107 = vadd.f32 %v4866, %v5022
      %v5108 = vadd.f32 %v4867, %v5025
      %v5109 = vadd.f32 %v4868, %v5027
      %v5110 = vadd.f32 %v4869, %v5030
      %v5111 = vadd.f32 %v4870, %v5032
      %v5112 = vadd.f32 %v4871, %v5035
      %v5113 = vadd.f32 %v4872, %v5037
      %v5114 = vadd.f32 %v4873, %v5040
      %v5115 = vadd.f32 %v4874, %v5042
      %v5116 = vadd.f32 %v4875, %v5045
      %v5117 = vadd.f32 %v4876, %v5047
      %v5118 = vadd.f32 %v4877, %v5050
      %v5119 = vadd.f32 %v4878, %v5052
      %v5120 = vadd.f32 %v4879, %v5055
      %v5121 = vadd.f32 %v4880, %v5057
      %s5122 = sadd.s32 %s21, 3
      %p5123 = scmp.lt.s32.totalorder %s5122, 0
      %s5124 = ssub.s32 0, %s5122
      %s5125 = scalar_select %p5123, %s5124, %s5122
      %s5126 = sdiv.u32.pop %s5125, 3
      %s5127 = srem.u32.pop %s5125, 3
      %s5128 = ssub.s32 0, %s5127
      %s5129 = scalar_select %p5123, %s5128, %s5127
      %p5130 = scmp.ne.s32.totalorder %s5129, 0
      %p5131 = scmp.lt.s32.totalorder %s5129, 0
      %p5132 = pnand %p5131, %p5130
      %p5133 = pneg %p5132
      %s5134 = sadd.s32 %s5129, 3
      %s5135 = scalar_select %p5133, %s5134, %s5129
      %s5136 = smul.u32 %s5135, 432
      %s5137 = scalar_lea.vmem [#allocation2], %s5136
      %v5138 = vld [vmem:[%s5137] sm:$0xff]
      %v5139 = vld [vmem:[%s5137 + $0x8] sm:$0xff]
      %v5140 = vld [vmem:[%s5137 + $0x10] sm:$0x3]
      %v5141 = vld [vmem:[%s5137 + $0x18] sm:$0xff]
      %v5142 = vld [vmem:[%s5137 + $0x20] sm:$0xff]
      %v5143 = vld [vmem:[%s5137 + $0x28] sm:$0x3]
      %v5144 = vld [vmem:[%s5137 + $0x30] sm:$0xff]
      %v5145 = vld [vmem:[%s5137 + $0x38] sm:$0xff]
      %v5146 = vld [vmem:[%s5137 + $0x40] sm:$0x3]
      %v5147 = vld [vmem:[%s5137 + $0x48] sm:$0xff]
      %v5148 = vld [vmem:[%s5137 + $0x50] sm:$0xff]
      %v5149 = vld [vmem:[%s5137 + $0x58] sm:$0x3]
      %v5150 = vld [vmem:[%s5137 + $0x60] sm:$0xff]
      %v5151 = vld [vmem:[%s5137 + $0x68] sm:$0xff]
      %v5152 = vld [vmem:[%s5137 + $0x70] sm:$0x3]
      %v5153 = vld [vmem:[%s5137 + $0x78] sm:$0xff]
      %v5154 = vld [vmem:[%s5137 + $0x80] sm:$0xff]
      %v5155 = vld [vmem:[%s5137 + $0x88] sm:$0x3]
      %v5156 = vld [vmem:[%s5137 + $0x90] sm:$0xff]
      %v5157 = vld [vmem:[%s5137 + $0x98] sm:$0xff]
      %v5158 = vld [vmem:[%s5137 + $0xa0] sm:$0x3]
      %v5159 = vld [vmem:[%s5137 + $0xa8] sm:$0xff]
      %v5160 = vld [vmem:[%s5137 + $0xb0] sm:$0xff]
      %v5161 = vld [vmem:[%s5137 + $0xb8] sm:$0x3]
      %v5162 = vld [vmem:[%s5137 + $0xc0] sm:$0xff]
      %v5163 = vld [vmem:[%s5137 + $0xc8] sm:$0xff]
      %v5164 = vld [vmem:[%s5137 + $0xd0] sm:$0x3]
      %v5165 = vld [vmem:[%s5137 + $0xd8] sm:$0xff]
      %v5166 = vld [vmem:[%s5137 + $0xe0] sm:$0xff]
      %v5167 = vld [vmem:[%s5137 + $0xe8] sm:$0x3]
      %v5168 = vld [vmem:[%s5137 + $0xf0] sm:$0xff]
      %v5169 = vld [vmem:[%s5137 + $0xf8] sm:$0xff]
      %v5170 = vld [vmem:[%s5137 + $0x100] sm:$0x3]
      %v5171 = vld [vmem:[%s5137 + $0x108] sm:$0xff]
      %v5172 = vld [vmem:[%s5137 + $0x110] sm:$0xff]
      %v5173 = vld [vmem:[%s5137 + $0x118] sm:$0x3]
      %v5174 = vld [vmem:[%s5137 + $0x120] sm:$0xff]
      %v5175 = vld [vmem:[%s5137 + $0x128] sm:$0xff]
      %v5176 = vld [vmem:[%s5137 + $0x130] sm:$0x3]
      %v5177 = vld [vmem:[%s5137 + $0x138] sm:$0xff]
      %v5178 = vld [vmem:[%s5137 + $0x140] sm:$0xff]
      %v5179 = vld [vmem:[%s5137 + $0x148] sm:$0x3]
      %v5180 = vld [vmem:[%s5137 + $0x150] sm:$0xff]
      %v5181 = vld [vmem:[%s5137 + $0x158] sm:$0xff]
      %v5182 = vld [vmem:[%s5137 + $0x160] sm:$0x3]
      %v5183 = vld [vmem:[%s5137 + $0x168] sm:$0xff]
      %v5184 = vld [vmem:[%s5137 + $0x170] sm:$0xff]
      %v5185 = vld [vmem:[%s5137 + $0x178] sm:$0x3]
      %v5186 = vld [vmem:[%s5137 + $0x180] sm:$0xff]
      %v5187 = vld [vmem:[%s5137 + $0x188] sm:$0xff]
      %v5188 = vld [vmem:[%s5137 + $0x190] sm:$0x3]
      %v5189 = vld [vmem:[%s5137 + $0x198] sm:$0xff]
      %v5190 = vld [vmem:[%s5137 + $0x1a0] sm:$0xff]
      %v5191 = vld [vmem:[%s5137 + $0x1a8] sm:$0x3]
      %v5192 = vperm.slane %v3391, 0
      %v5193 = vmul.f32 %v5138, %v5192
      %v5194 = vmul.f32 %v5139, %v5192
      %v5195 = vmul.f32 %v5141, %v5192
      %v5196 = vmul.f32 %v5142, %v5192
      %v5197 = vmul.f32 %v5144, %v5192
      %v5198 = vmul.f32 %v5145, %v5192
      %v5199 = vmul.f32 %v5147, %v5192
      %v5200 = vmul.f32 %v5148, %v5192
      %v5201 = vmul.f32 %v5150, %v5192
      %v5202 = vmul.f32 %v5151, %v5192
      %v5203 = vmul.f32 %v5153, %v5192
      %v5204 = vmul.f32 %v5154, %v5192
      %v5205 = vmul.f32 %v5156, %v5192
      %v5206 = vmul.f32 %v5157, %v5192
      %v5207 = vmul.f32 %v5159, %v5192
      %v5208 = vmul.f32 %v5160, %v5192
      %v5209 = vmul.f32 %v5162, %v5192
      %v5210 = vmul.f32 %v5163, %v5192
      %v5211 = vmul.f32 %v5165, %v5192
      %v5212 = vmul.f32 %v5166, %v5192
      %v5213 = vmul.f32 %v5168, %v5192
      %v5214 = vmul.f32 %v5169, %v5192
      %v5215 = vmul.f32 %v5171, %v5192
      %v5216 = vmul.f32 %v5172, %v5192
      %v5217 = vmul.f32 %v5174, %v5192
      %v5218 = vmul.f32 %v5175, %v5192
      %v5219 = vmul.f32 %v5177, %v5192
      %v5220 = vmul.f32 %v5178, %v5192
      %v5221 = vmul.f32 %v5180, %v5192
      %v5222 = vmul.f32 %v5181, %v5192
      %v5223 = vmul.f32 %v5183, %v5192
      %v5224 = vmul.f32 %v5184, %v5192
      %v5225 = vadd.f32 %v5090, %v5193
      %v5226 = vadd.f32 %v5091, %v5194
      %v5227 = vadd.f32 %v5092, %v5195
      %v5228 = vadd.f32 %v5093, %v5196
      %v5229 = vadd.f32 %v5094, %v5197
      %v5230 = vadd.f32 %v5095, %v5198
      %v5231 = vadd.f32 %v5096, %v5199
      %v5232 = vadd.f32 %v5097, %v5200
      %v5233 = vadd.f32 %v5098, %v5201
      %v5234 = vadd.f32 %v5099, %v5202
      %v5235 = vadd.f32 %v5100, %v5203
      %v5236 = vadd.f32 %v5101, %v5204
      %v5237 = vadd.f32 %v5102, %v5205
      %v5238 = vadd.f32 %v5103, %v5206
      %v5239 = vadd.f32 %v5104, %v5207
      %v5240 = vadd.f32 %v5105, %v5208
      %v5241 = vadd.f32 %v5106, %v5209
      %v5242 = vadd.f32 %v5107, %v5210
      %v5243 = vadd.f32 %v5108, %v5211
      %v5244 = vadd.f32 %v5109, %v5212
      %v5245 = vadd.f32 %v5110, %v5213
      %v5246 = vadd.f32 %v5111, %v5214
      %v5247 = vadd.f32 %v5112, %v5215
      %v5248 = vadd.f32 %v5113, %v5216
      %v5249 = vadd.f32 %v5114, %v5217
      %v5250 = vadd.f32 %v5115, %v5218
      %v5251 = vadd.f32 %v5116, %v5219
      %v5252 = vadd.f32 %v5117, %v5220
      %v5253 = vadd.f32 %v5118, %v5221
      %v5254 = vadd.f32 %v5119, %v5222
      %v5255 = vadd.f32 %v5120, %v5223
      %v5256 = vadd.f32 %v5121, %v5224
      %v5257 = vperm.slane %v3394, 0
      %v5258 = vmul.f32 %v5141, %v5257
      %v5259 = vmul.f32 %v5142, %v5257
      %v5260 = vmul.f32 %v5144, %v5257
      %v5261 = vmul.f32 %v5145, %v5257
      %v5262 = vmul.f32 %v5147, %v5257
      %v5263 = vmul.f32 %v5148, %v5257
      %v5264 = vmul.f32 %v5150, %v5257
      %v5265 = vmul.f32 %v5151, %v5257
      %v5266 = vmul.f32 %v5153, %v5257
      %v5267 = vmul.f32 %v5154, %v5257
      %v5268 = vmul.f32 %v5156, %v5257
      %v5269 = vmul.f32 %v5157, %v5257
      %v5270 = vmul.f32 %v5159, %v5257
      %v5271 = vmul.f32 %v5160, %v5257
      %v5272 = vmul.f32 %v5162, %v5257
      %v5273 = vmul.f32 %v5163, %v5257
      %v5274 = vmul.f32 %v5165, %v5257
      %v5275 = vmul.f32 %v5166, %v5257
      %v5276 = vmul.f32 %v5168, %v5257
      %v5277 = vmul.f32 %v5169, %v5257
      %v5278 = vmul.f32 %v5171, %v5257
      %v5279 = vmul.f32 %v5172, %v5257
      %v5280 = vmul.f32 %v5174, %v5257
      %v5281 = vmul.f32 %v5175, %v5257
      %v5282 = vmul.f32 %v5177, %v5257
      %v5283 = vmul.f32 %v5178, %v5257
      %v5284 = vmul.f32 %v5180, %v5257
      %v5285 = vmul.f32 %v5181, %v5257
      %v5286 = vmul.f32 %v5183, %v5257
      %v5287 = vmul.f32 %v5184, %v5257
      %v5288 = vmul.f32 %v5186, %v5257
      %v5289 = vmul.f32 %v5187, %v5257
      %v5290 = vadd.f32 %v5225, %v5258
      %v5291 = vadd.f32 %v5226, %v5259
      %v5292 = vadd.f32 %v5227, %v5260
      %v5293 = vadd.f32 %v5228, %v5261
      %v5294 = vadd.f32 %v5229, %v5262
      %v5295 = vadd.f32 %v5230, %v5263
      %v5296 = vadd.f32 %v5231, %v5264
      %v5297 = vadd.f32 %v5232, %v5265
      %v5298 = vadd.f32 %v5233, %v5266
      %v5299 = vadd.f32 %v5234, %v5267
      %v5300 = vadd.f32 %v5235, %v5268
      %v5301 = vadd.f32 %v5236, %v5269
      %v5302 = vadd.f32 %v5237, %v5270
      %v5303 = vadd.f32 %v5238, %v5271
      %v5304 = vadd.f32 %v5239, %v5272
      %v5305 = vadd.f32 %v5240, %v5273
      %v5306 = vadd.f32 %v5241, %v5274
      %v5307 = vadd.f32 %v5242, %v5275
      %v5308 = vadd.f32 %v5243, %v5276
      %v5309 = vadd.f32 %v5244, %v5277
      %v5310 = vadd.f32 %v5245, %v5278
      %v5311 = vadd.f32 %v5246, %v5279
      %v5312 = vadd.f32 %v5247, %v5280
      %v5313 = vadd.f32 %v5248, %v5281
      %v5314 = vadd.f32 %v5249, %v5282
      %v5315 = vadd.f32 %v5250, %v5283
      %v5316 = vadd.f32 %v5251, %v5284
      %v5317 = vadd.f32 %v5252, %v5285
      %v5318 = vadd.f32 %v5253, %v5286
      %v5319 = vadd.f32 %v5254, %v5287
      %v5320 = vadd.f32 %v5255, %v5288
      %v5321 = vadd.f32 %v5256, %v5289
      %v5322 = vperm.slane %v3397, 0
      %v5323 = vmul.f32 %v5144, %v5322
      %v5324 = vmul.f32 %v5145, %v5322
      %v5325 = vmul.f32 %v5147, %v5322
      %v5326 = vmul.f32 %v5148, %v5322
      %v5327 = vmul.f32 %v5150, %v5322
      %v5328 = vmul.f32 %v5151, %v5322
      %v5329 = vmul.f32 %v5153, %v5322
      %v5330 = vmul.f32 %v5154, %v5322
      %v5331 = vmul.f32 %v5156, %v5322
      %v5332 = vmul.f32 %v5157, %v5322
      %v5333 = vmul.f32 %v5159, %v5322
      %v5334 = vmul.f32 %v5160, %v5322
      %v5335 = vmul.f32 %v5162, %v5322
      %v5336 = vmul.f32 %v5163, %v5322
      %v5337 = vmul.f32 %v5165, %v5322
      %v5338 = vmul.f32 %v5166, %v5322
      %v5339 = vmul.f32 %v5168, %v5322
      %v5340 = vmul.f32 %v5169, %v5322
      %v5341 = vmul.f32 %v5171, %v5322
      %v5342 = vmul.f32 %v5172, %v5322
      %v5343 = vmul.f32 %v5174, %v5322
      %v5344 = vmul.f32 %v5175, %v5322
      %v5345 = vmul.f32 %v5177, %v5322
      %v5346 = vmul.f32 %v5178, %v5322
      %v5347 = vmul.f32 %v5180, %v5322
      %v5348 = vmul.f32 %v5181, %v5322
      %v5349 = vmul.f32 %v5183, %v5322
      %v5350 = vmul.f32 %v5184, %v5322
      %v5351 = vmul.f32 %v5186, %v5322
      %v5352 = vmul.f32 %v5187, %v5322
      %v5353 = vmul.f32 %v5189, %v5322
      %v5354 = vmul.f32 %v5190, %v5322
      %v5355 = vadd.f32 %v5290, %v5323
      %v5356 = vadd.f32 %v5291, %v5324
      %v5357 = vadd.f32 %v5292, %v5325
      %v5358 = vadd.f32 %v5293, %v5326
      %v5359 = vadd.f32 %v5294, %v5327
      %v5360 = vadd.f32 %v5295, %v5328
      %v5361 = vadd.f32 %v5296, %v5329
      %v5362 = vadd.f32 %v5297, %v5330
      %v5363 = vadd.f32 %v5298, %v5331
      %v5364 = vadd.f32 %v5299, %v5332
      %v5365 = vadd.f32 %v5300, %v5333
      %v5366 = vadd.f32 %v5301, %v5334
      %v5367 = vadd.f32 %v5302, %v5335
      %v5368 = vadd.f32 %v5303, %v5336
      %v5369 = vadd.f32 %v5304, %v5337
      %v5370 = vadd.f32 %v5305, %v5338
      %v5371 = vadd.f32 %v5306, %v5339
      %v5372 = vadd.f32 %v5307, %v5340
      %v5373 = vadd.f32 %v5308, %v5341
      %v5374 = vadd.f32 %v5309, %v5342
      %v5375 = vadd.f32 %v5310, %v5343
      %v5376 = vadd.f32 %v5311, %v5344
      %v5377 = vadd.f32 %v5312, %v5345
      %v5378 = vadd.f32 %v5313, %v5346
      %v5379 = vadd.f32 %v5314, %v5347
      %v5380 = vadd.f32 %v5315, %v5348
      %v5381 = vadd.f32 %v5316, %v5349
      %v5382 = vadd.f32 %v5317, %v5350
      %v5383 = vadd.f32 %v5318, %v5351
      %v5384 = vadd.f32 %v5319, %v5352
      %v5385 = vadd.f32 %v5320, %v5353
      %v5386 = vadd.f32 %v5321, %v5354
      %v5387 = vperm.slane %v3392, 0
      %v5388 = vmul.f32 %v5138, %v5387
      %v5389 = vmul.f32 %v5139, %v5387
      %v5390 = vmul.f32 %v5140, %v5387
      %v5391 = vmul.f32 %v5141, %v5387
      %v5392 = vmul.f32 %v5142, %v5387
      %v5393 = vmul.f32 %v5143, %v5387
      %v5394 = vmul.f32 %v5144, %v5387
      %v5395 = vmul.f32 %v5145, %v5387
      %v5396 = vmul.f32 %v5146, %v5387
      %v5397 = vmul.f32 %v5147, %v5387
      %v5398 = vmul.f32 %v5148, %v5387
      %v5399 = vmul.f32 %v5149, %v5387
      %v5400 = vmul.f32 %v5150, %v5387
      %v5401 = vmul.f32 %v5151, %v5387
      %v5402 = vmul.f32 %v5152, %v5387
      %v5403 = vmul.f32 %v5153, %v5387
      %v5404 = vmul.f32 %v5154, %v5387
      %v5405 = vmul.f32 %v5155, %v5387
      %v5406 = vmul.f32 %v5156, %v5387
      %v5407 = vmul.f32 %v5157, %v5387
      %v5408 = vmul.f32 %v5158, %v5387
      %v5409 = vmul.f32 %v5159, %v5387
      %v5410 = vmul.f32 %v5160, %v5387
      %v5411 = vmul.f32 %v5161, %v5387
      %v5412 = vmul.f32 %v5162, %v5387
      %v5413 = vmul.f32 %v5163, %v5387
      %v5414 = vmul.f32 %v5164, %v5387
      %v5415 = vmul.f32 %v5165, %v5387
      %v5416 = vmul.f32 %v5166, %v5387
      %v5417 = vmul.f32 %v5167, %v5387
      %v5418 = vmul.f32 %v5168, %v5387
      %v5419 = vmul.f32 %v5169, %v5387
      %v5420 = vmul.f32 %v5170, %v5387
      %v5421 = vmul.f32 %v5171, %v5387
      %v5422 = vmul.f32 %v5172, %v5387
      %v5423 = vmul.f32 %v5173, %v5387
      %v5424 = vmul.f32 %v5174, %v5387
      %v5425 = vmul.f32 %v5175, %v5387
      %v5426 = vmul.f32 %v5176, %v5387
      %v5427 = vmul.f32 %v5177, %v5387
      %v5428 = vmul.f32 %v5178, %v5387
      %v5429 = vmul.f32 %v5179, %v5387
      %v5430 = vmul.f32 %v5180, %v5387
      %v5431 = vmul.f32 %v5181, %v5387
      %v5432 = vmul.f32 %v5182, %v5387
      %v5433 = vmul.f32 %v5183, %v5387
      %v5434 = vmul.f32 %v5184, %v5387
      %v5435 = vmul.f32 %v5185, %v5387
      %v5484 = vrot.slane %v5388, 1
      %v5485 = vrot.slane %v5389, 1
      %v5486 = vsel %vm3771, %v5484, %v5485
      %v5487 = vrot.slane %v5390, 1
      %v5488 = vsel %vm3771, %v5485, %v5487
      %v5489 = vrot.slane %v5391, 1
      %v5490 = vrot.slane %v5392, 1
      %v5491 = vsel %vm3771, %v5489, %v5490
      %v5492 = vrot.slane %v5393, 1
      %v5493 = vsel %vm3771, %v5490, %v5492
      %v5494 = vrot.slane %v5394, 1
      %v5495 = vrot.slane %v5395, 1
      %v5496 = vsel %vm3771, %v5494, %v5495
      %v5497 = vrot.slane %v5396, 1
      %v5498 = vsel %vm3771, %v5495, %v5497
      %v5499 = vrot.slane %v5397, 1
      %v5500 = vrot.slane %v5398, 1
      %v5501 = vsel %vm3771, %v5499, %v5500
      %v5502 = vrot.slane %v5399, 1
      %v5503 = vsel %vm3771, %v5500, %v5502
      %v5504 = vrot.slane %v5400, 1
      %v5505 = vrot.slane %v5401, 1
      %v5506 = vsel %vm3771, %v5504, %v5505
      %v5507 = vrot.slane %v5402, 1
      %v5508 = vsel %vm3771, %v5505, %v5507
      %v5509 = vrot.slane %v5403, 1
      %v5510 = vrot.slane %v5404, 1
      %v5511 = vsel %vm3771, %v5509, %v5510
      %v5512 = vrot.slane %v5405, 1
      %v5513 = vsel %vm3771, %v5510, %v5512
      %v5514 = vrot.slane %v5406, 1
      %v5515 = vrot.slane %v5407, 1
      %v5516 = vsel %vm3771, %v5514, %v5515
      %v5517 = vrot.slane %v5408, 1
      %v5518 = vsel %vm3771, %v5515, %v5517
      %v5519 = vrot.slane %v5409, 1
      %v5520 = vrot.slane %v5410, 1
      %v5521 = vsel %vm3771, %v5519, %v5520
      %v5522 = vrot.slane %v5411, 1
      %v5523 = vsel %vm3771, %v5520, %v5522
      %v5524 = vrot.slane %v5412, 1
      %v5525 = vrot.slane %v5413, 1
      %v5526 = vsel %vm3771, %v5524, %v5525
      %v5527 = vrot.slane %v5414, 1
      %v5528 = vsel %vm3771, %v5525, %v5527
      %v5529 = vrot.slane %v5415, 1
      %v5530 = vrot.slane %v5416, 1
      %v5531 = vsel %vm3771, %v5529, %v5530
      %v5532 = vrot.slane %v5417, 1
      %v5533 = vsel %vm3771, %v5530, %v5532
      %v5534 = vrot.slane %v5418, 1
      %v5535 = vrot.slane %v5419, 1
      %v5536 = vsel %vm3771, %v5534, %v5535
      %v5537 = vrot.slane %v5420, 1
      %v5538 = vsel %vm3771, %v5535, %v5537
      %v5539 = vrot.slane %v5421, 1
      %v5540 = vrot.slane %v5422, 1
      %v5541 = vsel %vm3771, %v5539, %v5540
      %v5542 = vrot.slane %v5423, 1
      %v5543 = vsel %vm3771, %v5540, %v5542
      %v5544 = vrot.slane %v5424, 1
      %v5545 = vrot.slane %v5425, 1
      %v5546 = vsel %vm3771, %v5544, %v5545
      %v5547 = vrot.slane %v5426, 1
      %v5548 = vsel %vm3771, %v5545, %v5547
      %v5549 = vrot.slane %v5427, 1
      %v5550 = vrot.slane %v5428, 1
      %v5551 = vsel %vm3771, %v5549, %v5550
      %v5552 = vrot.slane %v5429, 1
      %v5553 = vsel %vm3771, %v5550, %v5552
      %v5554 = vrot.slane %v5430, 1
      %v5555 = vrot.slane %v5431, 1
      %v5556 = vsel %vm3771, %v5554, %v5555
      %v5557 = vrot.slane %v5432, 1
      %v5558 = vsel %vm3771, %v5555, %v5557
      %v5559 = vrot.slane %v5433, 1
      %v5560 = vrot.slane %v5434, 1
      %v5561 = vsel %vm3771, %v5559, %v5560
      %v5562 = vrot.slane %v5435, 1
      %v5563 = vsel %vm3771, %v5560, %v5562
      %v5596 = vadd.f32 %v5355, %v5486
      %v5597 = vadd.f32 %v5356, %v5488
      %v5598 = vadd.f32 %v5357, %v5491
      %v5599 = vadd.f32 %v5358, %v5493
      %v5600 = vadd.f32 %v5359, %v5496
      %v5601 = vadd.f32 %v5360, %v5498
      %v5602 = vadd.f32 %v5361, %v5501
      %v5603 = vadd.f32 %v5362, %v5503
      %v5604 = vadd.f32 %v5363, %v5506
      %v5605 = vadd.f32 %v5364, %v5508
      %v5606 = vadd.f32 %v5365, %v5511
      %v5607 = vadd.f32 %v5366, %v5513
      %v5608 = vadd.f32 %v5367, %v5516
      %v5609 = vadd.f32 %v5368, %v5518
      %v5610 = vadd.f32 %v5369, %v5521
      %v5611 = vadd.f32 %v5370, %v5523
      %v5612 = vadd.f32 %v5371, %v5526
      %v5613 = vadd.f32 %v5372, %v5528
      %v5614 = vadd.f32 %v5373, %v5531
      %v5615 = vadd.f32 %v5374, %v5533
      %v5616 = vadd.f32 %v5375, %v5536
      %v5617 = vadd.f32 %v5376, %v5538
      %v5618 = vadd.f32 %v5377, %v5541
      %v5619 = vadd.f32 %v5378, %v5543
      %v5620 = vadd.f32 %v5379, %v5546
      %v5621 = vadd.f32 %v5380, %v5548
      %v5622 = vadd.f32 %v5381, %v5551
      %v5623 = vadd.f32 %v5382, %v5553
      %v5624 = vadd.f32 %v5383, %v5556
      %v5625 = vadd.f32 %v5384, %v5558
      %v5626 = vadd.f32 %v5385, %v5561
      %v5627 = vadd.f32 %v5386, %v5563
      %v5628 = vperm.slane %v3395, 0
      %v5629 = vmul.f32 %v5141, %v5628
      %v5630 = vmul.f32 %v5142, %v5628
      %v5631 = vmul.f32 %v5143, %v5628
      %v5632 = vmul.f32 %v5144, %v5628
      %v5633 = vmul.f32 %v5145, %v5628
      %v5634 = vmul.f32 %v5146, %v5628
      %v5635 = vmul.f32 %v5147, %v5628
      %v5636 = vmul.f32 %v5148, %v5628
      %v5637 = vmul.f32 %v5149, %v5628
      %v5638 = vmul.f32 %v5150, %v5628
      %v5639 = vmul.f32 %v5151, %v5628
      %v5640 = vmul.f32 %v5152, %v5628
      %v5641 = vmul.f32 %v5153, %v5628
      %v5642 = vmul.f32 %v5154, %v5628
      %v5643 = vmul.f32 %v5155, %v5628
      %v5644 = vmul.f32 %v5156, %v5628
      %v5645 = vmul.f32 %v5157, %v5628
      %v5646 = vmul.f32 %v5158, %v5628
      %v5647 = vmul.f32 %v5159, %v5628
      %v5648 = vmul.f32 %v5160, %v5628
      %v5649 = vmul.f32 %v5161, %v5628
      %v5650 = vmul.f32 %v5162, %v5628
      %v5651 = vmul.f32 %v5163, %v5628
      %v5652 = vmul.f32 %v5164, %v5628
      %v5653 = vmul.f32 %v5165, %v5628
      %v5654 = vmul.f32 %v5166, %v5628
      %v5655 = vmul.f32 %v5167, %v5628
      %v5656 = vmul.f32 %v5168, %v5628
      %v5657 = vmul.f32 %v5169, %v5628
      %v5658 = vmul.f32 %v5170, %v5628
      %v5659 = vmul.f32 %v5171, %v5628
      %v5660 = vmul.f32 %v5172, %v5628
      %v5661 = vmul.f32 %v5173, %v5628
      %v5662 = vmul.f32 %v5174, %v5628
      %v5663 = vmul.f32 %v5175, %v5628
      %v5664 = vmul.f32 %v5176, %v5628
      %v5665 = vmul.f32 %v5177, %v5628
      %v5666 = vmul.f32 %v5178, %v5628
      %v5667 = vmul.f32 %v5179, %v5628
      %v5668 = vmul.f32 %v5180, %v5628
      %v5669 = vmul.f32 %v5181, %v5628
      %v5670 = vmul.f32 %v5182, %v5628
      %v5671 = vmul.f32 %v5183, %v5628
      %v5672 = vmul.f32 %v5184, %v5628
      %v5673 = vmul.f32 %v5185, %v5628
      %v5674 = vmul.f32 %v5186, %v5628
      %v5675 = vmul.f32 %v5187, %v5628
      %v5676 = vmul.f32 %v5188, %v5628
      %v5725 = vrot.slane %v5629, 1
      %v5726 = vrot.slane %v5630, 1
      %v5727 = vsel %vm3771, %v5725, %v5726
      %v5728 = vrot.slane %v5631, 1
      %v5729 = vsel %vm3771, %v5726, %v5728
      %v5730 = vrot.slane %v5632, 1
      %v5731 = vrot.slane %v5633, 1
      %v5732 = vsel %vm3771, %v5730, %v5731
      %v5733 = vrot.slane %v5634, 1
      %v5734 = vsel %vm3771, %v5731, %v5733
      %v5735 = vrot.slane %v5635, 1
      %v5736 = vrot.slane %v5636, 1
      %v5737 = vsel %vm3771, %v5735, %v5736
      %v5738 = vrot.slane %v5637, 1
      %v5739 = vsel %vm3771, %v5736, %v5738
      %v5740 = vrot.slane %v5638, 1
      %v5741 = vrot.slane %v5639, 1
      %v5742 = vsel %vm3771, %v5740, %v5741
      %v5743 = vrot.slane %v5640, 1
      %v5744 = vsel %vm3771, %v5741, %v5743
      %v5745 = vrot.slane %v5641, 1
      %v5746 = vrot.slane %v5642, 1
      %v5747 = vsel %vm3771, %v5745, %v5746
      %v5748 = vrot.slane %v5643, 1
      %v5749 = vsel %vm3771, %v5746, %v5748
      %v5750 = vrot.slane %v5644, 1
      %v5751 = vrot.slane %v5645, 1
      %v5752 = vsel %vm3771, %v5750, %v5751
      %v5753 = vrot.slane %v5646, 1
      %v5754 = vsel %vm3771, %v5751, %v5753
      %v5755 = vrot.slane %v5647, 1
      %v5756 = vrot.slane %v5648, 1
      %v5757 = vsel %vm3771, %v5755, %v5756
      %v5758 = vrot.slane %v5649, 1
      %v5759 = vsel %vm3771, %v5756, %v5758
      %v5760 = vrot.slane %v5650, 1
      %v5761 = vrot.slane %v5651, 1
      %v5762 = vsel %vm3771, %v5760, %v5761
      %v5763 = vrot.slane %v5652, 1
      %v5764 = vsel %vm3771, %v5761, %v5763
      %v5765 = vrot.slane %v5653, 1
      %v5766 = vrot.slane %v5654, 1
      %v5767 = vsel %vm3771, %v5765, %v5766
      %v5768 = vrot.slane %v5655, 1
      %v5769 = vsel %vm3771, %v5766, %v5768
      %v5770 = vrot.slane %v5656, 1
      %v5771 = vrot.slane %v5657, 1
      %v5772 = vsel %vm3771, %v5770, %v5771
      %v5773 = vrot.slane %v5658, 1
      %v5774 = vsel %vm3771, %v5771, %v5773
      %v5775 = vrot.slane %v5659, 1
      %v5776 = vrot.slane %v5660, 1
      %v5777 = vsel %vm3771, %v5775, %v5776
      %v5778 = vrot.slane %v5661, 1
      %v5779 = vsel %vm3771, %v5776, %v5778
      %v5780 = vrot.slane %v5662, 1
      %v5781 = vrot.slane %v5663, 1
      %v5782 = vsel %vm3771, %v5780, %v5781
      %v5783 = vrot.slane %v5664, 1
      %v5784 = vsel %vm3771, %v5781, %v5783
      %v5785 = vrot.slane %v5665, 1
      %v5786 = vrot.slane %v5666, 1
      %v5787 = vsel %vm3771, %v5785, %v5786
      %v5788 = vrot.slane %v5667, 1
      %v5789 = vsel %vm3771, %v5786, %v5788
      %v5790 = vrot.slane %v5668, 1
      %v5791 = vrot.slane %v5669, 1
      %v5792 = vsel %vm3771, %v5790, %v5791
      %v5793 = vrot.slane %v5670, 1
      %v5794 = vsel %vm3771, %v5791, %v5793
      %v5795 = vrot.slane %v5671, 1
      %v5796 = vrot.slane %v5672, 1
      %v5797 = vsel %vm3771, %v5795, %v5796
      %v5798 = vrot.slane %v5673, 1
      %v5799 = vsel %vm3771, %v5796, %v5798
      %v5800 = vrot.slane %v5674, 1
      %v5801 = vrot.slane %v5675, 1
      %v5802 = vsel %vm3771, %v5800, %v5801
      %v5803 = vrot.slane %v5676, 1
      %v5804 = vsel %vm3771, %v5801, %v5803
      %v5837 = vadd.f32 %v5596, %v5727
      %v5838 = vadd.f32 %v5597, %v5729
      %v5839 = vadd.f32 %v5598, %v5732
      %v5840 = vadd.f32 %v5599, %v5734
      %v5841 = vadd.f32 %v5600, %v5737
      %v5842 = vadd.f32 %v5601, %v5739
      %v5843 = vadd.f32 %v5602, %v5742
      %v5844 = vadd.f32 %v5603, %v5744
      %v5845 = vadd.f32 %v5604, %v5747
      %v5846 = vadd.f32 %v5605, %v5749
      %v5847 = vadd.f32 %v5606, %v5752
      %v5848 = vadd.f32 %v5607, %v5754
      %v5849 = vadd.f32 %v5608, %v5757
      %v5850 = vadd.f32 %v5609, %v5759
      %v5851 = vadd.f32 %v5610, %v5762
      %v5852 = vadd.f32 %v5611, %v5764
      %v5853 = vadd.f32 %v5612, %v5767
      %v5854 = vadd.f32 %v5613, %v5769
      %v5855 = vadd.f32 %v5614, %v5772
      %v5856 = vadd.f32 %v5615, %v5774
      %v5857 = vadd.f32 %v5616, %v5777
      %v5858 = vadd.f32 %v5617, %v5779
      %v5859 = vadd.f32 %v5618, %v5782
      %v5860 = vadd.f32 %v5619, %v5784
      %v5861 = vadd.f32 %v5620, %v5787
      %v5862 = vadd.f32 %v5621, %v5789
      %v5863 = vadd.f32 %v5622, %v5792
      %v5864 = vadd.f32 %v5623, %v5794
      %v5865 = vadd.f32 %v5624, %v5797
      %v5866 = vadd.f32 %v5625, %v5799
      %v5867 = vadd.f32 %v5626, %v5802
      %v5868 = vadd.f32 %v5627, %v5804
      %v5869 = vperm.slane %v3398, 0
      %v5870 = vmul.f32 %v5144, %v5869
      %v5871 = vmul.f32 %v5145, %v5869
      %v5872 = vmul.f32 %v5146, %v5869
      %v5873 = vmul.f32 %v5147, %v5869
      %v5874 = vmul.f32 %v5148, %v5869
      %v5875 = vmul.f32 %v5149, %v5869
      %v5876 = vmul.f32 %v5150, %v5869
      %v5877 = vmul.f32 %v5151, %v5869
      %v5878 = vmul.f32 %v5152, %v5869
      %v5879 = vmul.f32 %v5153, %v5869
      %v5880 = vmul.f32 %v5154, %v5869
      %v5881 = vmul.f32 %v5155, %v5869
      %v5882 = vmul.f32 %v5156, %v5869
      %v5883 = vmul.f32 %v5157, %v5869
      %v5884 = vmul.f32 %v5158, %v5869
      %v5885 = vmul.f32 %v5159, %v5869
      %v5886 = vmul.f32 %v5160, %v5869
      %v5887 = vmul.f32 %v5161, %v5869
      %v5888 = vmul.f32 %v5162, %v5869
      %v5889 = vmul.f32 %v5163, %v5869
      %v5890 = vmul.f32 %v5164, %v5869
      %v5891 = vmul.f32 %v5165, %v5869
      %v5892 = vmul.f32 %v5166, %v5869
      %v5893 = vmul.f32 %v5167, %v5869
      %v5894 = vmul.f32 %v5168, %v5869
      %v5895 = vmul.f32 %v5169, %v5869
      %v5896 = vmul.f32 %v5170, %v5869
      %v5897 = vmul.f32 %v5171, %v5869
      %v5898 = vmul.f32 %v5172, %v5869
      %v5899 = vmul.f32 %v5173, %v5869
      %v5900 = vmul.f32 %v5174, %v5869
      %v5901 = vmul.f32 %v5175, %v5869
      %v5902 = vmul.f32 %v5176, %v5869
      %v5903 = vmul.f32 %v5177, %v5869
      %v5904 = vmul.f32 %v5178, %v5869
      %v5905 = vmul.f32 %v5179, %v5869
      %v5906 = vmul.f32 %v5180, %v5869
      %v5907 = vmul.f32 %v5181, %v5869
      %v5908 = vmul.f32 %v5182, %v5869
      %v5909 = vmul.f32 %v5183, %v5869
      %v5910 = vmul.f32 %v5184, %v5869
      %v5911 = vmul.f32 %v5185, %v5869
      %v5912 = vmul.f32 %v5186, %v5869
      %v5913 = vmul.f32 %v5187, %v5869
      %v5914 = vmul.f32 %v5188, %v5869
      %v5915 = vmul.f32 %v5189, %v5869
      %v5916 = vmul.f32 %v5190, %v5869
      %v5917 = vmul.f32 %v5191, %v5869
      %v5966 = vrot.slane %v5870, 1
      %v5967 = vrot.slane %v5871, 1
      %v5968 = vsel %vm3771, %v5966, %v5967
      %v5969 = vrot.slane %v5872, 1
      %v5970 = vsel %vm3771, %v5967, %v5969
      %v5971 = vrot.slane %v5873, 1
      %v5972 = vrot.slane %v5874, 1
      %v5973 = vsel %vm3771, %v5971, %v5972
      %v5974 = vrot.slane %v5875, 1
      %v5975 = vsel %vm3771, %v5972, %v5974
      %v5976 = vrot.slane %v5876, 1
      %v5977 = vrot.slane %v5877, 1
      %v5978 = vsel %vm3771, %v5976, %v5977
      %v5979 = vrot.slane %v5878, 1
      %v5980 = vsel %vm3771, %v5977, %v5979
      %v5981 = vrot.slane %v5879, 1
      %v5982 = vrot.slane %v5880, 1
      %v5983 = vsel %vm3771, %v5981, %v5982
      %v5984 = vrot.slane %v5881, 1
      %v5985 = vsel %vm3771, %v5982, %v5984
      %v5986 = vrot.slane %v5882, 1
      %v5987 = vrot.slane %v5883, 1
      %v5988 = vsel %vm3771, %v5986, %v5987
      %v5989 = vrot.slane %v5884, 1
      %v5990 = vsel %vm3771, %v5987, %v5989
      %v5991 = vrot.slane %v5885, 1
      %v5992 = vrot.slane %v5886, 1
      %v5993 = vsel %vm3771, %v5991, %v5992
      %v5994 = vrot.slane %v5887, 1
      %v5995 = vsel %vm3771, %v5992, %v5994
      %v5996 = vrot.slane %v5888, 1
      %v5997 = vrot.slane %v5889, 1
      %v5998 = vsel %vm3771, %v5996, %v5997
      %v5999 = vrot.slane %v5890, 1
      %v6000 = vsel %vm3771, %v5997, %v5999
      %v6001 = vrot.slane %v5891, 1
      %v6002 = vrot.slane %v5892, 1
      %v6003 = vsel %vm3771, %v6001, %v6002
      %v6004 = vrot.slane %v5893, 1
      %v6005 = vsel %vm3771, %v6002, %v6004
      %v6006 = vrot.slane %v5894, 1
      %v6007 = vrot.slane %v5895, 1
      %v6008 = vsel %vm3771, %v6006, %v6007
      %v6009 = vrot.slane %v5896, 1
      %v6010 = vsel %vm3771, %v6007, %v6009
      %v6011 = vrot.slane %v5897, 1
      %v6012 = vrot.slane %v5898, 1
      %v6013 = vsel %vm3771, %v6011, %v6012
      %v6014 = vrot.slane %v5899, 1
      %v6015 = vsel %vm3771, %v6012, %v6014
      %v6016 = vrot.slane %v5900, 1
      %v6017 = vrot.slane %v5901, 1
      %v6018 = vsel %vm3771, %v6016, %v6017
      %v6019 = vrot.slane %v5902, 1
      %v6020 = vsel %vm3771, %v6017, %v6019
      %v6021 = vrot.slane %v5903, 1
      %v6022 = vrot.slane %v5904, 1
      %v6023 = vsel %vm3771, %v6021, %v6022
      %v6024 = vrot.slane %v5905, 1
      %v6025 = vsel %vm3771, %v6022, %v6024
      %v6026 = vrot.slane %v5906, 1
      %v6027 = vrot.slane %v5907, 1
      %v6028 = vsel %vm3771, %v6026, %v6027
      %v6029 = vrot.slane %v5908, 1
      %v6030 = vsel %vm3771, %v6027, %v6029
      %v6031 = vrot.slane %v5909, 1
      %v6032 = vrot.slane %v5910, 1
      %v6033 = vsel %vm3771, %v6031, %v6032
      %v6034 = vrot.slane %v5911, 1
      %v6035 = vsel %vm3771, %v6032, %v6034
      %v6036 = vrot.slane %v5912, 1
      %v6037 = vrot.slane %v5913, 1
      %v6038 = vsel %vm3771, %v6036, %v6037
      %v6039 = vrot.slane %v5914, 1
      %v6040 = vsel %vm3771, %v6037, %v6039
      %v6041 = vrot.slane %v5915, 1
      %v6042 = vrot.slane %v5916, 1
      %v6043 = vsel %vm3771, %v6041, %v6042
      %v6044 = vrot.slane %v5917, 1
      %v6045 = vsel %vm3771, %v6042, %v6044
      %v6078 = vadd.f32 %v5837, %v5968
      %v6079 = vadd.f32 %v5838, %v5970
      %v6080 = vadd.f32 %v5839, %v5973
      %v6081 = vadd.f32 %v5840, %v5975
      %v6082 = vadd.f32 %v5841, %v5978
      %v6083 = vadd.f32 %v5842, %v5980
      %v6084 = vadd.f32 %v5843, %v5983
      %v6085 = vadd.f32 %v5844, %v5985
      %v6086 = vadd.f32 %v5845, %v5988
      %v6087 = vadd.f32 %v5846, %v5990
      %v6088 = vadd.f32 %v5847, %v5993
      %v6089 = vadd.f32 %v5848, %v5995
      %v6090 = vadd.f32 %v5849, %v5998
      %v6091 = vadd.f32 %v5850, %v6000
      %v6092 = vadd.f32 %v5851, %v6003
      %v6093 = vadd.f32 %v5852, %v6005
      %v6094 = vadd.f32 %v5853, %v6008
      %v6095 = vadd.f32 %v5854, %v6010
      %v6096 = vadd.f32 %v5855, %v6013
      %v6097 = vadd.f32 %v5856, %v6015
      %v6098 = vadd.f32 %v5857, %v6018
      %v6099 = vadd.f32 %v5858, %v6020
      %v6100 = vadd.f32 %v5859, %v6023
      %v6101 = vadd.f32 %v5860, %v6025
      %v6102 = vadd.f32 %v5861, %v6028
      %v6103 = vadd.f32 %v5862, %v6030
      %v6104 = vadd.f32 %v5863, %v6033
      %v6105 = vadd.f32 %v5864, %v6035
      %v6106 = vadd.f32 %v5865, %v6038
      %v6107 = vadd.f32 %v5866, %v6040
      %v6108 = vadd.f32 %v5867, %v6043
      %v6109 = vadd.f32 %v5868, %v6045
      %v6110 = vperm.slane %v3393, 0
      %v6111 = vmul.f32 %v5138, %v6110
      %v6112 = vmul.f32 %v5139, %v6110
      %v6113 = vmul.f32 %v5140, %v6110
      %v6114 = vmul.f32 %v5141, %v6110
      %v6115 = vmul.f32 %v5142, %v6110
      %v6116 = vmul.f32 %v5143, %v6110
      %v6117 = vmul.f32 %v5144, %v6110
      %v6118 = vmul.f32 %v5145, %v6110
      %v6119 = vmul.f32 %v5146, %v6110
      %v6120 = vmul.f32 %v5147, %v6110
      %v6121 = vmul.f32 %v5148, %v6110
      %v6122 = vmul.f32 %v5149, %v6110
      %v6123 = vmul.f32 %v5150, %v6110
      %v6124 = vmul.f32 %v5151, %v6110
      %v6125 = vmul.f32 %v5152, %v6110
      %v6126 = vmul.f32 %v5153, %v6110
      %v6127 = vmul.f32 %v5154, %v6110
      %v6128 = vmul.f32 %v5155, %v6110
      %v6129 = vmul.f32 %v5156, %v6110
      %v6130 = vmul.f32 %v5157, %v6110
      %v6131 = vmul.f32 %v5158, %v6110
      %v6132 = vmul.f32 %v5159, %v6110
      %v6133 = vmul.f32 %v5160, %v6110
      %v6134 = vmul.f32 %v5161, %v6110
      %v6135 = vmul.f32 %v5162, %v6110
      %v6136 = vmul.f32 %v5163, %v6110
      %v6137 = vmul.f32 %v5164, %v6110
      %v6138 = vmul.f32 %v5165, %v6110
      %v6139 = vmul.f32 %v5166, %v6110
      %v6140 = vmul.f32 %v5167, %v6110
      %v6141 = vmul.f32 %v5168, %v6110
      %v6142 = vmul.f32 %v5169, %v6110
      %v6143 = vmul.f32 %v5170, %v6110
      %v6144 = vmul.f32 %v5171, %v6110
      %v6145 = vmul.f32 %v5172, %v6110
      %v6146 = vmul.f32 %v5173, %v6110
      %v6147 = vmul.f32 %v5174, %v6110
      %v6148 = vmul.f32 %v5175, %v6110
      %v6149 = vmul.f32 %v5176, %v6110
      %v6150 = vmul.f32 %v5177, %v6110
      %v6151 = vmul.f32 %v5178, %v6110
      %v6152 = vmul.f32 %v5179, %v6110
      %v6153 = vmul.f32 %v5180, %v6110
      %v6154 = vmul.f32 %v5181, %v6110
      %v6155 = vmul.f32 %v5182, %v6110
      %v6156 = vmul.f32 %v5183, %v6110
      %v6157 = vmul.f32 %v5184, %v6110
      %v6158 = vmul.f32 %v5185, %v6110
      %v6207 = vrot.slane %v6111, 2
      %v6208 = vrot.slane %v6112, 2
      %v6209 = vsel %vm4495, %v6207, %v6208
      %v6210 = vrot.slane %v6113, 2
      %v6211 = vsel %vm4495, %v6208, %v6210
      %v6212 = vrot.slane %v6114, 2
      %v6213 = vrot.slane %v6115, 2
      %v6214 = vsel %vm4495, %v6212, %v6213
      %v6215 = vrot.slane %v6116, 2
      %v6216 = vsel %vm4495, %v6213, %v6215
      %v6217 = vrot.slane %v6117, 2
      %v6218 = vrot.slane %v6118, 2
      %v6219 = vsel %vm4495, %v6217, %v6218
      %v6220 = vrot.slane %v6119, 2
      %v6221 = vsel %vm4495, %v6218, %v6220
      %v6222 = vrot.slane %v6120, 2
      %v6223 = vrot.slane %v6121, 2
      %v6224 = vsel %vm4495, %v6222, %v6223
      %v6225 = vrot.slane %v6122, 2
      %v6226 = vsel %vm4495, %v6223, %v6225
      %v6227 = vrot.slane %v6123, 2
      %v6228 = vrot.slane %v6124, 2
      %v6229 = vsel %vm4495, %v6227, %v6228
      %v6230 = vrot.slane %v6125, 2
      %v6231 = vsel %vm4495, %v6228, %v6230
      %v6232 = vrot.slane %v6126, 2
      %v6233 = vrot.slane %v6127, 2
      %v6234 = vsel %vm4495, %v6232, %v6233
      %v6235 = vrot.slane %v6128, 2
      %v6236 = vsel %vm4495, %v6233, %v6235
      %v6237 = vrot.slane %v6129, 2
      %v6238 = vrot.slane %v6130, 2
      %v6239 = vsel %vm4495, %v6237, %v6238
      %v6240 = vrot.slane %v6131, 2
      %v6241 = vsel %vm4495, %v6238, %v6240
      %v6242 = vrot.slane %v6132, 2
      %v6243 = vrot.slane %v6133, 2
      %v6244 = vsel %vm4495, %v6242, %v6243
      %v6245 = vrot.slane %v6134, 2
      %v6246 = vsel %vm4495, %v6243, %v6245
      %v6247 = vrot.slane %v6135, 2
      %v6248 = vrot.slane %v6136, 2
      %v6249 = vsel %vm4495, %v6247, %v6248
      %v6250 = vrot.slane %v6137, 2
      %v6251 = vsel %vm4495, %v6248, %v6250
      %v6252 = vrot.slane %v6138, 2
      %v6253 = vrot.slane %v6139, 2
      %v6254 = vsel %vm4495, %v6252, %v6253
      %v6255 = vrot.slane %v6140, 2
      %v6256 = vsel %vm4495, %v6253, %v6255
      %v6257 = vrot.slane %v6141, 2
      %v6258 = vrot.slane %v6142, 2
      %v6259 = vsel %vm4495, %v6257, %v6258
      %v6260 = vrot.slane %v6143, 2
      %v6261 = vsel %vm4495, %v6258, %v6260
      %v6262 = vrot.slane %v6144, 2
      %v6263 = vrot.slane %v6145, 2
      %v6264 = vsel %vm4495, %v6262, %v6263
      %v6265 = vrot.slane %v6146, 2
      %v6266 = vsel %vm4495, %v6263, %v6265
      %v6267 = vrot.slane %v6147, 2
      %v6268 = vrot.slane %v6148, 2
      %v6269 = vsel %vm4495, %v6267, %v6268
      %v6270 = vrot.slane %v6149, 2
      %v6271 = vsel %vm4495, %v6268, %v6270
      %v6272 = vrot.slane %v6150, 2
      %v6273 = vrot.slane %v6151, 2
      %v6274 = vsel %vm4495, %v6272, %v6273
      %v6275 = vrot.slane %v6152, 2
      %v6276 = vsel %vm4495, %v6273, %v6275
      %v6277 = vrot.slane %v6153, 2
      %v6278 = vrot.slane %v6154, 2
      %v6279 = vsel %vm4495, %v6277, %v6278
      %v6280 = vrot.slane %v6155, 2
      %v6281 = vsel %vm4495, %v6278, %v6280
      %v6282 = vrot.slane %v6156, 2
      %v6283 = vrot.slane %v6157, 2
      %v6284 = vsel %vm4495, %v6282, %v6283
      %v6285 = vrot.slane %v6158, 2
      %v6286 = vsel %vm4495, %v6283, %v6285
      %v6319 = vadd.f32 %v6078, %v6209
      %v6320 = vadd.f32 %v6079, %v6211
      %v6321 = vadd.f32 %v6080, %v6214
      %v6322 = vadd.f32 %v6081, %v6216
      %v6323 = vadd.f32 %v6082, %v6219
      %v6324 = vadd.f32 %v6083, %v6221
      %v6325 = vadd.f32 %v6084, %v6224
      %v6326 = vadd.f32 %v6085, %v6226
      %v6327 = vadd.f32 %v6086, %v6229
      %v6328 = vadd.f32 %v6087, %v6231
      %v6329 = vadd.f32 %v6088, %v6234
      %v6330 = vadd.f32 %v6089, %v6236
      %v6331 = vadd.f32 %v6090, %v6239
      %v6332 = vadd.f32 %v6091, %v6241
      %v6333 = vadd.f32 %v6092, %v6244
      %v6334 = vadd.f32 %v6093, %v6246
      %v6335 = vadd.f32 %v6094, %v6249
      %v6336 = vadd.f32 %v6095, %v6251
      %v6337 = vadd.f32 %v6096, %v6254
      %v6338 = vadd.f32 %v6097, %v6256
      %v6339 = vadd.f32 %v6098, %v6259
      %v6340 = vadd.f32 %v6099, %v6261
      %v6341 = vadd.f32 %v6100, %v6264
      %v6342 = vadd.f32 %v6101, %v6266
      %v6343 = vadd.f32 %v6102, %v6269
      %v6344 = vadd.f32 %v6103, %v6271
      %v6345 = vadd.f32 %v6104, %v6274
      %v6346 = vadd.f32 %v6105, %v6276
      %v6347 = vadd.f32 %v6106, %v6279
      %v6348 = vadd.f32 %v6107, %v6281
      %v6349 = vadd.f32 %v6108, %v6284
      %v6350 = vadd.f32 %v6109, %v6286
      %v6351 = vperm.slane %v3396, 0
      %v6352 = vmul.f32 %v5141, %v6351
      %v6353 = vmul.f32 %v5142, %v6351
      %v6354 = vmul.f32 %v5143, %v6351
      %v6355 = vmul.f32 %v5144, %v6351
      %v6356 = vmul.f32 %v5145, %v6351
      %v6357 = vmul.f32 %v5146, %v6351
      %v6358 = vmul.f32 %v5147, %v6351
      %v6359 = vmul.f32 %v5148, %v6351
      %v6360 = vmul.f32 %v5149, %v6351
      %v6361 = vmul.f32 %v5150, %v6351
      %v6362 = vmul.f32 %v5151, %v6351
      %v6363 = vmul.f32 %v5152, %v6351
      %v6364 = vmul.f32 %v5153, %v6351
      %v6365 = vmul.f32 %v5154, %v6351
      %v6366 = vmul.f32 %v5155, %v6351
      %v6367 = vmul.f32 %v5156, %v6351
      %v6368 = vmul.f32 %v5157, %v6351
      %v6369 = vmul.f32 %v5158, %v6351
      %v6370 = vmul.f32 %v5159, %v6351
      %v6371 = vmul.f32 %v5160, %v6351
      %v6372 = vmul.f32 %v5161, %v6351
      %v6373 = vmul.f32 %v5162, %v6351
      %v6374 = vmul.f32 %v5163, %v6351
      %v6375 = vmul.f32 %v5164, %v6351
      %v6376 = vmul.f32 %v5165, %v6351
      %v6377 = vmul.f32 %v5166, %v6351
      %v6378 = vmul.f32 %v5167, %v6351
      %v6379 = vmul.f32 %v5168, %v6351
      %v6380 = vmul.f32 %v5169, %v6351
      %v6381 = vmul.f32 %v5170, %v6351
      %v6382 = vmul.f32 %v5171, %v6351
      %v6383 = vmul.f32 %v5172, %v6351
      %v6384 = vmul.f32 %v5173, %v6351
      %v6385 = vmul.f32 %v5174, %v6351
      %v6386 = vmul.f32 %v5175, %v6351
      %v6387 = vmul.f32 %v5176, %v6351
      %v6388 = vmul.f32 %v5177, %v6351
      %v6389 = vmul.f32 %v5178, %v6351
      %v6390 = vmul.f32 %v5179, %v6351
      %v6391 = vmul.f32 %v5180, %v6351
      %v6392 = vmul.f32 %v5181, %v6351
      %v6393 = vmul.f32 %v5182, %v6351
      %v6394 = vmul.f32 %v5183, %v6351
      %v6395 = vmul.f32 %v5184, %v6351
      %v6396 = vmul.f32 %v5185, %v6351
      %v6397 = vmul.f32 %v5186, %v6351
      %v6398 = vmul.f32 %v5187, %v6351
      %v6399 = vmul.f32 %v5188, %v6351
      %v6448 = vrot.slane %v6352, 2
      %v6449 = vrot.slane %v6353, 2
      %v6450 = vsel %vm4495, %v6448, %v6449
      %v6451 = vrot.slane %v6354, 2
      %v6452 = vsel %vm4495, %v6449, %v6451
      %v6453 = vrot.slane %v6355, 2
      %v6454 = vrot.slane %v6356, 2
      %v6455 = vsel %vm4495, %v6453, %v6454
      %v6456 = vrot.slane %v6357, 2
      %v6457 = vsel %vm4495, %v6454, %v6456
      %v6458 = vrot.slane %v6358, 2
      %v6459 = vrot.slane %v6359, 2
      %v6460 = vsel %vm4495, %v6458, %v6459
      %v6461 = vrot.slane %v6360, 2
      %v6462 = vsel %vm4495, %v6459, %v6461
      %v6463 = vrot.slane %v6361, 2
      %v6464 = vrot.slane %v6362, 2
      %v6465 = vsel %vm4495, %v6463, %v6464
      %v6466 = vrot.slane %v6363, 2
      %v6467 = vsel %vm4495, %v6464, %v6466
      %v6468 = vrot.slane %v6364, 2
      %v6469 = vrot.slane %v6365, 2
      %v6470 = vsel %vm4495, %v6468, %v6469
      %v6471 = vrot.slane %v6366, 2
      %v6472 = vsel %vm4495, %v6469, %v6471
      %v6473 = vrot.slane %v6367, 2
      %v6474 = vrot.slane %v6368, 2
      %v6475 = vsel %vm4495, %v6473, %v6474
      %v6476 = vrot.slane %v6369, 2
      %v6477 = vsel %vm4495, %v6474, %v6476
      %v6478 = vrot.slane %v6370, 2
      %v6479 = vrot.slane %v6371, 2
      %v6480 = vsel %vm4495, %v6478, %v6479
      %v6481 = vrot.slane %v6372, 2
      %v6482 = vsel %vm4495, %v6479, %v6481
      %v6483 = vrot.slane %v6373, 2
      %v6484 = vrot.slane %v6374, 2
      %v6485 = vsel %vm4495, %v6483, %v6484
      %v6486 = vrot.slane %v6375, 2
      %v6487 = vsel %vm4495, %v6484, %v6486
      %v6488 = vrot.slane %v6376, 2
      %v6489 = vrot.slane %v6377, 2
      %v6490 = vsel %vm4495, %v6488, %v6489
      %v6491 = vrot.slane %v6378, 2
      %v6492 = vsel %vm4495, %v6489, %v6491
      %v6493 = vrot.slane %v6379, 2
      %v6494 = vrot.slane %v6380, 2
      %v6495 = vsel %vm4495, %v6493, %v6494
      %v6496 = vrot.slane %v6381, 2
      %v6497 = vsel %vm4495, %v6494, %v6496
      %v6498 = vrot.slane %v6382, 2
      %v6499 = vrot.slane %v6383, 2
      %v6500 = vsel %vm4495, %v6498, %v6499
      %v6501 = vrot.slane %v6384, 2
      %v6502 = vsel %vm4495, %v6499, %v6501
      %v6503 = vrot.slane %v6385, 2
      %v6504 = vrot.slane %v6386, 2
      %v6505 = vsel %vm4495, %v6503, %v6504
      %v6506 = vrot.slane %v6387, 2
      %v6507 = vsel %vm4495, %v6504, %v6506
      %v6508 = vrot.slane %v6388, 2
      %v6509 = vrot.slane %v6389, 2
      %v6510 = vsel %vm4495, %v6508, %v6509
      %v6511 = vrot.slane %v6390, 2
      %v6512 = vsel %vm4495, %v6509, %v6511
      %v6513 = vrot.slane %v6391, 2
      %v6514 = vrot.slane %v6392, 2
      %v6515 = vsel %vm4495, %v6513, %v6514
      %v6516 = vrot.slane %v6393, 2
      %v6517 = vsel %vm4495, %v6514, %v6516
      %v6518 = vrot.slane %v6394, 2
      %v6519 = vrot.slane %v6395, 2
      %v6520 = vsel %vm4495, %v6518, %v6519
      %v6521 = vrot.slane %v6396, 2
      %v6522 = vsel %vm4495, %v6519, %v6521
      %v6523 = vrot.slane %v6397, 2
      %v6524 = vrot.slane %v6398, 2
      %v6525 = vsel %vm4495, %v6523, %v6524
      %v6526 = vrot.slane %v6399, 2
      %v6527 = vsel %vm4495, %v6524, %v6526
      %v6560 = vadd.f32 %v6319, %v6450
      %v6561 = vadd.f32 %v6320, %v6452
      %v6562 = vadd.f32 %v6321, %v6455
      %v6563 = vadd.f32 %v6322, %v6457
      %v6564 = vadd.f32 %v6323, %v6460
      %v6565 = vadd.f32 %v6324, %v6462
      %v6566 = vadd.f32 %v6325, %v6465
      %v6567 = vadd.f32 %v6326, %v6467
      %v6568 = vadd.f32 %v6327, %v6470
      %v6569 = vadd.f32 %v6328, %v6472
      %v6570 = vadd.f32 %v6329, %v6475
      %v6571 = vadd.f32 %v6330, %v6477
      %v6572 = vadd.f32 %v6331, %v6480
      %v6573 = vadd.f32 %v6332, %v6482
      %v6574 = vadd.f32 %v6333, %v6485
      %v6575 = vadd.f32 %v6334, %v6487
      %v6576 = vadd.f32 %v6335, %v6490
      %v6577 = vadd.f32 %v6336, %v6492
      %v6578 = vadd.f32 %v6337, %v6495
      %v6579 = vadd.f32 %v6338, %v6497
      %v6580 = vadd.f32 %v6339, %v6500
      %v6581 = vadd.f32 %v6340, %v6502
      %v6582 = vadd.f32 %v6341, %v6505
      %v6583 = vadd.f32 %v6342, %v6507
      %v6584 = vadd.f32 %v6343, %v6510
      %v6585 = vadd.f32 %v6344, %v6512
      %v6586 = vadd.f32 %v6345, %v6515
      %v6587 = vadd.f32 %v6346, %v6517
      %v6588 = vadd.f32 %v6347, %v6520
      %v6589 = vadd.f32 %v6348, %v6522
      %v6590 = vadd.f32 %v6349, %v6525
      %v6591 = vadd.f32 %v6350, %v6527
      %v6592 = vperm.slane %v3399, 0
      %v6593 = vmul.f32 %v5144, %v6592
      %v6594 = vmul.f32 %v5145, %v6592
      %v6595 = vmul.f32 %v5146, %v6592
      %v6596 = vmul.f32 %v5147, %v6592
      %v6597 = vmul.f32 %v5148, %v6592
      %v6598 = vmul.f32 %v5149, %v6592
      %v6599 = vmul.f32 %v5150, %v6592
      %v6600 = vmul.f32 %v5151, %v6592
      %v6601 = vmul.f32 %v5152, %v6592
      %v6602 = vmul.f32 %v5153, %v6592
      %v6603 = vmul.f32 %v5154, %v6592
      %v6604 = vmul.f32 %v5155, %v6592
      %v6605 = vmul.f32 %v5156, %v6592
      %v6606 = vmul.f32 %v5157, %v6592
      %v6607 = vmul.f32 %v5158, %v6592
      %v6608 = vmul.f32 %v5159, %v6592
      %v6609 = vmul.f32 %v5160, %v6592
      %v6610 = vmul.f32 %v5161, %v6592
      %v6611 = vmul.f32 %v5162, %v6592
      %v6612 = vmul.f32 %v5163, %v6592
      %v6613 = vmul.f32 %v5164, %v6592
      %v6614 = vmul.f32 %v5165, %v6592
      %v6615 = vmul.f32 %v5166, %v6592
      %v6616 = vmul.f32 %v5167, %v6592
      %v6617 = vmul.f32 %v5168, %v6592
      %v6618 = vmul.f32 %v5169, %v6592
      %v6619 = vmul.f32 %v5170, %v6592
      %v6620 = vmul.f32 %v5171, %v6592
      %v6621 = vmul.f32 %v5172, %v6592
      %v6622 = vmul.f32 %v5173, %v6592
      %v6623 = vmul.f32 %v5174, %v6592
      %v6624 = vmul.f32 %v5175, %v6592
      %v6625 = vmul.f32 %v5176, %v6592
      %v6626 = vmul.f32 %v5177, %v6592
      %v6627 = vmul.f32 %v5178, %v6592
      %v6628 = vmul.f32 %v5179, %v6592
      %v6629 = vmul.f32 %v5180, %v6592
      %v6630 = vmul.f32 %v5181, %v6592
      %v6631 = vmul.f32 %v5182, %v6592
      %v6632 = vmul.f32 %v5183, %v6592
      %v6633 = vmul.f32 %v5184, %v6592
      %v6634 = vmul.f32 %v5185, %v6592
      %v6635 = vmul.f32 %v5186, %v6592
      %v6636 = vmul.f32 %v5187, %v6592
      %v6637 = vmul.f32 %v5188, %v6592
      %v6638 = vmul.f32 %v5189, %v6592
      %v6639 = vmul.f32 %v5190, %v6592
      %v6640 = vmul.f32 %v5191, %v6592
      %v6689 = vrot.slane %v6593, 2
      %v6690 = vrot.slane %v6594, 2
      %v6691 = vsel %vm4495, %v6689, %v6690
      %v6692 = vrot.slane %v6595, 2
      %v6693 = vsel %vm4495, %v6690, %v6692
      %v6694 = vrot.slane %v6596, 2
      %v6695 = vrot.slane %v6597, 2
      %v6696 = vsel %vm4495, %v6694, %v6695
      %v6697 = vrot.slane %v6598, 2
      %v6698 = vsel %vm4495, %v6695, %v6697
      %v6699 = vrot.slane %v6599, 2
      %v6700 = vrot.slane %v6600, 2
      %v6701 = vsel %vm4495, %v6699, %v6700
      %v6702 = vrot.slane %v6601, 2
      %v6703 = vsel %vm4495, %v6700, %v6702
      %v6704 = vrot.slane %v6602, 2
      %v6705 = vrot.slane %v6603, 2
      %v6706 = vsel %vm4495, %v6704, %v6705
      %v6707 = vrot.slane %v6604, 2
      %v6708 = vsel %vm4495, %v6705, %v6707
      %v6709 = vrot.slane %v6605, 2
      %v6710 = vrot.slane %v6606, 2
      %v6711 = vsel %vm4495, %v6709, %v6710
      %v6712 = vrot.slane %v6607, 2
      %v6713 = vsel %vm4495, %v6710, %v6712
      %v6714 = vrot.slane %v6608, 2
      %v6715 = vrot.slane %v6609, 2
      %v6716 = vsel %vm4495, %v6714, %v6715
      %v6717 = vrot.slane %v6610, 2
      %v6718 = vsel %vm4495, %v6715, %v6717
      %v6719 = vrot.slane %v6611, 2
      %v6720 = vrot.slane %v6612, 2
      %v6721 = vsel %vm4495, %v6719, %v6720
      %v6722 = vrot.slane %v6613, 2
      %v6723 = vsel %vm4495, %v6720, %v6722
      %v6724 = vrot.slane %v6614, 2
      %v6725 = vrot.slane %v6615, 2
      %v6726 = vsel %vm4495, %v6724, %v6725
      %v6727 = vrot.slane %v6616, 2
      %v6728 = vsel %vm4495, %v6725, %v6727
      %v6729 = vrot.slane %v6617, 2
      %v6730 = vrot.slane %v6618, 2
      %v6731 = vsel %vm4495, %v6729, %v6730
      %v6732 = vrot.slane %v6619, 2
      %v6733 = vsel %vm4495, %v6730, %v6732
      %v6734 = vrot.slane %v6620, 2
      %v6735 = vrot.slane %v6621, 2
      %v6736 = vsel %vm4495, %v6734, %v6735
      %v6737 = vrot.slane %v6622, 2
      %v6738 = vsel %vm4495, %v6735, %v6737
      %v6739 = vrot.slane %v6623, 2
      %v6740 = vrot.slane %v6624, 2
      %v6741 = vsel %vm4495, %v6739, %v6740
      %v6742 = vrot.slane %v6625, 2
      %v6743 = vsel %vm4495, %v6740, %v6742
      %v6744 = vrot.slane %v6626, 2
      %v6745 = vrot.slane %v6627, 2
      %v6746 = vsel %vm4495, %v6744, %v6745
      %v6747 = vrot.slane %v6628, 2
      %v6748 = vsel %vm4495, %v6745, %v6747
      %v6749 = vrot.slane %v6629, 2
      %v6750 = vrot.slane %v6630, 2
      %v6751 = vsel %vm4495, %v6749, %v6750
      %v6752 = vrot.slane %v6631, 2
      %v6753 = vsel %vm4495, %v6750, %v6752
      %v6754 = vrot.slane %v6632, 2
      %v6755 = vrot.slane %v6633, 2
      %v6756 = vsel %vm4495, %v6754, %v6755
      %v6757 = vrot.slane %v6634, 2
      %v6758 = vsel %vm4495, %v6755, %v6757
      %v6759 = vrot.slane %v6635, 2
      %v6760 = vrot.slane %v6636, 2
      %v6761 = vsel %vm4495, %v6759, %v6760
      %v6762 = vrot.slane %v6637, 2
      %v6763 = vsel %vm4495, %v6760, %v6762
      %v6764 = vrot.slane %v6638, 2
      %v6765 = vrot.slane %v6639, 2
      %v6766 = vsel %vm4495, %v6764, %v6765
      %v6767 = vrot.slane %v6640, 2
      %v6768 = vsel %vm4495, %v6765, %v6767
      %v6801 = vadd.f32 %v6560, %v6691
      %v6802 = vadd.f32 %v6561, %v6693
      %v6803 = vadd.f32 %v6562, %v6696
      %v6804 = vadd.f32 %v6563, %v6698
      %v6805 = vadd.f32 %v6564, %v6701
      %v6806 = vadd.f32 %v6565, %v6703
      %v6807 = vadd.f32 %v6566, %v6706
      %v6808 = vadd.f32 %v6567, %v6708
      %v6809 = vadd.f32 %v6568, %v6711
      %v6810 = vadd.f32 %v6569, %v6713
      %v6811 = vadd.f32 %v6570, %v6716
      %v6812 = vadd.f32 %v6571, %v6718
      %v6813 = vadd.f32 %v6572, %v6721
      %v6814 = vadd.f32 %v6573, %v6723
      %v6815 = vadd.f32 %v6574, %v6726
      %v6816 = vadd.f32 %v6575, %v6728
      %v6817 = vadd.f32 %v6576, %v6731
      %v6818 = vadd.f32 %v6577, %v6733
      %v6819 = vadd.f32 %v6578, %v6736
      %v6820 = vadd.f32 %v6579, %v6738
      %v6821 = vadd.f32 %v6580, %v6741
      %v6822 = vadd.f32 %v6581, %v6743
      %v6823 = vadd.f32 %v6582, %v6746
      %v6824 = vadd.f32 %v6583, %v6748
      %v6825 = vadd.f32 %v6584, %v6751
      %v6826 = vadd.f32 %v6585, %v6753
      %v6827 = vadd.f32 %v6586, %v6756
      %v6828 = vadd.f32 %v6587, %v6758
      %v6829 = vadd.f32 %v6588, %v6761
      %v6830 = vadd.f32 %v6589, %v6763
      %v6831 = vadd.f32 %v6590, %v6766
      %v6832 = vadd.f32 %v6591, %v6768
      %s6833 = sadd.s32 %s21, 4
      %p6834 = scmp.lt.s32.totalorder %s6833, 0
      %s6835 = ssub.s32 0, %s6833
      %s6836 = scalar_select %p6834, %s6835, %s6833
      %s6837 = sdiv.u32.pop %s6836, 3
      %s6838 = srem.u32.pop %s6836, 3
      %s6839 = ssub.s32 0, %s6838
      %s6840 = scalar_select %p6834, %s6839, %s6838
      %p6841 = scmp.ne.s32.totalorder %s6840, 0
      %p6842 = scmp.lt.s32.totalorder %s6840, 0
      %p6843 = pnand %p6842, %p6841
      %p6844 = pneg %p6843
      %s6845 = sadd.s32 %s6840, 3
      %s6846 = scalar_select %p6844, %s6845, %s6840
      %s6847 = smul.u32 %s6846, 432
      %s6848 = scalar_lea.vmem [#allocation2], %s6847
      %v6849 = vld [vmem:[%s6848] sm:$0xff]
      %v6850 = vld [vmem:[%s6848 + $0x8] sm:$0xff]
      %v6851 = vld [vmem:[%s6848 + $0x10] sm:$0x3]
      %v6852 = vld [vmem:[%s6848 + $0x18] sm:$0xff]
      %v6853 = vld [vmem:[%s6848 + $0x20] sm:$0xff]
      %v6854 = vld [vmem:[%s6848 + $0x28] sm:$0x3]
      %v6855 = vld [vmem:[%s6848 + $0x30] sm:$0xff]
      %v6856 = vld [vmem:[%s6848 + $0x38] sm:$0xff]
      %v6857 = vld [vmem:[%s6848 + $0x40] sm:$0x3]
      %v6858 = vld [vmem:[%s6848 + $0x48] sm:$0xff]
      %v6859 = vld [vmem:[%s6848 + $0x50] sm:$0xff]
      %v6860 = vld [vmem:[%s6848 + $0x58] sm:$0x3]
      %v6861 = vld [vmem:[%s6848 + $0x60] sm:$0xff]
      %v6862 = vld [vmem:[%s6848 + $0x68] sm:$0xff]
      %v6863 = vld [vmem:[%s6848 + $0x70] sm:$0x3]
      %v6864 = vld [vmem:[%s6848 + $0x78] sm:$0xff]
      %v6865 = vld [vmem:[%s6848 + $0x80] sm:$0xff]
      %v6866 = vld [vmem:[%s6848 + $0x88] sm:$0x3]
      %v6867 = vld [vmem:[%s6848 + $0x90] sm:$0xff]
      %v6868 = vld [vmem:[%s6848 + $0x98] sm:$0xff]
      %v6869 = vld [vmem:[%s6848 + $0xa0] sm:$0x3]
      %v6870 = vld [vmem:[%s6848 + $0xa8] sm:$0xff]
      %v6871 = vld [vmem:[%s6848 + $0xb0] sm:$0xff]
      %v6872 = vld [vmem:[%s6848 + $0xb8] sm:$0x3]
      %v6873 = vld [vmem:[%s6848 + $0xc0] sm:$0xff]
      %v6874 = vld [vmem:[%s6848 + $0xc8] sm:$0xff]
      %v6875 = vld [vmem:[%s6848 + $0xd0] sm:$0x3]
      %v6876 = vld [vmem:[%s6848 + $0xd8] sm:$0xff]
      %v6877 = vld [vmem:[%s6848 + $0xe0] sm:$0xff]
      %v6878 = vld [vmem:[%s6848 + $0xe8] sm:$0x3]
      %v6879 = vld [vmem:[%s6848 + $0xf0] sm:$0xff]
      %v6880 = vld [vmem:[%s6848 + $0xf8] sm:$0xff]
      %v6881 = vld [vmem:[%s6848 + $0x100] sm:$0x3]
      %v6882 = vld [vmem:[%s6848 + $0x108] sm:$0xff]
      %v6883 = vld [vmem:[%s6848 + $0x110] sm:$0xff]
      %v6884 = vld [vmem:[%s6848 + $0x118] sm:$0x3]
      %v6885 = vld [vmem:[%s6848 + $0x120] sm:$0xff]
      %v6886 = vld [vmem:[%s6848 + $0x128] sm:$0xff]
      %v6887 = vld [vmem:[%s6848 + $0x130] sm:$0x3]
      %v6888 = vld [vmem:[%s6848 + $0x138] sm:$0xff]
      %v6889 = vld [vmem:[%s6848 + $0x140] sm:$0xff]
      %v6890 = vld [vmem:[%s6848 + $0x148] sm:$0x3]
      %v6891 = vld [vmem:[%s6848 + $0x150] sm:$0xff]
      %v6892 = vld [vmem:[%s6848 + $0x158] sm:$0xff]
      %v6893 = vld [vmem:[%s6848 + $0x160] sm:$0x3]
      %v6894 = vld [vmem:[%s6848 + $0x168] sm:$0xff]
      %v6895 = vld [vmem:[%s6848 + $0x170] sm:$0xff]
      %v6896 = vld [vmem:[%s6848 + $0x178] sm:$0x3]
      %v6897 = vld [vmem:[%s6848 + $0x180] sm:$0xff]
      %v6898 = vld [vmem:[%s6848 + $0x188] sm:$0xff]
      %v6899 = vld [vmem:[%s6848 + $0x190] sm:$0x3]
      %v6900 = vld [vmem:[%s6848 + $0x198] sm:$0xff]
      %v6901 = vld [vmem:[%s6848 + $0x1a0] sm:$0xff]
      %v6902 = vld [vmem:[%s6848 + $0x1a8] sm:$0x3]
      %v6903 = vperm.slane %v3400, 0
      %v6904 = vmul.f32 %v6849, %v6903
      %v6905 = vmul.f32 %v6850, %v6903
      %v6906 = vmul.f32 %v6852, %v6903
      %v6907 = vmul.f32 %v6853, %v6903
      %v6908 = vmul.f32 %v6855, %v6903
      %v6909 = vmul.f32 %v6856, %v6903
      %v6910 = vmul.f32 %v6858, %v6903
      %v6911 = vmul.f32 %v6859, %v6903
      %v6912 = vmul.f32 %v6861, %v6903
      %v6913 = vmul.f32 %v6862, %v6903
      %v6914 = vmul.f32 %v6864, %v6903
      %v6915 = vmul.f32 %v6865, %v6903
      %v6916 = vmul.f32 %v6867, %v6903
      %v6917 = vmul.f32 %v6868, %v6903
      %v6918 = vmul.f32 %v6870, %v6903
      %v6919 = vmul.f32 %v6871, %v6903
      %v6920 = vmul.f32 %v6873, %v6903
      %v6921 = vmul.f32 %v6874, %v6903
      %v6922 = vmul.f32 %v6876, %v6903
      %v6923 = vmul.f32 %v6877, %v6903
      %v6924 = vmul.f32 %v6879, %v6903
      %v6925 = vmul.f32 %v6880, %v6903
      %v6926 = vmul.f32 %v6882, %v6903
      %v6927 = vmul.f32 %v6883, %v6903
      %v6928 = vmul.f32 %v6885, %v6903
      %v6929 = vmul.f32 %v6886, %v6903
      %v6930 = vmul.f32 %v6888, %v6903
      %v6931 = vmul.f32 %v6889, %v6903
      %v6932 = vmul.f32 %v6891, %v6903
      %v6933 = vmul.f32 %v6892, %v6903
      %v6934 = vmul.f32 %v6894, %v6903
      %v6935 = vmul.f32 %v6895, %v6903
      %v6936 = vadd.f32 %v6801, %v6904
      %v6937 = vadd.f32 %v6802, %v6905
      %v6938 = vadd.f32 %v6803, %v6906
      %v6939 = vadd.f32 %v6804, %v6907
      %v6940 = vadd.f32 %v6805, %v6908
      %v6941 = vadd.f32 %v6806, %v6909
      %v6942 = vadd.f32 %v6807, %v6910
      %v6943 = vadd.f32 %v6808, %v6911
      %v6944 = vadd.f32 %v6809, %v6912
      %v6945 = vadd.f32 %v6810, %v6913
      %v6946 = vadd.f32 %v6811, %v6914
      %v6947 = vadd.f32 %v6812, %v6915
      %v6948 = vadd.f32 %v6813, %v6916
      %v6949 = vadd.f32 %v6814, %v6917
      %v6950 = vadd.f32 %v6815, %v6918
      %v6951 = vadd.f32 %v6816, %v6919
      %v6952 = vadd.f32 %v6817, %v6920
      %v6953 = vadd.f32 %v6818, %v6921
      %v6954 = vadd.f32 %v6819, %v6922
      %v6955 = vadd.f32 %v6820, %v6923
      %v6956 = vadd.f32 %v6821, %v6924
      %v6957 = vadd.f32 %v6822, %v6925
      %v6958 = vadd.f32 %v6823, %v6926
      %v6959 = vadd.f32 %v6824, %v6927
      %v6960 = vadd.f32 %v6825, %v6928
      %v6961 = vadd.f32 %v6826, %v6929
      %v6962 = vadd.f32 %v6827, %v6930
      %v6963 = vadd.f32 %v6828, %v6931
      %v6964 = vadd.f32 %v6829, %v6932
      %v6965 = vadd.f32 %v6830, %v6933
      %v6966 = vadd.f32 %v6831, %v6934
      %v6967 = vadd.f32 %v6832, %v6935
      %v6968 = vperm.slane %v3403, 0
      %v6969 = vmul.f32 %v6852, %v6968
      %v6970 = vmul.f32 %v6853, %v6968
      %v6971 = vmul.f32 %v6855, %v6968
      %v6972 = vmul.f32 %v6856, %v6968
      %v6973 = vmul.f32 %v6858, %v6968
      %v6974 = vmul.f32 %v6859, %v6968
      %v6975 = vmul.f32 %v6861, %v6968
      %v6976 = vmul.f32 %v6862, %v6968
      %v6977 = vmul.f32 %v6864, %v6968
      %v6978 = vmul.f32 %v6865, %v6968
      %v6979 = vmul.f32 %v6867, %v6968
      %v6980 = vmul.f32 %v6868, %v6968
      %v6981 = vmul.f32 %v6870, %v6968
      %v6982 = vmul.f32 %v6871, %v6968
      %v6983 = vmul.f32 %v6873, %v6968
      %v6984 = vmul.f32 %v6874, %v6968
      %v6985 = vmul.f32 %v6876, %v6968
      %v6986 = vmul.f32 %v6877, %v6968
      %v6987 = vmul.f32 %v6879, %v6968
      %v6988 = vmul.f32 %v6880, %v6968
      %v6989 = vmul.f32 %v6882, %v6968
      %v6990 = vmul.f32 %v6883, %v6968
      %v6991 = vmul.f32 %v6885, %v6968
      %v6992 = vmul.f32 %v6886, %v6968
      %v6993 = vmul.f32 %v6888, %v6968
      %v6994 = vmul.f32 %v6889, %v6968
      %v6995 = vmul.f32 %v6891, %v6968
      %v6996 = vmul.f32 %v6892, %v6968
      %v6997 = vmul.f32 %v6894, %v6968
      %v6998 = vmul.f32 %v6895, %v6968
      %v6999 = vmul.f32 %v6897, %v6968
      %v7000 = vmul.f32 %v6898, %v6968
      %v7001 = vadd.f32 %v6936, %v6969
      %v7002 = vadd.f32 %v6937, %v6970
      %v7003 = vadd.f32 %v6938, %v6971
      %v7004 = vadd.f32 %v6939, %v6972
      %v7005 = vadd.f32 %v6940, %v6973
      %v7006 = vadd.f32 %v6941, %v6974
      %v7007 = vadd.f32 %v6942, %v6975
      %v7008 = vadd.f32 %v6943, %v6976
      %v7009 = vadd.f32 %v6944, %v6977
      %v7010 = vadd.f32 %v6945, %v6978
      %v7011 = vadd.f32 %v6946, %v6979
      %v7012 = vadd.f32 %v6947, %v6980
      %v7013 = vadd.f32 %v6948, %v6981
      %v7014 = vadd.f32 %v6949, %v6982
      %v7015 = vadd.f32 %v6950, %v6983
      %v7016 = vadd.f32 %v6951, %v6984
      %v7017 = vadd.f32 %v6952, %v6985
      %v7018 = vadd.f32 %v6953, %v6986
      %v7019 = vadd.f32 %v6954, %v6987
      %v7020 = vadd.f32 %v6955, %v6988
      %v7021 = vadd.f32 %v6956, %v6989
      %v7022 = vadd.f32 %v6957, %v6990
      %v7023 = vadd.f32 %v6958, %v6991
      %v7024 = vadd.f32 %v6959, %v6992
      %v7025 = vadd.f32 %v6960, %v6993
      %v7026 = vadd.f32 %v6961, %v6994
      %v7027 = vadd.f32 %v6962, %v6995
      %v7028 = vadd.f32 %v6963, %v6996
      %v7029 = vadd.f32 %v6964, %v6997
      %v7030 = vadd.f32 %v6965, %v6998
      %v7031 = vadd.f32 %v6966, %v6999
      %v7032 = vadd.f32 %v6967, %v7000
      %v7033 = vperm.slane %v3406, 0
      %v7034 = vmul.f32 %v6855, %v7033
      %v7035 = vmul.f32 %v6856, %v7033
      %v7036 = vmul.f32 %v6858, %v7033
      %v7037 = vmul.f32 %v6859, %v7033
      %v7038 = vmul.f32 %v6861, %v7033
      %v7039 = vmul.f32 %v6862, %v7033
      %v7040 = vmul.f32 %v6864, %v7033
      %v7041 = vmul.f32 %v6865, %v7033
      %v7042 = vmul.f32 %v6867, %v7033
      %v7043 = vmul.f32 %v6868, %v7033
      %v7044 = vmul.f32 %v6870, %v7033
      %v7045 = vmul.f32 %v6871, %v7033
      %v7046 = vmul.f32 %v6873, %v7033
      %v7047 = vmul.f32 %v6874, %v7033
      %v7048 = vmul.f32 %v6876, %v7033
      %v7049 = vmul.f32 %v6877, %v7033
      %v7050 = vmul.f32 %v6879, %v7033
      %v7051 = vmul.f32 %v6880, %v7033
      %v7052 = vmul.f32 %v6882, %v7033
      %v7053 = vmul.f32 %v6883, %v7033
      %v7054 = vmul.f32 %v6885, %v7033
      %v7055 = vmul.f32 %v6886, %v7033
      %v7056 = vmul.f32 %v6888, %v7033
      %v7057 = vmul.f32 %v6889, %v7033
      %v7058 = vmul.f32 %v6891, %v7033
      %v7059 = vmul.f32 %v6892, %v7033
      %v7060 = vmul.f32 %v6894, %v7033
      %v7061 = vmul.f32 %v6895, %v7033
      %v7062 = vmul.f32 %v6897, %v7033
      %v7063 = vmul.f32 %v6898, %v7033
      %v7064 = vmul.f32 %v6900, %v7033
      %v7065 = vmul.f32 %v6901, %v7033
      %v7066 = vadd.f32 %v7001, %v7034
      %v7067 = vadd.f32 %v7002, %v7035
      %v7068 = vadd.f32 %v7003, %v7036
      %v7069 = vadd.f32 %v7004, %v7037
      %v7070 = vadd.f32 %v7005, %v7038
      %v7071 = vadd.f32 %v7006, %v7039
      %v7072 = vadd.f32 %v7007, %v7040
      %v7073 = vadd.f32 %v7008, %v7041
      %v7074 = vadd.f32 %v7009, %v7042
      %v7075 = vadd.f32 %v7010, %v7043
      %v7076 = vadd.f32 %v7011, %v7044
      %v7077 = vadd.f32 %v7012, %v7045
      %v7078 = vadd.f32 %v7013, %v7046
      %v7079 = vadd.f32 %v7014, %v7047
      %v7080 = vadd.f32 %v7015, %v7048
      %v7081 = vadd.f32 %v7016, %v7049
      %v7082 = vadd.f32 %v7017, %v7050
      %v7083 = vadd.f32 %v7018, %v7051
      %v7084 = vadd.f32 %v7019, %v7052
      %v7085 = vadd.f32 %v7020, %v7053
      %v7086 = vadd.f32 %v7021, %v7054
      %v7087 = vadd.f32 %v7022, %v7055
      %v7088 = vadd.f32 %v7023, %v7056
      %v7089 = vadd.f32 %v7024, %v7057
      %v7090 = vadd.f32 %v7025, %v7058
      %v7091 = vadd.f32 %v7026, %v7059
      %v7092 = vadd.f32 %v7027, %v7060
      %v7093 = vadd.f32 %v7028, %v7061
      %v7094 = vadd.f32 %v7029, %v7062
      %v7095 = vadd.f32 %v7030, %v7063
      %v7096 = vadd.f32 %v7031, %v7064
      %v7097 = vadd.f32 %v7032, %v7065
      %v7098 = vperm.slane %v3401, 0
      %v7099 = vmul.f32 %v6849, %v7098
      %v7100 = vmul.f32 %v6850, %v7098
      %v7101 = vmul.f32 %v6851, %v7098
      %v7102 = vmul.f32 %v6852, %v7098
      %v7103 = vmul.f32 %v6853, %v7098
      %v7104 = vmul.f32 %v6854, %v7098
      %v7105 = vmul.f32 %v6855, %v7098
      %v7106 = vmul.f32 %v6856, %v7098
      %v7107 = vmul.f32 %v6857, %v7098
      %v7108 = vmul.f32 %v6858, %v7098
      %v7109 = vmul.f32 %v6859, %v7098
      %v7110 = vmul.f32 %v6860, %v7098
      %v7111 = vmul.f32 %v6861, %v7098
      %v7112 = vmul.f32 %v6862, %v7098
      %v7113 = vmul.f32 %v6863, %v7098
      %v7114 = vmul.f32 %v6864, %v7098
      %v7115 = vmul.f32 %v6865, %v7098
      %v7116 = vmul.f32 %v6866, %v7098
      %v7117 = vmul.f32 %v6867, %v7098
      %v7118 = vmul.f32 %v6868, %v7098
      %v7119 = vmul.f32 %v6869, %v7098
      %v7120 = vmul.f32 %v6870, %v7098
      %v7121 = vmul.f32 %v6871, %v7098
      %v7122 = vmul.f32 %v6872, %v7098
      %v7123 = vmul.f32 %v6873, %v7098
      %v7124 = vmul.f32 %v6874, %v7098
      %v7125 = vmul.f32 %v6875, %v7098
      %v7126 = vmul.f32 %v6876, %v7098
      %v7127 = vmul.f32 %v6877, %v7098
      %v7128 = vmul.f32 %v6878, %v7098
      %v7129 = vmul.f32 %v6879, %v7098
      %v7130 = vmul.f32 %v6880, %v7098
      %v7131 = vmul.f32 %v6881, %v7098
      %v7132 = vmul.f32 %v6882, %v7098
      %v7133 = vmul.f32 %v6883, %v7098
      %v7134 = vmul.f32 %v6884, %v7098
      %v7135 = vmul.f32 %v6885, %v7098
      %v7136 = vmul.f32 %v6886, %v7098
      %v7137 = vmul.f32 %v6887, %v7098
      %v7138 = vmul.f32 %v6888, %v7098
      %v7139 = vmul.f32 %v6889, %v7098
      %v7140 = vmul.f32 %v6890, %v7098
      %v7141 = vmul.f32 %v6891, %v7098
      %v7142 = vmul.f32 %v6892, %v7098
      %v7143 = vmul.f32 %v6893, %v7098
      %v7144 = vmul.f32 %v6894, %v7098
      %v7145 = vmul.f32 %v6895, %v7098
      %v7146 = vmul.f32 %v6896, %v7098
      %v7195 = vrot.slane %v7099, 1
      %v7196 = vrot.slane %v7100, 1
      %v7197 = vsel %vm3771, %v7195, %v7196
      %v7198 = vrot.slane %v7101, 1
      %v7199 = vsel %vm3771, %v7196, %v7198
      %v7200 = vrot.slane %v7102, 1
      %v7201 = vrot.slane %v7103, 1
      %v7202 = vsel %vm3771, %v7200, %v7201
      %v7203 = vrot.slane %v7104, 1
      %v7204 = vsel %vm3771, %v7201, %v7203
      %v7205 = vrot.slane %v7105, 1
      %v7206 = vrot.slane %v7106, 1
      %v7207 = vsel %vm3771, %v7205, %v7206
      %v7208 = vrot.slane %v7107, 1
      %v7209 = vsel %vm3771, %v7206, %v7208
      %v7210 = vrot.slane %v7108, 1
      %v7211 = vrot.slane %v7109, 1
      %v7212 = vsel %vm3771, %v7210, %v7211
      %v7213 = vrot.slane %v7110, 1
      %v7214 = vsel %vm3771, %v7211, %v7213
      %v7215 = vrot.slane %v7111, 1
      %v7216 = vrot.slane %v7112, 1
      %v7217 = vsel %vm3771, %v7215, %v7216
      %v7218 = vrot.slane %v7113, 1
      %v7219 = vsel %vm3771, %v7216, %v7218
      %v7220 = vrot.slane %v7114, 1
      %v7221 = vrot.slane %v7115, 1
      %v7222 = vsel %vm3771, %v7220, %v7221
      %v7223 = vrot.slane %v7116, 1
      %v7224 = vsel %vm3771, %v7221, %v7223
      %v7225 = vrot.slane %v7117, 1
      %v7226 = vrot.slane %v7118, 1
      %v7227 = vsel %vm3771, %v7225, %v7226
      %v7228 = vrot.slane %v7119, 1
      %v7229 = vsel %vm3771, %v7226, %v7228
      %v7230 = vrot.slane %v7120, 1
      %v7231 = vrot.slane %v7121, 1
      %v7232 = vsel %vm3771, %v7230, %v7231
      %v7233 = vrot.slane %v7122, 1
      %v7234 = vsel %vm3771, %v7231, %v7233
      %v7235 = vrot.slane %v7123, 1
      %v7236 = vrot.slane %v7124, 1
      %v7237 = vsel %vm3771, %v7235, %v7236
      %v7238 = vrot.slane %v7125, 1
      %v7239 = vsel %vm3771, %v7236, %v7238
      %v7240 = vrot.slane %v7126, 1
      %v7241 = vrot.slane %v7127, 1
      %v7242 = vsel %vm3771, %v7240, %v7241
      %v7243 = vrot.slane %v7128, 1
      %v7244 = vsel %vm3771, %v7241, %v7243
      %v7245 = vrot.slane %v7129, 1
      %v7246 = vrot.slane %v7130, 1
      %v7247 = vsel %vm3771, %v7245, %v7246
      %v7248 = vrot.slane %v7131, 1
      %v7249 = vsel %vm3771, %v7246, %v7248
      %v7250 = vrot.slane %v7132, 1
      %v7251 = vrot.slane %v7133, 1
      %v7252 = vsel %vm3771, %v7250, %v7251
      %v7253 = vrot.slane %v7134, 1
      %v7254 = vsel %vm3771, %v7251, %v7253
      %v7255 = vrot.slane %v7135, 1
      %v7256 = vrot.slane %v7136, 1
      %v7257 = vsel %vm3771, %v7255, %v7256
      %v7258 = vrot.slane %v7137, 1
      %v7259 = vsel %vm3771, %v7256, %v7258
      %v7260 = vrot.slane %v7138, 1
      %v7261 = vrot.slane %v7139, 1
      %v7262 = vsel %vm3771, %v7260, %v7261
      %v7263 = vrot.slane %v7140, 1
      %v7264 = vsel %vm3771, %v7261, %v7263
      %v7265 = vrot.slane %v7141, 1
      %v7266 = vrot.slane %v7142, 1
      %v7267 = vsel %vm3771, %v7265, %v7266
      %v7268 = vrot.slane %v7143, 1
      %v7269 = vsel %vm3771, %v7266, %v7268
      %v7270 = vrot.slane %v7144, 1
      %v7271 = vrot.slane %v7145, 1
      %v7272 = vsel %vm3771, %v7270, %v7271
      %v7273 = vrot.slane %v7146, 1
      %v7274 = vsel %vm3771, %v7271, %v7273
      %v7307 = vadd.f32 %v7066, %v7197
      %v7308 = vadd.f32 %v7067, %v7199
      %v7309 = vadd.f32 %v7068, %v7202
      %v7310 = vadd.f32 %v7069, %v7204
      %v7311 = vadd.f32 %v7070, %v7207
      %v7312 = vadd.f32 %v7071, %v7209
      %v7313 = vadd.f32 %v7072, %v7212
      %v7314 = vadd.f32 %v7073, %v7214
      %v7315 = vadd.f32 %v7074, %v7217
      %v7316 = vadd.f32 %v7075, %v7219
      %v7317 = vadd.f32 %v7076, %v7222
      %v7318 = vadd.f32 %v7077, %v7224
      %v7319 = vadd.f32 %v7078, %v7227
      %v7320 = vadd.f32 %v7079, %v7229
      %v7321 = vadd.f32 %v7080, %v7232
      %v7322 = vadd.f32 %v7081, %v7234
      %v7323 = vadd.f32 %v7082, %v7237
      %v7324 = vadd.f32 %v7083, %v7239
      %v7325 = vadd.f32 %v7084, %v7242
      %v7326 = vadd.f32 %v7085, %v7244
      %v7327 = vadd.f32 %v7086, %v7247
      %v7328 = vadd.f32 %v7087, %v7249
      %v7329 = vadd.f32 %v7088, %v7252
      %v7330 = vadd.f32 %v7089, %v7254
      %v7331 = vadd.f32 %v7090, %v7257
      %v7332 = vadd.f32 %v7091, %v7259
      %v7333 = vadd.f32 %v7092, %v7262
      %v7334 = vadd.f32 %v7093, %v7264
      %v7335 = vadd.f32 %v7094, %v7267
      %v7336 = vadd.f32 %v7095, %v7269
      %v7337 = vadd.f32 %v7096, %v7272
      %v7338 = vadd.f32 %v7097, %v7274
      %v7339 = vperm.slane %v3404, 0
      %v7340 = vmul.f32 %v6852, %v7339
      %v7341 = vmul.f32 %v6853, %v7339
      %v7342 = vmul.f32 %v6854, %v7339
      %v7343 = vmul.f32 %v6855, %v7339
      %v7344 = vmul.f32 %v6856, %v7339
      %v7345 = vmul.f32 %v6857, %v7339
      %v7346 = vmul.f32 %v6858, %v7339
      %v7347 = vmul.f32 %v6859, %v7339
      %v7348 = vmul.f32 %v6860, %v7339
      %v7349 = vmul.f32 %v6861, %v7339
      %v7350 = vmul.f32 %v6862, %v7339
      %v7351 = vmul.f32 %v6863, %v7339
      %v7352 = vmul.f32 %v6864, %v7339
      %v7353 = vmul.f32 %v6865, %v7339
      %v7354 = vmul.f32 %v6866, %v7339
      %v7355 = vmul.f32 %v6867, %v7339
      %v7356 = vmul.f32 %v6868, %v7339
      %v7357 = vmul.f32 %v6869, %v7339
      %v7358 = vmul.f32 %v6870, %v7339
      %v7359 = vmul.f32 %v6871, %v7339
      %v7360 = vmul.f32 %v6872, %v7339
      %v7361 = vmul.f32 %v6873, %v7339
      %v7362 = vmul.f32 %v6874, %v7339
      %v7363 = vmul.f32 %v6875, %v7339
      %v7364 = vmul.f32 %v6876, %v7339
      %v7365 = vmul.f32 %v6877, %v7339
      %v7366 = vmul.f32 %v6878, %v7339
      %v7367 = vmul.f32 %v6879, %v7339
      %v7368 = vmul.f32 %v6880, %v7339
      %v7369 = vmul.f32 %v6881, %v7339
      %v7370 = vmul.f32 %v6882, %v7339
      %v7371 = vmul.f32 %v6883, %v7339
      %v7372 = vmul.f32 %v6884, %v7339
      %v7373 = vmul.f32 %v6885, %v7339
      %v7374 = vmul.f32 %v6886, %v7339
      %v7375 = vmul.f32 %v6887, %v7339
      %v7376 = vmul.f32 %v6888, %v7339
      %v7377 = vmul.f32 %v6889, %v7339
      %v7378 = vmul.f32 %v6890, %v7339
      %v7379 = vmul.f32 %v6891, %v7339
      %v7380 = vmul.f32 %v6892, %v7339
      %v7381 = vmul.f32 %v6893, %v7339
      %v7382 = vmul.f32 %v6894, %v7339
      %v7383 = vmul.f32 %v6895, %v7339
      %v7384 = vmul.f32 %v6896, %v7339
      %v7385 = vmul.f32 %v6897, %v7339
      %v7386 = vmul.f32 %v6898, %v7339
      %v7387 = vmul.f32 %v6899, %v7339
      %v7436 = vrot.slane %v7340, 1
      %v7437 = vrot.slane %v7341, 1
      %v7438 = vsel %vm3771, %v7436, %v7437
      %v7439 = vrot.slane %v7342, 1
      %v7440 = vsel %vm3771, %v7437, %v7439
      %v7441 = vrot.slane %v7343, 1
      %v7442 = vrot.slane %v7344, 1
      %v7443 = vsel %vm3771, %v7441, %v7442
      %v7444 = vrot.slane %v7345, 1
      %v7445 = vsel %vm3771, %v7442, %v7444
      %v7446 = vrot.slane %v7346, 1
      %v7447 = vrot.slane %v7347, 1
      %v7448 = vsel %vm3771, %v7446, %v7447
      %v7449 = vrot.slane %v7348, 1
      %v7450 = vsel %vm3771, %v7447, %v7449
      %v7451 = vrot.slane %v7349, 1
      %v7452 = vrot.slane %v7350, 1
      %v7453 = vsel %vm3771, %v7451, %v7452
      %v7454 = vrot.slane %v7351, 1
      %v7455 = vsel %vm3771, %v7452, %v7454
      %v7456 = vrot.slane %v7352, 1
      %v7457 = vrot.slane %v7353, 1
      %v7458 = vsel %vm3771, %v7456, %v7457
      %v7459 = vrot.slane %v7354, 1
      %v7460 = vsel %vm3771, %v7457, %v7459
      %v7461 = vrot.slane %v7355, 1
      %v7462 = vrot.slane %v7356, 1
      %v7463 = vsel %vm3771, %v7461, %v7462
      %v7464 = vrot.slane %v7357, 1
      %v7465 = vsel %vm3771, %v7462, %v7464
      %v7466 = vrot.slane %v7358, 1
      %v7467 = vrot.slane %v7359, 1
      %v7468 = vsel %vm3771, %v7466, %v7467
      %v7469 = vrot.slane %v7360, 1
      %v7470 = vsel %vm3771, %v7467, %v7469
      %v7471 = vrot.slane %v7361, 1
      %v7472 = vrot.slane %v7362, 1
      %v7473 = vsel %vm3771, %v7471, %v7472
      %v7474 = vrot.slane %v7363, 1
      %v7475 = vsel %vm3771, %v7472, %v7474
      %v7476 = vrot.slane %v7364, 1
      %v7477 = vrot.slane %v7365, 1
      %v7478 = vsel %vm3771, %v7476, %v7477
      %v7479 = vrot.slane %v7366, 1
      %v7480 = vsel %vm3771, %v7477, %v7479
      %v7481 = vrot.slane %v7367, 1
      %v7482 = vrot.slane %v7368, 1
      %v7483 = vsel %vm3771, %v7481, %v7482
      %v7484 = vrot.slane %v7369, 1
      %v7485 = vsel %vm3771, %v7482, %v7484
      %v7486 = vrot.slane %v7370, 1
      %v7487 = vrot.slane %v7371, 1
      %v7488 = vsel %vm3771, %v7486, %v7487
      %v7489 = vrot.slane %v7372, 1
      %v7490 = vsel %vm3771, %v7487, %v7489
      %v7491 = vrot.slane %v7373, 1
      %v7492 = vrot.slane %v7374, 1
      %v7493 = vsel %vm3771, %v7491, %v7492
      %v7494 = vrot.slane %v7375, 1
      %v7495 = vsel %vm3771, %v7492, %v7494
      %v7496 = vrot.slane %v7376, 1
      %v7497 = vrot.slane %v7377, 1
      %v7498 = vsel %vm3771, %v7496, %v7497
      %v7499 = vrot.slane %v7378, 1
      %v7500 = vsel %vm3771, %v7497, %v7499
      %v7501 = vrot.slane %v7379, 1
      %v7502 = vrot.slane %v7380, 1
      %v7503 = vsel %vm3771, %v7501, %v7502
      %v7504 = vrot.slane %v7381, 1
      %v7505 = vsel %vm3771, %v7502, %v7504
      %v7506 = vrot.slane %v7382, 1
      %v7507 = vrot.slane %v7383, 1
      %v7508 = vsel %vm3771, %v7506, %v7507
      %v7509 = vrot.slane %v7384, 1
      %v7510 = vsel %vm3771, %v7507, %v7509
      %v7511 = vrot.slane %v7385, 1
      %v7512 = vrot.slane %v7386, 1
      %v7513 = vsel %vm3771, %v7511, %v7512
      %v7514 = vrot.slane %v7387, 1
      %v7515 = vsel %vm3771, %v7512, %v7514
      %v7548 = vadd.f32 %v7307, %v7438
      %v7549 = vadd.f32 %v7308, %v7440
      %v7550 = vadd.f32 %v7309, %v7443
      %v7551 = vadd.f32 %v7310, %v7445
      %v7552 = vadd.f32 %v7311, %v7448
      %v7553 = vadd.f32 %v7312, %v7450
      %v7554 = vadd.f32 %v7313, %v7453
      %v7555 = vadd.f32 %v7314, %v7455
      %v7556 = vadd.f32 %v7315, %v7458
      %v7557 = vadd.f32 %v7316, %v7460
      %v7558 = vadd.f32 %v7317, %v7463
      %v7559 = vadd.f32 %v7318, %v7465
      %v7560 = vadd.f32 %v7319, %v7468
      %v7561 = vadd.f32 %v7320, %v7470
      %v7562 = vadd.f32 %v7321, %v7473
      %v7563 = vadd.f32 %v7322, %v7475
      %v7564 = vadd.f32 %v7323, %v7478
      %v7565 = vadd.f32 %v7324, %v7480
      %v7566 = vadd.f32 %v7325, %v7483
      %v7567 = vadd.f32 %v7326, %v7485
      %v7568 = vadd.f32 %v7327, %v7488
      %v7569 = vadd.f32 %v7328, %v7490
      %v7570 = vadd.f32 %v7329, %v7493
      %v7571 = vadd.f32 %v7330, %v7495
      %v7572 = vadd.f32 %v7331, %v7498
      %v7573 = vadd.f32 %v7332, %v7500
      %v7574 = vadd.f32 %v7333, %v7503
      %v7575 = vadd.f32 %v7334, %v7505
      %v7576 = vadd.f32 %v7335, %v7508
      %v7577 = vadd.f32 %v7336, %v7510
      %v7578 = vadd.f32 %v7337, %v7513
      %v7579 = vadd.f32 %v7338, %v7515
      %v7580 = vperm.slane %v3407, 0
      %v7581 = vmul.f32 %v6855, %v7580
      %v7582 = vmul.f32 %v6856, %v7580
      %v7583 = vmul.f32 %v6857, %v7580
      %v7584 = vmul.f32 %v6858, %v7580
      %v7585 = vmul.f32 %v6859, %v7580
      %v7586 = vmul.f32 %v6860, %v7580
      %v7587 = vmul.f32 %v6861, %v7580
      %v7588 = vmul.f32 %v6862, %v7580
      %v7589 = vmul.f32 %v6863, %v7580
      %v7590 = vmul.f32 %v6864, %v7580
      %v7591 = vmul.f32 %v6865, %v7580
      %v7592 = vmul.f32 %v6866, %v7580
      %v7593 = vmul.f32 %v6867, %v7580
      %v7594 = vmul.f32 %v6868, %v7580
      %v7595 = vmul.f32 %v6869, %v7580
      %v7596 = vmul.f32 %v6870, %v7580
      %v7597 = vmul.f32 %v6871, %v7580
      %v7598 = vmul.f32 %v6872, %v7580
      %v7599 = vmul.f32 %v6873, %v7580
      %v7600 = vmul.f32 %v6874, %v7580
      %v7601 = vmul.f32 %v6875, %v7580
      %v7602 = vmul.f32 %v6876, %v7580
      %v7603 = vmul.f32 %v6877, %v7580
      %v7604 = vmul.f32 %v6878, %v7580
      %v7605 = vmul.f32 %v6879, %v7580
      %v7606 = vmul.f32 %v6880, %v7580
      %v7607 = vmul.f32 %v6881, %v7580
      %v7608 = vmul.f32 %v6882, %v7580
      %v7609 = vmul.f32 %v6883, %v7580
      %v7610 = vmul.f32 %v6884, %v7580
      %v7611 = vmul.f32 %v6885, %v7580
      %v7612 = vmul.f32 %v6886, %v7580
      %v7613 = vmul.f32 %v6887, %v7580
      %v7614 = vmul.f32 %v6888, %v7580
      %v7615 = vmul.f32 %v6889, %v7580
      %v7616 = vmul.f32 %v6890, %v7580
      %v7617 = vmul.f32 %v6891, %v7580
      %v7618 = vmul.f32 %v6892, %v7580
      %v7619 = vmul.f32 %v6893, %v7580
      %v7620 = vmul.f32 %v6894, %v7580
      %v7621 = vmul.f32 %v6895, %v7580
      %v7622 = vmul.f32 %v6896, %v7580
      %v7623 = vmul.f32 %v6897, %v7580
      %v7624 = vmul.f32 %v6898, %v7580
      %v7625 = vmul.f32 %v6899, %v7580
      %v7626 = vmul.f32 %v6900, %v7580
      %v7627 = vmul.f32 %v6901, %v7580
      %v7628 = vmul.f32 %v6902, %v7580
      %v7677 = vrot.slane %v7581, 1
      %v7678 = vrot.slane %v7582, 1
      %v7679 = vsel %vm3771, %v7677, %v7678
      %v7680 = vrot.slane %v7583, 1
      %v7681 = vsel %vm3771, %v7678, %v7680
      %v7682 = vrot.slane %v7584, 1
      %v7683 = vrot.slane %v7585, 1
      %v7684 = vsel %vm3771, %v7682, %v7683
      %v7685 = vrot.slane %v7586, 1
      %v7686 = vsel %vm3771, %v7683, %v7685
      %v7687 = vrot.slane %v7587, 1
      %v7688 = vrot.slane %v7588, 1
      %v7689 = vsel %vm3771, %v7687, %v7688
      %v7690 = vrot.slane %v7589, 1
      %v7691 = vsel %vm3771, %v7688, %v7690
      %v7692 = vrot.slane %v7590, 1
      %v7693 = vrot.slane %v7591, 1
      %v7694 = vsel %vm3771, %v7692, %v7693
      %v7695 = vrot.slane %v7592, 1
      %v7696 = vsel %vm3771, %v7693, %v7695
      %v7697 = vrot.slane %v7593, 1
      %v7698 = vrot.slane %v7594, 1
      %v7699 = vsel %vm3771, %v7697, %v7698
      %v7700 = vrot.slane %v7595, 1
      %v7701 = vsel %vm3771, %v7698, %v7700
      %v7702 = vrot.slane %v7596, 1
      %v7703 = vrot.slane %v7597, 1
      %v7704 = vsel %vm3771, %v7702, %v7703
      %v7705 = vrot.slane %v7598, 1
      %v7706 = vsel %vm3771, %v7703, %v7705
      %v7707 = vrot.slane %v7599, 1
      %v7708 = vrot.slane %v7600, 1
      %v7709 = vsel %vm3771, %v7707, %v7708
      %v7710 = vrot.slane %v7601, 1
      %v7711 = vsel %vm3771, %v7708, %v7710
      %v7712 = vrot.slane %v7602, 1
      %v7713 = vrot.slane %v7603, 1
      %v7714 = vsel %vm3771, %v7712, %v7713
      %v7715 = vrot.slane %v7604, 1
      %v7716 = vsel %vm3771, %v7713, %v7715
      %v7717 = vrot.slane %v7605, 1
      %v7718 = vrot.slane %v7606, 1
      %v7719 = vsel %vm3771, %v7717, %v7718
      %v7720 = vrot.slane %v7607, 1
      %v7721 = vsel %vm3771, %v7718, %v7720
      %v7722 = vrot.slane %v7608, 1
      %v7723 = vrot.slane %v7609, 1
      %v7724 = vsel %vm3771, %v7722, %v7723
      %v7725 = vrot.slane %v7610, 1
      %v7726 = vsel %vm3771, %v7723, %v7725
      %v7727 = vrot.slane %v7611, 1
      %v7728 = vrot.slane %v7612, 1
      %v7729 = vsel %vm3771, %v7727, %v7728
      %v7730 = vrot.slane %v7613, 1
      %v7731 = vsel %vm3771, %v7728, %v7730
      %v7732 = vrot.slane %v7614, 1
      %v7733 = vrot.slane %v7615, 1
      %v7734 = vsel %vm3771, %v7732, %v7733
      %v7735 = vrot.slane %v7616, 1
      %v7736 = vsel %vm3771, %v7733, %v7735
      %v7737 = vrot.slane %v7617, 1
      %v7738 = vrot.slane %v7618, 1
      %v7739 = vsel %vm3771, %v7737, %v7738
      %v7740 = vrot.slane %v7619, 1
      %v7741 = vsel %vm3771, %v7738, %v7740
      %v7742 = vrot.slane %v7620, 1
      %v7743 = vrot.slane %v7621, 1
      %v7744 = vsel %vm3771, %v7742, %v7743
      %v7745 = vrot.slane %v7622, 1
      %v7746 = vsel %vm3771, %v7743, %v7745
      %v7747 = vrot.slane %v7623, 1
      %v7748 = vrot.slane %v7624, 1
      %v7749 = vsel %vm3771, %v7747, %v7748
      %v7750 = vrot.slane %v7625, 1
      %v7751 = vsel %vm3771, %v7748, %v7750
      %v7752 = vrot.slane %v7626, 1
      %v7753 = vrot.slane %v7627, 1
      %v7754 = vsel %vm3771, %v7752, %v7753
      %v7755 = vrot.slane %v7628, 1
      %v7756 = vsel %vm3771, %v7753, %v7755
      %v7789 = vadd.f32 %v7548, %v7679
      %v7790 = vadd.f32 %v7549, %v7681
      %v7791 = vadd.f32 %v7550, %v7684
      %v7792 = vadd.f32 %v7551, %v7686
      %v7793 = vadd.f32 %v7552, %v7689
      %v7794 = vadd.f32 %v7553, %v7691
      %v7795 = vadd.f32 %v7554, %v7694
      %v7796 = vadd.f32 %v7555, %v7696
      %v7797 = vadd.f32 %v7556, %v7699
      %v7798 = vadd.f32 %v7557, %v7701
      %v7799 = vadd.f32 %v7558, %v7704
      %v7800 = vadd.f32 %v7559, %v7706
      %v7801 = vadd.f32 %v7560, %v7709
      %v7802 = vadd.f32 %v7561, %v7711
      %v7803 = vadd.f32 %v7562, %v7714
      %v7804 = vadd.f32 %v7563, %v7716
      %v7805 = vadd.f32 %v7564, %v7719
      %v7806 = vadd.f32 %v7565, %v7721
      %v7807 = vadd.f32 %v7566, %v7724
      %v7808 = vadd.f32 %v7567, %v7726
      %v7809 = vadd.f32 %v7568, %v7729
      %v7810 = vadd.f32 %v7569, %v7731
      %v7811 = vadd.f32 %v7570, %v7734
      %v7812 = vadd.f32 %v7571, %v7736
      %v7813 = vadd.f32 %v7572, %v7739
      %v7814 = vadd.f32 %v7573, %v7741
      %v7815 = vadd.f32 %v7574, %v7744
      %v7816 = vadd.f32 %v7575, %v7746
      %v7817 = vadd.f32 %v7576, %v7749
      %v7818 = vadd.f32 %v7577, %v7751
      %v7819 = vadd.f32 %v7578, %v7754
      %v7820 = vadd.f32 %v7579, %v7756
      %v7821 = vperm.slane %v3402, 0
      %v7822 = vmul.f32 %v6849, %v7821
      %v7823 = vmul.f32 %v6850, %v7821
      %v7824 = vmul.f32 %v6851, %v7821
      %v7825 = vmul.f32 %v6852, %v7821
      %v7826 = vmul.f32 %v6853, %v7821
      %v7827 = vmul.f32 %v6854, %v7821
      %v7828 = vmul.f32 %v6855, %v7821
      %v7829 = vmul.f32 %v6856, %v7821
      %v7830 = vmul.f32 %v6857, %v7821
      %v7831 = vmul.f32 %v6858, %v7821
      %v7832 = vmul.f32 %v6859, %v7821
      %v7833 = vmul.f32 %v6860, %v7821
      %v7834 = vmul.f32 %v6861, %v7821
      %v7835 = vmul.f32 %v6862, %v7821
      %v7836 = vmul.f32 %v6863, %v7821
      %v7837 = vmul.f32 %v6864, %v7821
      %v7838 = vmul.f32 %v6865, %v7821
      %v7839 = vmul.f32 %v6866, %v7821
      %v7840 = vmul.f32 %v6867, %v7821
      %v7841 = vmul.f32 %v6868, %v7821
      %v7842 = vmul.f32 %v6869, %v7821
      %v7843 = vmul.f32 %v6870, %v7821
      %v7844 = vmul.f32 %v6871, %v7821
      %v7845 = vmul.f32 %v6872, %v7821
      %v7846 = vmul.f32 %v6873, %v7821
      %v7847 = vmul.f32 %v6874, %v7821
      %v7848 = vmul.f32 %v6875, %v7821
      %v7849 = vmul.f32 %v6876, %v7821
      %v7850 = vmul.f32 %v6877, %v7821
      %v7851 = vmul.f32 %v6878, %v7821
      %v7852 = vmul.f32 %v6879, %v7821
      %v7853 = vmul.f32 %v6880, %v7821
      %v7854 = vmul.f32 %v6881, %v7821
      %v7855 = vmul.f32 %v6882, %v7821
      %v7856 = vmul.f32 %v6883, %v7821
      %v7857 = vmul.f32 %v6884, %v7821
      %v7858 = vmul.f32 %v6885, %v7821
      %v7859 = vmul.f32 %v6886, %v7821
      %v7860 = vmul.f32 %v6887, %v7821
      %v7861 = vmul.f32 %v6888, %v7821
      %v7862 = vmul.f32 %v6889, %v7821
      %v7863 = vmul.f32 %v6890, %v7821
      %v7864 = vmul.f32 %v6891, %v7821
      %v7865 = vmul.f32 %v6892, %v7821
      %v7866 = vmul.f32 %v6893, %v7821
      %v7867 = vmul.f32 %v6894, %v7821
      %v7868 = vmul.f32 %v6895, %v7821
      %v7869 = vmul.f32 %v6896, %v7821
      %v7918 = vrot.slane %v7822, 2
      %v7919 = vrot.slane %v7823, 2
      %v7920 = vsel %vm4495, %v7918, %v7919
      %v7921 = vrot.slane %v7824, 2
      %v7922 = vsel %vm4495, %v7919, %v7921
      %v7923 = vrot.slane %v7825, 2
      %v7924 = vrot.slane %v7826, 2
      %v7925 = vsel %vm4495, %v7923, %v7924
      %v7926 = vrot.slane %v7827, 2
      %v7927 = vsel %vm4495, %v7924, %v7926
      %v7928 = vrot.slane %v7828, 2
      %v7929 = vrot.slane %v7829, 2
      %v7930 = vsel %vm4495, %v7928, %v7929
      %v7931 = vrot.slane %v7830, 2
      %v7932 = vsel %vm4495, %v7929, %v7931
      %v7933 = vrot.slane %v7831, 2
      %v7934 = vrot.slane %v7832, 2
      %v7935 = vsel %vm4495, %v7933, %v7934
      %v7936 = vrot.slane %v7833, 2
      %v7937 = vsel %vm4495, %v7934, %v7936
      %v7938 = vrot.slane %v7834, 2
      %v7939 = vrot.slane %v7835, 2
      %v7940 = vsel %vm4495, %v7938, %v7939
      %v7941 = vrot.slane %v7836, 2
      %v7942 = vsel %vm4495, %v7939, %v7941
      %v7943 = vrot.slane %v7837, 2
      %v7944 = vrot.slane %v7838, 2
      %v7945 = vsel %vm4495, %v7943, %v7944
      %v7946 = vrot.slane %v7839, 2
      %v7947 = vsel %vm4495, %v7944, %v7946
      %v7948 = vrot.slane %v7840, 2
      %v7949 = vrot.slane %v7841, 2
      %v7950 = vsel %vm4495, %v7948, %v7949
      %v7951 = vrot.slane %v7842, 2
      %v7952 = vsel %vm4495, %v7949, %v7951
      %v7953 = vrot.slane %v7843, 2
      %v7954 = vrot.slane %v7844, 2
      %v7955 = vsel %vm4495, %v7953, %v7954
      %v7956 = vrot.slane %v7845, 2
      %v7957 = vsel %vm4495, %v7954, %v7956
      %v7958 = vrot.slane %v7846, 2
      %v7959 = vrot.slane %v7847, 2
      %v7960 = vsel %vm4495, %v7958, %v7959
      %v7961 = vrot.slane %v7848, 2
      %v7962 = vsel %vm4495, %v7959, %v7961
      %v7963 = vrot.slane %v7849, 2
      %v7964 = vrot.slane %v7850, 2
      %v7965 = vsel %vm4495, %v7963, %v7964
      %v7966 = vrot.slane %v7851, 2
      %v7967 = vsel %vm4495, %v7964, %v7966
      %v7968 = vrot.slane %v7852, 2
      %v7969 = vrot.slane %v7853, 2
      %v7970 = vsel %vm4495, %v7968, %v7969
      %v7971 = vrot.slane %v7854, 2
      %v7972 = vsel %vm4495, %v7969, %v7971
      %v7973 = vrot.slane %v7855, 2
      %v7974 = vrot.slane %v7856, 2
      %v7975 = vsel %vm4495, %v7973, %v7974
      %v7976 = vrot.slane %v7857, 2
      %v7977 = vsel %vm4495, %v7974, %v7976
      %v7978 = vrot.slane %v7858, 2
      %v7979 = vrot.slane %v7859, 2
      %v7980 = vsel %vm4495, %v7978, %v7979
      %v7981 = vrot.slane %v7860, 2
      %v7982 = vsel %vm4495, %v7979, %v7981
      %v7983 = vrot.slane %v7861, 2
      %v7984 = vrot.slane %v7862, 2
      %v7985 = vsel %vm4495, %v7983, %v7984
      %v7986 = vrot.slane %v7863, 2
      %v7987 = vsel %vm4495, %v7984, %v7986
      %v7988 = vrot.slane %v7864, 2
      %v7989 = vrot.slane %v7865, 2
      %v7990 = vsel %vm4495, %v7988, %v7989
      %v7991 = vrot.slane %v7866, 2
      %v7992 = vsel %vm4495, %v7989, %v7991
      %v7993 = vrot.slane %v7867, 2
      %v7994 = vrot.slane %v7868, 2
      %v7995 = vsel %vm4495, %v7993, %v7994
      %v7996 = vrot.slane %v7869, 2
      %v7997 = vsel %vm4495, %v7994, %v7996
      %v8030 = vadd.f32 %v7789, %v7920
      %v8031 = vadd.f32 %v7790, %v7922
      %v8032 = vadd.f32 %v7791, %v7925
      %v8033 = vadd.f32 %v7792, %v7927
      %v8034 = vadd.f32 %v7793, %v7930
      %v8035 = vadd.f32 %v7794, %v7932
      %v8036 = vadd.f32 %v7795, %v7935
      %v8037 = vadd.f32 %v7796, %v7937
      %v8038 = vadd.f32 %v7797, %v7940
      %v8039 = vadd.f32 %v7798, %v7942
      %v8040 = vadd.f32 %v7799, %v7945
      %v8041 = vadd.f32 %v7800, %v7947
      %v8042 = vadd.f32 %v7801, %v7950
      %v8043 = vadd.f32 %v7802, %v7952
      %v8044 = vadd.f32 %v7803, %v7955
      %v8045 = vadd.f32 %v7804, %v7957
      %v8046 = vadd.f32 %v7805, %v7960
      %v8047 = vadd.f32 %v7806, %v7962
      %v8048 = vadd.f32 %v7807, %v7965
      %v8049 = vadd.f32 %v7808, %v7967
      %v8050 = vadd.f32 %v7809, %v7970
      %v8051 = vadd.f32 %v7810, %v7972
      %v8052 = vadd.f32 %v7811, %v7975
      %v8053 = vadd.f32 %v7812, %v7977
      %v8054 = vadd.f32 %v7813, %v7980
      %v8055 = vadd.f32 %v7814, %v7982
      %v8056 = vadd.f32 %v7815, %v7985
      %v8057 = vadd.f32 %v7816, %v7987
      %v8058 = vadd.f32 %v7817, %v7990
      %v8059 = vadd.f32 %v7818, %v7992
      %v8060 = vadd.f32 %v7819, %v7995
      %v8061 = vadd.f32 %v7820, %v7997
      %v8062 = vperm.slane %v3405, 0
      %v8063 = vmul.f32 %v6852, %v8062
      %v8064 = vmul.f32 %v6853, %v8062
      %v8065 = vmul.f32 %v6854, %v8062
      %v8066 = vmul.f32 %v6855, %v8062
      %v8067 = vmul.f32 %v6856, %v8062
      %v8068 = vmul.f32 %v6857, %v8062
      %v8069 = vmul.f32 %v6858, %v8062
      %v8070 = vmul.f32 %v6859, %v8062
      %v8071 = vmul.f32 %v6860, %v8062
      %v8072 = vmul.f32 %v6861, %v8062
      %v8073 = vmul.f32 %v6862, %v8062
      %v8074 = vmul.f32 %v6863, %v8062
      %v8075 = vmul.f32 %v6864, %v8062
      %v8076 = vmul.f32 %v6865, %v8062
      %v8077 = vmul.f32 %v6866, %v8062
      %v8078 = vmul.f32 %v6867, %v8062
      %v8079 = vmul.f32 %v6868, %v8062
      %v8080 = vmul.f32 %v6869, %v8062
      %v8081 = vmul.f32 %v6870, %v8062
      %v8082 = vmul.f32 %v6871, %v8062
      %v8083 = vmul.f32 %v6872, %v8062
      %v8084 = vmul.f32 %v6873, %v8062
      %v8085 = vmul.f32 %v6874, %v8062
      %v8086 = vmul.f32 %v6875, %v8062
      %v8087 = vmul.f32 %v6876, %v8062
      %v8088 = vmul.f32 %v6877, %v8062
      %v8089 = vmul.f32 %v6878, %v8062
      %v8090 = vmul.f32 %v6879, %v8062
      %v8091 = vmul.f32 %v6880, %v8062
      %v8092 = vmul.f32 %v6881, %v8062
      %v8093 = vmul.f32 %v6882, %v8062
      %v8094 = vmul.f32 %v6883, %v8062
      %v8095 = vmul.f32 %v6884, %v8062
      %v8096 = vmul.f32 %v6885, %v8062
      %v8097 = vmul.f32 %v6886, %v8062
      %v8098 = vmul.f32 %v6887, %v8062
      %v8099 = vmul.f32 %v6888, %v8062
      %v8100 = vmul.f32 %v6889, %v8062
      %v8101 = vmul.f32 %v6890, %v8062
      %v8102 = vmul.f32 %v6891, %v8062
      %v8103 = vmul.f32 %v6892, %v8062
      %v8104 = vmul.f32 %v6893, %v8062
      %v8105 = vmul.f32 %v6894, %v8062
      %v8106 = vmul.f32 %v6895, %v8062
      %v8107 = vmul.f32 %v6896, %v8062
      %v8108 = vmul.f32 %v6897, %v8062
      %v8109 = vmul.f32 %v6898, %v8062
      %v8110 = vmul.f32 %v6899, %v8062
      %v8159 = vrot.slane %v8063, 2
      %v8160 = vrot.slane %v8064, 2
      %v8161 = vsel %vm4495, %v8159, %v8160
      %v8162 = vrot.slane %v8065, 2
      %v8163 = vsel %vm4495, %v8160, %v8162
      %v8164 = vrot.slane %v8066, 2
      %v8165 = vrot.slane %v8067, 2
      %v8166 = vsel %vm4495, %v8164, %v8165
      %v8167 = vrot.slane %v8068, 2
      %v8168 = vsel %vm4495, %v8165, %v8167
      %v8169 = vrot.slane %v8069, 2
      %v8170 = vrot.slane %v8070, 2
      %v8171 = vsel %vm4495, %v8169, %v8170
      %v8172 = vrot.slane %v8071, 2
      %v8173 = vsel %vm4495, %v8170, %v8172
      %v8174 = vrot.slane %v8072, 2
      %v8175 = vrot.slane %v8073, 2
      %v8176 = vsel %vm4495, %v8174, %v8175
      %v8177 = vrot.slane %v8074, 2
      %v8178 = vsel %vm4495, %v8175, %v8177
      %v8179 = vrot.slane %v8075, 2
      %v8180 = vrot.slane %v8076, 2
      %v8181 = vsel %vm4495, %v8179, %v8180
      %v8182 = vrot.slane %v8077, 2
      %v8183 = vsel %vm4495, %v8180, %v8182
      %v8184 = vrot.slane %v8078, 2
      %v8185 = vrot.slane %v8079, 2
      %v8186 = vsel %vm4495, %v8184, %v8185
      %v8187 = vrot.slane %v8080, 2
      %v8188 = vsel %vm4495, %v8185, %v8187
      %v8189 = vrot.slane %v8081, 2
      %v8190 = vrot.slane %v8082, 2
      %v8191 = vsel %vm4495, %v8189, %v8190
      %v8192 = vrot.slane %v8083, 2
      %v8193 = vsel %vm4495, %v8190, %v8192
      %v8194 = vrot.slane %v8084, 2
      %v8195 = vrot.slane %v8085, 2
      %v8196 = vsel %vm4495, %v8194, %v8195
      %v8197 = vrot.slane %v8086, 2
      %v8198 = vsel %vm4495, %v8195, %v8197
      %v8199 = vrot.slane %v8087, 2
      %v8200 = vrot.slane %v8088, 2
      %v8201 = vsel %vm4495, %v8199, %v8200
      %v8202 = vrot.slane %v8089, 2
      %v8203 = vsel %vm4495, %v8200, %v8202
      %v8204 = vrot.slane %v8090, 2
      %v8205 = vrot.slane %v8091, 2
      %v8206 = vsel %vm4495, %v8204, %v8205
      %v8207 = vrot.slane %v8092, 2
      %v8208 = vsel %vm4495, %v8205, %v8207
      %v8209 = vrot.slane %v8093, 2
      %v8210 = vrot.slane %v8094, 2
      %v8211 = vsel %vm4495, %v8209, %v8210
      %v8212 = vrot.slane %v8095, 2
      %v8213 = vsel %vm4495, %v8210, %v8212
      %v8214 = vrot.slane %v8096, 2
      %v8215 = vrot.slane %v8097, 2
      %v8216 = vsel %vm4495, %v8214, %v8215
      %v8217 = vrot.slane %v8098, 2
      %v8218 = vsel %vm4495, %v8215, %v8217
      %v8219 = vrot.slane %v8099, 2
      %v8220 = vrot.slane %v8100, 2
      %v8221 = vsel %vm4495, %v8219, %v8220
      %v8222 = vrot.slane %v8101, 2
      %v8223 = vsel %vm4495, %v8220, %v8222
      %v8224 = vrot.slane %v8102, 2
      %v8225 = vrot.slane %v8103, 2
      %v8226 = vsel %vm4495, %v8224, %v8225
      %v8227 = vrot.slane %v8104, 2
      %v8228 = vsel %vm4495, %v8225, %v8227
      %v8229 = vrot.slane %v8105, 2
      %v8230 = vrot.slane %v8106, 2
      %v8231 = vsel %vm4495, %v8229, %v8230
      %v8232 = vrot.slane %v8107, 2
      %v8233 = vsel %vm4495, %v8230, %v8232
      %v8234 = vrot.slane %v8108, 2
      %v8235 = vrot.slane %v8109, 2
      %v8236 = vsel %vm4495, %v8234, %v8235
      %v8237 = vrot.slane %v8110, 2
      %v8238 = vsel %vm4495, %v8235, %v8237
      %v8271 = vadd.f32 %v8030, %v8161
      %v8272 = vadd.f32 %v8031, %v8163
      %v8273 = vadd.f32 %v8032, %v8166
      %v8274 = vadd.f32 %v8033, %v8168
      %v8275 = vadd.f32 %v8034, %v8171
      %v8276 = vadd.f32 %v8035, %v8173
      %v8277 = vadd.f32 %v8036, %v8176
      %v8278 = vadd.f32 %v8037, %v8178
      %v8279 = vadd.f32 %v8038, %v8181
      %v8280 = vadd.f32 %v8039, %v8183
      %v8281 = vadd.f32 %v8040, %v8186
      %v8282 = vadd.f32 %v8041, %v8188
      %v8283 = vadd.f32 %v8042, %v8191
      %v8284 = vadd.f32 %v8043, %v8193
      %v8285 = vadd.f32 %v8044, %v8196
      %v8286 = vadd.f32 %v8045, %v8198
      %v8287 = vadd.f32 %v8046, %v8201
      %v8288 = vadd.f32 %v8047, %v8203
      %v8289 = vadd.f32 %v8048, %v8206
      %v8290 = vadd.f32 %v8049, %v8208
      %v8291 = vadd.f32 %v8050, %v8211
      %v8292 = vadd.f32 %v8051, %v8213
      %v8293 = vadd.f32 %v8052, %v8216
      %v8294 = vadd.f32 %v8053, %v8218
      %v8295 = vadd.f32 %v8054, %v8221
      %v8296 = vadd.f32 %v8055, %v8223
      %v8297 = vadd.f32 %v8056, %v8226
      %v8298 = vadd.f32 %v8057, %v8228
      %v8299 = vadd.f32 %v8058, %v8231
      %v8300 = vadd.f32 %v8059, %v8233
      %v8301 = vadd.f32 %v8060, %v8236
      %v8302 = vadd.f32 %v8061, %v8238
      %v8303 = vperm.slane %v3408, 0
      %v8304 = vmul.f32 %v6855, %v8303
      %v8305 = vmul.f32 %v6856, %v8303
      %v8306 = vmul.f32 %v6857, %v8303
      %v8307 = vmul.f32 %v6858, %v8303
      %v8308 = vmul.f32 %v6859, %v8303
      %v8309 = vmul.f32 %v6860, %v8303
      %v8310 = vmul.f32 %v6861, %v8303
      %v8311 = vmul.f32 %v6862, %v8303
      %v8312 = vmul.f32 %v6863, %v8303
      %v8313 = vmul.f32 %v6864, %v8303
      %v8314 = vmul.f32 %v6865, %v8303
      %v8315 = vmul.f32 %v6866, %v8303
      %v8316 = vmul.f32 %v6867, %v8303
      %v8317 = vmul.f32 %v6868, %v8303
      %v8318 = vmul.f32 %v6869, %v8303
      %v8319 = vmul.f32 %v6870, %v8303
      %v8320 = vmul.f32 %v6871, %v8303
      %v8321 = vmul.f32 %v6872, %v8303
      %v8322 = vmul.f32 %v6873, %v8303
      %v8323 = vmul.f32 %v6874, %v8303
      %v8324 = vmul.f32 %v6875, %v8303
      %v8325 = vmul.f32 %v6876, %v8303
      %v8326 = vmul.f32 %v6877, %v8303
      %v8327 = vmul.f32 %v6878, %v8303
      %v8328 = vmul.f32 %v6879, %v8303
      %v8329 = vmul.f32 %v6880, %v8303
      %v8330 = vmul.f32 %v6881, %v8303
      %v8331 = vmul.f32 %v6882, %v8303
      %v8332 = vmul.f32 %v6883, %v8303
      %v8333 = vmul.f32 %v6884, %v8303
      %v8334 = vmul.f32 %v6885, %v8303
      %v8335 = vmul.f32 %v6886, %v8303
      %v8336 = vmul.f32 %v6887, %v8303
      %v8337 = vmul.f32 %v6888, %v8303
      %v8338 = vmul.f32 %v6889, %v8303
      %v8339 = vmul.f32 %v6890, %v8303
      %v8340 = vmul.f32 %v6891, %v8303
      %v8341 = vmul.f32 %v6892, %v8303
      %v8342 = vmul.f32 %v6893, %v8303
      %v8343 = vmul.f32 %v6894, %v8303
      %v8344 = vmul.f32 %v6895, %v8303
      %v8345 = vmul.f32 %v6896, %v8303
      %v8346 = vmul.f32 %v6897, %v8303
      %v8347 = vmul.f32 %v6898, %v8303
      %v8348 = vmul.f32 %v6899, %v8303
      %v8349 = vmul.f32 %v6900, %v8303
      %v8350 = vmul.f32 %v6901, %v8303
      %v8351 = vmul.f32 %v6902, %v8303
      %v8400 = vrot.slane %v8304, 2
      %v8401 = vrot.slane %v8305, 2
      %v8402 = vsel %vm4495, %v8400, %v8401
      %v8403 = vrot.slane %v8306, 2
      %v8404 = vsel %vm4495, %v8401, %v8403
      %v8405 = vrot.slane %v8307, 2
      %v8406 = vrot.slane %v8308, 2
      %v8407 = vsel %vm4495, %v8405, %v8406
      %v8408 = vrot.slane %v8309, 2
      %v8409 = vsel %vm4495, %v8406, %v8408
      %v8410 = vrot.slane %v8310, 2
      %v8411 = vrot.slane %v8311, 2
      %v8412 = vsel %vm4495, %v8410, %v8411
      %v8413 = vrot.slane %v8312, 2
      %v8414 = vsel %vm4495, %v8411, %v8413
      %v8415 = vrot.slane %v8313, 2
      %v8416 = vrot.slane %v8314, 2
      %v8417 = vsel %vm4495, %v8415, %v8416
      %v8418 = vrot.slane %v8315, 2
      %v8419 = vsel %vm4495, %v8416, %v8418
      %v8420 = vrot.slane %v8316, 2
      %v8421 = vrot.slane %v8317, 2
      %v8422 = vsel %vm4495, %v8420, %v8421
      %v8423 = vrot.slane %v8318, 2
      %v8424 = vsel %vm4495, %v8421, %v8423
      %v8425 = vrot.slane %v8319, 2
      %v8426 = vrot.slane %v8320, 2
      %v8427 = vsel %vm4495, %v8425, %v8426
      %v8428 = vrot.slane %v8321, 2
      %v8429 = vsel %vm4495, %v8426, %v8428
      %v8430 = vrot.slane %v8322, 2
      %v8431 = vrot.slane %v8323, 2
      %v8432 = vsel %vm4495, %v8430, %v8431
      %v8433 = vrot.slane %v8324, 2
      %v8434 = vsel %vm4495, %v8431, %v8433
      %v8435 = vrot.slane %v8325, 2
      %v8436 = vrot.slane %v8326, 2
      %v8437 = vsel %vm4495, %v8435, %v8436
      %v8438 = vrot.slane %v8327, 2
      %v8439 = vsel %vm4495, %v8436, %v8438
      %v8440 = vrot.slane %v8328, 2
      %v8441 = vrot.slane %v8329, 2
      %v8442 = vsel %vm4495, %v8440, %v8441
      %v8443 = vrot.slane %v8330, 2
      %v8444 = vsel %vm4495, %v8441, %v8443
      %v8445 = vrot.slane %v8331, 2
      %v8446 = vrot.slane %v8332, 2
      %v8447 = vsel %vm4495, %v8445, %v8446
      %v8448 = vrot.slane %v8333, 2
      %v8449 = vsel %vm4495, %v8446, %v8448
      %v8450 = vrot.slane %v8334, 2
      %v8451 = vrot.slane %v8335, 2
      %v8452 = vsel %vm4495, %v8450, %v8451
      %v8453 = vrot.slane %v8336, 2
      %v8454 = vsel %vm4495, %v8451, %v8453
      %v8455 = vrot.slane %v8337, 2
      %v8456 = vrot.slane %v8338, 2
      %v8457 = vsel %vm4495, %v8455, %v8456
      %v8458 = vrot.slane %v8339, 2
      %v8459 = vsel %vm4495, %v8456, %v8458
      %v8460 = vrot.slane %v8340, 2
      %v8461 = vrot.slane %v8341, 2
      %v8462 = vsel %vm4495, %v8460, %v8461
      %v8463 = vrot.slane %v8342, 2
      %v8464 = vsel %vm4495, %v8461, %v8463
      %v8465 = vrot.slane %v8343, 2
      %v8466 = vrot.slane %v8344, 2
      %v8467 = vsel %vm4495, %v8465, %v8466
      %v8468 = vrot.slane %v8345, 2
      %v8469 = vsel %vm4495, %v8466, %v8468
      %v8470 = vrot.slane %v8346, 2
      %v8471 = vrot.slane %v8347, 2
      %v8472 = vsel %vm4495, %v8470, %v8471
      %v8473 = vrot.slane %v8348, 2
      %v8474 = vsel %vm4495, %v8471, %v8473
      %v8475 = vrot.slane %v8349, 2
      %v8476 = vrot.slane %v8350, 2
      %v8477 = vsel %vm4495, %v8475, %v8476
      %v8478 = vrot.slane %v8351, 2
      %v8479 = vsel %vm4495, %v8476, %v8478
      %v8512 = vadd.f32 %v8271, %v8402
      %v8513 = vadd.f32 %v8272, %v8404
      %v8514 = vadd.f32 %v8273, %v8407
      %v8515 = vadd.f32 %v8274, %v8409
      %v8516 = vadd.f32 %v8275, %v8412
      %v8517 = vadd.f32 %v8276, %v8414
      %v8518 = vadd.f32 %v8277, %v8417
      %v8519 = vadd.f32 %v8278, %v8419
      %v8520 = vadd.f32 %v8279, %v8422
      %v8521 = vadd.f32 %v8280, %v8424
      %v8522 = vadd.f32 %v8281, %v8427
      %v8523 = vadd.f32 %v8282, %v8429
      %v8524 = vadd.f32 %v8283, %v8432
      %v8525 = vadd.f32 %v8284, %v8434
      %v8526 = vadd.f32 %v8285, %v8437
      %v8527 = vadd.f32 %v8286, %v8439
      %v8528 = vadd.f32 %v8287, %v8442
      %v8529 = vadd.f32 %v8288, %v8444
      %v8530 = vadd.f32 %v8289, %v8447
      %v8531 = vadd.f32 %v8290, %v8449
      %v8532 = vadd.f32 %v8291, %v8452
      %v8533 = vadd.f32 %v8292, %v8454
      %v8534 = vadd.f32 %v8293, %v8457
      %v8535 = vadd.f32 %v8294, %v8459
      %v8536 = vadd.f32 %v8295, %v8462
      %v8537 = vadd.f32 %v8296, %v8464
      %v8538 = vadd.f32 %v8297, %v8467
      %v8539 = vadd.f32 %v8298, %v8469
      %v8540 = vadd.f32 %v8299, %v8472
      %v8541 = vadd.f32 %v8300, %v8474
      %v8542 = vadd.f32 %v8301, %v8477
      %v8543 = vadd.f32 %v8302, %v8479
      %v8544 = vmul.f32 %v8512, %v8512
      %v8545 = vmul.f32 %v8513, %v8513
      %v8546 = vmul.f32 %v8514, %v8514
      %v8547 = vmul.f32 %v8515, %v8515
      %v8548 = vmul.f32 %v8516, %v8516
      %v8549 = vmul.f32 %v8517, %v8517
      %v8550 = vmul.f32 %v8518, %v8518
      %v8551 = vmul.f32 %v8519, %v8519
      %v8552 = vmul.f32 %v8520, %v8520
      %v8553 = vmul.f32 %v8521, %v8521
      %v8554 = vmul.f32 %v8522, %v8522
      %v8555 = vmul.f32 %v8523, %v8523
      %v8556 = vmul.f32 %v8524, %v8524
      %v8557 = vmul.f32 %v8525, %v8525
      %v8558 = vmul.f32 %v8526, %v8526
      %v8559 = vmul.f32 %v8527, %v8527
      %v8560 = vmul.f32 %v8528, %v8528
      %v8561 = vmul.f32 %v8529, %v8529
      %v8562 = vmul.f32 %v8530, %v8530
      %v8563 = vmul.f32 %v8531, %v8531
      %v8564 = vmul.f32 %v8532, %v8532
      %v8565 = vmul.f32 %v8533, %v8533
      %v8566 = vmul.f32 %v8534, %v8534
      %v8567 = vmul.f32 %v8535, %v8535
      %v8568 = vmul.f32 %v8536, %v8536
      %v8569 = vmul.f32 %v8537, %v8537
      %v8570 = vmul.f32 %v8538, %v8538
      %v8571 = vmul.f32 %v8539, %v8539
      %v8572 = vmul.f32 %v8540, %v8540
      %v8573 = vmul.f32 %v8541, %v8541
      %v8574 = vmul.f32 %v8542, %v8542
      %v8575 = vmul.f32 %v8543, %v8543
      %v8576 = vmul.f32 %v8512, %v8544
      %v8577 = vmul.f32 %v8513, %v8545
      %v8578 = vmul.f32 %v8514, %v8546
      %v8579 = vmul.f32 %v8515, %v8547
      %v8580 = vmul.f32 %v8516, %v8548
      %v8581 = vmul.f32 %v8517, %v8549
      %v8582 = vmul.f32 %v8518, %v8550
      %v8583 = vmul.f32 %v8519, %v8551
      %v8584 = vmul.f32 %v8520, %v8552
      %v8585 = vmul.f32 %v8521, %v8553
      %v8586 = vmul.f32 %v8522, %v8554
      %v8587 = vmul.f32 %v8523, %v8555
      %v8588 = vmul.f32 %v8524, %v8556
      %v8589 = vmul.f32 %v8525, %v8557
      %v8590 = vmul.f32 %v8526, %v8558
      %v8591 = vmul.f32 %v8527, %v8559
      %v8592 = vmul.f32 %v8528, %v8560
      %v8593 = vmul.f32 %v8529, %v8561
      %v8594 = vmul.f32 %v8530, %v8562
      %v8595 = vmul.f32 %v8531, %v8563
      %v8596 = vmul.f32 %v8532, %v8564
      %v8597 = vmul.f32 %v8533, %v8565
      %v8598 = vmul.f32 %v8534, %v8566
      %v8599 = vmul.f32 %v8535, %v8567
      %v8600 = vmul.f32 %v8536, %v8568
      %v8601 = vmul.f32 %v8537, %v8569
      %v8602 = vmul.f32 %v8538, %v8570
      %v8603 = vmul.f32 %v8539, %v8571
      %v8604 = vmul.f32 %v8540, %v8572
      %v8605 = vmul.f32 %v8541, %v8573
      %v8606 = vmul.f32 %v8542, %v8574
      %v8607 = vmul.f32 %v8543, %v8575
      %v8608 = vmul.f32 %v8576, 0.044715
      %v8609 = vmul.f32 %v8577, 0.044715
      %v8610 = vmul.f32 %v8578, 0.044715
      %v8611 = vmul.f32 %v8579, 0.044715
      %v8612 = vmul.f32 %v8580, 0.044715
      %v8613 = vmul.f32 %v8581, 0.044715
      %v8614 = vmul.f32 %v8582, 0.044715
      %v8615 = vmul.f32 %v8583, 0.044715
      %v8616 = vmul.f32 %v8584, 0.044715
      %v8617 = vmul.f32 %v8585, 0.044715
      %v8618 = vmul.f32 %v8586, 0.044715
      %v8619 = vmul.f32 %v8587, 0.044715
      %v8620 = vmul.f32 %v8588, 0.044715
      %v8621 = vmul.f32 %v8589, 0.044715
      %v8622 = vmul.f32 %v8590, 0.044715
      %v8623 = vmul.f32 %v8591, 0.044715
      %v8624 = vmul.f32 %v8592, 0.044715
      %v8625 = vmul.f32 %v8593, 0.044715
      %v8626 = vmul.f32 %v8594, 0.044715
      %v8627 = vmul.f32 %v8595, 0.044715
      %v8628 = vmul.f32 %v8596, 0.044715
      %v8629 = vmul.f32 %v8597, 0.044715
      %v8630 = vmul.f32 %v8598, 0.044715
      %v8631 = vmul.f32 %v8599, 0.044715
      %v8632 = vmul.f32 %v8600, 0.044715
      %v8633 = vmul.f32 %v8601, 0.044715
      %v8634 = vmul.f32 %v8602, 0.044715
      %v8635 = vmul.f32 %v8603, 0.044715
      %v8636 = vmul.f32 %v8604, 0.044715
      %v8637 = vmul.f32 %v8605, 0.044715
      %v8638 = vmul.f32 %v8606, 0.044715
      %v8639 = vmul.f32 %v8607, 0.044715
      %v8640 = vadd.f32 %v8512, %v8608
      %v8641 = vadd.f32 %v8513, %v8609
      %v8642 = vadd.f32 %v8514, %v8610
      %v8643 = vadd.f32 %v8515, %v8611
      %v8644 = vadd.f32 %v8516, %v8612
      %v8645 = vadd.f32 %v8517, %v8613
      %v8646 = vadd.f32 %v8518, %v8614
      %v8647 = vadd.f32 %v8519, %v8615
      %v8648 = vadd.f32 %v8520, %v8616
      %v8649 = vadd.f32 %v8521, %v8617
      %v8650 = vadd.f32 %v8522, %v8618
      %v8651 = vadd.f32 %v8523, %v8619
      %v8652 = vadd.f32 %v8524, %v8620
      %v8653 = vadd.f32 %v8525, %v8621
      %v8654 = vadd.f32 %v8526, %v8622
      %v8655 = vadd.f32 %v8527, %v8623
      %v8656 = vadd.f32 %v8528, %v8624
      %v8657 = vadd.f32 %v8529, %v8625
      %v8658 = vadd.f32 %v8530, %v8626
      %v8659 = vadd.f32 %v8531, %v8627
      %v8660 = vadd.f32 %v8532, %v8628
      %v8661 = vadd.f32 %v8533, %v8629
      %v8662 = vadd.f32 %v8534, %v8630
      %v8663 = vadd.f32 %v8535, %v8631
      %v8664 = vadd.f32 %v8536, %v8632
      %v8665 = vadd.f32 %v8537, %v8633
      %v8666 = vadd.f32 %v8538, %v8634
      %v8667 = vadd.f32 %v8539, %v8635
      %v8668 = vadd.f32 %v8540, %v8636
      %v8669 = vadd.f32 %v8541, %v8637
      %v8670 = vadd.f32 %v8542, %v8638
      %v8671 = vadd.f32 %v8543, %v8639
      %v8672 = vmul.f32 %v8640, 0.7978846
      %v8673 = vmul.f32 %v8641, 0.7978846
      %v8674 = vmul.f32 %v8642, 0.7978846
      %v8675 = vmul.f32 %v8643, 0.7978846
      %v8676 = vmul.f32 %v8644, 0.7978846
      %v8677 = vmul.f32 %v8645, 0.7978846
      %v8678 = vmul.f32 %v8646, 0.7978846
      %v8679 = vmul.f32 %v8647, 0.7978846
      %v8680 = vmul.f32 %v8648, 0.7978846
      %v8681 = vmul.f32 %v8649, 0.7978846
      %v8682 = vmul.f32 %v8650, 0.7978846
      %v8683 = vmul.f32 %v8651, 0.7978846
      %v8684 = vmul.f32 %v8652, 0.7978846
      %v8685 = vmul.f32 %v8653, 0.7978846
      %v8686 = vmul.f32 %v8654, 0.7978846
      %v8687 = vmul.f32 %v8655, 0.7978846
      %v8688 = vmul.f32 %v8656, 0.7978846
      %v8689 = vmul.f32 %v8657, 0.7978846
      %v8690 = vmul.f32 %v8658, 0.7978846
      %v8691 = vmul.f32 %v8659, 0.7978846
      %v8692 = vmul.f32 %v8660, 0.7978846
      %v8693 = vmul.f32 %v8661, 0.7978846
      %v8694 = vmul.f32 %v8662, 0.7978846
      %v8695 = vmul.f32 %v8663, 0.7978846
      %v8696 = vmul.f32 %v8664, 0.7978846
      %v8697 = vmul.f32 %v8665, 0.7978846
      %v8698 = vmul.f32 %v8666, 0.7978846
      %v8699 = vmul.f32 %v8667, 0.7978846
      %v8700 = vmul.f32 %v8668, 0.7978846
      %v8701 = vmul.f32 %v8669, 0.7978846
      %v8702 = vmul.f32 %v8670, 0.7978846
      %v8703 = vmul.f32 %v8671, 0.7978846
      %v8704 = vtanh.pop %v8672
      %v8705 = vtanh.pop %v8673
      %v8706 = vtanh.pop %v8674
      %v8707 = vtanh.pop %v8675
      %v8708 = vtanh.pop %v8676
      %v8709 = vtanh.pop %v8677
      %v8710 = vtanh.pop %v8678
      %v8711 = vtanh.pop %v8679
      %v8712 = vtanh.pop %v8680
      %v8713 = vtanh.pop %v8681
      %v8714 = vtanh.pop %v8682
      %v8715 = vtanh.pop %v8683
      %v8716 = vtanh.pop %v8684
      %v8717 = vtanh.pop %v8685
      %v8718 = vtanh.pop %v8686
      %v8719 = vtanh.pop %v8687
      %v8720 = vtanh.pop %v8688
      %v8721 = vtanh.pop %v8689
      %v8722 = vtanh.pop %v8690
      %v8723 = vtanh.pop %v8691
      %v8724 = vtanh.pop %v8692
      %v8725 = vtanh.pop %v8693
      %v8726 = vtanh.pop %v8694
      %v8727 = vtanh.pop %v8695
      %v8728 = vtanh.pop %v8696
      %v8729 = vtanh.pop %v8697
      %v8730 = vtanh.pop %v8698
      %v8731 = vtanh.pop %v8699
      %v8732 = vtanh.pop %v8700
      %v8733 = vtanh.pop %v8701
      %v8734 = vtanh.pop %v8702
      %v8735 = vtanh.pop %v8703
      %v8736 = vadd.f32 %v8704, 1.0
      %v8737 = vadd.f32 %v8705, 1.0
      %v8738 = vadd.f32 %v8706, 1.0
      %v8739 = vadd.f32 %v8707, 1.0
      %v8740 = vadd.f32 %v8708, 1.0
      %v8741 = vadd.f32 %v8709, 1.0
      %v8742 = vadd.f32 %v8710, 1.0
      %v8743 = vadd.f32 %v8711, 1.0
      %v8744 = vadd.f32 %v8712, 1.0
      %v8745 = vadd.f32 %v8713, 1.0
      %v8746 = vadd.f32 %v8714, 1.0
      %v8747 = vadd.f32 %v8715, 1.0
      %v8748 = vadd.f32 %v8716, 1.0
      %v8749 = vadd.f32 %v8717, 1.0
      %v8750 = vadd.f32 %v8718, 1.0
      %v8751 = vadd.f32 %v8719, 1.0
      %v8752 = vadd.f32 %v8720, 1.0
      %v8753 = vadd.f32 %v8721, 1.0
      %v8754 = vadd.f32 %v8722, 1.0
      %v8755 = vadd.f32 %v8723, 1.0
      %v8756 = vadd.f32 %v8724, 1.0
      %v8757 = vadd.f32 %v8725, 1.0
      %v8758 = vadd.f32 %v8726, 1.0
      %v8759 = vadd.f32 %v8727, 1.0
      %v8760 = vadd.f32 %v8728, 1.0
      %v8761 = vadd.f32 %v8729, 1.0
      %v8762 = vadd.f32 %v8730, 1.0
      %v8763 = vadd.f32 %v8731, 1.0
      %v8764 = vadd.f32 %v8732, 1.0
      %v8765 = vadd.f32 %v8733, 1.0
      %v8766 = vadd.f32 %v8734, 1.0
      %v8767 = vadd.f32 %v8735, 1.0
      %v8768 = vmul.f32 %v8736, 0.5
      %v8769 = vmul.f32 %v8737, 0.5
      %v8770 = vmul.f32 %v8738, 0.5
      %v8771 = vmul.f32 %v8739, 0.5
      %v8772 = vmul.f32 %v8740, 0.5
      %v8773 = vmul.f32 %v8741, 0.5
      %v8774 = vmul.f32 %v8742, 0.5
      %v8775 = vmul.f32 %v8743, 0.5
      %v8776 = vmul.f32 %v8744, 0.5
      %v8777 = vmul.f32 %v8745, 0.5
      %v8778 = vmul.f32 %v8746, 0.5
      %v8779 = vmul.f32 %v8747, 0.5
      %v8780 = vmul.f32 %v8748, 0.5
      %v8781 = vmul.f32 %v8749, 0.5
      %v8782 = vmul.f32 %v8750, 0.5
      %v8783 = vmul.f32 %v8751, 0.5
      %v8784 = vmul.f32 %v8752, 0.5
      %v8785 = vmul.f32 %v8753, 0.5
      %v8786 = vmul.f32 %v8754, 0.5
      %v8787 = vmul.f32 %v8755, 0.5
      %v8788 = vmul.f32 %v8756, 0.5
      %v8789 = vmul.f32 %v8757, 0.5
      %v8790 = vmul.f32 %v8758, 0.5
      %v8791 = vmul.f32 %v8759, 0.5
      %v8792 = vmul.f32 %v8760, 0.5
      %v8793 = vmul.f32 %v8761, 0.5
      %v8794 = vmul.f32 %v8762, 0.5
      %v8795 = vmul.f32 %v8763, 0.5
      %v8796 = vmul.f32 %v8764, 0.5
      %v8797 = vmul.f32 %v8765, 0.5
      %v8798 = vmul.f32 %v8766, 0.5
      %v8799 = vmul.f32 %v8767, 0.5
      %v8800 = vmul.f32 %v8512, %v8768
      %v8801 = vmul.f32 %v8513, %v8769
      %v8802 = vmul.f32 %v8514, %v8770
      %v8803 = vmul.f32 %v8515, %v8771
      %v8804 = vmul.f32 %v8516, %v8772
      %v8805 = vmul.f32 %v8517, %v8773
      %v8806 = vmul.f32 %v8518, %v8774
      %v8807 = vmul.f32 %v8519, %v8775
      %v8808 = vmul.f32 %v8520, %v8776
      %v8809 = vmul.f32 %v8521, %v8777
      %v8810 = vmul.f32 %v8522, %v8778
      %v8811 = vmul.f32 %v8523, %v8779
      %v8812 = vmul.f32 %v8524, %v8780
      %v8813 = vmul.f32 %v8525, %v8781
      %v8814 = vmul.f32 %v8526, %v8782
      %v8815 = vmul.f32 %v8527, %v8783
      %v8816 = vmul.f32 %v8528, %v8784
      %v8817 = vmul.f32 %v8529, %v8785
      %v8818 = vmul.f32 %v8530, %v8786
      %v8819 = vmul.f32 %v8531, %v8787
      %v8820 = vmul.f32 %v8532, %v8788
      %v8821 = vmul.f32 %v8533, %v8789
      %v8822 = vmul.f32 %v8534, %v8790
      %v8823 = vmul.f32 %v8535, %v8791
      %v8824 = vmul.f32 %v8536, %v8792
      %v8825 = vmul.f32 %v8537, %v8793
      %v8826 = vmul.f32 %v8538, %v8794
      %v8827 = vmul.f32 %v8539, %v8795
      %v8828 = vmul.f32 %v8540, %v8796
      %v8829 = vmul.f32 %v8541, %v8797
      %v8830 = vmul.f32 %v8542, %v8798
      %v8831 = vmul.f32 %v8543, %v8799
      %v8832 = vld [vmem:[%s4] sm:$0xff]
      %v8833 = vld [vmem:[%s4 + $0x8] sm:$0xff]
      %v8834 = vld [vmem:[%s4 + $0x10] sm:$0xff]
      %v8835 = vld [vmem:[%s4 + $0x18] sm:$0xff]
      %v8836 = vld [vmem:[%s4 + $0x20] sm:$0xff]
      %v8837 = vld [vmem:[%s4 + $0x28] sm:$0xff]
      %v8838 = vld [vmem:[%s4 + $0x30] sm:$0xff]
      %v8839 = vld [vmem:[%s4 + $0x38] sm:$0xff]
      %vm8840 = vcmask 523264
      %v8842 = vsel %vm8840, %v8800, 0
      %v8845 = vsel %vm8840, %v8801, 0
      %v8848 = vsel %vm8840, %v8802, 0
      %v8851 = vsel %vm8840, %v8803, 0
      %v8854 = vsel %vm8840, %v8804, 0
      %v8857 = vsel %vm8840, %v8805, 0
      %v8860 = vsel %vm8840, %v8806, 0
      %v8863 = vsel %vm8840, %v8807, 0
      %v8866 = vsel %vm8840, %v8808, 0
      %v8869 = vsel %vm8840, %v8809, 0
      %v8872 = vsel %vm8840, %v8810, 0
      %v8875 = vsel %vm8840, %v8811, 0
      %v8878 = vsel %vm8840, %v8812, 0
      %v8881 = vsel %vm8840, %v8813, 0
      %v8884 = vsel %vm8840, %v8814, 0
      %v8887 = vsel %vm8840, %v8815, 0
      %v8890 = vsel %vm8840, %v8816, 0
      %v8893 = vsel %vm8840, %v8817, 0
      %v8896 = vsel %vm8840, %v8818, 0
      %v8899 = vsel %vm8840, %v8819, 0
      %v8902 = vsel %vm8840, %v8820, 0
      %v8905 = vsel %vm8840, %v8821, 0
      %v8908 = vsel %vm8840, %v8822, 0
      %v8911 = vsel %vm8840, %v8823, 0
      %v8914 = vsel %vm8840, %v8824, 0
      %v8917 = vsel %vm8840, %v8825, 0
      %v8920 = vsel %vm8840, %v8826, 0
      %v8923 = vsel %vm8840, %v8827, 0
      %v8926 = vsel %vm8840, %v8828, 0
      %v8929 = vsel %vm8840, %v8829, 0
      %v8932 = vsel %vm8840, %v8830, 0
      %v8935 = vsel %vm8840, %v8831, 0
      %8937 = vmatpush.msra.mxu0 0.0
      %8938 = vmatpush.msra.mxu0 0.0
      %8939 = vmatpush.msra.mxu0 0.0
      %8940 = vmatpush.msra.mxu0 0.0
      %8941 = vmatpush.msra.mxu0 0.0
      %8942 = vmatpush.msra.mxu0 0.0
      %8943 = vmatpush.msra.mxu0 0.0
      %8944 = vmatpush.msra.mxu0 0.0
      %8945 = vmatpush.msra.mxu0 %v8839
      %8946 = vmatpush.msra.mxu0 %v8838
      %8947 = vmatpush.msra.mxu0 %v8837
      %8948 = vmatpush.msra.mxu0 %v8836
      %8949 = vmatpush.msra.mxu0 %v8835
      %8950 = vmatpush.msra.mxu0 %v8834
      %8951 = vmatpush.msra.mxu0 %v8833
      %8952 = vmatpush.msra.mxu0 %v8832
      %8953 = vmatmul.f32.gmra.mxu0 %v8842
      %v8954 = vpop.f32.mrf.mxu0
      %v8955 = vadd.f32 0.0, %v8954
      %8956 = vmatmul.f32.gmra.mxu0 %v8845
      %v8957 = vpop.f32.mrf.mxu0
      %v8958 = vadd.f32 0.0, %v8957
      %8959 = vmatmul.f32.gmra.mxu0 %v8848
      %v8960 = vpop.f32.mrf.mxu0
      %v8961 = vadd.f32 0.0, %v8960
      %8962 = vmatmul.f32.gmra.mxu0 %v8851
      %v8963 = vpop.f32.mrf.mxu0
      %v8964 = vadd.f32 0.0, %v8963
      %8965 = vmatmul.f32.gmra.mxu0 %v8854
      %v8966 = vpop.f32.mrf.mxu0
      %v8967 = vadd.f32 0.0, %v8966
      %8968 = vmatmul.f32.gmra.mxu0 %v8857
      %v8969 = vpop.f32.mrf.mxu0
      %v8970 = vadd.f32 0.0, %v8969
      %8971 = vmatmul.f32.gmra.mxu0 %v8860
      %v8972 = vpop.f32.mrf.mxu0
      %v8973 = vadd.f32 0.0, %v8972
      %8974 = vmatmul.f32.gmra.mxu0 %v8863
      %v8975 = vpop.f32.mrf.mxu0
      %v8976 = vadd.f32 0.0, %v8975
      %8977 = vmatmul.f32.gmra.mxu0 %v8866
      %v8978 = vpop.f32.mrf.mxu0
      %v8979 = vadd.f32 0.0, %v8978
      %8980 = vmatmul.f32.gmra.mxu0 %v8869
      %v8981 = vpop.f32.mrf.mxu0
      %v8982 = vadd.f32 0.0, %v8981
      %8983 = vmatmul.f32.gmra.mxu0 %v8872
      %v8984 = vpop.f32.mrf.mxu0
      %v8985 = vadd.f32 0.0, %v8984
      %8986 = vmatmul.f32.gmra.mxu0 %v8875
      %v8987 = vpop.f32.mrf.mxu0
      %v8988 = vadd.f32 0.0, %v8987
      %8989 = vmatmul.f32.gmra.mxu0 %v8878
      %v8990 = vpop.f32.mrf.mxu0
      %v8991 = vadd.f32 0.0, %v8990
      %8992 = vmatmul.f32.gmra.mxu0 %v8881
      %v8993 = vpop.f32.mrf.mxu0
      %v8994 = vadd.f32 0.0, %v8993
      %8995 = vmatmul.f32.gmra.mxu0 %v8884
      %v8996 = vpop.f32.mrf.mxu0
      %v8997 = vadd.f32 0.0, %v8996
      %8998 = vmatmul.f32.gmra.mxu0 %v8887
      %v8999 = vpop.f32.mrf.mxu0
      %v9000 = vadd.f32 0.0, %v8999
      %9001 = vmatmul.f32.gmra.mxu0 %v8890
      %v9002 = vpop.f32.mrf.mxu0
      %v9003 = vadd.f32 0.0, %v9002
      %9004 = vmatmul.f32.gmra.mxu0 %v8893
      %v9005 = vpop.f32.mrf.mxu0
      %v9006 = vadd.f32 0.0, %v9005
      %9007 = vmatmul.f32.gmra.mxu0 %v8896
      %v9008 = vpop.f32.mrf.mxu0
      %v9009 = vadd.f32 0.0, %v9008
      %9010 = vmatmul.f32.gmra.mxu0 %v8899
      %v9011 = vpop.f32.mrf.mxu0
      %v9012 = vadd.f32 0.0, %v9011
      %9013 = vmatmul.f32.gmra.mxu0 %v8902
      %v9014 = vpop.f32.mrf.mxu0
      %v9015 = vadd.f32 0.0, %v9014
      %9016 = vmatmul.f32.gmra.mxu0 %v8905
      %v9017 = vpop.f32.mrf.mxu0
      %v9018 = vadd.f32 0.0, %v9017
      %9019 = vmatmul.f32.gmra.mxu0 %v8908
      %v9020 = vpop.f32.mrf.mxu0
      %v9021 = vadd.f32 0.0, %v9020
      %9022 = vmatmul.f32.gmra.mxu0 %v8911
      %v9023 = vpop.f32.mrf.mxu0
      %v9024 = vadd.f32 0.0, %v9023
      %9025 = vmatmul.f32.gmra.mxu0 %v8914
      %v9026 = vpop.f32.mrf.mxu0
      %v9027 = vadd.f32 0.0, %v9026
      %9028 = vmatmul.f32.gmra.mxu0 %v8917
      %v9029 = vpop.f32.mrf.mxu0
      %v9030 = vadd.f32 0.0, %v9029
      %9031 = vmatmul.f32.gmra.mxu0 %v8920
      %v9032 = vpop.f32.mrf.mxu0
      %v9033 = vadd.f32 0.0, %v9032
      %9034 = vmatmul.f32.gmra.mxu0 %v8923
      %v9035 = vpop.f32.mrf.mxu0
      %v9036 = vadd.f32 0.0, %v9035
      %9037 = vmatmul.f32.gmra.mxu0 %v8926
      %v9038 = vpop.f32.mrf.mxu0
      %v9039 = vadd.f32 0.0, %v9038
      %9040 = vmatmul.f32.gmra.mxu0 %v8929
      %v9041 = vpop.f32.mrf.mxu0
      %v9042 = vadd.f32 0.0, %v9041
      %9043 = vmatmul.f32.gmra.mxu0 %v8932
      %v9044 = vpop.f32.mrf.mxu0
      %v9045 = vadd.f32 0.0, %v9044
      %9046 = vmatmul.f32.gmra.mxu0 %v8935
      %v9047 = vpop.f32.mrf.mxu0
      %v9048 = vadd.f32 0.0, %v9047
      %9049 = vdwg.mxu0
      %v9050 = vld [vmem:[%s291] sm:$0xff]
      %v9051 = vld [vmem:[%s291 + $0x8] sm:$0xff]
      %v9052 = vld [vmem:[%s291 + $0x10] sm:$0xff]
      %v9053 = vld [vmem:[%s291 + $0x18] sm:$0xff]
      %v9054 = vld [vmem:[%s291 + $0x20] sm:$0xff]
      %v9055 = vld [vmem:[%s291 + $0x28] sm:$0xff]
      %v9056 = vld [vmem:[%s291 + $0x30] sm:$0xff]
      %v9057 = vld [vmem:[%s291 + $0x38] sm:$0xff]
      %v9058 = vld [vmem:[%s291 + $0x40] sm:$0xff]
      %v9059 = vld [vmem:[%s291 + $0x48] sm:$0xff]
      %v9060 = vld [vmem:[%s291 + $0x50] sm:$0xff]
      %v9061 = vld [vmem:[%s291 + $0x58] sm:$0xff]
      %v9062 = vld [vmem:[%s291 + $0x60] sm:$0xff]
      %v9063 = vld [vmem:[%s291 + $0x68] sm:$0xff]
      %v9064 = vld [vmem:[%s291 + $0x70] sm:$0xff]
      %v9065 = vld [vmem:[%s291 + $0x78] sm:$0xff]
      %v9066 = vld [vmem:[%s291 + $0x80] sm:$0xff]
      %v9067 = vld [vmem:[%s291 + $0x88] sm:$0xff]
      %v9068 = vld [vmem:[%s291 + $0x90] sm:$0xff]
      %v9069 = vld [vmem:[%s291 + $0x98] sm:$0xff]
      %v9070 = vld [vmem:[%s291 + $0xa0] sm:$0xff]
      %v9071 = vld [vmem:[%s291 + $0xa8] sm:$0xff]
      %v9072 = vld [vmem:[%s291 + $0xb0] sm:$0xff]
      %v9073 = vld [vmem:[%s291 + $0xb8] sm:$0xff]
      %v9074 = vld [vmem:[%s291 + $0xc0] sm:$0xff]
      %v9075 = vld [vmem:[%s291 + $0xc8] sm:$0xff]
      %v9076 = vld [vmem:[%s291 + $0xd0] sm:$0xff]
      %v9077 = vld [vmem:[%s291 + $0xd8] sm:$0xff]
      %v9078 = vld [vmem:[%s291 + $0xe0] sm:$0xff]
      %v9079 = vld [vmem:[%s291 + $0xe8] sm:$0xff]
      %v9080 = vld [vmem:[%s291 + $0xf0] sm:$0xff]
      %v9081 = vld [vmem:[%s291 + $0xf8] sm:$0xff]
      %v9082 = vadd.f32 %v8955, %v9050
      %v9083 = vadd.f32 %v8958, %v9051
      %v9084 = vadd.f32 %v8961, %v9052
      %v9085 = vadd.f32 %v8964, %v9053
      %v9086 = vadd.f32 %v8967, %v9054
      %v9087 = vadd.f32 %v8970, %v9055
      %v9088 = vadd.f32 %v8973, %v9056
      %v9089 = vadd.f32 %v8976, %v9057
      %v9090 = vadd.f32 %v8979, %v9058
      %v9091 = vadd.f32 %v8982, %v9059
      %v9092 = vadd.f32 %v8985, %v9060
      %v9093 = vadd.f32 %v8988, %v9061
      %v9094 = vadd.f32 %v8991, %v9062
      %v9095 = vadd.f32 %v8994, %v9063
      %v9096 = vadd.f32 %v8997, %v9064
      %v9097 = vadd.f32 %v9000, %v9065
      %v9098 = vadd.f32 %v9003, %v9066
      %v9099 = vadd.f32 %v9006, %v9067
      %v9100 = vadd.f32 %v9009, %v9068
      %v9101 = vadd.f32 %v9012, %v9069
      %v9102 = vadd.f32 %v9015, %v9070
      %v9103 = vadd.f32 %v9018, %v9071
      %v9104 = vadd.f32 %v9021, %v9072
      %v9105 = vadd.f32 %v9024, %v9073
      %v9106 = vadd.f32 %v9027, %v9074
      %v9107 = vadd.f32 %v9030, %v9075
      %v9108 = vadd.f32 %v9033, %v9076
      %v9109 = vadd.f32 %v9036, %v9077
      %v9110 = vadd.f32 %v9039, %v9078
      %v9111 = vadd.f32 %v9042, %v9079
      %v9112 = vadd.f32 %v9045, %v9080
      %v9113 = vadd.f32 %v9048, %v9081
      %vm9114 = vcmask 130048
      %9115 = vst.msk [vmem:[%s315] sm:$0xff] %vm9114, %v9082
      %9116 = vst.msk [vmem:[%s315 + $0x8] sm:$0xff] %vm9114, %v9083
      %9117 = vst.msk [vmem:[%s315 + $0x10] sm:$0xff] %vm9114, %v9084
      %9118 = vst.msk [vmem:[%s315 + $0x18] sm:$0xff] %vm9114, %v9085
      %9119 = vst.msk [vmem:[%s315 + $0x20] sm:$0xff] %vm9114, %v9086
      %9120 = vst.msk [vmem:[%s315 + $0x28] sm:$0xff] %vm9114, %v9087
      %9121 = vst.msk [vmem:[%s315 + $0x30] sm:$0xff] %vm9114, %v9088
      %9122 = vst.msk [vmem:[%s315 + $0x38] sm:$0xff] %vm9114, %v9089
      %9123 = vst.msk [vmem:[%s315 + $0x40] sm:$0xff] %vm9114, %v9090
      %9124 = vst.msk [vmem:[%s315 + $0x48] sm:$0xff] %vm9114, %v9091
      %9125 = vst.msk [vmem:[%s315 + $0x50] sm:$0xff] %vm9114, %v9092
      %9126 = vst.msk [vmem:[%s315 + $0x58] sm:$0xff] %vm9114, %v9093
      %9127 = vst.msk [vmem:[%s315 + $0x60] sm:$0xff] %vm9114, %v9094
      %9128 = vst.msk [vmem:[%s315 + $0x68] sm:$0xff] %vm9114, %v9095
      %9129 = vst.msk [vmem:[%s315 + $0x70] sm:$0xff] %vm9114, %v9096
      %9130 = vst.msk [vmem:[%s315 + $0x78] sm:$0xff] %vm9114, %v9097
      %9131 = vst.msk [vmem:[%s315 + $0x80] sm:$0xff] %vm9114, %v9098
      %9132 = vst.msk [vmem:[%s315 + $0x88] sm:$0xff] %vm9114, %v9099
      %9133 = vst.msk [vmem:[%s315 + $0x90] sm:$0xff] %vm9114, %v9100
      %9134 = vst.msk [vmem:[%s315 + $0x98] sm:$0xff] %vm9114, %v9101
      %9135 = vst.msk [vmem:[%s315 + $0xa0] sm:$0xff] %vm9114, %v9102
      %9136 = vst.msk [vmem:[%s315 + $0xa8] sm:$0xff] %vm9114, %v9103
      %9137 = vst.msk [vmem:[%s315 + $0xb0] sm:$0xff] %vm9114, %v9104
      %9138 = vst.msk [vmem:[%s315 + $0xb8] sm:$0xff] %vm9114, %v9105
      %9139 = vst.msk [vmem:[%s315 + $0xc0] sm:$0xff] %vm9114, %v9106
      %9140 = vst.msk [vmem:[%s315 + $0xc8] sm:$0xff] %vm9114, %v9107
      %9141 = vst.msk [vmem:[%s315 + $0xd0] sm:$0xff] %vm9114, %v9108
      %9142 = vst.msk [vmem:[%s315 + $0xd8] sm:$0xff] %vm9114, %v9109
      %9143 = vst.msk [vmem:[%s315 + $0xe0] sm:$0xff] %vm9114, %v9110
      %9144 = vst.msk [vmem:[%s315 + $0xe8] sm:$0xff] %vm9114, %v9111
      %9145 = vst.msk [vmem:[%s315 + $0xf0] sm:$0xff] %vm9114, %v9112
      %9146 = vst.msk [vmem:[%s315 + $0xf8] sm:$0xff] %vm9114, %v9113
      %p9147 = scmp.lt.s32.totalorder %s20, 1
      %s9148 = scalar_select %p9147, %s20, 1
      %p9149 = scmp.lt.s32.totalorder %s21, 1
      %s9150 = scalar_select %p9149, %s21, 1
      %s9151 = smul.addr %s9150, 32
      %s9152 = smul.addr %s9148, 64
      %s9153 = sadd.s32 %s9151, %s9152
      %s9154 = smul.addr %s9153, 8
      %s9155 = scalar_lea.vmem %s5, %s9154
      // Predicated region
      $region53: #{fab_forward.3} parent=39 // pred_check
        %p9156 = pneg %p173
      $region54: #{fab_forward.3} parent=39 // pred_check_branch
        %9158 = sbr.rel (%p9156) target = $region56
      $region55: #{fab_forward.3} parent=39 // pred_region
        _
      $region56: #{fab_forward.3} parent=39 // pred_fallthru
        _
    $region40: #{fab_forward.3} parent=5 // pred_fallthru
      _
    %p9159 = scmp.le.s32.totalorder 2, %s11
    // Predicated region
    $region57: #{fab_forward.3} parent=5 // pred_check
      %p9160 = pneg %p9159
    $region58: #{fab_forward.3} parent=5 // pred_check_branch
      %9162 = sbr.rel (%p9160) target = $region60
    $region59: #{fab_forward.3} parent=5 // pred_region
      %s9163 = ssub.s32 %s11, 2
      // Predicated region
      $region61: #{fab_forward.3} parent=59 // pred_check
        %p9164 = pneg %p179
      $region62: #{fab_forward.3} parent=59 // pred_check_branch
        %9166 = sbr.rel (%p9164) target = $region64
      $region63: #{fab_forward.3} parent=59 // pred_region
        %p9167 = scmp.lt.s32.totalorder %s22, 1
        %s9168 = scalar_select %p9167, %s22, 1
        %p9169 = scmp.lt.s32.totalorder %s23, 1
        %s9170 = scalar_select %p9169, %s23, 1
        %s9171 = smul.addr %s9170, 32
        %s9172 = smul.addr %s9168, 64
        %s9173 = sadd.s32 %s9171, %s9172
        %s9174 = smul.addr %s9173, 8
        %s9175 = scalar_lea.vmem %s5, %s9174
      $region64: #{fab_forward.3} parent=59 // pred_fallthru
        _
    $region60: #{fab_forward.3} parent=5 // pred_fallthru
      _
  $region6: #{fab_forward.3} parent=0 // loop_footer
    %s15 = sadd.s32 1, %s11
  $region7: #{fab_forward.3} parent=0 // loop_footer_branch
    %10 = sbr.rel target = $region3
  $region8: #{fab_forward.3} parent=0 // loop_exit
    _

</llo_original>
